<compile_context>
chip_gen: v7x
topology: tpu7x:2x2x1
jax: 0.10.0
libtpu: 0.0.40
codegen_flags: <defaults>
</compile_context>

<pallas_src>
import functools
import math

import jax
import jax.numpy as jnp
from jax.experimental import pallas as pl
from jax.experimental.pallas import tpu as pltpu


# ----------------------------- in-kernel helpers -----------------------------

def _gelu(x):
    # TODO(synk): PyTorch nn.GELU() is erf-exact; tanh approximation is used here
    # because lax.erf is not guaranteed to lower through Mosaic.
    c = math.sqrt(2.0 / math.pi)
    return 0.5 * x * (1.0 + jnp.tanh(c * (x + 0.044715 * x * x * x)))


def _layer_norm(x, g, b, eps):
    mu = jnp.mean(x, axis=-1, keepdims=True)
    var = jnp.mean(jnp.square(x - mu), axis=-1, keepdims=True)
    return (x - mu) * jax.lax.rsqrt(var + eps) * g + b


def _sigmoid(x):
    # Exact sigmoid (final head output only, negligible cost; keeps out in [0,1]).
    return 1.0 / (1.0 + jnp.exp(-x))


def _mm(a, w, b):
    # bf16 x bf16 on the MXU, f32 accumulation, f32 bias add.
    return jnp.dot(a.astype(jnp.bfloat16), w,
                   preferred_element_type=jnp.float32) + b


# ------------------------------ fused kernel ----------------------------------

def _fused_detector_kernel(
        # inputs (shared, loaded once: constant block index)
        scale_ref, mask_ref, patches_ref, pw_ref, pb_ref, cls_ref, pos_ref,
        # inputs (stacked per-layer, streamed one layer per grid step)
        ln1g_ref, ln1b_ref, wqkv_ref, bqkv_ref, wo_ref, bo_ref,
        ln2g_ref, ln2b_ref, w1_ref, b1_ref, w2_ref, b2_ref,
        # inputs (head, loaded once)
        lnfg_ref, lnfb_ref,
        cw1_ref, cb1_ref, cg1_ref, cgb1_ref,
        cw2_ref, cb2_ref, cg2_ref, cgb2_ref,
        cw3_ref, cb3_ref,
        # output
        o_ref,
        # scratch: resident token activations for this batch block
        tok_ref,
        *, b_tile, n_real, t_pad, hidden):
    D = hidden
    layer = pl.program_id(1)
    n_layers = pl.num_programs(1)
    pdim = patches_ref.shape[-1]

    # -------- grid step 0: scale + patch embed + token assembly --------------
    @pl.when(layer == 0)
    def _init_tokens():
        # patches are pre-padded to t_pad rows (row 0 / pad rows are zeros), so
        # the embed matmul has M = b_tile * t_pad aligned rows and the result
        # lands with ONE full-tile store (no offset-1 sublane slice writes).
        p = patches_ref[...].reshape(b_tile * t_pad, pdim)
        # `if x.max() > 1.0: x = x / 255.0` — scalar multiplier selected in the
        # wrapper from the GLOBAL batch max (matches torch x.max() semantics).
        p = p * scale_ref[0, 0]
        emb = _mm(p, pw_ref[...], pb_ref[...]).reshape(b_tile, t_pad, D)
        row = jax.lax.broadcasted_iota(jnp.int32, (b_tile, t_pad, D), 1)
        tok = jnp.where(row == 0, cls_ref[...], emb)           # CLS into row 0
        tok_ref[...] = tok + pos_ref[...]                      # single full store

    # -------- one pre-LN transformer block on the full batch block -----------
    # TODO(synk): ViTMAEModel additionally applies 75% random patch masking and
    # is multi-head; this synthetic stand-in encoder keeps all tokens and uses
    # a single head (pretrained checkpoint cannot be loaded here).
    x = tok_ref[...].reshape(b_tile * t_pad, D)                # (M, D) f32

    h = _layer_norm(x, ln1g_ref[0], ln1b_ref[0], eps=1e-12)
    qkv = _mm(h, wqkv_ref[0], bqkv_ref[0])                     # (M, 3D)
    q = qkv[:, 0:D].reshape(b_tile, t_pad, D)
    k = qkv[:, D:2 * D].reshape(b_tile, t_pad, D)
    v = qkv[:, 2 * D:3 * D].reshape(b_tile, t_pad, D)

    scores = jnp.einsum('bqd,bkd->bqk',
                        q.astype(jnp.bfloat16), k.astype(jnp.bfloat16),
                        preferred_element_type=jnp.float32)
    # additive key-pad mask (0 / -1e30) is a resident constant: one VPU add.
    scores = scores * (1.0 / math.sqrt(D)) + mask_ref[...]
    scores = scores - jnp.max(scores, axis=-1, keepdims=True)
    p_attn = jnp.exp(scores)
    p_attn = p_attn * pl.reciprocal(
        jnp.sum(p_attn, axis=-1, keepdims=True), approx=True)
    ctx = jnp.einsum('bqk,bkd->bqd',
                     p_attn.astype(jnp.bfloat16), v.astype(jnp.bfloat16),
                     preferred_element_type=jnp.float32)       # (b, T, D)

    attn = _mm(ctx.reshape(b_tile * t_pad, D), wo_ref[0], bo_ref[0])
    x = x + attn

    h2 = _layer_norm(x, ln2g_ref[0], ln2b_ref[0], eps=1e-12)
    m = _gelu(_mm(h2, w1_ref[0], b1_ref[0]))
    m = _mm(m, w2_ref[0], b2_ref[0])

    new_tok = (x + m).reshape(b_tile, t_pad, D)
    tok_ref[...] = new_tok

    # -------- last grid step: final LN + classifier head + sigmoid -----------
    @pl.when(layer == n_layers - 1)
    def _head():
        cls_tok = new_tok[:, 0, :]                             # (b_tile, D)
        h = _layer_norm(cls_tok, lnfg_ref[...], lnfb_ref[...], eps=1e-12)
        h = _gelu(_mm(h, cw1_ref[...], cb1_ref[...]))
        h = _layer_norm(h, cg1_ref[...], cgb1_ref[...], eps=1e-5)   # Dropout(0.2) -> identity (eval)
        h = _gelu(_mm(h, cw2_ref[...], cb2_ref[...]))
        h = _layer_norm(h, cg2_ref[...], cgb2_ref[...], eps=1e-5)   # Dropout(0.1) -> identity (eval)
        logits = _mm(h, cw3_ref[...], cb3_ref[...])            # (b_tile, 2)
        o_ref[...] = _sigmoid(logits[:, 1:2])                  # sigmoid(logits[:, 1]).unsqueeze(1)


# ------------------------------- JAX wrapper -----------------------------------

def detector_forward(x, params):
    # ---- input-format fixup mirroring Detector.forward (shape-only glue) ----
    if x.ndim == 4:
        if x.shape[1] != 3:
            if x.shape[3] == 3:
                x = jnp.transpose(x, (0, 3, 1, 2))
            elif x.shape[2] == 3:
                x = jnp.transpose(x, (0, 2, 1, 3))
    elif x.ndim == 3:
        if x.shape[0] == 3:
            x = x[None]
        elif x.shape[2] == 3:
            x = jnp.transpose(x, (2, 0, 1))[None]
    assert x.ndim == 4 and x.shape[1] == 3, f"bad input shape {x.shape}"
    B, C, H, W = x.shape
    x = x.astype(jnp.float32)

    patch = params['patch']
    D = params['hidden']
    t_pad = params['t_pad']
    hp, wp = H // patch, W // patch
    n_patch = hp * wp
    n_real = n_patch + 1
    patch_dim = C * patch * patch
    depth = params['wqkv'].shape[0]
    d_mlp = params['w1'].shape[-1]

    # global-max scaling decision (matches torch `if x.max() > 1.0: x /= 255.`)
    px_scale = jnp.where(jnp.max(x) > 1.0,
                         jnp.float32(1.0 / 255.0),
                         jnp.float32(1.0)).reshape(1, 1)

    # additive key-pad mask: 0 for real tokens, -1e30 for pad tokens
    attn_bias = jnp.where(jnp.arange(t_pad) < n_real, 0.0, -1e30)
    attn_bias = attn_bias.astype(jnp.float32).reshape(1, 1, t_pad)

    # TODO(synk): patch extraction kept as XLA layout glue (negligible at 32x32;
    # at production sizes it should be folded into the kernel via an index_map).
    patches = x.reshape(B, C, hp, patch, wp, patch)
    patches = jnp.transpose(patches, (0, 2, 4, 1, 3, 5)).reshape(B, n_patch, patch_dim)
    # pre-pad to t_pad token rows (row 0 reserved for CLS, tail rows are pad)
    patches = jnp.pad(patches, ((0, 0), (1, t_pad - n_real), (0, 0)))

    # batch blocking: sublane rule requires b_tile % 8 == 0 or b_tile == B.
    b_tile = 8 if (B % 8 == 0 and B >= 8) else B
    n_bblk = B // b_tile

    def const_spec(a):
        zeros = (0,) * a.ndim
        return pl.BlockSpec(a.shape, lambda b, l, z=zeros: z)

    def layer_spec(a):
        trailing = (0,) * (a.ndim - 1)
        return pl.BlockSpec((1,) + a.shape[1:], lambda b, l, t=trailing: (l,) + t)

    patches_spec = pl.BlockSpec((b_tile, t_pad, patch_dim), lambda b, l: (b, 0, 0))

    shared_in = [px_scale, attn_bias, patches, params['patch_w'], params['patch_b'],
                 params['cls_token'], params['pos_embed']]
    shared_specs = [const_spec(px_scale), const_spec(attn_bias), patches_spec,
                    const_spec(params['patch_w']), const_spec(params['patch_b']),
                    const_spec(params['cls_token']), const_spec(params['pos_embed'])]

    layer_in = [params['ln1_g'], params['ln1_b'], params['wqkv'], params['bqkv'],
                params['wo'], params['bo'], params['ln2_g'], params['ln2_b'],
                params['w1'], params['b1'], params['w2'], params['b2']]
    head_in = [params['lnf_g'], params['lnf_b'],
               params['c_w1'], params['c_b1'], params['c_ln1_g'], params['c_ln1_b'],
               params['c_w2'], params['c_b2'], params['c_ln2_g'], params['c_ln2_b'],
               params['c_w3'], params['c_b3']]

    in_specs = (shared_specs
                + [layer_spec(a) for a in layer_in]
                + [const_spec(a) for a in head_in])

    kernel = functools.partial(_fused_detector_kernel,
                               b_tile=b_tile, n_real=n_real, t_pad=t_pad, hidden=D)

    # ---- advisory cost estimate so XLA schedules surrounding glue sensibly ----
    m_tot = B * t_pad
    flops_layer = (2 * m_tot * D * (3 * D)        # QKV
                   + 2 * 2 * B * t_pad * t_pad * D  # scores + ctx
                   + 2 * m_tot * D * D             # out proj
                   + 2 * 2 * m_tot * D * d_mlp)    # MLP
    flops = (depth * flops_layer
             + 2 * m_tot * patch_dim * D
             + 2 * B * (D * 768 + 768 * 384 + 384 * 2))
    transcend = depth * (B * t_pad * t_pad + m_tot * d_mlp) + B * (768 + 384 + 1)
    all_inputs = shared_in + layer_in + head_in
    bytes_accessed = sum(int(a.size) * a.dtype.itemsize for a in all_inputs) + B * 4
    cost = pl.CostEstimate(flops=int(flops), transcendentals=int(transcend),
                           bytes_accessed=int(bytes_accessed))

    # TODO(synk): at real ViT-MAE-large size (D=1024, MLP=4096, 24 layers) the
    # per-layer weight blocks must additionally be N-tiled on v7x (64 MiB VMEM);
    # at this size whole-layer blocks fit easily.
    out = pl.pallas_call(
        kernel,
        out_shape=jax.ShapeDtypeStruct((B, 1), jnp.float32),
        grid=(n_bblk, depth),
        in_specs=in_specs,
        out_specs=pl.BlockSpec((b_tile, 1), lambda b, l: (b, 0)),
        scratch_shapes=[pltpu.VMEM((b_tile, t_pad, D), jnp.float32)],
        compiler_params=pltpu.CompilerParams(
            dimension_semantics=("parallel", "arbitrary"),
            # well below v7x's 64 MiB physical VMEM; plenty for this size
            vmem_limit_bytes=48 * 1024 * 1024),
        cost_estimate=cost,
    )(*shared_in, *layer_in, *head_in)
    return out


# ------------------------------ parameter init --------------------------------

def init_params(key, *, hidden=128, patch=8, img=32, depth=2, mlp_ratio=4):
    f32, bf16 = jnp.float32, jnp.bfloat16

    def normal(k, shape, dtype=bf16, scale=0.02):
        return (scale * jax.random.normal(k, shape, f32)).astype(dtype)

    n_patch = (img // patch) ** 2
    n_real = n_patch + 1
    t_pad = ((n_real + 31) // 32) * 32       # pad token count to 32 (bf16 sublane alignment)
    patch_dim = 3 * patch * patch
    keys = jax.random.split(key, 16)

    params = {
        'patch': patch, 'hidden': hidden, 't_pad': t_pad,
        'patch_w': normal(keys[0], (patch_dim, hidden)),
        'patch_b': jnp.zeros((1, hidden), f32),
        'cls_token': normal(keys[1], (1, 1, hidden), dtype=f32),
        'pos_embed': normal(keys[2], (1, t_pad, hidden), dtype=f32),
        'lnf_g': jnp.ones((1, hidden), f32),
        'lnf_b': jnp.zeros((1, hidden), f32),
        # classifier: Linear(hidden,768) GELU LN(768) Drop Linear(768,384) GELU LN(384) Drop Linear(384,2)
        'c_w1': normal(keys[3], (hidden, 768)),
        'c_b1': jnp.zeros((1, 768), f32),
        'c_ln1_g': jnp.ones((1, 768), f32),
        'c_ln1_b': jnp.zeros((1, 768), f32),
        'c_w2': normal(keys[4], (768, 384)),
        'c_b2': jnp.zeros((1, 384), f32),
        'c_ln2_g': jnp.ones((1, 384), f32),
        'c_ln2_b': jnp.zeros((1, 384), f32),
        'c_w3': normal(keys[5], (384, 2)),
        'c_b3': jnp.zeros((1, 2), f32),
    }

    lk = jax.random.split(keys[6], depth * 4)
    params.update({
        # per-layer weights stacked along a leading depth axis
        'ln1_g': jnp.ones((depth, 1, hidden), f32),
        'ln1_b': jnp.zeros((depth, 1, hidden), f32),
        'wqkv': jnp.stack([normal(lk[i * 4 + 0], (hidden, 3 * hidden)) for i in range(depth)]),
        'bqkv': jnp.zeros((depth, 1, 3 * hidden), f32),
        'wo': jnp.stack([normal(lk[i * 4 + 1], (hidden, hidden)) for i in range(depth)]),
        'bo': jnp.zeros((depth, 1, hidden), f32),
        'ln2_g': jnp.ones((depth, 1, hidden), f32),
        'ln2_b': jnp.zeros((depth, 1, hidden), f32),
        'w1': jnp.stack([normal(lk[i * 4 + 2], (hidden, mlp_ratio * hidden)) for i in range(depth)]),
        'b1': jnp.zeros((depth, 1, mlp_ratio * hidden), f32),
        'w2': jnp.stack([normal(lk[i * 4 + 3], (mlp_ratio * hidden, hidden)) for i in range(depth)]),
        'b2': jnp.zeros((depth, 1, hidden), f32),
    })
    return params


# ----------------------------------- main --------------------------------------

if __name__ == "__main__":
    key = jax.random.PRNGKey(0)
    k_x, k_p = jax.random.split(key)
    # B=16 so M = B*t_pad = 512 rows feed the MXU (two batch blocks -> v7x
    # megacore gets parallel work); uint8-range pixels exercise the /255 branch.
    x = jax.random.uniform(k_x, (16, 3, 32, 32), dtype=jnp.float32,
                           minval=0.0, maxval=255.0)
    params = init_params(k_p)

    out = detector_forward(x, params)
    out = jax.block_until_ready(out)

    assert out.shape == (16, 1), out.shape
    assert out.dtype == jnp.float32, out.dtype
    assert bool(jnp.all((out >= 0.0) & (out <= 1.0)))
    print("KERNEL_OK")
</pallas_src>

<mosaic_0001>
module attributes {stable_mosaic.version = 11 : i64} {
  func.func @_fused_detector_kernel(%arg0: i32, %arg1: i32, %arg2: memref<1x1xf32, #tpu.memory_space<vmem>>, %arg3: memref<1x1x32xf32, #tpu.memory_space<vmem>>, %arg4: memref<8x32x192xf32, #tpu.memory_space<vmem>>, %arg5: memref<192x128xbf16, #tpu.memory_space<vmem>>, %arg6: memref<1x128xf32, #tpu.memory_space<vmem>>, %arg7: memref<1x1x128xf32, #tpu.memory_space<vmem>>, %arg8: memref<1x32x128xf32, #tpu.memory_space<vmem>>, %arg9: memref<1x1x128xf32, #tpu.memory_space<vmem>>, %arg10: memref<1x1x128xf32, #tpu.memory_space<vmem>>, %arg11: memref<1x128x384xbf16, #tpu.memory_space<vmem>>, %arg12: memref<1x1x384xf32, #tpu.memory_space<vmem>>, %arg13: memref<1x128x128xbf16, #tpu.memory_space<vmem>>, %arg14: memref<1x1x128xf32, #tpu.memory_space<vmem>>, %arg15: memref<1x1x128xf32, #tpu.memory_space<vmem>>, %arg16: memref<1x1x128xf32, #tpu.memory_space<vmem>>, %arg17: memref<1x128x512xbf16, #tpu.memory_space<vmem>>, %arg18: memref<1x1x512xf32, #tpu.memory_space<vmem>>, %arg19: memref<1x512x128xbf16, #tpu.memory_space<vmem>>, %arg20: memref<1x1x128xf32, #tpu.memory_space<vmem>>, %arg21: memref<1x128xf32, #tpu.memory_space<vmem>>, %arg22: memref<1x128xf32, #tpu.memory_space<vmem>>, %arg23: memref<128x768xbf16, #tpu.memory_space<vmem>>, %arg24: memref<1x768xf32, #tpu.memory_space<vmem>>, %arg25: memref<1x768xf32, #tpu.memory_space<vmem>>, %arg26: memref<1x768xf32, #tpu.memory_space<vmem>>, %arg27: memref<768x384xbf16, #tpu.memory_space<vmem>>, %arg28: memref<1x384xf32, #tpu.memory_space<vmem>>, %arg29: memref<1x384xf32, #tpu.memory_space<vmem>>, %arg30: memref<1x384xf32, #tpu.memory_space<vmem>>, %arg31: memref<384x2xbf16, #tpu.memory_space<vmem>>, %arg32: memref<1x2xf32, #tpu.memory_space<vmem>>, %arg33: memref<8x1xf32, #tpu.memory_space<vmem>>, %arg34: memref<8x32x128xf32, #tpu.memory_space<vmem>>) attributes {dimension_semantics = [#tpu.dimension_semantics<parallel>, #tpu.dimension_semantics<arbitrary>], iteration_bounds = array<i64: 2, 2>, scalar_prefetch = 0 : i64, scratch_operands = 1 : i64, tpu.core_type = #tpu.core_type<tc>, window_params = [{pipeline_mode = #tpu.pipeline_mode<synchronous>, transform_indices = @transform_0, window_bounds = array<i64: 1, 1>}, {pipeline_mode = #tpu.pipeline_mode<synchronous>, transform_indices = @transform_1, window_bounds = array<i64: 1, 1, 32>}, {transform_indices = @transform_2, window_bounds = array<i64: 8, 32, 192>}, {pipeline_mode = #tpu.pipeline_mode<synchronous>, transform_indices = @transform_3, window_bounds = array<i64: 192, 128>}, {pipeline_mode = #tpu.pipeline_mode<synchronous>, transform_indices = @transform_4, window_bounds = array<i64: 1, 128>}, {pipeline_mode = #tpu.pipeline_mode<synchronous>, transform_indices = @transform_5, window_bounds = array<i64: 1, 1, 128>}, {pipeline_mode = #tpu.pipeline_mode<synchronous>, transform_indices = @transform_6, window_bounds = array<i64: 1, 32, 128>}, {transform_indices = @transform_7, window_bounds = array<i64: 1, 1, 128>}, {transform_indices = @transform_8, window_bounds = array<i64: 1, 1, 128>}, {transform_indices = @transform_9, window_bounds = array<i64: 1, 128, 384>}, {transform_indices = @transform_10, window_bounds = array<i64: 1, 1, 384>}, {transform_indices = @transform_11, window_bounds = array<i64: 1, 128, 128>}, {transform_indices = @transform_12, window_bounds = array<i64: 1, 1, 128>}, {transform_indices = @transform_13, window_bounds = array<i64: 1, 1, 128>}, {transform_indices = @transform_14, window_bounds = array<i64: 1, 1, 128>}, {transform_indices = @transform_15, window_bounds = array<i64: 1, 128, 512>}, {transform_indices = @transform_16, window_bounds = array<i64: 1, 1, 512>}, {transform_indices = @transform_17, window_bounds = array<i64: 1, 512, 128>}, {transform_indices = @transform_18, window_bounds = array<i64: 1, 1, 128>}, {pipeline_mode = #tpu.pipeline_mode<synchronous>, transform_indices = @transform_19, window_bounds = array<i64: 1, 128>}, {pipeline_mode = #tpu.pipeline_mode<synchronous>, transform_indices = @transform_20, window_bounds = array<i64: 1, 128>}, {pipeline_mode = #tpu.pipeline_mode<synchronous>, transform_indices = @transform_21, window_bounds = array<i64: 128, 768>}, {pipeline_mode = #tpu.pipeline_mode<synchronous>, transform_indices = @transform_22, window_bounds = array<i64: 1, 768>}, {pipeline_mode = #tpu.pipeline_mode<synchronous>, transform_indices = @transform_23, window_bounds = array<i64: 1, 768>}, {pipeline_mode = #tpu.pipeline_mode<synchronous>, transform_indices = @transform_24, window_bounds = array<i64: 1, 768>}, {pipeline_mode = #tpu.pipeline_mode<synchronous>, transform_indices = @transform_25, window_bounds = array<i64: 768, 384>}, {pipeline_mode = #tpu.pipeline_mode<synchronous>, transform_indices = @transform_26, window_bounds = array<i64: 1, 384>}, {pipeline_mode = #tpu.pipeline_mode<synchronous>, transform_indices = @transform_27, window_bounds = array<i64: 1, 384>}, {pipeline_mode = #tpu.pipeline_mode<synchronous>, transform_indices = @transform_28, window_bounds = array<i64: 1, 384>}, {pipeline_mode = #tpu.pipeline_mode<synchronous>, transform_indices = @transform_29, window_bounds = array<i64: 384, 2>}, {pipeline_mode = #tpu.pipeline_mode<synchronous>, transform_indices = @transform_30, window_bounds = array<i64: 1, 2>}, {transform_indices = @transform_31, window_bounds = array<i64: 8, 1>}]} {
    %c0_i32 = arith.constant 0 : i32
    %0 = arith.cmpi eq, %arg1, %c0_i32 : i32
    %1 = arith.extui %0 : i1 to i32
    %c0_i32_0 = arith.constant 0 : i32
    %2 = arith.cmpi ne, %1, %c0_i32_0 : i32
    scf.if %2 {
      %c0_68 = arith.constant 0 : index
      %c0_69 = arith.constant 0 : index
      %c0_70 = arith.constant 0 : index
      %137 = vector.load %arg4[%c0_68, %c0_69, %c0_70] : memref<8x32x192xf32, #tpu.memory_space<vmem>>, vector<8x32x192xf32>
      %138 = vector.shape_cast %137 : vector<8x32x192xf32> to vector<256x192xf32>
      %c0_71 = arith.constant 0 : index
      %c0_72 = arith.constant 0 : index
      %139 = vector.load %arg2[%c0_71, %c0_72] : memref<1x1xf32, #tpu.memory_space<vmem>>, vector<1x1xf32>
      %140 = vector.extract %139[0, 0] : f32 from vector<1x1xf32>
      %141 = vector.broadcast %140 : f32 to vector<256x192xf32>
      %142 = arith.mulf %138, %141 : vector<256x192xf32>
      %c0_73 = arith.constant 0 : index
      %c0_74 = arith.constant 0 : index
      %143 = vector.load %arg5[%c0_73, %c0_74] : memref<192x128xbf16, #tpu.memory_space<vmem>>, vector<192x128xbf16>
      %c0_75 = arith.constant 0 : index
      %c0_76 = arith.constant 0 : index
      %144 = vector.load %arg6[%c0_75, %c0_76] : memref<1x128xf32, #tpu.memory_space<vmem>>, vector<1x128xf32>
      %145 = arith.truncf %142 : vector<256x192xf32> to vector<256x192xbf16>
      %cst_77 = arith.constant dense<0.000000e+00> : vector<256x128xf32>
      %146 = tpu.matmul %145, %143, %cst_77 {dimension_numbers = #tpu.dot_dimension_numbers<[1], [0], [0], [1], [0, 0, 1, 1], [], []>} : vector<256x192xbf16>, vector<192x128xbf16>, vector<256x128xf32> -> vector<256x128xf32>
      %147 = vector.broadcast %144 : vector<1x128xf32> to vector<256x128xf32>
      %148 = arith.addf %146, %147 : vector<256x128xf32>
      %149 = vector.shape_cast %148 : vector<256x128xf32> to vector<8x32x128xf32>
      %150 = tpu.iota {dimensions = array<i32: 1>} : vector<8x32x128xi32>
      %c0_i32_78 = arith.constant 0 : i32
      %151 = vector.broadcast %c0_i32_78 : i32 to vector<8x32x128xi32>
      %152 = arith.cmpi eq, %150, %151 : vector<8x32x128xi32>
      %c0_79 = arith.constant 0 : index
      %c0_80 = arith.constant 0 : index
      %c0_81 = arith.constant 0 : index
      %153 = vector.load %arg7[%c0_79, %c0_80, %c0_81] : memref<1x1x128xf32, #tpu.memory_space<vmem>>, vector<1x1x128xf32>
      %154 = vector.shape_cast %153 : vector<1x1x128xf32> to vector<1x1x128xf32>
      %155 = vector.broadcast %154 : vector<1x1x128xf32> to vector<8x32x128xf32>
      %156 = arith.select %152, %155, %149 : vector<8x32x128xi1>, vector<8x32x128xf32>
      %c0_82 = arith.constant 0 : index
      %c0_83 = arith.constant 0 : index
      %c0_84 = arith.constant 0 : index
      %157 = vector.load %arg8[%c0_82, %c0_83, %c0_84] : memref<1x32x128xf32, #tpu.memory_space<vmem>>, vector<1x32x128xf32>
      %158 = vector.broadcast %157 : vector<1x32x128xf32> to vector<8x32x128xf32>
      %159 = arith.addf %156, %158 : vector<8x32x128xf32>
      %c0_85 = arith.constant 0 : index
      %c0_86 = arith.constant 0 : index
      %c0_87 = arith.constant 0 : index
      %160 = vector.load %arg34[%c0_85, %c0_86, %c0_87] : memref<8x32x128xf32, #tpu.memory_space<vmem>>, vector<8x32x128xf32>
      tpu.vector_store %arg34[%c0_85, %c0_86, %c0_87], %159 {strides = array<i32>} : memref<8x32x128xf32, #tpu.memory_space<vmem>>, vector<8x32x128xf32>,
    } else {
    }
    %c0 = arith.constant 0 : index
    %c0_1 = arith.constant 0 : index
    %c0_2 = arith.constant 0 : index
    %3 = vector.load %arg34[%c0, %c0_1, %c0_2] : memref<8x32x128xf32, #tpu.memory_space<vmem>>, vector<8x32x128xf32>
    %4 = vector.shape_cast %3 : vector<8x32x128xf32> to vector<256x128xf32>
    %c0_3 = arith.constant 0 : index
    %c0_4 = arith.constant 0 : index
    %c0_5 = arith.constant 0 : index
    %5 = vector.load %arg9[%c0_3, %c0_4, %c0_5] : memref<1x1x128xf32, #tpu.memory_space<vmem>>, vector<1x1x128xf32>
    %6 = vector.shape_cast %5 : vector<1x1x128xf32> to vector<1x128xf32>
    %c0_6 = arith.constant 0 : index
    %c0_7 = arith.constant 0 : index
    %c0_8 = arith.constant 0 : index
    %7 = vector.load %arg10[%c0_6, %c0_7, %c0_8] : memref<1x1x128xf32, #tpu.memory_space<vmem>>, vector<1x1x128xf32>
    %8 = vector.shape_cast %7 : vector<1x1x128xf32> to vector<1x128xf32>
    %cst = arith.constant dense<0.000000e+00> : vector<256xf32>
    %9 = vector.multi_reduction <add>, %4, %cst [1] : vector<256x128xf32> to vector<256xf32>
    %10 = vector.shape_cast %9 : vector<256xf32> to vector<256x1xf32>
    %cst_9 = arith.constant 1.280000e+02 : f32
    %11 = vector.broadcast %cst_9 : f32 to vector<256x1xf32>
    %12 = arith.divf %10, %11 : vector<256x1xf32>
    %13 = vector.broadcast %12 : vector<256x1xf32> to vector<256x128xf32>
    %14 = arith.subf %4, %13 : vector<256x128xf32>
    %15 = arith.mulf %14, %14 : vector<256x128xf32>
    %cst_10 = arith.constant dense<0.000000e+00> : vector<256xf32>
    %16 = vector.multi_reduction <add>, %15, %cst_10 [1] : vector<256x128xf32> to vector<256xf32>
    %17 = vector.shape_cast %16 : vector<256xf32> to vector<256x1xf32>
    %cst_11 = arith.constant 1.280000e+02 : f32
    %18 = vector.broadcast %cst_11 : f32 to vector<256x1xf32>
    %19 = arith.divf %17, %18 : vector<256x1xf32>
    %20 = vector.broadcast %12 : vector<256x1xf32> to vector<256x128xf32>
    %21 = arith.subf %4, %20 : vector<256x128xf32>
    %cst_12 = arith.constant 9.99999996E-13 : f32
    %22 = vector.broadcast %cst_12 : f32 to vector<256x1xf32>
    %23 = arith.addf %19, %22 : vector<256x1xf32>
    %24 = math.rsqrt %23 : vector<256x1xf32>
    %25 = vector.broadcast %24 : vector<256x1xf32> to vector<256x128xf32>
    %26 = arith.mulf %21, %25 : vector<256x128xf32>
    %27 = vector.broadcast %6 : vector<1x128xf32> to vector<256x128xf32>
    %28 = arith.mulf %26, %27 : vector<256x128xf32>
    %29 = vector.broadcast %8 : vector<1x128xf32> to vector<256x128xf32>
    %30 = arith.addf %28, %29 : vector<256x128xf32>
    %c0_13 = arith.constant 0 : index
    %c0_14 = arith.constant 0 : index
    %c0_15 = arith.constant 0 : index
    %31 = vector.load %arg11[%c0_13, %c0_14, %c0_15] : memref<1x128x384xbf16, #tpu.memory_space<vmem>>, vector<1x128x384xbf16>
    %32 = vector.shape_cast %31 : vector<1x128x384xbf16> to vector<128x384xbf16>
    %c0_16 = arith.constant 0 : index
    %c0_17 = arith.constant 0 : index
    %c0_18 = arith.constant 0 : index
    %33 = vector.load %arg12[%c0_16, %c0_17, %c0_18] : memref<1x1x384xf32, #tpu.memory_space<vmem>>, vector<1x1x384xf32>
    %34 = vector.shape_cast %33 : vector<1x1x384xf32> to vector<1x384xf32>
    %35 = arith.truncf %30 : vector<256x128xf32> to vector<256x128xbf16>
    %cst_19 = arith.constant dense<0.000000e+00> : vector<256x384xf32>
    %36 = tpu.matmul %35, %32, %cst_19 {dimension_numbers = #tpu.dot_dimension_numbers<[1], [0], [0], [1], [0, 0, 1, 1], [], []>} : vector<256x128xbf16>, vector<128x384xbf16>, vector<256x384xf32> -> vector<256x384xf32>
    %37 = vector.broadcast %34 : vector<1x384xf32> to vector<256x384xf32>
    %38 = arith.addf %36, %37 : vector<256x384xf32>
    %39 = vector.extract_strided_slice %38 {offsets = [0, 0], sizes = [256, 128], strides = [1, 1]} : vector<256x384xf32> to vector<256x128xf32>
    %40 = vector.shape_cast %39 : vector<256x128xf32> to vector<8x32x128xf32>
    %41 = vector.extract_strided_slice %38 {offsets = [0, 128], sizes = [256, 128], strides = [1, 1]} : vector<256x384xf32> to vector<256x128xf32>
    %42 = vector.shape_cast %41 : vector<256x128xf32> to vector<8x32x128xf32>
    %43 = vector.extract_strided_slice %38 {offsets = [0, 256], sizes = [256, 128], strides = [1, 1]} : vector<256x384xf32> to vector<256x128xf32>
    %44 = vector.shape_cast %43 : vector<256x128xf32> to vector<8x32x128xf32>
    %45 = arith.truncf %40 : vector<8x32x128xf32> to vector<8x32x128xbf16>
    %46 = arith.truncf %42 : vector<8x32x128xf32> to vector<8x32x128xbf16>
    "tpu.trace_start"() <{level = 10 : i32, message = "bqd,bkd->bqk"}> : () -> ()
    %cst_20 = arith.constant dense<0.000000e+00> : vector<8x32x32xf32>
    %47 = tpu.matmul %45, %46, %cst_20 {dimension_numbers = #tpu.dot_dimension_numbers<[2], [2], [1], [1], [0, 0, 0, 1, 1, 1], [0], [0]>} : vector<8x32x128xbf16>, vector<8x32x128xbf16>, vector<8x32x32xf32> -> vector<8x32x32xf32>
    "tpu.trace_stop"() : () -> ()
    %cst_21 = arith.constant 0.0883883461 : f32
    %48 = vector.broadcast %cst_21 : f32 to vector<8x32x32xf32>
    %49 = arith.mulf %47, %48 : vector<8x32x32xf32>
    %c0_22 = arith.constant 0 : index
    %c0_23 = arith.constant 0 : index
    %c0_24 = arith.constant 0 : index
    %50 = vector.load %arg3[%c0_22, %c0_23, %c0_24] : memref<1x1x32xf32, #tpu.memory_space<vmem>>, vector<1x1x32xf32>
    %51 = vector.broadcast %50 : vector<1x1x32xf32> to vector<8x32x32xf32>
    %52 = arith.addf %49, %51 : vector<8x32x32xf32>
    %cst_25 = arith.constant dense<0xFF800000> : vector<8x32xf32>
    %53 = vector.multi_reduction <maximumf>, %52, %cst_25 [2] : vector<8x32x32xf32> to vector<8x32xf32>
    %54 = vector.shape_cast %53 : vector<8x32xf32> to vector<8x32x1xf32>
    %55 = vector.broadcast %54 : vector<8x32x1xf32> to vector<8x32x32xf32>
    %56 = arith.subf %52, %55 : vector<8x32x32xf32>
    %57 = math.exp %56 : vector<8x32x32xf32>
    %cst_26 = arith.constant dense<0.000000e+00> : vector<8x32xf32>
    %58 = vector.multi_reduction <add>, %57, %cst_26 [2] : vector<8x32x32xf32> to vector<8x32xf32>
    %59 = vector.shape_cast %58 : vector<8x32xf32> to vector<8x32x1xf32>
    %60 = tpu.reciprocal %59 {approx = true} : vector<8x32x1xf32> -> vector<8x32x1xf32>
    %61 = vector.broadcast %60 : vector<8x32x1xf32> to vector<8x32x32xf32>
    %62 = arith.mulf %57, %61 : vector<8x32x32xf32>
    %63 = arith.truncf %62 : vector<8x32x32xf32> to vector<8x32x32xbf16>
    %64 = arith.truncf %44 : vector<8x32x128xf32> to vector<8x32x128xbf16>
    "tpu.trace_start"() <{level = 10 : i32, message = "bqk,bkd->bqd"}> : () -> ()
    %cst_27 = arith.constant dense<0.000000e+00> : vector<8x32x128xf32>
    %65 = tpu.matmul %63, %64, %cst_27 {dimension_numbers = #tpu.dot_dimension_numbers<[2], [1], [1], [2], [0, 0, 0, 1, 1, 2], [0], [0]>} : vector<8x32x32xbf16>, vector<8x32x128xbf16>, vector<8x32x128xf32> -> vector<8x32x128xf32>
    "tpu.trace_stop"() : () -> ()
    %66 = vector.shape_cast %65 : vector<8x32x128xf32> to vector<256x128xf32>
    %c0_28 = arith.constant 0 : index
    %c0_29 = arith.constant 0 : index
    %c0_30 = arith.constant 0 : index
    %67 = vector.load %arg13[%c0_28, %c0_29, %c0_30] : memref<1x128x128xbf16, #tpu.memory_space<vmem>>, vector<1x128x128xbf16>
    %68 = vector.shape_cast %67 : vector<1x128x128xbf16> to vector<128x128xbf16>
    %c0_31 = arith.constant 0 : index
    %c0_32 = arith.constant 0 : index
    %c0_33 = arith.constant 0 : index
    %69 = vector.load %arg14[%c0_31, %c0_32, %c0_33] : memref<1x1x128xf32, #tpu.memory_space<vmem>>, vector<1x1x128xf32>
    %70 = vector.shape_cast %69 : vector<1x1x128xf32> to vector<1x128xf32>
    %71 = arith.truncf %66 : vector<256x128xf32> to vector<256x128xbf16>
    %cst_34 = arith.constant dense<0.000000e+00> : vector<256x128xf32>
    %72 = tpu.matmul %71, %68, %cst_34 {dimension_numbers = #tpu.dot_dimension_numbers<[1], [0], [0], [1], [0, 0, 1, 1], [], []>} : vector<256x128xbf16>, vector<128x128xbf16>, vector<256x128xf32> -> vector<256x128xf32>
    %73 = vector.broadcast %70 : vector<1x128xf32> to vector<256x128xf32>
    %74 = arith.addf %72, %73 : vector<256x128xf32>
    %75 = arith.addf %4, %74 : vector<256x128xf32>
    %c0_35 = arith.constant 0 : index
    %c0_36 = arith.constant 0 : index
    %c0_37 = arith.constant 0 : index
    %76 = vector.load %arg15[%c0_35, %c0_36, %c0_37] : memref<1x1x128xf32, #tpu.memory_space<vmem>>, vector<1x1x128xf32>
    %77 = vector.shape_cast %76 : vector<1x1x128xf32> to vector<1x128xf32>
    %c0_38 = arith.constant 0 : index
    %c0_39 = arith.constant 0 : index
    %c0_40 = arith.constant 0 : index
    %78 = vector.load %arg16[%c0_38, %c0_39, %c0_40] : memref<1x1x128xf32, #tpu.memory_space<vmem>>, vector<1x1x128xf32>
    %79 = vector.shape_cast %78 : vector<1x1x128xf32> to vector<1x128xf32>
    %cst_41 = arith.constant dense<0.000000e+00> : vector<256xf32>
    %80 = vector.multi_reduction <add>, %75, %cst_41 [1] : vector<256x128xf32> to vector<256xf32>
    %81 = vector.shape_cast %80 : vector<256xf32> to vector<256x1xf32>
    %cst_42 = arith.constant 1.280000e+02 : f32
    %82 = vector.broadcast %cst_42 : f32 to vector<256x1xf32>
    %83 = arith.divf %81, %82 : vector<256x1xf32>
    %84 = vector.broadcast %83 : vector<256x1xf32> to vector<256x128xf32>
    %85 = arith.subf %75, %84 : vector<256x128xf32>
    %86 = arith.mulf %85, %85 : vector<256x128xf32>
    %cst_43 = arith.constant dense<0.000000e+00> : vector<256xf32>
    %87 = vector.multi_reduction <add>, %86, %cst_43 [1] : vector<256x128xf32> to vector<256xf32>
    %88 = vector.shape_cast %87 : vector<256xf32> to vector<256x1xf32>
    %cst_44 = arith.constant 1.280000e+02 : f32
    %89 = vector.broadcast %cst_44 : f32 to vector<256x1xf32>
    %90 = arith.divf %88, %89 : vector<256x1xf32>
    %91 = vector.broadcast %83 : vector<256x1xf32> to vector<256x128xf32>
    %92 = arith.subf %75, %91 : vector<256x128xf32>
    %cst_45 = arith.constant 9.99999996E-13 : f32
    %93 = vector.broadcast %cst_45 : f32 to vector<256x1xf32>
    %94 = arith.addf %90, %93 : vector<256x1xf32>
    %95 = math.rsqrt %94 : vector<256x1xf32>
    %96 = vector.broadcast %95 : vector<256x1xf32> to vector<256x128xf32>
    %97 = arith.mulf %92, %96 : vector<256x128xf32>
    %98 = vector.broadcast %77 : vector<1x128xf32> to vector<256x128xf32>
    %99 = arith.mulf %97, %98 : vector<256x128xf32>
    %100 = vector.broadcast %79 : vector<1x128xf32> to vector<256x128xf32>
    %101 = arith.addf %99, %100 : vector<256x128xf32>
    %c0_46 = arith.constant 0 : index
    %c0_47 = arith.constant 0 : index
    %c0_48 = arith.constant 0 : index
    %102 = vector.load %arg17[%c0_46, %c0_47, %c0_48] : memref<1x128x512xbf16, #tpu.memory_space<vmem>>, vector<1x128x512xbf16>
    %103 = vector.shape_cast %102 : vector<1x128x512xbf16> to vector<128x512xbf16>
    %c0_49 = arith.constant 0 : index
    %c0_50 = arith.constant 0 : index
    %c0_51 = arith.constant 0 : index
    %104 = vector.load %arg18[%c0_49, %c0_50, %c0_51] : memref<1x1x512xf32, #tpu.memory_space<vmem>>, vector<1x1x512xf32>
    %105 = vector.shape_cast %104 : vector<1x1x512xf32> to vector<1x512xf32>
    %106 = arith.truncf %101 : vector<256x128xf32> to vector<256x128xbf16>
    %cst_52 = arith.constant dense<0.000000e+00> : vector<256x512xf32>
    %107 = tpu.matmul %106, %103, %cst_52 {dimension_numbers = #tpu.dot_dimension_numbers<[1], [0], [0], [1], [0, 0, 1, 1], [], []>} : vector<256x128xbf16>, vector<128x512xbf16>, vector<256x512xf32> -> vector<256x512xf32>
    %108 = vector.broadcast %105 : vector<1x512xf32> to vector<256x512xf32>
    %109 = arith.addf %107, %108 : vector<256x512xf32>
    %cst_53 = arith.constant 5.000000e-01 : f32
    %110 = vector.broadcast %cst_53 : f32 to vector<256x512xf32>
    %111 = arith.mulf %110, %109 : vector<256x512xf32>
    %cst_54 = arith.constant 4.471500e-02 : f32
    %112 = vector.broadcast %cst_54 : f32 to vector<256x512xf32>
    %113 = arith.mulf %112, %109 : vector<256x512xf32>
    %114 = arith.mulf %113, %109 : vector<256x512xf32>
    %115 = arith.mulf %114, %109 : vector<256x512xf32>
    %116 = arith.addf %109, %115 : vector<256x512xf32>
    %cst_55 = arith.constant 0.797884583 : f32
    %117 = vector.broadcast %cst_55 : f32 to vector<256x512xf32>
    %118 = arith.mulf %117, %116 : vector<256x512xf32>
    %119 = math.tanh %118 : vector<256x512xf32>
    %cst_56 = arith.constant 1.000000e+00 : f32
    %120 = vector.broadcast %cst_56 : f32 to vector<256x512xf32>
    %121 = arith.addf %120, %119 : vector<256x512xf32>
    %122 = arith.mulf %111, %121 : vector<256x512xf32>
    %c0_57 = arith.constant 0 : index
    %c0_58 = arith.constant 0 : index
    %c0_59 = arith.constant 0 : index
    %123 = vector.load %arg19[%c0_57, %c0_58, %c0_59] : memref<1x512x128xbf16, #tpu.memory_space<vmem>>, vector<1x512x128xbf16>
    %124 = vector.shape_cast %123 : vector<1x512x128xbf16> to vector<512x128xbf16>
    %c0_60 = arith.constant 0 : index
    %c0_61 = arith.constant 0 : index
    %c0_62 = arith.constant 0 : index
    %125 = vector.load %arg20[%c0_60, %c0_61, %c0_62] : memref<1x1x128xf32, #tpu.memory_space<vmem>>, vector<1x1x128xf32>
    %126 = vector.shape_cast %125 : vector<1x1x128xf32> to vector<1x128xf32>
    %127 = arith.truncf %122 : vector<256x512xf32> to vector<256x512xbf16>
    %cst_63 = arith.constant dense<0.000000e+00> : vector<256x128xf32>
    %128 = tpu.matmul %127, %124, %cst_63 {dimension_numbers = #tpu.dot_dimension_numbers<[1], [0], [0], [1], [0, 0, 1, 1], [], []>} : vector<256x512xbf16>, vector<512x128xbf16>, vector<256x128xf32> -> vector<256x128xf32>
    %129 = vector.broadcast %126 : vector<1x128xf32> to vector<256x128xf32>
    %130 = arith.addf %128, %129 : vector<256x128xf32>
    %131 = arith.addf %75, %130 : vector<256x128xf32>
    %132 = vector.shape_cast %131 : vector<256x128xf32> to vector<8x32x128xf32>
    %c0_64 = arith.constant 0 : index
    %c0_65 = arith.constant 0 : index
    %c0_66 = arith.constant 0 : index
    %133 = vector.load %arg34[%c0_64, %c0_65, %c0_66] : memref<8x32x128xf32, #tpu.memory_space<vmem>>, vector<8x32x128xf32>
    tpu.vector_store %arg34[%c0_64, %c0_65, %c0_66], %132 {strides = array<i32>} : memref<8x32x128xf32, #tpu.memory_space<vmem>>, vector<8x32x128xf32>,
    %c1_i32 = arith.constant 1 : i32
    %134 = arith.cmpi eq, %arg1, %c1_i32 : i32
    %135 = arith.extui %134 : i1 to i32
    %c0_i32_67 = arith.constant 0 : i32
    %136 = arith.cmpi ne, %135, %c0_i32_67 : i32
    scf.if %136 {
      %137 = vector.extract_strided_slice %132 {offsets = [0, 0, 0], sizes = [8, 1, 128], strides = [1, 1, 1]} : vector<8x32x128xf32> to vector<8x1x128xf32>
      %138 = vector.shape_cast %137 : vector<8x1x128xf32> to vector<8x128xf32>
      %c0_68 = arith.constant 0 : index
      %c0_69 = arith.constant 0 : index
      %139 = vector.load %arg21[%c0_68, %c0_69] : memref<1x128xf32, #tpu.memory_space<vmem>>, vector<1x128xf32>
      %c0_70 = arith.constant 0 : index
      %c0_71 = arith.constant 0 : index
      %140 = vector.load %arg22[%c0_70, %c0_71] : memref<1x128xf32, #tpu.memory_space<vmem>>, vector<1x128xf32>
      %cst_72 = arith.constant dense<0.000000e+00> : vector<8xf32>
      %141 = vector.multi_reduction <add>, %138, %cst_72 [1] : vector<8x128xf32> to vector<8xf32>
      %142 = vector.shape_cast %141 : vector<8xf32> to vector<8x1xf32>
      %cst_73 = arith.constant 1.280000e+02 : f32
      %143 = vector.broadcast %cst_73 : f32 to vector<8x1xf32>
      %144 = arith.divf %142, %143 : vector<8x1xf32>
      %145 = vector.broadcast %144 : vector<8x1xf32> to vector<8x128xf32>
      %146 = arith.subf %138, %145 : vector<8x128xf32>
      %147 = arith.mulf %146, %146 : vector<8x128xf32>
      %cst_74 = arith.constant dense<0.000000e+00> : vector<8xf32>
      %148 = vector.multi_reduction <add>, %147, %cst_74 [1] : vector<8x128xf32> to vector<8xf32>
      %149 = vector.shape_cast %148 : vector<8xf32> to vector<8x1xf32>
      %cst_75 = arith.constant 1.280000e+02 : f32
      %150 = vector.broadcast %cst_75 : f32 to vector<8x1xf32>
      %151 = arith.divf %149, %150 : vector<8x1xf32>
      %152 = vector.broadcast %144 : vector<8x1xf32> to vector<8x128xf32>
      %153 = arith.subf %138, %152 : vector<8x128xf32>
      %cst_76 = arith.constant 9.99999996E-13 : f32
      %154 = vector.broadcast %cst_76 : f32 to vector<8x1xf32>
      %155 = arith.addf %151, %154 : vector<8x1xf32>
      %156 = math.rsqrt %155 : vector<8x1xf32>
      %157 = vector.broadcast %156 : vector<8x1xf32> to vector<8x128xf32>
      %158 = arith.mulf %153, %157 : vector<8x128xf32>
      %159 = vector.broadcast %139 : vector<1x128xf32> to vector<8x128xf32>
      %160 = arith.mulf %158, %159 : vector<8x128xf32>
      %161 = vector.broadcast %140 : vector<1x128xf32> to vector<8x128xf32>
      %162 = arith.addf %160, %161 : vector<8x128xf32>
      %c0_77 = arith.constant 0 : index
      %c0_78 = arith.constant 0 : index
      %163 = vector.load %arg23[%c0_77, %c0_78] : memref<128x768xbf16, #tpu.memory_space<vmem>>, vector<128x768xbf16>
      %c0_79 = arith.constant 0 : index
      %c0_80 = arith.constant 0 : index
      %164 = vector.load %arg24[%c0_79, %c0_80] : memref<1x768xf32, #tpu.memory_space<vmem>>, vector<1x768xf32>
      %165 = arith.truncf %162 : vector<8x128xf32> to vector<8x128xbf16>
      %cst_81 = arith.constant dense<0.000000e+00> : vector<8x768xf32>
      %166 = tpu.matmul %165, %163, %cst_81 {dimension_numbers = #tpu.dot_dimension_numbers<[1], [0], [0], [1], [0, 0, 1, 1], [], []>} : vector<8x128xbf16>, vector<128x768xbf16>, vector<8x768xf32> -> vector<8x768xf32>
      %167 = vector.broadcast %164 : vector<1x768xf32> to vector<8x768xf32>
      %168 = arith.addf %166, %167 : vector<8x768xf32>
      %cst_82 = arith.constant 5.000000e-01 : f32
      %169 = vector.broadcast %cst_82 : f32 to vector<8x768xf32>
      %170 = arith.mulf %169, %168 : vector<8x768xf32>
      %cst_83 = arith.constant 4.471500e-02 : f32
      %171 = vector.broadcast %cst_83 : f32 to vector<8x768xf32>
      %172 = arith.mulf %171, %168 : vector<8x768xf32>
      %173 = arith.mulf %172, %168 : vector<8x768xf32>
      %174 = arith.mulf %173, %168 : vector<8x768xf32>
      %175 = arith.addf %168, %174 : vector<8x768xf32>
      %cst_84 = arith.constant 0.797884583 : f32
      %176 = vector.broadcast %cst_84 : f32 to vector<8x768xf32>
      %177 = arith.mulf %176, %175 : vector<8x768xf32>
      %178 = math.tanh %177 : vector<8x768xf32>
      %cst_85 = arith.constant 1.000000e+00 : f32
      %179 = vector.broadcast %cst_85 : f32 to vector<8x768xf32>
      %180 = arith.addf %179, %178 : vector<8x768xf32>
      %181 = arith.mulf %170, %180 : vector<8x768xf32>
      %c0_86 = arith.constant 0 : index
      %c0_87 = arith.constant 0 : index
      %182 = vector.load %arg25[%c0_86, %c0_87] : memref<1x768xf32, #tpu.memory_space<vmem>>, vector<1x768xf32>
      %c0_88 = arith.constant 0 : index
      %c0_89 = arith.constant 0 : index
      %183 = vector.load %arg26[%c0_88, %c0_89] : memref<1x768xf32, #tpu.memory_space<vmem>>, vector<1x768xf32>
      %cst_90 = arith.constant dense<0.000000e+00> : vector<8xf32>
      %184 = vector.multi_reduction <add>, %181, %cst_90 [1] : vector<8x768xf32> to vector<8xf32>
      %185 = vector.shape_cast %184 : vector<8xf32> to vector<8x1xf32>
      %cst_91 = arith.constant 7.680000e+02 : f32
      %186 = vector.broadcast %cst_91 : f32 to vector<8x1xf32>
      %187 = arith.divf %185, %186 : vector<8x1xf32>
      %188 = vector.broadcast %187 : vector<8x1xf32> to vector<8x768xf32>
      %189 = arith.subf %181, %188 : vector<8x768xf32>
      %190 = arith.mulf %189, %189 : vector<8x768xf32>
      %cst_92 = arith.constant dense<0.000000e+00> : vector<8xf32>
      %191 = vector.multi_reduction <add>, %190, %cst_92 [1] : vector<8x768xf32> to vector<8xf32>
      %192 = vector.shape_cast %191 : vector<8xf32> to vector<8x1xf32>
      %cst_93 = arith.constant 7.680000e+02 : f32
      %193 = vector.broadcast %cst_93 : f32 to vector<8x1xf32>
      %194 = arith.divf %192, %193 : vector<8x1xf32>
      %195 = vector.broadcast %187 : vector<8x1xf32> to vector<8x768xf32>
      %196 = arith.subf %181, %195 : vector<8x768xf32>
      %cst_94 = arith.constant 9.99999974E-6 : f32
      %197 = vector.broadcast %cst_94 : f32 to vector<8x1xf32>
      %198 = arith.addf %194, %197 : vector<8x1xf32>
      %199 = math.rsqrt %198 : vector<8x1xf32>
      %200 = vector.broadcast %199 : vector<8x1xf32> to vector<8x768xf32>
      %201 = arith.mulf %196, %200 : vector<8x768xf32>
      %202 = vector.broadcast %182 : vector<1x768xf32> to vector<8x768xf32>
      %203 = arith.mulf %201, %202 : vector<8x768xf32>
      %204 = vector.broadcast %183 : vector<1x768xf32> to vector<8x768xf32>
      %205 = arith.addf %203, %204 : vector<8x768xf32>
      %c0_95 = arith.constant 0 : index
      %c0_96 = arith.constant 0 : index
      %206 = vector.load %arg27[%c0_95, %c0_96] : memref<768x384xbf16, #tpu.memory_space<vmem>>, vector<768x384xbf16>
      %c0_97 = arith.constant 0 : index
      %c0_98 = arith.constant 0 : index
      %207 = vector.load %arg28[%c0_97, %c0_98] : memref<1x384xf32, #tpu.memory_space<vmem>>, vector<1x384xf32>
      %208 = arith.truncf %205 : vector<8x768xf32> to vector<8x768xbf16>
      %cst_99 = arith.constant dense<0.000000e+00> : vector<8x384xf32>
      %209 = tpu.matmul %208, %206, %cst_99 {dimension_numbers = #tpu.dot_dimension_numbers<[1], [0], [0], [1], [0, 0, 1, 1], [], []>} : vector<8x768xbf16>, vector<768x384xbf16>, vector<8x384xf32> -> vector<8x384xf32>
      %210 = vector.broadcast %207 : vector<1x384xf32> to vector<8x384xf32>
      %211 = arith.addf %209, %210 : vector<8x384xf32>
      %cst_100 = arith.constant 5.000000e-01 : f32
      %212 = vector.broadcast %cst_100 : f32 to vector<8x384xf32>
      %213 = arith.mulf %212, %211 : vector<8x384xf32>
      %cst_101 = arith.constant 4.471500e-02 : f32
      %214 = vector.broadcast %cst_101 : f32 to vector<8x384xf32>
      %215 = arith.mulf %214, %211 : vector<8x384xf32>
      %216 = arith.mulf %215, %211 : vector<8x384xf32>
      %217 = arith.mulf %216, %211 : vector<8x384xf32>
      %218 = arith.addf %211, %217 : vector<8x384xf32>
      %cst_102 = arith.constant 0.797884583 : f32
      %219 = vector.broadcast %cst_102 : f32 to vector<8x384xf32>
      %220 = arith.mulf %219, %218 : vector<8x384xf32>
      %221 = math.tanh %220 : vector<8x384xf32>
      %cst_103 = arith.constant 1.000000e+00 : f32
      %222 = vector.broadcast %cst_103 : f32 to vector<8x384xf32>
      %223 = arith.addf %222, %221 : vector<8x384xf32>
      %224 = arith.mulf %213, %223 : vector<8x384xf32>
      %c0_104 = arith.constant 0 : index
      %c0_105 = arith.constant 0 : index
      %225 = vector.load %arg29[%c0_104, %c0_105] : memref<1x384xf32, #tpu.memory_space<vmem>>, vector<1x384xf32>
      %c0_106 = arith.constant 0 : index
      %c0_107 = arith.constant 0 : index
      %226 = vector.load %arg30[%c0_106, %c0_107] : memref<1x384xf32, #tpu.memory_space<vmem>>, vector<1x384xf32>
      %cst_108 = arith.constant dense<0.000000e+00> : vector<8xf32>
      %227 = vector.multi_reduction <add>, %224, %cst_108 [1] : vector<8x384xf32> to vector<8xf32>
      %228 = vector.shape_cast %227 : vector<8xf32> to vector<8x1xf32>
      %cst_109 = arith.constant 3.840000e+02 : f32
      %229 = vector.broadcast %cst_109 : f32 to vector<8x1xf32>
      %230 = arith.divf %228, %229 : vector<8x1xf32>
      %231 = vector.broadcast %230 : vector<8x1xf32> to vector<8x384xf32>
      %232 = arith.subf %224, %231 : vector<8x384xf32>
      %233 = arith.mulf %232, %232 : vector<8x384xf32>
      %cst_110 = arith.constant dense<0.000000e+00> : vector<8xf32>
      %234 = vector.multi_reduction <add>, %233, %cst_110 [1] : vector<8x384xf32> to vector<8xf32>
      %235 = vector.shape_cast %234 : vector<8xf32> to vector<8x1xf32>
      %cst_111 = arith.constant 3.840000e+02 : f32
      %236 = vector.broadcast %cst_111 : f32 to vector<8x1xf32>
      %237 = arith.divf %235, %236 : vector<8x1xf32>
      %238 = vector.broadcast %230 : vector<8x1xf32> to vector<8x384xf32>
      %239 = arith.subf %224, %238 : vector<8x384xf32>
      %cst_112 = arith.constant 9.99999974E-6 : f32
      %240 = vector.broadcast %cst_112 : f32 to vector<8x1xf32>
      %241 = arith.addf %237, %240 : vector<8x1xf32>
      %242 = math.rsqrt %241 : vector<8x1xf32>
      %243 = vector.broadcast %242 : vector<8x1xf32> to vector<8x384xf32>
      %244 = arith.mulf %239, %243 : vector<8x384xf32>
      %245 = vector.broadcast %225 : vector<1x384xf32> to vector<8x384xf32>
      %246 = arith.mulf %244, %245 : vector<8x384xf32>
      %247 = vector.broadcast %226 : vector<1x384xf32> to vector<8x384xf32>
      %248 = arith.addf %246, %247 : vector<8x384xf32>
      %c0_113 = arith.constant 0 : index
      %c0_114 = arith.constant 0 : index
      %249 = vector.load %arg31[%c0_113, %c0_114] : memref<384x2xbf16, #tpu.memory_space<vmem>>, vector<384x2xbf16>
      %c0_115 = arith.constant 0 : index
      %c0_116 = arith.constant 0 : index
      %250 = vector.load %arg32[%c0_115, %c0_116] : memref<1x2xf32, #tpu.memory_space<vmem>>, vector<1x2xf32>
      %251 = arith.truncf %248 : vector<8x384xf32> to vector<8x384xbf16>
      %cst_117 = arith.constant dense<0.000000e+00> : vector<8x2xf32>
      %252 = tpu.matmul %251, %249, %cst_117 {dimension_numbers = #tpu.dot_dimension_numbers<[1], [0], [0], [1], [0, 0, 1, 1], [], []>} : vector<8x384xbf16>, vector<384x2xbf16>, vector<8x2xf32> -> vector<8x2xf32>
      %253 = vector.broadcast %250 : vector<1x2xf32> to vector<8x2xf32>
      %254 = arith.addf %252, %253 : vector<8x2xf32>
      %255 = vector.extract_strided_slice %254 {offsets = [0, 1], sizes = [8, 1], strides = [1, 1]} : vector<8x2xf32> to vector<8x1xf32>
      %cst_118 = arith.constant 0.000000e+00 : f32
      %256 = vector.broadcast %cst_118 : f32 to vector<8x1xf32>
      %257 = arith.subf %256, %255 : vector<8x1xf32>
      %258 = math.exp %257 : vector<8x1xf32>
      %cst_119 = arith.constant 1.000000e+00 : f32
      %259 = vector.broadcast %cst_119 : f32 to vector<8x1xf32>
      %260 = arith.addf %259, %258 : vector<8x1xf32>
      %cst_120 = arith.constant 1.000000e+00 : f32
      %261 = vector.broadcast %cst_120 : f32 to vector<8x1xf32>
      %262 = arith.divf %261, %260 : vector<8x1xf32>
      %c0_121 = arith.constant 0 : index
      %c0_122 = arith.constant 0 : index
      %263 = vector.load %arg33[%c0_121, %c0_122] : memref<8x1xf32, #tpu.memory_space<vmem>>, vector<8x1xf32>
      tpu.vector_store %arg33[%c0_121, %c0_122], %262 {strides = array<i32>} : memref<8x1xf32, #tpu.memory_space<vmem>>, vector<8x1xf32>,
    } else {
    }
    return
  }
  func.func @transform_0(%arg0: i32, %arg1: i32) -> (i32, i32) {
    %c0_i32 = arith.constant 0 : i32
    %c0_i32_0 = arith.constant 0 : i32
    %c0_i32_1 = arith.constant 0 : i32
    return %c0_i32, %c0_i32_0 : i32, i32
  }
  func.func @transform_1(%arg0: i32, %arg1: i32) -> (i32, i32, i32) {
    %c0_i32 = arith.constant 0 : i32
    %c0_i32_0 = arith.constant 0 : i32
    %c0_i32_1 = arith.constant 0 : i32
    %c0_i32_2 = arith.constant 0 : i32
    return %c0_i32, %c0_i32_0, %c0_i32_1 : i32, i32, i32
  }
  func.func @transform_2(%arg0: i32, %arg1: i32) -> (i32, i32, i32) {
    %c0_i32 = arith.constant 0 : i32
    %c0_i32_0 = arith.constant 0 : i32
    %c0_i32_1 = arith.constant 0 : i32
    return %arg0, %c0_i32, %c0_i32_0 : i32, i32, i32
  }
  func.func @transform_3(%arg0: i32, %arg1: i32) -> (i32, i32) {
    %c0_i32 = arith.constant 0 : i32
    %c0_i32_0 = arith.constant 0 : i32
    %c0_i32_1 = arith.constant 0 : i32
    return %c0_i32, %c0_i32_0 : i32, i32
  }
  func.func @transform_4(%arg0: i32, %arg1: i32) -> (i32, i32) {
    %c0_i32 = arith.constant 0 : i32
    %c0_i32_0 = arith.constant 0 : i32
    %c0_i32_1 = arith.constant 0 : i32
    return %c0_i32, %c0_i32_0 : i32, i32
  }
  func.func @transform_5(%arg0: i32, %arg1: i32) -> (i32, i32, i32) {
    %c0_i32 = arith.constant 0 : i32
    %c0_i32_0 = arith.constant 0 : i32
    %c0_i32_1 = arith.constant 0 : i32
    %c0_i32_2 = arith.constant 0 : i32
    return %c0_i32, %c0_i32_0, %c0_i32_1 : i32, i32, i32
  }
  func.func @transform_6(%arg0: i32, %arg1: i32) -> (i32, i32, i32) {
    %c0_i32 = arith.constant 0 : i32
    %c0_i32_0 = arith.constant 0 : i32
    %c0_i32_1 = arith.constant 0 : i32
    %c0_i32_2 = arith.constant 0 : i32
    return %c0_i32, %c0_i32_0, %c0_i32_1 : i32, i32, i32
  }
  func.func @transform_7(%arg0: i32, %arg1: i32) -> (i32, i32, i32) {
    %c0_i32 = arith.constant 0 : i32
    %c0_i32_0 = arith.constant 0 : i32
    %c0_i32_1 = arith.constant 0 : i32
    return %arg1, %c0_i32, %c0_i32_0 : i32, i32, i32
  }
  func.func @transform_8(%arg0: i32, %arg1: i32) -> (i32, i32, i32) {
    %c0_i32 = arith.constant 0 : i32
    %c0_i32_0 = arith.constant 0 : i32
    %c0_i32_1 = arith.constant 0 : i32
    return %arg1, %c0_i32, %c0_i32_0 : i32, i32, i32
  }
  func.func @transform_9(%arg0: i32, %arg1: i32) -> (i32, i32, i32) {
    %c0_i32 = arith.constant 0 : i32
    %c0_i32_0 = arith.constant 0 : i32
    %c0_i32_1 = arith.constant 0 : i32
    return %arg1, %c0_i32, %c0_i32_0 : i32, i32, i32
  }
  func.func @transform_10(%arg0: i32, %arg1: i32) -> (i32, i32, i32) {
    %c0_i32 = arith.constant 0 : i32
    %c0_i32_0 = arith.constant 0 : i32
    %c0_i32_1 = arith.constant 0 : i32
    return %arg1, %c0_i32, %c0_i32_0 : i32, i32, i32
  }
  func.func @transform_11(%arg0: i32, %arg1: i32) -> (i32, i32, i32) {
    %c0_i32 = arith.constant 0 : i32
    %c0_i32_0 = arith.constant 0 : i32
    %c0_i32_1 = arith.constant 0 : i32
    return %arg1, %c0_i32, %c0_i32_0 : i32, i32, i32
  }
  func.func @transform_12(%arg0: i32, %arg1: i32) -> (i32, i32, i32) {
    %c0_i32 = arith.constant 0 : i32
    %c0_i32_0 = arith.constant 0 : i32
    %c0_i32_1 = arith.constant 0 : i32
    return %arg1, %c0_i32, %c0_i32_0 : i32, i32, i32
  }
  func.func @transform_13(%arg0: i32, %arg1: i32) -> (i32, i32, i32) {
    %c0_i32 = arith.constant 0 : i32
    %c0_i32_0 = arith.constant 0 : i32
    %c0_i32_1 = arith.constant 0 : i32
    return %arg1, %c0_i32, %c0_i32_0 : i32, i32, i32
  }
  func.func @transform_14(%arg0: i32, %arg1: i32) -> (i32, i32, i32) {
    %c0_i32 = arith.constant 0 : i32
    %c0_i32_0 = arith.constant 0 : i32
    %c0_i32_1 = arith.constant 0 : i32
    return %arg1, %c0_i32, %c0_i32_0 : i32, i32, i32
  }
  func.func @transform_15(%arg0: i32, %arg1: i32) -> (i32, i32, i32) {
    %c0_i32 = arith.constant 0 : i32
    %c0_i32_0 = arith.constant 0 : i32
    %c0_i32_1 = arith.constant 0 : i32
    return %arg1, %c0_i32, %c0_i32_0 : i32, i32, i32
  }
  func.func @transform_16(%arg0: i32, %arg1: i32) -> (i32, i32, i32) {
    %c0_i32 = arith.constant 0 : i32
    %c0_i32_0 = arith.constant 0 : i32
    %c0_i32_1 = arith.constant 0 : i32
    return %arg1, %c0_i32, %c0_i32_0 : i32, i32, i32
  }
  func.func @transform_17(%arg0: i32, %arg1: i32) -> (i32, i32, i32) {
    %c0_i32 = arith.constant 0 : i32
    %c0_i32_0 = arith.constant 0 : i32
    %c0_i32_1 = arith.constant 0 : i32
    return %arg1, %c0_i32, %c0_i32_0 : i32, i32, i32
  }
  func.func @transform_18(%arg0: i32, %arg1: i32) -> (i32, i32, i32) {
    %c0_i32 = arith.constant 0 : i32
    %c0_i32_0 = arith.constant 0 : i32
    %c0_i32_1 = arith.constant 0 : i32
    return %arg1, %c0_i32, %c0_i32_0 : i32, i32, i32
  }
  func.func @transform_19(%arg0: i32, %arg1: i32) -> (i32, i32) {
    %c0_i32 = arith.constant 0 : i32
    %c0_i32_0 = arith.constant 0 : i32
    %c0_i32_1 = arith.constant 0 : i32
    return %c0_i32, %c0_i32_0 : i32, i32
  }
  func.func @transform_20(%arg0: i32, %arg1: i32) -> (i32, i32) {
    %c0_i32 = arith.constant 0 : i32
    %c0_i32_0 = arith.constant 0 : i32
    %c0_i32_1 = arith.constant 0 : i32
    return %c0_i32, %c0_i32_0 : i32, i32
  }
  func.func @transform_21(%arg0: i32, %arg1: i32) -> (i32, i32) {
    %c0_i32 = arith.constant 0 : i32
    %c0_i32_0 = arith.constant 0 : i32
    %c0_i32_1 = arith.constant 0 : i32
    return %c0_i32, %c0_i32_0 : i32, i32
  }
  func.func @transform_22(%arg0: i32, %arg1: i32) -> (i32, i32) {
    %c0_i32 = arith.constant 0 : i32
    %c0_i32_0 = arith.constant 0 : i32
    %c0_i32_1 = arith.constant 0 : i32
    return %c0_i32, %c0_i32_0 : i32, i32
  }
  func.func @transform_23(%arg0: i32, %arg1: i32) -> (i32, i32) {
    %c0_i32 = arith.constant 0 : i32
    %c0_i32_0 = arith.constant 0 : i32
    %c0_i32_1 = arith.constant 0 : i32
    return %c0_i32, %c0_i32_0 : i32, i32
  }
  func.func @transform_24(%arg0: i32, %arg1: i32) -> (i32, i32) {
    %c0_i32 = arith.constant 0 : i32
    %c0_i32_0 = arith.constant 0 : i32
    %c0_i32_1 = arith.constant 0 : i32
    return %c0_i32, %c0_i32_0 : i32, i32
  }
  func.func @transform_25(%arg0: i32, %arg1: i32) -> (i32, i32) {
    %c0_i32 = arith.constant 0 : i32
    %c0_i32_0 = arith.constant 0 : i32
    %c0_i32_1 = arith.constant 0 : i32
    return %c0_i32, %c0_i32_0 : i32, i32
  }
  func.func @transform_26(%arg0: i32, %arg1: i32) -> (i32, i32) {
    %c0_i32 = arith.constant 0 : i32
    %c0_i32_0 = arith.constant 0 : i32
    %c0_i32_1 = arith.constant 0 : i32
    return %c0_i32, %c0_i32_0 : i32, i32
  }
  func.func @transform_27(%arg0: i32, %arg1: i32) -> (i32, i32) {
    %c0_i32 = arith.constant 0 : i32
    %c0_i32_0 = arith.constant 0 : i32
    %c0_i32_1 = arith.constant 0 : i32
    return %c0_i32, %c0_i32_0 : i32, i32
  }
  func.func @transform_28(%arg0: i32, %arg1: i32) -> (i32, i32) {
    %c0_i32 = arith.constant 0 : i32
    %c0_i32_0 = arith.constant 0 : i32
    %c0_i32_1 = arith.constant 0 : i32
    return %c0_i32, %c0_i32_0 : i32, i32
  }
  func.func @transform_29(%arg0: i32, %arg1: i32) -> (i32, i32) {
    %c0_i32 = arith.constant 0 : i32
    %c0_i32_0 = arith.constant 0 : i32
    %c0_i32_1 = arith.constant 0 : i32
    return %c0_i32, %c0_i32_0 : i32, i32
  }
  func.func @transform_30(%arg0: i32, %arg1: i32) -> (i32, i32) {
    %c0_i32 = arith.constant 0 : i32
    %c0_i32_0 = arith.constant 0 : i32
    %c0_i32_1 = arith.constant 0 : i32
    return %c0_i32, %c0_i32_0 : i32, i32
  }
  func.func @transform_31(%arg0: i32, %arg1: i32) -> (i32, i32) {
    %c0_i32 = arith.constant 0 : i32
    %c0_i32_0 = arith.constant 0 : i32
    return %arg0, %c0_i32 : i32, i32
  }
}

</mosaic_0001>

<llo_original>
// kernel: tpu_custom_call.1
$region0: #{tpu_custom_call.1}
  #allocation0 [shape = 'u32[]', space=smem, size = 0x4, offset = 0x4, fixed_abs, tag = 'smem constant byte address 0x4 - core index']
  #allocation1 [shape = 'u32[144,128]{1,0:T(1,128)}', space=vmem, size = 0x12000, scoped, tag = 'internal scratch']
  #allocation2 [shape = 'f32[8,32,128]{2,1,0:T(8,128)}', space=vmem, size = 0x20000, scoped, tag = 'scratch operand']
  #allocation3 [shape = 'f32[1,1]{1,0:T(1,128)S(1)}', space=vmem, size = 0x200, scoped, tag = 'scoped memory for tpu_custom_call.1']
  %s0 = inlined_call_operand.smem [shape: u32[32], index: -1, kind: input, shape index: {}]
  %s1 = sld [smem:[%s0]]
  %s2 = scalar_lea.smem %s0, 1
  %s3 = sld [smem:[%s2]]
  %s4 = scalar_lea.smem %s0, 2
  %s5 = sld [smem:[%s4]]
  %s6 = scalar_lea.smem %s0, 3
  %s7 = sld [smem:[%s6]]
  %s8 = scalar_lea.smem %s0, 4
  %s9 = sld [smem:[%s8]]
  %s10 = scalar_lea.smem %s0, 5
  %s11 = sld [smem:[%s10]]
  %s12 = scalar_lea.smem %s0, 6
  %s13 = sld [smem:[%s12]]
  %s14 = scalar_lea.smem %s0, 7
  %s15 = sld [smem:[%s14]]
  %s16 = scalar_lea.smem %s0, 8
  %s17 = sld [smem:[%s16]]
  %s18 = scalar_lea.smem %s0, 9
  %s19 = sld [smem:[%s18]]
  %s20 = scalar_lea.smem %s0, 10
  %s21 = sld [smem:[%s20]]
  %s22 = scalar_lea.smem %s0, 11
  %s23 = sld [smem:[%s22]]
  %s24 = scalar_lea.smem %s0, 12
  %s25 = sld [smem:[%s24]]
  %s26 = scalar_lea.smem %s0, 13
  %s27 = sld [smem:[%s26]]
  %s28 = scalar_lea.smem %s0, 14
  %s29 = sld [smem:[%s28]]
  %s30 = scalar_lea.smem %s0, 15
  %s31 = sld [smem:[%s30]]
  %s32 = scalar_lea.smem %s0, 16
  %s33 = sld [smem:[%s32]]
  %s34 = scalar_lea.smem %s0, 17
  %s35 = sld [smem:[%s34]]
  %s36 = scalar_lea.smem %s0, 18
  %s37 = sld [smem:[%s36]]
  %s38 = scalar_lea.smem %s0, 19
  %s39 = sld [smem:[%s38]]
  %s40 = scalar_lea.smem %s0, 20
  %s41 = sld [smem:[%s40]]
  %s42 = scalar_lea.smem %s0, 21
  %s43 = sld [smem:[%s42]]
  %s44 = scalar_lea.smem %s0, 22
  %s45 = sld [smem:[%s44]]
  %s46 = scalar_lea.smem %s0, 23
  %s47 = sld [smem:[%s46]]
  %s48 = scalar_lea.smem %s0, 24
  %s49 = sld [smem:[%s48]]
  %s50 = scalar_lea.smem %s0, 25
  %s51 = sld [smem:[%s50]]
  %s52 = scalar_lea.smem %s0, 26
  %s53 = sld [smem:[%s52]]
  %s54 = scalar_lea.smem %s0, 27
  %s55 = sld [smem:[%s54]]
  %s56 = scalar_lea.smem %s0, 28
  %s57 = sld [smem:[%s56]]
  %s58 = scalar_lea.smem %s0, 29
  %s59 = sld [smem:[%s58]]
  %s60 = scalar_lea.smem %s0, 30
  %s61 = sld [smem:[%s60]]
  %s62 = scalar_lea.smem %s0, 31
  %s63 = sld [smem:[%s62]]
  %s64 = sld [smem:[#allocation0]]
  $region233: #{tpu_custom_call.1} parent=0
    _
  %s66 = ssub.s32 1, %s64
  %s67 = scalar_select 0, %s66, %s64
  %v68 = vstv %s1
  %69 = vst [vmem:[#allocation3] sm:$0x1] %v68
  $region1: #{tpu_custom_call.1} parent=0
    #allocation4 [shape = 'u8[512]{0}', space=vmem, size = 0x400, scoped, tag = 'input window, operand 1, single buffered']
    #allocation5 [shape = 's32[2]{0}', space=sflag, size = 0x8, scoped, tag = 'scoped memory for tpu_custom_call.1']
    #allocation6 [shape = 'u8[524288]{0}', space=vmem, size = 0x80000, scoped, tag = 'input window, operand 2']
    #allocation7 [shape = 's32[2]{0}', space=sflag, size = 0x8, scoped, tag = 'scoped memory for tpu_custom_call.1']
    #allocation8 [shape = 'u8[512]{0}', space=vmem, size = 0x400, scoped, tag = 'input window, operand 4, single buffered']
    #allocation9 [shape = 'u8[512]{0}', space=vmem, size = 0x400, scoped, tag = 'input window, operand 5, single buffered']
    #allocation10 [shape = 's32[1]{0}', space=sflag, size = 0x4, scoped, tag = 'scoped memory for tpu_custom_call.1']
    #allocation11 [shape = 'u8[16384]{0}', space=vmem, size = 0x4000, scoped, tag = 'input window, operand 6, single buffered']
    #allocation12 [shape = 'u8[1024]{0}', space=vmem, size = 0x400, scoped, tag = 'input window, operand 7']
    #allocation13 [shape = 's32[2]{0}', space=sflag, size = 0x8, scoped, tag = 'scoped memory for tpu_custom_call.1']
    #allocation14 [shape = 'u8[1024]{0}', space=vmem, size = 0x400, scoped, tag = 'input window, operand 8']
    #allocation15 [shape = 'u8[196608]{0}', space=vmem, size = 0x30000, scoped, tag = 'input window, operand 9']
    #allocation16 [shape = 's32[2]{0}', space=sflag, size = 0x8, scoped, tag = 'scoped memory for tpu_custom_call.1']
    #allocation17 [shape = 'u8[3072]{0}', space=vmem, size = 0xc00, scoped, tag = 'input window, operand 10']
    #allocation18 [shape = 'u8[1024]{0}', space=vmem, size = 0x400, scoped, tag = 'input window, operand 12']
    #allocation19 [shape = 's32[2]{0}', space=sflag, size = 0x8, scoped, tag = 'scoped memory for tpu_custom_call.1']
    #allocation20 [shape = 'u8[1024]{0}', space=vmem, size = 0x400, scoped, tag = 'input window, operand 13']
    #allocation21 [shape = 'u8[1024]{0}', space=vmem, size = 0x400, scoped, tag = 'input window, operand 14']
    #allocation22 [shape = 's32[2]{0}', space=sflag, size = 0x8, scoped, tag = 'scoped memory for tpu_custom_call.1']
    #allocation23 [shape = 'u8[262144]{0}', space=vmem, size = 0x40000, scoped, tag = 'input window, operand 15']
    #allocation24 [shape = 'u8[262144]{0}', space=vmem, size = 0x40000, scoped, tag = 'input window, operand 17']
    #allocation25 [shape = 's32[2]{0}', space=sflag, size = 0x8, scoped, tag = 'scoped memory for tpu_custom_call.1']
    #allocation26 [shape = 'u8[1024]{0}', space=vmem, size = 0x400, scoped, tag = 'input window, operand 18']
    #allocation27 [shape = 'u8[196608]{0}', space=vmem, size = 0x30000, scoped, tag = 'input window, operand 21, single buffered']
    #allocation28 [shape = 's32[1]{0}', space=sflag, size = 0x4, scoped, tag = 'scoped memory for tpu_custom_call.1']
    #allocation29 [shape = 'u8[589824]{0}', space=vmem, size = 0x90000, scoped, tag = 'input window, operand 25, single buffered']
    %70 = vsyncpa [#allocation5], 0
    %71 = vsyncpa [#allocation7], 0
    %s72 = scalar_lea.sflag [#allocation7], 1
    %73 = vsyncpa %s72, 0
    %74 = vsyncpa [#allocation10], 0
    %75 = vsyncpa [#allocation13], 0
    %s76 = scalar_lea.sflag [#allocation13], 1
    %77 = vsyncpa %s76, 0
    %78 = vsyncpa [#allocation16], 0
    %s79 = scalar_lea.sflag [#allocation16], 1
    %80 = vsyncpa %s79, 0
    %81 = vsyncpa [#allocation19], 0
    %s82 = scalar_lea.sflag [#allocation19], 1
    %83 = vsyncpa %s82, 0
    %84 = vsyncpa [#allocation22], 0
    %s85 = scalar_lea.sflag [#allocation22], 1
    %86 = vsyncpa %s85, 0
    %87 = vsyncpa [#allocation25], 0
    %s88 = scalar_lea.sflag [#allocation25], 1
    %89 = vsyncpa %s88, 0
    %90 = vsyncpa [#allocation28], 0
    loop: start=0, step=1, limit=6
    $region2: #{tpu_custom_call.1} parent=1 // loop_pre_header
      _
    $region3: #{tpu_custom_call.1} parent=1 // loop_header
      %s92 = sphi 0, %s96
      %p93 = scmp.ge.s32.totalorder %s92, 6
      %s99 = sphi 0, %s111
      %s100 = sphi 0, %s107
      %s101 = sphi 0, %s99
      %s102 = sphi 0, %s100
      %s103 = sphi 0, %s101
      %s104 = sphi 0, %s102
      %s112 = sphi 0, %s112
      %s114 = sphi 0, %s112
      %s115 = sphi 0, %s114
      %s129 = sphi 0, %s115
      %s133 = sphi 0, %s133
      %s135 = sphi 0, %s133
      %s136 = sphi 0, %s135
      %s150 = sphi 0, %s136
      %s156 = sphi 0, %s158
      %s159 = sphi 0, %s156
      %s160 = sphi 0, %s159
      %s176 = sphi 0, %s160
      %s180 = sphi 0, %s180
      %s182 = sphi 0, %s180
      %s183 = sphi 0, %s182
      %s197 = sphi 0, %s183
      %s201 = sphi 0, %s201
      %s203 = sphi 0, %s201
      %s204 = sphi 0, %s203
      %s218 = sphi 0, %s204
      %s222 = sphi 0, %s222
      %s224 = sphi 0, %s222
      %s225 = sphi 0, %s224
      %s239 = sphi 0, %s225
      %s243 = sphi 0, %s243
      %s245 = sphi 0, %s243
      %s246 = sphi 0, %s245
      %s260 = sphi 0, %s246
      %s266 = sphi 0, %s268
      %s269 = sphi 0, %s266
      %s270 = sphi 0, %s269
      %s286 = sphi 0, %s270
      %s292 = sphi 0, %s294
      %s295 = sphi 0, %s292
      %s296 = sphi 0, %s295
      %s312 = sphi 0, %s296
      %s318 = sphi 0, %s320
      %s321 = sphi 0, %s318
      %s322 = sphi 0, %s321
      %s338 = sphi 0, %s322
      %s344 = sphi 0, %s346
      %s347 = sphi 0, %s344
      %s348 = sphi 0, %s347
      %s364 = sphi 0, %s348
      %s370 = sphi 0, %s372
      %s373 = sphi 0, %s370
      %s374 = sphi 0, %s373
      %s390 = sphi 0, %s374
      %s396 = sphi 0, %s398
      %s399 = sphi 0, %s396
      %s400 = sphi 0, %s399
      %s416 = sphi 0, %s400
      %s422 = sphi 0, %s424
      %s425 = sphi 0, %s422
      %s426 = sphi 0, %s425
      %s442 = sphi 0, %s426
      %s448 = sphi 0, %s450
      %s451 = sphi 0, %s448
      %s452 = sphi 0, %s451
      %s468 = sphi 0, %s452
      %s474 = sphi 0, %s476
      %s477 = sphi 0, %s474
      %s478 = sphi 0, %s477
      %s494 = sphi 0, %s478
      %s500 = sphi 0, %s502
      %s503 = sphi 0, %s500
      %s504 = sphi 0, %s503
      %s520 = sphi 0, %s504
      %s526 = sphi 0, %s528
      %s529 = sphi 0, %s526
      %s530 = sphi 0, %s529
      %s546 = sphi 0, %s530
      %s552 = sphi 0, %s554
      %s555 = sphi 0, %s552
      %s556 = sphi 0, %s555
      %s572 = sphi 0, %s556
      %s576 = sphi 0, %s576
      %s578 = sphi 0, %s576
      %s579 = sphi 0, %s578
      %s593 = sphi 0, %s579
      %s597 = sphi 0, %s597
      %s599 = sphi 0, %s597
      %s600 = sphi 0, %s599
      %s614 = sphi 0, %s600
      %s618 = sphi 0, %s618
      %s620 = sphi 0, %s618
      %s621 = sphi 0, %s620
      %s635 = sphi 0, %s621
      %s639 = sphi 0, %s639
      %s641 = sphi 0, %s639
      %s642 = sphi 0, %s641
      %s656 = sphi 0, %s642
      %s660 = sphi 0, %s660
      %s662 = sphi 0, %s660
      %s663 = sphi 0, %s662
      %s677 = sphi 0, %s663
      %s681 = sphi 0, %s681
      %s683 = sphi 0, %s681
      %s684 = sphi 0, %s683
      %s698 = sphi 0, %s684
      %s702 = sphi 0, %s702
      %s704 = sphi 0, %s702
      %s705 = sphi 0, %s704
      %s719 = sphi 0, %s705
      %s723 = sphi 0, %s723
      %s725 = sphi 0, %s723
      %s726 = sphi 0, %s725
      %s740 = sphi 0, %s726
      %s744 = sphi 0, %s744
      %s746 = sphi 0, %s744
      %s747 = sphi 0, %s746
      %s761 = sphi 0, %s747
      %s765 = sphi 0, %s765
      %s767 = sphi 0, %s765
      %s768 = sphi 0, %s767
      %s782 = sphi 0, %s768
      %s786 = sphi 0, %s786
      %s788 = sphi 0, %s786
      %s789 = sphi 0, %s788
      %s803 = sphi 0, %s789
      %s807 = sphi 0, %s807
      %s809 = sphi 0, %s807
      %s810 = sphi 0, %s809
      %s824 = sphi 0, %s810
      %s830 = sphi 0, %s832
      %s833 = sphi 0, %s830
      %s834 = sphi 0, %s833
      %s850 = sphi 0, %s834
    $region4: #{tpu_custom_call.1} parent=1 // loop_header_branch
      %95 = sbr.rel (%p93) target = $region8
    $region5: #{tpu_custom_call.1} parent=1 // loop_body
      %s97 = ssub.s32 %s92, 1
      %s98 = ssub.s32 %s92, 2
      %s105 = sadd.s32 1, %s100
      %p106 = scmp.ge.s32.totalorder %s105, 2
      %s107 = scalar_select %p106, 0, %s105
      %s108 = sadd.s32 1, %s99
      %s109 = scalar_select %p106, %s108, %s99
      %p110 = scmp.ge.s32.totalorder %s109, 2
      %s111 = scalar_select %p110, 0, %s109
      %s113 = sadd.s32 %s112, 1
      %p116 = scmp.eq.s32.totalorder %s92, 3
      %p117 = scmp.ne.s32.totalorder %s112, %s114
      %p118 = scmp.eq.s32.totalorder %s92, 0
      %p119 = por %p117, %p118
      %p120 = scmp.ne.s32.totalorder %s112, %s114
      %p121 = scmp.eq.s32.totalorder %s97, 3
      %p122 = por %p120, %p121
      %p123 = scmp.ne.s32.totalorder %s114, %s115
      %p124 = scmp.eq.s32.totalorder %s97, 0
      %p125 = por %p123, %p124
      %p126 = scmp.ne.s32.totalorder %s114, %s115
      %p127 = scmp.eq.s32.totalorder %s98, 3
      %p128 = por %p126, %p127
      %p130 = scmp.ne.s32.totalorder %s115, %s129
      %p131 = scmp.eq.s32.totalorder %s98, 0
      %p132 = por %p130, %p131
      %s134 = sadd.s32 %s133, 1
      %p137 = scmp.eq.s32.totalorder %s92, 3
      %p138 = scmp.ne.s32.totalorder %s133, %s135
      %p139 = scmp.eq.s32.totalorder %s92, 0
      %p140 = por %p138, %p139
      %p141 = scmp.ne.s32.totalorder %s133, %s135
      %p142 = scmp.eq.s32.totalorder %s97, 3
      %p143 = por %p141, %p142
      %p144 = scmp.ne.s32.totalorder %s135, %s136
      %p145 = scmp.eq.s32.totalorder %s97, 0
      %p146 = por %p144, %p145
      %p147 = scmp.ne.s32.totalorder %s135, %s136
      %p148 = scmp.eq.s32.totalorder %s98, 3
      %p149 = por %p147, %p148
      %p151 = scmp.ne.s32.totalorder %s136, %s150
      %p152 = scmp.eq.s32.totalorder %s98, 0
      %p153 = por %p151, %p152
      %s154 = ssub.s32 %s99, %s111
      %p155 = scmp.eq.s32.totalorder %s154, 0
      %s157 = sadd.s32 %s156, 1
      %s158 = scalar_select %p155, %s156, %s157
      %p161 = pneg %p155
      %p162 = scmp.eq.s32.totalorder %s92, 3
      %p163 = por %p161, %p162
      %p164 = scmp.ne.s32.totalorder %s156, %s159
      %p165 = scmp.eq.s32.totalorder %s92, 0
      %p166 = por %p164, %p165
      %p167 = scmp.ne.s32.totalorder %s156, %s159
      %p168 = scmp.eq.s32.totalorder %s97, 3
      %p169 = por %p167, %p168
      %p170 = scmp.ne.s32.totalorder %s159, %s160
      %p171 = scmp.eq.s32.totalorder %s97, 0
      %p172 = por %p170, %p171
      %p173 = scmp.ne.s32.totalorder %s159, %s160
      %p174 = scmp.eq.s32.totalorder %s98, 3
      %p175 = por %p173, %p174
      %p177 = scmp.ne.s32.totalorder %s160, %s176
      %p178 = scmp.eq.s32.totalorder %s98, 0
      %p179 = por %p177, %p178
      %s181 = sadd.s32 %s180, 1
      %p184 = scmp.eq.s32.totalorder %s92, 3
      %p185 = scmp.ne.s32.totalorder %s180, %s182
      %p186 = scmp.eq.s32.totalorder %s92, 0
      %p187 = por %p185, %p186
      %p188 = scmp.ne.s32.totalorder %s180, %s182
      %p189 = scmp.eq.s32.totalorder %s97, 3
      %p190 = por %p188, %p189
      %p191 = scmp.ne.s32.totalorder %s182, %s183
      %p192 = scmp.eq.s32.totalorder %s97, 0
      %p193 = por %p191, %p192
      %p194 = scmp.ne.s32.totalorder %s182, %s183
      %p195 = scmp.eq.s32.totalorder %s98, 3
      %p196 = por %p194, %p195
      %p198 = scmp.ne.s32.totalorder %s183, %s197
      %p199 = scmp.eq.s32.totalorder %s98, 0
      %p200 = por %p198, %p199
      %s202 = sadd.s32 %s201, 1
      %p205 = scmp.eq.s32.totalorder %s92, 3
      %p206 = scmp.ne.s32.totalorder %s201, %s203
      %p207 = scmp.eq.s32.totalorder %s92, 0
      %p208 = por %p206, %p207
      %p209 = scmp.ne.s32.totalorder %s201, %s203
      %p210 = scmp.eq.s32.totalorder %s97, 3
      %p211 = por %p209, %p210
      %p212 = scmp.ne.s32.totalorder %s203, %s204
      %p213 = scmp.eq.s32.totalorder %s97, 0
      %p214 = por %p212, %p213
      %p215 = scmp.ne.s32.totalorder %s203, %s204
      %p216 = scmp.eq.s32.totalorder %s98, 3
      %p217 = por %p215, %p216
      %p219 = scmp.ne.s32.totalorder %s204, %s218
      %p220 = scmp.eq.s32.totalorder %s98, 0
      %p221 = por %p219, %p220
      %s223 = sadd.s32 %s222, 1
      %p226 = scmp.eq.s32.totalorder %s92, 3
      %p227 = scmp.ne.s32.totalorder %s222, %s224
      %p228 = scmp.eq.s32.totalorder %s92, 0
      %p229 = por %p227, %p228
      %p230 = scmp.ne.s32.totalorder %s222, %s224
      %p231 = scmp.eq.s32.totalorder %s97, 3
      %p232 = por %p230, %p231
      %p233 = scmp.ne.s32.totalorder %s224, %s225
      %p234 = scmp.eq.s32.totalorder %s97, 0
      %p235 = por %p233, %p234
      %p236 = scmp.ne.s32.totalorder %s224, %s225
      %p237 = scmp.eq.s32.totalorder %s98, 3
      %p238 = por %p236, %p237
      %p240 = scmp.ne.s32.totalorder %s225, %s239
      %p241 = scmp.eq.s32.totalorder %s98, 0
      %p242 = por %p240, %p241
      %s244 = sadd.s32 %s243, 1
      %p247 = scmp.eq.s32.totalorder %s92, 3
      %p248 = scmp.ne.s32.totalorder %s243, %s245
      %p249 = scmp.eq.s32.totalorder %s92, 0
      %p250 = por %p248, %p249
      %p251 = scmp.ne.s32.totalorder %s243, %s245
      %p252 = scmp.eq.s32.totalorder %s97, 3
      %p253 = por %p251, %p252
      %p254 = scmp.ne.s32.totalorder %s245, %s246
      %p255 = scmp.eq.s32.totalorder %s97, 0
      %p256 = por %p254, %p255
      %p257 = scmp.ne.s32.totalorder %s245, %s246
      %p258 = scmp.eq.s32.totalorder %s98, 3
      %p259 = por %p257, %p258
      %p261 = scmp.ne.s32.totalorder %s246, %s260
      %p262 = scmp.eq.s32.totalorder %s98, 0
      %p263 = por %p261, %p262
      %s264 = ssub.s32 %s100, %s107
      %p265 = scmp.eq.s32.totalorder %s264, 0
      %s267 = sadd.s32 %s266, 1
      %s268 = scalar_select %p265, %s266, %s267
      %p271 = pneg %p265
      %p272 = scmp.eq.s32.totalorder %s92, 3
      %p273 = por %p271, %p272
      %p274 = scmp.ne.s32.totalorder %s266, %s269
      %p275 = scmp.eq.s32.totalorder %s92, 0
      %p276 = por %p274, %p275
      %p277 = scmp.ne.s32.totalorder %s266, %s269
      %p278 = scmp.eq.s32.totalorder %s97, 3
      %p279 = por %p277, %p278
      %p280 = scmp.ne.s32.totalorder %s269, %s270
      %p281 = scmp.eq.s32.totalorder %s97, 0
      %p282 = por %p280, %p281
      %p283 = scmp.ne.s32.totalorder %s269, %s270
      %p284 = scmp.eq.s32.totalorder %s98, 3
      %p285 = por %p283, %p284
      %p287 = scmp.ne.s32.totalorder %s270, %s286
      %p288 = scmp.eq.s32.totalorder %s98, 0
      %p289 = por %p287, %p288
      %s290 = ssub.s32 %s100, %s107
      %p291 = scmp.eq.s32.totalorder %s290, 0
      %s293 = sadd.s32 %s292, 1
      %s294 = scalar_select %p291, %s292, %s293
      %p297 = pneg %p291
      %p298 = scmp.eq.s32.totalorder %s92, 3
      %p299 = por %p297, %p298
      %p300 = scmp.ne.s32.totalorder %s292, %s295
      %p301 = scmp.eq.s32.totalorder %s92, 0
      %p302 = por %p300, %p301
      %p303 = scmp.ne.s32.totalorder %s292, %s295
      %p304 = scmp.eq.s32.totalorder %s97, 3
      %p305 = por %p303, %p304
      %p306 = scmp.ne.s32.totalorder %s295, %s296
      %p307 = scmp.eq.s32.totalorder %s97, 0
      %p308 = por %p306, %p307
      %p309 = scmp.ne.s32.totalorder %s295, %s296
      %p310 = scmp.eq.s32.totalorder %s98, 3
      %p311 = por %p309, %p310
      %p313 = scmp.ne.s32.totalorder %s296, %s312
      %p314 = scmp.eq.s32.totalorder %s98, 0
      %p315 = por %p313, %p314
      %s316 = ssub.s32 %s100, %s107
      %p317 = scmp.eq.s32.totalorder %s316, 0
      %s319 = sadd.s32 %s318, 1
      %s320 = scalar_select %p317, %s318, %s319
      %p323 = pneg %p317
      %p324 = scmp.eq.s32.totalorder %s92, 3
      %p325 = por %p323, %p324
      %p326 = scmp.ne.s32.totalorder %s318, %s321
      %p327 = scmp.eq.s32.totalorder %s92, 0
      %p328 = por %p326, %p327
      %p329 = scmp.ne.s32.totalorder %s318, %s321
      %p330 = scmp.eq.s32.totalorder %s97, 3
      %p331 = por %p329, %p330
      %p332 = scmp.ne.s32.totalorder %s321, %s322
      %p333 = scmp.eq.s32.totalorder %s97, 0
      %p334 = por %p332, %p333
      %p335 = scmp.ne.s32.totalorder %s321, %s322
      %p336 = scmp.eq.s32.totalorder %s98, 3
      %p337 = por %p335, %p336
      %p339 = scmp.ne.s32.totalorder %s322, %s338
      %p340 = scmp.eq.s32.totalorder %s98, 0
      %p341 = por %p339, %p340
      %s342 = ssub.s32 %s100, %s107
      %p343 = scmp.eq.s32.totalorder %s342, 0
      %s345 = sadd.s32 %s344, 1
      %s346 = scalar_select %p343, %s344, %s345
      %p349 = pneg %p343
      %p350 = scmp.eq.s32.totalorder %s92, 3
      %p351 = por %p349, %p350
      %p352 = scmp.ne.s32.totalorder %s344, %s347
      %p353 = scmp.eq.s32.totalorder %s92, 0
      %p354 = por %p352, %p353
      %p355 = scmp.ne.s32.totalorder %s344, %s347
      %p356 = scmp.eq.s32.totalorder %s97, 3
      %p357 = por %p355, %p356
      %p358 = scmp.ne.s32.totalorder %s347, %s348
      %p359 = scmp.eq.s32.totalorder %s97, 0
      %p360 = por %p358, %p359
      %p361 = scmp.ne.s32.totalorder %s347, %s348
      %p362 = scmp.eq.s32.totalorder %s98, 3
      %p363 = por %p361, %p362
      %p365 = scmp.ne.s32.totalorder %s348, %s364
      %p366 = scmp.eq.s32.totalorder %s98, 0
      %p367 = por %p365, %p366
      %s368 = ssub.s32 %s100, %s107
      %p369 = scmp.eq.s32.totalorder %s368, 0
      %s371 = sadd.s32 %s370, 1
      %s372 = scalar_select %p369, %s370, %s371
      %p375 = pneg %p369
      %p376 = scmp.eq.s32.totalorder %s92, 3
      %p377 = por %p375, %p376
      %p378 = scmp.ne.s32.totalorder %s370, %s373
      %p379 = scmp.eq.s32.totalorder %s92, 0
      %p380 = por %p378, %p379
      %p381 = scmp.ne.s32.totalorder %s370, %s373
      %p382 = scmp.eq.s32.totalorder %s97, 3
      %p383 = por %p381, %p382
      %p384 = scmp.ne.s32.totalorder %s373, %s374
      %p385 = scmp.eq.s32.totalorder %s97, 0
      %p386 = por %p384, %p385
      %p387 = scmp.ne.s32.totalorder %s373, %s374
      %p388 = scmp.eq.s32.totalorder %s98, 3
      %p389 = por %p387, %p388
      %p391 = scmp.ne.s32.totalorder %s374, %s390
      %p392 = scmp.eq.s32.totalorder %s98, 0
      %p393 = por %p391, %p392
      %s394 = ssub.s32 %s100, %s107
      %p395 = scmp.eq.s32.totalorder %s394, 0
      %s397 = sadd.s32 %s396, 1
      %s398 = scalar_select %p395, %s396, %s397
      %p401 = pneg %p395
      %p402 = scmp.eq.s32.totalorder %s92, 3
      %p403 = por %p401, %p402
      %p404 = scmp.ne.s32.totalorder %s396, %s399
      %p405 = scmp.eq.s32.totalorder %s92, 0
      %p406 = por %p404, %p405
      %p407 = scmp.ne.s32.totalorder %s396, %s399
      %p408 = scmp.eq.s32.totalorder %s97, 3
      %p409 = por %p407, %p408
      %p410 = scmp.ne.s32.totalorder %s399, %s400
      %p411 = scmp.eq.s32.totalorder %s97, 0
      %p412 = por %p410, %p411
      %p413 = scmp.ne.s32.totalorder %s399, %s400
      %p414 = scmp.eq.s32.totalorder %s98, 3
      %p415 = por %p413, %p414
      %p417 = scmp.ne.s32.totalorder %s400, %s416
      %p418 = scmp.eq.s32.totalorder %s98, 0
      %p419 = por %p417, %p418
      %s420 = ssub.s32 %s100, %s107
      %p421 = scmp.eq.s32.totalorder %s420, 0
      %s423 = sadd.s32 %s422, 1
      %s424 = scalar_select %p421, %s422, %s423
      %p427 = pneg %p421
      %p428 = scmp.eq.s32.totalorder %s92, 3
      %p429 = por %p427, %p428
      %p430 = scmp.ne.s32.totalorder %s422, %s425
      %p431 = scmp.eq.s32.totalorder %s92, 0
      %p432 = por %p430, %p431
      %p433 = scmp.ne.s32.totalorder %s422, %s425
      %p434 = scmp.eq.s32.totalorder %s97, 3
      %p435 = por %p433, %p434
      %p436 = scmp.ne.s32.totalorder %s425, %s426
      %p437 = scmp.eq.s32.totalorder %s97, 0
      %p438 = por %p436, %p437
      %p439 = scmp.ne.s32.totalorder %s425, %s426
      %p440 = scmp.eq.s32.totalorder %s98, 3
      %p441 = por %p439, %p440
      %p443 = scmp.ne.s32.totalorder %s426, %s442
      %p444 = scmp.eq.s32.totalorder %s98, 0
      %p445 = por %p443, %p444
      %s446 = ssub.s32 %s100, %s107
      %p447 = scmp.eq.s32.totalorder %s446, 0
      %s449 = sadd.s32 %s448, 1
      %s450 = scalar_select %p447, %s448, %s449
      %p453 = pneg %p447
      %p454 = scmp.eq.s32.totalorder %s92, 3
      %p455 = por %p453, %p454
      %p456 = scmp.ne.s32.totalorder %s448, %s451
      %p457 = scmp.eq.s32.totalorder %s92, 0
      %p458 = por %p456, %p457
      %p459 = scmp.ne.s32.totalorder %s448, %s451
      %p460 = scmp.eq.s32.totalorder %s97, 3
      %p461 = por %p459, %p460
      %p462 = scmp.ne.s32.totalorder %s451, %s452
      %p463 = scmp.eq.s32.totalorder %s97, 0
      %p464 = por %p462, %p463
      %p465 = scmp.ne.s32.totalorder %s451, %s452
      %p466 = scmp.eq.s32.totalorder %s98, 3
      %p467 = por %p465, %p466
      %p469 = scmp.ne.s32.totalorder %s452, %s468
      %p470 = scmp.eq.s32.totalorder %s98, 0
      %p471 = por %p469, %p470
      %s472 = ssub.s32 %s100, %s107
      %p473 = scmp.eq.s32.totalorder %s472, 0
      %s475 = sadd.s32 %s474, 1
      %s476 = scalar_select %p473, %s474, %s475
      %p479 = pneg %p473
      %p480 = scmp.eq.s32.totalorder %s92, 3
      %p481 = por %p479, %p480
      %p482 = scmp.ne.s32.totalorder %s474, %s477
      %p483 = scmp.eq.s32.totalorder %s92, 0
      %p484 = por %p482, %p483
      %p485 = scmp.ne.s32.totalorder %s474, %s477
      %p486 = scmp.eq.s32.totalorder %s97, 3
      %p487 = por %p485, %p486
      %p488 = scmp.ne.s32.totalorder %s477, %s478
      %p489 = scmp.eq.s32.totalorder %s97, 0
      %p490 = por %p488, %p489
      %p491 = scmp.ne.s32.totalorder %s477, %s478
      %p492 = scmp.eq.s32.totalorder %s98, 3
      %p493 = por %p491, %p492
      %p495 = scmp.ne.s32.totalorder %s478, %s494
      %p496 = scmp.eq.s32.totalorder %s98, 0
      %p497 = por %p495, %p496
      %s498 = ssub.s32 %s100, %s107
      %p499 = scmp.eq.s32.totalorder %s498, 0
      %s501 = sadd.s32 %s500, 1
      %s502 = scalar_select %p499, %s500, %s501
      %p505 = pneg %p499
      %p506 = scmp.eq.s32.totalorder %s92, 3
      %p507 = por %p505, %p506
      %p508 = scmp.ne.s32.totalorder %s500, %s503
      %p509 = scmp.eq.s32.totalorder %s92, 0
      %p510 = por %p508, %p509
      %p511 = scmp.ne.s32.totalorder %s500, %s503
      %p512 = scmp.eq.s32.totalorder %s97, 3
      %p513 = por %p511, %p512
      %p514 = scmp.ne.s32.totalorder %s503, %s504
      %p515 = scmp.eq.s32.totalorder %s97, 0
      %p516 = por %p514, %p515
      %p517 = scmp.ne.s32.totalorder %s503, %s504
      %p518 = scmp.eq.s32.totalorder %s98, 3
      %p519 = por %p517, %p518
      %p521 = scmp.ne.s32.totalorder %s504, %s520
      %p522 = scmp.eq.s32.totalorder %s98, 0
      %p523 = por %p521, %p522
      %s524 = ssub.s32 %s100, %s107
      %p525 = scmp.eq.s32.totalorder %s524, 0
      %s527 = sadd.s32 %s526, 1
      %s528 = scalar_select %p525, %s526, %s527
      %p531 = pneg %p525
      %p532 = scmp.eq.s32.totalorder %s92, 3
      %p533 = por %p531, %p532
      %p534 = scmp.ne.s32.totalorder %s526, %s529
      %p535 = scmp.eq.s32.totalorder %s92, 0
      %p536 = por %p534, %p535
      %p537 = scmp.ne.s32.totalorder %s526, %s529
      %p538 = scmp.eq.s32.totalorder %s97, 3
      %p539 = por %p537, %p538
      %p540 = scmp.ne.s32.totalorder %s529, %s530
      %p541 = scmp.eq.s32.totalorder %s97, 0
      %p542 = por %p540, %p541
      %p543 = scmp.ne.s32.totalorder %s529, %s530
      %p544 = scmp.eq.s32.totalorder %s98, 3
      %p545 = por %p543, %p544
      %p547 = scmp.ne.s32.totalorder %s530, %s546
      %p548 = scmp.eq.s32.totalorder %s98, 0
      %p549 = por %p547, %p548
      %s550 = ssub.s32 %s100, %s107
      %p551 = scmp.eq.s32.totalorder %s550, 0
      %s553 = sadd.s32 %s552, 1
      %s554 = scalar_select %p551, %s552, %s553
      %p557 = pneg %p551
      %p558 = scmp.eq.s32.totalorder %s92, 3
      %p559 = por %p557, %p558
      %p560 = scmp.ne.s32.totalorder %s552, %s555
      %p561 = scmp.eq.s32.totalorder %s92, 0
      %p562 = por %p560, %p561
      %p563 = scmp.ne.s32.totalorder %s552, %s555
      %p564 = scmp.eq.s32.totalorder %s97, 3
      %p565 = por %p563, %p564
      %p566 = scmp.ne.s32.totalorder %s555, %s556
      %p567 = scmp.eq.s32.totalorder %s97, 0
      %p568 = por %p566, %p567
      %p569 = scmp.ne.s32.totalorder %s555, %s556
      %p570 = scmp.eq.s32.totalorder %s98, 3
      %p571 = por %p569, %p570
      %p573 = scmp.ne.s32.totalorder %s556, %s572
      %p574 = scmp.eq.s32.totalorder %s98, 0
      %p575 = por %p573, %p574
      %s577 = sadd.s32 %s576, 1
      %p580 = scmp.eq.s32.totalorder %s92, 3
      %p581 = scmp.ne.s32.totalorder %s576, %s578
      %p582 = scmp.eq.s32.totalorder %s92, 0
      %p583 = por %p581, %p582
      %p584 = scmp.ne.s32.totalorder %s576, %s578
      %p585 = scmp.eq.s32.totalorder %s97, 3
      %p586 = por %p584, %p585
      %p587 = scmp.ne.s32.totalorder %s578, %s579
      %p588 = scmp.eq.s32.totalorder %s97, 0
      %p589 = por %p587, %p588
      %p590 = scmp.ne.s32.totalorder %s578, %s579
      %p591 = scmp.eq.s32.totalorder %s98, 3
      %p592 = por %p590, %p591
      %p594 = scmp.ne.s32.totalorder %s579, %s593
      %p595 = scmp.eq.s32.totalorder %s98, 0
      %p596 = por %p594, %p595
      %s598 = sadd.s32 %s597, 1
      %p601 = scmp.eq.s32.totalorder %s92, 3
      %p602 = scmp.ne.s32.totalorder %s597, %s599
      %p603 = scmp.eq.s32.totalorder %s92, 0
      %p604 = por %p602, %p603
      %p605 = scmp.ne.s32.totalorder %s597, %s599
      %p606 = scmp.eq.s32.totalorder %s97, 3
      %p607 = por %p605, %p606
      %p608 = scmp.ne.s32.totalorder %s599, %s600
      %p609 = scmp.eq.s32.totalorder %s97, 0
      %p610 = por %p608, %p609
      %p611 = scmp.ne.s32.totalorder %s599, %s600
      %p612 = scmp.eq.s32.totalorder %s98, 3
      %p613 = por %p611, %p612
      %p615 = scmp.ne.s32.totalorder %s600, %s614
      %p616 = scmp.eq.s32.totalorder %s98, 0
      %p617 = por %p615, %p616
      %s619 = sadd.s32 %s618, 1
      %p622 = scmp.eq.s32.totalorder %s92, 3
      %p623 = scmp.ne.s32.totalorder %s618, %s620
      %p624 = scmp.eq.s32.totalorder %s92, 0
      %p625 = por %p623, %p624
      %p626 = scmp.ne.s32.totalorder %s618, %s620
      %p627 = scmp.eq.s32.totalorder %s97, 3
      %p628 = por %p626, %p627
      %p629 = scmp.ne.s32.totalorder %s620, %s621
      %p630 = scmp.eq.s32.totalorder %s97, 0
      %p631 = por %p629, %p630
      %p632 = scmp.ne.s32.totalorder %s620, %s621
      %p633 = scmp.eq.s32.totalorder %s98, 3
      %p634 = por %p632, %p633
      %p636 = scmp.ne.s32.totalorder %s621, %s635
      %p637 = scmp.eq.s32.totalorder %s98, 0
      %p638 = por %p636, %p637
      %s640 = sadd.s32 %s639, 1
      %p643 = scmp.eq.s32.totalorder %s92, 3
      %p644 = scmp.ne.s32.totalorder %s639, %s641
      %p645 = scmp.eq.s32.totalorder %s92, 0
      %p646 = por %p644, %p645
      %p647 = scmp.ne.s32.totalorder %s639, %s641
      %p648 = scmp.eq.s32.totalorder %s97, 3
      %p649 = por %p647, %p648
      %p650 = scmp.ne.s32.totalorder %s641, %s642
      %p651 = scmp.eq.s32.totalorder %s97, 0
      %p652 = por %p650, %p651
      %p653 = scmp.ne.s32.totalorder %s641, %s642
      %p654 = scmp.eq.s32.totalorder %s98, 3
      %p655 = por %p653, %p654
      %p657 = scmp.ne.s32.totalorder %s642, %s656
      %p658 = scmp.eq.s32.totalorder %s98, 0
      %p659 = por %p657, %p658
      %s661 = sadd.s32 %s660, 1
      %p664 = scmp.eq.s32.totalorder %s92, 3
      %p665 = scmp.ne.s32.totalorder %s660, %s662
      %p666 = scmp.eq.s32.totalorder %s92, 0
      %p667 = por %p665, %p666
      %p668 = scmp.ne.s32.totalorder %s660, %s662
      %p669 = scmp.eq.s32.totalorder %s97, 3
      %p670 = por %p668, %p669
      %p671 = scmp.ne.s32.totalorder %s662, %s663
      %p672 = scmp.eq.s32.totalorder %s97, 0
      %p673 = por %p671, %p672
      %p674 = scmp.ne.s32.totalorder %s662, %s663
      %p675 = scmp.eq.s32.totalorder %s98, 3
      %p676 = por %p674, %p675
      %p678 = scmp.ne.s32.totalorder %s663, %s677
      %p679 = scmp.eq.s32.totalorder %s98, 0
      %p680 = por %p678, %p679
      %s682 = sadd.s32 %s681, 1
      %p685 = scmp.eq.s32.totalorder %s92, 3
      %p686 = scmp.ne.s32.totalorder %s681, %s683
      %p687 = scmp.eq.s32.totalorder %s92, 0
      %p688 = por %p686, %p687
      %p689 = scmp.ne.s32.totalorder %s681, %s683
      %p690 = scmp.eq.s32.totalorder %s97, 3
      %p691 = por %p689, %p690
      %p692 = scmp.ne.s32.totalorder %s683, %s684
      %p693 = scmp.eq.s32.totalorder %s97, 0
      %p694 = por %p692, %p693
      %p695 = scmp.ne.s32.totalorder %s683, %s684
      %p696 = scmp.eq.s32.totalorder %s98, 3
      %p697 = por %p695, %p696
      %p699 = scmp.ne.s32.totalorder %s684, %s698
      %p700 = scmp.eq.s32.totalorder %s98, 0
      %p701 = por %p699, %p700
      %s703 = sadd.s32 %s702, 1
      %p706 = scmp.eq.s32.totalorder %s92, 3
      %p707 = scmp.ne.s32.totalorder %s702, %s704
      %p708 = scmp.eq.s32.totalorder %s92, 0
      %p709 = por %p707, %p708
      %p710 = scmp.ne.s32.totalorder %s702, %s704
      %p711 = scmp.eq.s32.totalorder %s97, 3
      %p712 = por %p710, %p711
      %p713 = scmp.ne.s32.totalorder %s704, %s705
      %p714 = scmp.eq.s32.totalorder %s97, 0
      %p715 = por %p713, %p714
      %p716 = scmp.ne.s32.totalorder %s704, %s705
      %p717 = scmp.eq.s32.totalorder %s98, 3
      %p718 = por %p716, %p717
      %p720 = scmp.ne.s32.totalorder %s705, %s719
      %p721 = scmp.eq.s32.totalorder %s98, 0
      %p722 = por %p720, %p721
      %s724 = sadd.s32 %s723, 1
      %p727 = scmp.eq.s32.totalorder %s92, 3
      %p728 = scmp.ne.s32.totalorder %s723, %s725
      %p729 = scmp.eq.s32.totalorder %s92, 0
      %p730 = por %p728, %p729
      %p731 = scmp.ne.s32.totalorder %s723, %s725
      %p732 = scmp.eq.s32.totalorder %s97, 3
      %p733 = por %p731, %p732
      %p734 = scmp.ne.s32.totalorder %s725, %s726
      %p735 = scmp.eq.s32.totalorder %s97, 0
      %p736 = por %p734, %p735
      %p737 = scmp.ne.s32.totalorder %s725, %s726
      %p738 = scmp.eq.s32.totalorder %s98, 3
      %p739 = por %p737, %p738
      %p741 = scmp.ne.s32.totalorder %s726, %s740
      %p742 = scmp.eq.s32.totalorder %s98, 0
      %p743 = por %p741, %p742
      %s745 = sadd.s32 %s744, 1
      %p748 = scmp.eq.s32.totalorder %s92, 3
      %p749 = scmp.ne.s32.totalorder %s744, %s746
      %p750 = scmp.eq.s32.totalorder %s92, 0
      %p751 = por %p749, %p750
      %p752 = scmp.ne.s32.totalorder %s744, %s746
      %p753 = scmp.eq.s32.totalorder %s97, 3
      %p754 = por %p752, %p753
      %p755 = scmp.ne.s32.totalorder %s746, %s747
      %p756 = scmp.eq.s32.totalorder %s97, 0
      %p757 = por %p755, %p756
      %p758 = scmp.ne.s32.totalorder %s746, %s747
      %p759 = scmp.eq.s32.totalorder %s98, 3
      %p760 = por %p758, %p759
      %p762 = scmp.ne.s32.totalorder %s747, %s761
      %p763 = scmp.eq.s32.totalorder %s98, 0
      %p764 = por %p762, %p763
      %s766 = sadd.s32 %s765, 1
      %p769 = scmp.eq.s32.totalorder %s92, 3
      %p770 = scmp.ne.s32.totalorder %s765, %s767
      %p771 = scmp.eq.s32.totalorder %s92, 0
      %p772 = por %p770, %p771
      %p773 = scmp.ne.s32.totalorder %s765, %s767
      %p774 = scmp.eq.s32.totalorder %s97, 3
      %p775 = por %p773, %p774
      %p776 = scmp.ne.s32.totalorder %s767, %s768
      %p777 = scmp.eq.s32.totalorder %s97, 0
      %p778 = por %p776, %p777
      %p779 = scmp.ne.s32.totalorder %s767, %s768
      %p780 = scmp.eq.s32.totalorder %s98, 3
      %p781 = por %p779, %p780
      %p783 = scmp.ne.s32.totalorder %s768, %s782
      %p784 = scmp.eq.s32.totalorder %s98, 0
      %p785 = por %p783, %p784
      %s787 = sadd.s32 %s786, 1
      %p790 = scmp.eq.s32.totalorder %s92, 3
      %p791 = scmp.ne.s32.totalorder %s786, %s788
      %p792 = scmp.eq.s32.totalorder %s92, 0
      %p793 = por %p791, %p792
      %p794 = scmp.ne.s32.totalorder %s786, %s788
      %p795 = scmp.eq.s32.totalorder %s97, 3
      %p796 = por %p794, %p795
      %p797 = scmp.ne.s32.totalorder %s788, %s789
      %p798 = scmp.eq.s32.totalorder %s97, 0
      %p799 = por %p797, %p798
      %p800 = scmp.ne.s32.totalorder %s788, %s789
      %p801 = scmp.eq.s32.totalorder %s98, 3
      %p802 = por %p800, %p801
      %p804 = scmp.ne.s32.totalorder %s789, %s803
      %p805 = scmp.eq.s32.totalorder %s98, 0
      %p806 = por %p804, %p805
      %s808 = sadd.s32 %s807, 1
      %p811 = scmp.eq.s32.totalorder %s92, 3
      %p812 = scmp.ne.s32.totalorder %s807, %s809
      %p813 = scmp.eq.s32.totalorder %s92, 0
      %p814 = por %p812, %p813
      %p815 = scmp.ne.s32.totalorder %s807, %s809
      %p816 = scmp.eq.s32.totalorder %s97, 3
      %p817 = por %p815, %p816
      %p818 = scmp.ne.s32.totalorder %s809, %s810
      %p819 = scmp.eq.s32.totalorder %s97, 0
      %p820 = por %p818, %p819
      %p821 = scmp.ne.s32.totalorder %s809, %s810
      %p822 = scmp.eq.s32.totalorder %s98, 3
      %p823 = por %p821, %p822
      %p825 = scmp.ne.s32.totalorder %s810, %s824
      %p826 = scmp.eq.s32.totalorder %s98, 0
      %p827 = por %p825, %p826
      %s828 = ssub.s32 %s99, %s111
      %p829 = scmp.eq.s32.totalorder %s828, 0
      %s831 = sadd.s32 %s830, 1
      %s832 = scalar_select %p829, %s830, %s831
      %p835 = pneg %p829
      %p836 = scmp.eq.s32.totalorder %s92, 3
      %p837 = por %p835, %p836
      %p838 = scmp.ne.s32.totalorder %s830, %s833
      %p839 = scmp.eq.s32.totalorder %s92, 0
      %p840 = por %p838, %p839
      %p841 = scmp.ne.s32.totalorder %s830, %s833
      %p842 = scmp.eq.s32.totalorder %s97, 3
      %p843 = por %p841, %p842
      %p844 = scmp.ne.s32.totalorder %s833, %s834
      %p845 = scmp.eq.s32.totalorder %s97, 0
      %p846 = por %p844, %p845
      %p847 = scmp.ne.s32.totalorder %s833, %s834
      %p848 = scmp.eq.s32.totalorder %s98, 3
      %p849 = por %p847, %p848
      %p851 = scmp.ne.s32.totalorder %s834, %s850
      %p852 = scmp.eq.s32.totalorder %s98, 0
      %p853 = por %p851, %p852
      %p854 = scmp.le.s32.totalorder 1, %s92
      %p855 = scmp.lt.s32.totalorder %s92, 5
      %p856 = pnand %p854, %p855
      %p857 = pneg %p856
      // Predicated region
      $region9: #{tpu_custom_call.1} parent=5 // pred_check
        _
      $region10: #{tpu_custom_call.1} parent=5 // pred_check_branch
        %859 = sbr.rel (%p856) target = $region12
      $region11: #{tpu_custom_call.1} parent=5 // pred_region
        %s860 = ssub.s32 %s92, 1
        // Predicated region
        $region13: #{tpu_custom_call.1} parent=11 // pred_check
          %p861 = pneg %p125
        $region14: #{tpu_custom_call.1} parent=11 // pred_check_branch
          %863 = sbr.rel (%p861) target = $region16
        $region15: #{tpu_custom_call.1} parent=11 // pred_region
          _
        $region16: #{tpu_custom_call.1} parent=11 // pred_fallthru
          _
        // Predicated region
        $region17: #{tpu_custom_call.1} parent=11 // pred_check
          %p864 = pneg %p146
        $region18: #{tpu_custom_call.1} parent=11 // pred_check_branch
          %866 = sbr.rel (%p864) target = $region20
        $region19: #{tpu_custom_call.1} parent=11 // pred_region
          %s868 = ssub.s32 16, 16
          %869 = vsyncadd [#allocation5], %s868
          %s871 = sshll.u32 [#allocation4], 4
          %s872 = int_to_ptr.vmem [resolvable:$true] %s871
          %874 = dma.hbm_to_vmem [thread:$0]  %s3, 16, %s872, [#allocation5]
        $region20: #{tpu_custom_call.1} parent=11 // pred_fallthru
          _
        // Predicated region
        $region21: #{tpu_custom_call.1} parent=11 // pred_check
          %p875 = pneg %p193
        $region22: #{tpu_custom_call.1} parent=11 // pred_check_branch
          %877 = sbr.rel (%p875) target = $region24
        $region23: #{tpu_custom_call.1} parent=11 // pred_region
          _
        $region24: #{tpu_custom_call.1} parent=11 // pred_fallthru
          _
        // Predicated region
        $region25: #{tpu_custom_call.1} parent=11 // pred_check
          %p878 = pneg %p214
        $region26: #{tpu_custom_call.1} parent=11 // pred_check_branch
          %880 = sbr.rel (%p878) target = $region28
        $region27: #{tpu_custom_call.1} parent=11 // pred_region
          %s882 = ssub.s32 16, 16
          %883 = vsyncadd [#allocation7], %s882
          %s885 = sshll.u32 [#allocation8], 4
          %s886 = int_to_ptr.vmem [resolvable:$true] %s885
          %888 = dma.hbm_to_vmem [thread:$0]  %s9, 16, %s886, [#allocation7]
        $region28: #{tpu_custom_call.1} parent=11 // pred_fallthru
          _
        // Predicated region
        $region29: #{tpu_custom_call.1} parent=11 // pred_check
          %p889 = pneg %p235
        $region30: #{tpu_custom_call.1} parent=11 // pred_check_branch
          %891 = sbr.rel (%p889) target = $region32
        $region31: #{tpu_custom_call.1} parent=11 // pred_region
          %s893 = ssub.s32 16, 16
          %894 = vsyncadd [#allocation10], %s893
          %s896 = sshll.u32 [#allocation9], 4
          %s897 = int_to_ptr.vmem [resolvable:$true] %s896
          %899 = dma.hbm_to_vmem [thread:$0]  %s11, 16, %s897, [#allocation10]
        $region32: #{tpu_custom_call.1} parent=11 // pred_fallthru
          _
        // Predicated region
        $region33: #{tpu_custom_call.1} parent=11 // pred_check
          %p900 = pneg %p256
        $region34: #{tpu_custom_call.1} parent=11 // pred_check_branch
          %902 = sbr.rel (%p900) target = $region36
        $region35: #{tpu_custom_call.1} parent=11 // pred_region
          %s904 = ssub.s32 512, 512
          %905 = vsyncadd [#allocation10], %s904
          %s906 = sshll.u32 [#allocation11], 4
          %s907 = int_to_ptr.vmem [resolvable:$true] %s906
          %912 = dma.hbm_to_vmem [thread:$0]  %s13, 512, %s907, [#allocation10], 128, 128, 8
        $region36: #{tpu_custom_call.1} parent=11 // pred_fallthru
          _
        // Predicated region
        $region37: #{tpu_custom_call.1} parent=11 // pred_check
          %p913 = pneg %p589
        $region38: #{tpu_custom_call.1} parent=11 // pred_check_branch
          %915 = sbr.rel (%p913) target = $region40
        $region39: #{tpu_custom_call.1} parent=11 // pred_region
          _
        $region40: #{tpu_custom_call.1} parent=11 // pred_fallthru
          _
        // Predicated region
        $region41: #{tpu_custom_call.1} parent=11 // pred_check
          %p916 = pneg %p610
        $region42: #{tpu_custom_call.1} parent=11 // pred_check_branch
          %918 = sbr.rel (%p916) target = $region44
        $region43: #{tpu_custom_call.1} parent=11 // pred_region
          _
        $region44: #{tpu_custom_call.1} parent=11 // pred_fallthru
          _
        // Predicated region
        $region45: #{tpu_custom_call.1} parent=11 // pred_check
          %p919 = pneg %p631
        $region46: #{tpu_custom_call.1} parent=11 // pred_check_branch
          %921 = sbr.rel (%p919) target = $region48
        $region47: #{tpu_custom_call.1} parent=11 // pred_region
          %s923 = ssub.s32 6144, 6144
          %924 = vsyncadd [#allocation28], %s923
          %s925 = sshll.u32 [#allocation27], 4
          %s926 = int_to_ptr.vmem [resolvable:$true] %s925
          %931 = dma.hbm_to_vmem [thread:$0]  %s43, 6144, %s926, [#allocation28], 384, 384, 24
        $region48: #{tpu_custom_call.1} parent=11 // pred_fallthru
          _
        // Predicated region
        $region49: #{tpu_custom_call.1} parent=11 // pred_check
          %p932 = pneg %p652
        $region50: #{tpu_custom_call.1} parent=11 // pred_check_branch
          %934 = sbr.rel (%p932) target = $region52
        $region51: #{tpu_custom_call.1} parent=11 // pred_region
          _
        $region52: #{tpu_custom_call.1} parent=11 // pred_fallthru
          _
        // Predicated region
        $region53: #{tpu_custom_call.1} parent=11 // pred_check
          %p935 = pneg %p673
        $region54: #{tpu_custom_call.1} parent=11 // pred_check_branch
          %937 = sbr.rel (%p935) target = $region56
        $region55: #{tpu_custom_call.1} parent=11 // pred_region
          _
        $region56: #{tpu_custom_call.1} parent=11 // pred_fallthru
          _
        // Predicated region
        $region57: #{tpu_custom_call.1} parent=11 // pred_check
          %p938 = pneg %p694
        $region58: #{tpu_custom_call.1} parent=11 // pred_check_branch
          %940 = sbr.rel (%p938) target = $region60
        $region59: #{tpu_custom_call.1} parent=11 // pred_region
          _
        $region60: #{tpu_custom_call.1} parent=11 // pred_fallthru
          _
        // Predicated region
        $region61: #{tpu_custom_call.1} parent=11 // pred_check
          %p941 = pneg %p715
        $region62: #{tpu_custom_call.1} parent=11 // pred_check_branch
          %943 = sbr.rel (%p941) target = $region64
        $region63: #{tpu_custom_call.1} parent=11 // pred_region
          %s945 = ssub.s32 18432, 18432
          %946 = vsyncadd [#allocation28], %s945
          %s947 = sshll.u32 [#allocation29], 4
          %s948 = int_to_ptr.vmem [resolvable:$true] %s947
          %953 = dma.hbm_to_vmem [thread:$0]  %s51, 18432, %s948, [#allocation28], 192, 192, 12
        $region64: #{tpu_custom_call.1} parent=11 // pred_fallthru
          _
        // Predicated region
        $region65: #{tpu_custom_call.1} parent=11 // pred_check
          %p954 = pneg %p736
        $region66: #{tpu_custom_call.1} parent=11 // pred_check_branch
          %956 = sbr.rel (%p954) target = $region68
        $region67: #{tpu_custom_call.1} parent=11 // pred_region
          _
        $region68: #{tpu_custom_call.1} parent=11 // pred_fallthru
          _
        // Predicated region
        $region69: #{tpu_custom_call.1} parent=11 // pred_check
          %p957 = pneg %p757
        $region70: #{tpu_custom_call.1} parent=11 // pred_check_branch
          %959 = sbr.rel (%p957) target = $region72
        $region71: #{tpu_custom_call.1} parent=11 // pred_region
          _
        $region72: #{tpu_custom_call.1} parent=11 // pred_fallthru
          _
        // Predicated region
        $region73: #{tpu_custom_call.1} parent=11 // pred_check
          %p960 = pneg %p778
        $region74: #{tpu_custom_call.1} parent=11 // pred_check_branch
          %962 = sbr.rel (%p960) target = $region76
        $region75: #{tpu_custom_call.1} parent=11 // pred_region
          _
        $region76: #{tpu_custom_call.1} parent=11 // pred_fallthru
          _
        // Predicated region
        $region77: #{tpu_custom_call.1} parent=11 // pred_check
          %p963 = pneg %p799
        $region78: #{tpu_custom_call.1} parent=11 // pred_check_branch
          %965 = sbr.rel (%p963) target = $region80
        $region79: #{tpu_custom_call.1} parent=11 // pred_region
          _
        $region80: #{tpu_custom_call.1} parent=11 // pred_fallthru
          _
        // Predicated region
        $region81: #{tpu_custom_call.1} parent=11 // pred_check
          %p966 = pneg %p820
        $region82: #{tpu_custom_call.1} parent=11 // pred_check_branch
          %968 = sbr.rel (%p966) target = $region84
        $region83: #{tpu_custom_call.1} parent=11 // pred_region
          _
        $region84: #{tpu_custom_call.1} parent=11 // pred_fallthru
          _
      $region12: #{tpu_custom_call.1} parent=5 // pred_fallthru
        _
      %p969 = scmp.lt.s32.totalorder %s92, 4
      // Predicated region
      $region85: #{tpu_custom_call.1} parent=5 // pred_check
        %p970 = pneg %p969
      $region86: #{tpu_custom_call.1} parent=5 // pred_check_branch
        %972 = sbr.rel (%p970) target = $region88
      $region87: #{tpu_custom_call.1} parent=5 // pred_region
        // Predicated region
        $region89: #{tpu_custom_call.1} parent=87 // pred_check
          %p973 = pneg %p166
        $region90: #{tpu_custom_call.1} parent=87 // pred_check_branch
          %975 = sbr.rel (%p973) target = $region92
        $region91: #{tpu_custom_call.1} parent=87 // pred_region
          %s976 = sand.u32 %s92, 1
          %s977 = scalar_lea.sflag [#allocation7], %s976
          %s978 = sand.u32 %s156, 1
          %s979 = smul.addr %s978, 512
          %s980 = scalar_lea.vmem [#allocation6], %s979
          %s981 = smul.u32 8, %s99
          %s983 = ssub.s32 8192, 8192
          %984 = vsyncadd %s977, %s983
          %s985 = smul.addr %s981, 8
          %s986 = smul.addr %s985, 128
          %s987 = scalar_lea.hbm %s5, %s986
          %s988 = sshll.u32 %s980, 4
          %s989 = int_to_ptr.vmem [resolvable:$true] %s988
          %994 = dma.hbm_to_vmem [thread:$0]  %s987, 8192, %s989, %s977, 256, 256, 16
        $region92: #{tpu_custom_call.1} parent=87 // pred_fallthru
          _
        // Predicated region
        $region93: #{tpu_custom_call.1} parent=87 // pred_check
          %p995 = pneg %p276
        $region94: #{tpu_custom_call.1} parent=87 // pred_check_branch
          %997 = sbr.rel (%p995) target = $region96
        $region95: #{tpu_custom_call.1} parent=87 // pred_region
          %s998 = sand.u32 %s92, 1
          %s999 = scalar_lea.sflag [#allocation13], %s998
          %s1000 = sand.u32 %s266, 1
          %s1001 = scalar_lea.vmem [#allocation12], %s1000
          %s1003 = ssub.s32 16, 16
          %1004 = vsyncadd %s999, %s1003
          %s1005 = smul.addr %s100, 16
          %s1006 = scalar_lea.hbm %s15, %s1005
          %s1008 = sshll.u32 %s1001, 4
          %s1009 = int_to_ptr.vmem [resolvable:$true] %s1008
          %1011 = dma.hbm_to_vmem [thread:$0]  %s1006, 16, %s1009, %s999
        $region96: #{tpu_custom_call.1} parent=87 // pred_fallthru
          _
        // Predicated region
        $region97: #{tpu_custom_call.1} parent=87 // pred_check
          %p1012 = pneg %p302
        $region98: #{tpu_custom_call.1} parent=87 // pred_check_branch
          %1014 = sbr.rel (%p1012) target = $region100
        $region99: #{tpu_custom_call.1} parent=87 // pred_region
          %s1015 = sand.u32 %s92, 1
          %s1016 = scalar_lea.sflag [#allocation13], %s1015
          %s1017 = sand.u32 %s292, 1
          %s1018 = scalar_lea.vmem [#allocation14], %s1017
          %s1020 = ssub.s32 16, 16
          %1021 = vsyncadd %s1016, %s1020
          %s1022 = smul.addr %s100, 16
          %s1023 = scalar_lea.hbm %s17, %s1022
          %s1025 = sshll.u32 %s1018, 4
          %s1026 = int_to_ptr.vmem [resolvable:$true] %s1025
          %1028 = dma.hbm_to_vmem [thread:$0]  %s1023, 16, %s1026, %s1016
        $region100: #{tpu_custom_call.1} parent=87 // pred_fallthru
          _
        // Predicated region
        $region101: #{tpu_custom_call.1} parent=87 // pred_check
          %p1029 = pneg %p328
        $region102: #{tpu_custom_call.1} parent=87 // pred_check_branch
          %1031 = sbr.rel (%p1029) target = $region104
        $region103: #{tpu_custom_call.1} parent=87 // pred_region
          %s1032 = sand.u32 %s92, 1
          %s1033 = scalar_lea.sflag [#allocation16], %s1032
          %s1034 = sand.u32 %s318, 1
          %s1035 = smul.addr %s1034, 192
          %s1036 = scalar_lea.vmem [#allocation15], %s1035
          %s1038 = ssub.s32 3072, 3072
          %1039 = vsyncadd %s1033, %s1038
          %s1040 = smul.addr %s100, 48
          %s1041 = smul.addr %s1040, 64
          %s1042 = scalar_lea.hbm %s19, %s1041
          %s1043 = sshll.u32 %s1036, 4
          %s1044 = int_to_ptr.vmem [resolvable:$true] %s1043
          %1049 = dma.hbm_to_vmem [thread:$0]  %s1042, 3072, %s1044, %s1033, 192, 192, 12
        $region104: #{tpu_custom_call.1} parent=87 // pred_fallthru
          _
        // Predicated region
        $region105: #{tpu_custom_call.1} parent=87 // pred_check
          %p1050 = pneg %p354
        $region106: #{tpu_custom_call.1} parent=87 // pred_check_branch
          %1052 = sbr.rel (%p1050) target = $region108
        $region107: #{tpu_custom_call.1} parent=87 // pred_region
          %s1053 = sand.u32 %s92, 1
          %s1054 = scalar_lea.sflag [#allocation16], %s1053
          %s1055 = sand.u32 %s344, 1
          %s1056 = smul.addr %s1055, 3
          %s1057 = scalar_lea.vmem [#allocation17], %s1056
          %s1059 = ssub.s32 48, 48
          %1060 = vsyncadd %s1054, %s1059
          %s1061 = smul.addr %s100, 3
          %s1062 = smul.addr %s1061, 16
          %s1063 = scalar_lea.hbm %s21, %s1062
          %s1065 = sshll.u32 %s1057, 4
          %s1066 = int_to_ptr.vmem [resolvable:$true] %s1065
          %1068 = dma.hbm_to_vmem [thread:$0]  %s1063, 48, %s1066, %s1054
        $region108: #{tpu_custom_call.1} parent=87 // pred_fallthru
          _
        // Predicated region
        $region109: #{tpu_custom_call.1} parent=87 // pred_check
          %p1069 = pneg %p380
        $region110: #{tpu_custom_call.1} parent=87 // pred_check_branch
          %1071 = sbr.rel (%p1069) target = $region112
        $region111: #{tpu_custom_call.1} parent=87 // pred_region
          %p1072 = scmp.lt.s32.totalorder %s100, 1
          %s1073 = scalar_select %p1072, %s100, 1
          %s1074 = smul.addr %s1073, 16
          %s1075 = smul.addr %s1074, 4
          %s1076 = scalar_lea.vmem %s23, %s1075
        $region112: #{tpu_custom_call.1} parent=87 // pred_fallthru
          _
        // Predicated region
        $region113: #{tpu_custom_call.1} parent=87 // pred_check
          %p1077 = pneg %p406
        $region114: #{tpu_custom_call.1} parent=87 // pred_check_branch
          %1079 = sbr.rel (%p1077) target = $region116
        $region115: #{tpu_custom_call.1} parent=87 // pred_region
          %s1080 = sand.u32 %s92, 1
          %s1081 = scalar_lea.sflag [#allocation19], %s1080
          %s1082 = sand.u32 %s396, 1
          %s1083 = scalar_lea.vmem [#allocation18], %s1082
          %s1085 = ssub.s32 16, 16
          %1086 = vsyncadd %s1081, %s1085
          %s1087 = smul.addr %s100, 16
          %s1088 = scalar_lea.hbm %s25, %s1087
          %s1090 = sshll.u32 %s1083, 4
          %s1091 = int_to_ptr.vmem [resolvable:$true] %s1090
          %1093 = dma.hbm_to_vmem [thread:$0]  %s1088, 16, %s1091, %s1081
        $region116: #{tpu_custom_call.1} parent=87 // pred_fallthru
          _
        // Predicated region
        $region117: #{tpu_custom_call.1} parent=87 // pred_check
          %p1094 = pneg %p432
        $region118: #{tpu_custom_call.1} parent=87 // pred_check_branch
          %1096 = sbr.rel (%p1094) target = $region120
        $region119: #{tpu_custom_call.1} parent=87 // pred_region
          %s1097 = sand.u32 %s92, 1
          %s1098 = scalar_lea.sflag [#allocation19], %s1097
          %s1099 = sand.u32 %s422, 1
          %s1100 = scalar_lea.vmem [#allocation20], %s1099
          %s1102 = ssub.s32 16, 16
          %1103 = vsyncadd %s1098, %s1102
          %s1104 = smul.addr %s100, 16
          %s1105 = scalar_lea.hbm %s27, %s1104
          %s1107 = sshll.u32 %s1100, 4
          %s1108 = int_to_ptr.vmem [resolvable:$true] %s1107
          %1110 = dma.hbm_to_vmem [thread:$0]  %s1105, 16, %s1108, %s1098
        $region120: #{tpu_custom_call.1} parent=87 // pred_fallthru
          _
        // Predicated region
        $region121: #{tpu_custom_call.1} parent=87 // pred_check
          %p1111 = pneg %p458
        $region122: #{tpu_custom_call.1} parent=87 // pred_check_branch
          %1113 = sbr.rel (%p1111) target = $region124
        $region123: #{tpu_custom_call.1} parent=87 // pred_region
          %s1114 = sand.u32 %s92, 1
          %s1115 = scalar_lea.sflag [#allocation22], %s1114
          %s1116 = sand.u32 %s448, 1
          %s1117 = scalar_lea.vmem [#allocation21], %s1116
          %s1119 = ssub.s32 16, 16
          %1120 = vsyncadd %s1115, %s1119
          %s1121 = smul.addr %s100, 16
          %s1122 = scalar_lea.hbm %s29, %s1121
          %s1124 = sshll.u32 %s1117, 4
          %s1125 = int_to_ptr.vmem [resolvable:$true] %s1124
          %1127 = dma.hbm_to_vmem [thread:$0]  %s1122, 16, %s1125, %s1115
        $region124: #{tpu_custom_call.1} parent=87 // pred_fallthru
          _
        // Predicated region
        $region125: #{tpu_custom_call.1} parent=87 // pred_check
          %p1128 = pneg %p484
        $region126: #{tpu_custom_call.1} parent=87 // pred_check_branch
          %1130 = sbr.rel (%p1128) target = $region128
        $region127: #{tpu_custom_call.1} parent=87 // pred_region
          %s1131 = sand.u32 %s92, 1
          %s1132 = scalar_lea.sflag [#allocation22], %s1131
          %s1133 = sand.u32 %s474, 1
          %s1134 = smul.addr %s1133, 256
          %s1135 = scalar_lea.vmem [#allocation23], %s1134
          %s1137 = ssub.s32 4096, 4096
          %1138 = vsyncadd %s1132, %s1137
          %s1139 = smul.addr %s100, 64
          %s1140 = smul.addr %s1139, 64
          %s1141 = scalar_lea.hbm %s31, %s1140
          %s1142 = sshll.u32 %s1135, 4
          %s1143 = int_to_ptr.vmem [resolvable:$true] %s1142
          %1148 = dma.hbm_to_vmem [thread:$0]  %s1141, 4096, %s1143, %s1132, 256, 256, 16
        $region128: #{tpu_custom_call.1} parent=87 // pred_fallthru
          _
        // Predicated region
        $region129: #{tpu_custom_call.1} parent=87 // pred_check
          %p1149 = pneg %p510
        $region130: #{tpu_custom_call.1} parent=87 // pred_check_branch
          %1151 = sbr.rel (%p1149) target = $region132
        $region131: #{tpu_custom_call.1} parent=87 // pred_region
          %p1152 = scmp.lt.s32.totalorder %s100, 1
          %s1153 = scalar_select %p1152, %s100, 1
          %s1154 = smul.addr %s1153, 4
          %s1155 = scalar_lea.vmem %s33, %s1154
        $region132: #{tpu_custom_call.1} parent=87 // pred_fallthru
          _
        // Predicated region
        $region133: #{tpu_custom_call.1} parent=87 // pred_check
          %p1156 = pneg %p536
        $region134: #{tpu_custom_call.1} parent=87 // pred_check_branch
          %1158 = sbr.rel (%p1156) target = $region136
        $region135: #{tpu_custom_call.1} parent=87 // pred_region
          %s1159 = sand.u32 %s92, 1
          %s1160 = scalar_lea.sflag [#allocation25], %s1159
          %s1161 = sand.u32 %s526, 1
          %s1162 = smul.addr %s1161, 256
          %s1163 = scalar_lea.vmem [#allocation24], %s1162
          %s1165 = ssub.s32 4096, 4096
          %1166 = vsyncadd %s1160, %s1165
          %s1167 = smul.addr %s100, 64
          %s1168 = smul.addr %s1167, 64
          %s1169 = scalar_lea.hbm %s35, %s1168
          %s1170 = sshll.u32 %s1163, 4
          %s1171 = int_to_ptr.vmem [resolvable:$true] %s1170
          %1176 = dma.hbm_to_vmem [thread:$0]  %s1169, 4096, %s1171, %s1160, 64, 64, 4
        $region136: #{tpu_custom_call.1} parent=87 // pred_fallthru
          _
        // Predicated region
        $region137: #{tpu_custom_call.1} parent=87 // pred_check
          %p1177 = pneg %p562
        $region138: #{tpu_custom_call.1} parent=87 // pred_check_branch
          %1179 = sbr.rel (%p1177) target = $region140
        $region139: #{tpu_custom_call.1} parent=87 // pred_region
          %s1180 = sand.u32 %s92, 1
          %s1181 = scalar_lea.sflag [#allocation25], %s1180
          %s1182 = sand.u32 %s552, 1
          %s1183 = scalar_lea.vmem [#allocation26], %s1182
          %s1185 = ssub.s32 16, 16
          %1186 = vsyncadd %s1181, %s1185
          %s1187 = smul.addr %s100, 16
          %s1188 = scalar_lea.hbm %s37, %s1187
          %s1190 = sshll.u32 %s1183, 4
          %s1191 = int_to_ptr.vmem [resolvable:$true] %s1190
          %1193 = dma.hbm_to_vmem [thread:$0]  %s1188, 16, %s1191, %s1181
        $region140: #{tpu_custom_call.1} parent=87 // pred_fallthru
          _
      $region88: #{tpu_custom_call.1} parent=5 // pred_fallthru
        _
      %p1194 = scmp.le.s32.totalorder 1, %s92
      %p1195 = scmp.lt.s32.totalorder %s92, 5
      %p1196 = pnand %p1194, %p1195
      %p1197 = pneg %p1196
      // Predicated region
      $region141: #{tpu_custom_call.1} parent=5 // pred_check
        _
      $region142: #{tpu_custom_call.1} parent=5 // pred_check_branch
        %1199 = sbr.rel (%p1196) target = $region144
      $region143: #{tpu_custom_call.1} parent=5 // pred_region
        %s1200 = ssub.s32 %s92, 1
        // Predicated region
        $region145: #{tpu_custom_call.1} parent=143 // pred_check
          %p1201 = pneg %p146
        $region146: #{tpu_custom_call.1} parent=143 // pred_check_branch
          %1203 = sbr.rel (%p1201) target = $region148
        $region147: #{tpu_custom_call.1} parent=143 // pred_region
          %1204 = dma.done [#allocation5], 16
        $region148: #{tpu_custom_call.1} parent=143 // pred_fallthru
          _
        %s1205 = sand.u32 %s97, 1
        %s1206 = scalar_lea.sflag [#allocation7], %s1205
        %s1207 = sand.u32 %s159, 1
        %s1208 = smul.addr %s1207, 512
        %s1209 = scalar_lea.vmem [#allocation6], %s1208
        // Predicated region
        $region149: #{tpu_custom_call.1} parent=143 // pred_check
          %p1210 = pneg %p172
        $region150: #{tpu_custom_call.1} parent=143 // pred_check_branch
          %1212 = sbr.rel (%p1210) target = $region152
        $region151: #{tpu_custom_call.1} parent=143 // pred_region
          %1213 = dma.done %s1206, 8192
        $region152: #{tpu_custom_call.1} parent=143 // pred_fallthru
          _
        // Predicated region
        $region153: #{tpu_custom_call.1} parent=143 // pred_check
          %p1214 = pneg %p214
        $region154: #{tpu_custom_call.1} parent=143 // pred_check_branch
          %1216 = sbr.rel (%p1214) target = $region156
        $region155: #{tpu_custom_call.1} parent=143 // pred_region
          %1217 = dma.done [#allocation7], 16
        $region156: #{tpu_custom_call.1} parent=143 // pred_fallthru
          _
        // Predicated region
        $region157: #{tpu_custom_call.1} parent=143 // pred_check
          %p1218 = pneg %p235
        $region158: #{tpu_custom_call.1} parent=143 // pred_check_branch
          %1220 = sbr.rel (%p1218) target = $region160
        $region159: #{tpu_custom_call.1} parent=143 // pred_region
          %1221 = dma.done [#allocation10], 16
        $region160: #{tpu_custom_call.1} parent=143 // pred_fallthru
          _
        // Predicated region
        $region161: #{tpu_custom_call.1} parent=143 // pred_check
          %p1222 = pneg %p256
        $region162: #{tpu_custom_call.1} parent=143 // pred_check_branch
          %1224 = sbr.rel (%p1222) target = $region164
        $region163: #{tpu_custom_call.1} parent=143 // pred_region
          %1225 = dma.done [#allocation10], 512
        $region164: #{tpu_custom_call.1} parent=143 // pred_fallthru
          _
        %s1226 = sand.u32 %s97, 1
        %s1227 = scalar_lea.sflag [#allocation13], %s1226
        %s1228 = sand.u32 %s269, 1
        %s1229 = scalar_lea.vmem [#allocation12], %s1228
        // Predicated region
        $region165: #{tpu_custom_call.1} parent=143 // pred_check
          %p1230 = pneg %p282
        $region166: #{tpu_custom_call.1} parent=143 // pred_check_branch
          %1232 = sbr.rel (%p1230) target = $region168
        $region167: #{tpu_custom_call.1} parent=143 // pred_region
          %1233 = dma.done %s1227, 16
        $region168: #{tpu_custom_call.1} parent=143 // pred_fallthru
          _
        %s1234 = sand.u32 %s97, 1
        %s1235 = scalar_lea.sflag [#allocation13], %s1234
        %s1236 = sand.u32 %s295, 1
        %s1237 = scalar_lea.vmem [#allocation14], %s1236
        // Predicated region
        $region169: #{tpu_custom_call.1} parent=143 // pred_check
          %p1238 = pneg %p308
        $region170: #{tpu_custom_call.1} parent=143 // pred_check_branch
          %1240 = sbr.rel (%p1238) target = $region172
        $region171: #{tpu_custom_call.1} parent=143 // pred_region
          %1241 = dma.done %s1235, 16
        $region172: #{tpu_custom_call.1} parent=143 // pred_fallthru
          _
        %s1242 = sand.u32 %s97, 1
        %s1243 = scalar_lea.sflag [#allocation16], %s1242
        %s1244 = sand.u32 %s321, 1
        %s1245 = smul.addr %s1244, 192
        %s1246 = scalar_lea.vmem [#allocation15], %s1245
        // Predicated region
        $region173: #{tpu_custom_call.1} parent=143 // pred_check
          %p1247 = pneg %p334
        $region174: #{tpu_custom_call.1} parent=143 // pred_check_branch
          %1249 = sbr.rel (%p1247) target = $region176
        $region175: #{tpu_custom_call.1} parent=143 // pred_region
          %1250 = dma.done %s1243, 3072
        $region176: #{tpu_custom_call.1} parent=143 // pred_fallthru
          _
        %s1251 = sand.u32 %s97, 1
        %s1252 = scalar_lea.sflag [#allocation16], %s1251
        %s1253 = sand.u32 %s347, 1
        %s1254 = smul.addr %s1253, 3
        %s1255 = scalar_lea.vmem [#allocation17], %s1254
        // Predicated region
        $region177: #{tpu_custom_call.1} parent=143 // pred_check
          %p1256 = pneg %p360
        $region178: #{tpu_custom_call.1} parent=143 // pred_check_branch
          %1258 = sbr.rel (%p1256) target = $region180
        $region179: #{tpu_custom_call.1} parent=143 // pred_region
          %1259 = dma.done %s1252, 48
        $region180: #{tpu_custom_call.1} parent=143 // pred_fallthru
          _
        %s1260 = sand.u32 %s97, 1
        %s1261 = scalar_lea.sflag [#allocation19], %s1260
        %s1262 = sand.u32 %s399, 1
        %s1263 = scalar_lea.vmem [#allocation18], %s1262
        // Predicated region
        $region181: #{tpu_custom_call.1} parent=143 // pred_check
          %p1264 = pneg %p412
        $region182: #{tpu_custom_call.1} parent=143 // pred_check_branch
          %1266 = sbr.rel (%p1264) target = $region184
        $region183: #{tpu_custom_call.1} parent=143 // pred_region
          %1267 = dma.done %s1261, 16
        $region184: #{tpu_custom_call.1} parent=143 // pred_fallthru
          _
        %s1268 = sand.u32 %s97, 1
        %s1269 = scalar_lea.sflag [#allocation19], %s1268
        %s1270 = sand.u32 %s425, 1
        %s1271 = scalar_lea.vmem [#allocation20], %s1270
        // Predicated region
        $region185: #{tpu_custom_call.1} parent=143 // pred_check
          %p1272 = pneg %p438
        $region186: #{tpu_custom_call.1} parent=143 // pred_check_branch
          %1274 = sbr.rel (%p1272) target = $region188
        $region187: #{tpu_custom_call.1} parent=143 // pred_region
          %1275 = dma.done %s1269, 16
        $region188: #{tpu_custom_call.1} parent=143 // pred_fallthru
          _
        %s1276 = sand.u32 %s97, 1
        %s1277 = scalar_lea.sflag [#allocation22], %s1276
        %s1278 = sand.u32 %s451, 1
        %s1279 = scalar_lea.vmem [#allocation21], %s1278
        // Predicated region
        $region189: #{tpu_custom_call.1} parent=143 // pred_check
          %p1280 = pneg %p464
        $region190: #{tpu_custom_call.1} parent=143 // pred_check_branch
          %1282 = sbr.rel (%p1280) target = $region192
        $region191: #{tpu_custom_call.1} parent=143 // pred_region
          %1283 = dma.done %s1277, 16
        $region192: #{tpu_custom_call.1} parent=143 // pred_fallthru
          _
        %s1284 = sand.u32 %s97, 1
        %s1285 = scalar_lea.sflag [#allocation22], %s1284
        %s1286 = sand.u32 %s477, 1
        %s1287 = smul.addr %s1286, 256
        %s1288 = scalar_lea.vmem [#allocation23], %s1287
        // Predicated region
        $region193: #{tpu_custom_call.1} parent=143 // pred_check
          %p1289 = pneg %p490
        $region194: #{tpu_custom_call.1} parent=143 // pred_check_branch
          %1291 = sbr.rel (%p1289) target = $region196
        $region195: #{tpu_custom_call.1} parent=143 // pred_region
          %1292 = dma.done %s1285, 4096
        $region196: #{tpu_custom_call.1} parent=143 // pred_fallthru
          _
        %s1293 = sand.u32 %s97, 1
        %s1294 = scalar_lea.sflag [#allocation25], %s1293
        %s1295 = sand.u32 %s529, 1
        %s1296 = smul.addr %s1295, 256
        %s1297 = scalar_lea.vmem [#allocation24], %s1296
        // Predicated region
        $region197: #{tpu_custom_call.1} parent=143 // pred_check
          %p1298 = pneg %p542
        $region198: #{tpu_custom_call.1} parent=143 // pred_check_branch
          %1300 = sbr.rel (%p1298) target = $region200
        $region199: #{tpu_custom_call.1} parent=143 // pred_region
          %1301 = dma.done %s1294, 4096
        $region200: #{tpu_custom_call.1} parent=143 // pred_fallthru
          _
        %s1302 = sand.u32 %s97, 1
        %s1303 = scalar_lea.sflag [#allocation25], %s1302
        %s1304 = sand.u32 %s555, 1
        %s1305 = scalar_lea.vmem [#allocation26], %s1304
        // Predicated region
        $region201: #{tpu_custom_call.1} parent=143 // pred_check
          %p1306 = pneg %p568
        $region202: #{tpu_custom_call.1} parent=143 // pred_check_branch
          %1308 = sbr.rel (%p1306) target = $region204
        $region203: #{tpu_custom_call.1} parent=143 // pred_region
          %1309 = dma.done %s1303, 16
        $region204: #{tpu_custom_call.1} parent=143 // pred_fallthru
          _
        // Predicated region
        $region205: #{tpu_custom_call.1} parent=143 // pred_check
          %p1310 = pneg %p631
        $region206: #{tpu_custom_call.1} parent=143 // pred_check_branch
          %1312 = sbr.rel (%p1310) target = $region208
        $region207: #{tpu_custom_call.1} parent=143 // pred_region
          %1313 = dma.done [#allocation28], 6144
        $region208: #{tpu_custom_call.1} parent=143 // pred_fallthru
          _
        // Predicated region
        $region209: #{tpu_custom_call.1} parent=143 // pred_check
          %p1314 = pneg %p715
        $region210: #{tpu_custom_call.1} parent=143 // pred_check_branch
          %1316 = sbr.rel (%p1314) target = $region212
        $region211: #{tpu_custom_call.1} parent=143 // pred_region
          %1317 = dma.done [#allocation28], 18432
        $region212: #{tpu_custom_call.1} parent=143 // pred_fallthru
          _
        %p1318 = pneg %p125
        %p1319 = pneg %p122
        %p1320 = pneg %p146
        %p1321 = pneg %p143
        %s1322 = sand.u32 %s97, 1
        %s1323 = scalar_lea.sflag [#allocation7], %s1322
        %s1324 = sand.u32 %s159, 1
        %s1325 = smul.addr %s1324, 512
        %s1326 = scalar_lea.vmem [#allocation6], %s1325
        %p1327 = pneg %p172
        %p1328 = pneg %p169
        %p1329 = pneg %p193
        %p1330 = pneg %p190
        %p1331 = pneg %p214
        %p1332 = pneg %p211
        %p1333 = pneg %p235
        %p1334 = pneg %p232
        %p1335 = pneg %p256
        %p1336 = pneg %p253
        %s1337 = sand.u32 %s97, 1
        %s1338 = scalar_lea.sflag [#allocation13], %s1337
        %s1339 = sand.u32 %s269, 1
        %s1340 = scalar_lea.vmem [#allocation12], %s1339
        %p1341 = pneg %p282
        %p1342 = pneg %p279
        %s1343 = sand.u32 %s97, 1
        %s1344 = scalar_lea.sflag [#allocation13], %s1343
        %s1345 = sand.u32 %s295, 1
        %s1346 = scalar_lea.vmem [#allocation14], %s1345
        %p1347 = pneg %p308
        %p1348 = pneg %p305
        %s1349 = sand.u32 %s97, 1
        %s1350 = scalar_lea.sflag [#allocation16], %s1349
        %s1351 = sand.u32 %s321, 1
        %s1352 = smul.addr %s1351, 192
        %s1353 = scalar_lea.vmem [#allocation15], %s1352
        %p1354 = pneg %p334
        %p1355 = pneg %p331
        %s1356 = sand.u32 %s97, 1
        %s1357 = scalar_lea.sflag [#allocation16], %s1356
        %s1358 = sand.u32 %s347, 1
        %s1359 = smul.addr %s1358, 3
        %s1360 = scalar_lea.vmem [#allocation17], %s1359
        %p1361 = pneg %p360
        %p1362 = pneg %p357
        %p1363 = scmp.lt.s32.totalorder %s102, 1
        %s1364 = scalar_select %p1363, %s102, 1
        %s1365 = smul.addr %s1364, 16
        %s1366 = smul.addr %s1365, 4
        %s1367 = scalar_lea.vmem %s23, %s1366
        %p1368 = pneg %p386
        %p1369 = pneg %p383
        %s1370 = sand.u32 %s97, 1
        %s1371 = scalar_lea.sflag [#allocation19], %s1370
        %s1372 = sand.u32 %s399, 1
        %s1373 = scalar_lea.vmem [#allocation18], %s1372
        %p1374 = pneg %p412
        %p1375 = pneg %p409
        %s1376 = sand.u32 %s97, 1
        %s1377 = scalar_lea.sflag [#allocation19], %s1376
        %s1378 = sand.u32 %s425, 1
        %s1379 = scalar_lea.vmem [#allocation20], %s1378
        %p1380 = pneg %p438
        %p1381 = pneg %p435
        %s1382 = sand.u32 %s97, 1
        %s1383 = scalar_lea.sflag [#allocation22], %s1382
        %s1384 = sand.u32 %s451, 1
        %s1385 = scalar_lea.vmem [#allocation21], %s1384
        %p1386 = pneg %p464
        %p1387 = pneg %p461
        %s1388 = sand.u32 %s97, 1
        %s1389 = scalar_lea.sflag [#allocation22], %s1388
        %s1390 = sand.u32 %s477, 1
        %s1391 = smul.addr %s1390, 256
        %s1392 = scalar_lea.vmem [#allocation23], %s1391
        %p1393 = pneg %p490
        %p1394 = pneg %p487
        %p1395 = scmp.lt.s32.totalorder %s102, 1
        %s1396 = scalar_select %p1395, %s102, 1
        %s1397 = smul.addr %s1396, 4
        %s1398 = scalar_lea.vmem %s33, %s1397
        %p1399 = pneg %p516
        %p1400 = pneg %p513
        %s1401 = sand.u32 %s97, 1
        %s1402 = scalar_lea.sflag [#allocation25], %s1401
        %s1403 = sand.u32 %s529, 1
        %s1404 = smul.addr %s1403, 256
        %s1405 = scalar_lea.vmem [#allocation24], %s1404
        %p1406 = pneg %p542
        %p1407 = pneg %p539
        %s1408 = sand.u32 %s97, 1
        %s1409 = scalar_lea.sflag [#allocation25], %s1408
        %s1410 = sand.u32 %s555, 1
        %s1411 = scalar_lea.vmem [#allocation26], %s1410
        %p1412 = pneg %p568
        %p1413 = pneg %p565
        %p1414 = pneg %p589
        %p1415 = pneg %p586
        %p1416 = pneg %p610
        %p1417 = pneg %p607
        %p1418 = pneg %p631
        %p1419 = pneg %p628
        %p1420 = pneg %p652
        %p1421 = pneg %p649
        %p1422 = pneg %p673
        %p1423 = pneg %p670
        %p1424 = pneg %p694
        %p1425 = pneg %p691
        %p1426 = pneg %p715
        %p1427 = pneg %p712
        %p1428 = pneg %p736
        %p1429 = pneg %p733
        %p1430 = pneg %p757
        %p1431 = pneg %p754
        %p1432 = pneg %p778
        %p1433 = pneg %p775
        %p1434 = pneg %p799
        %p1435 = pneg %p796
        %p1436 = pneg %p820
        %p1437 = pneg %p817
        %p1438 = pneg %p846
        %p1439 = pneg %p843
        %p1440 = scmp.lt.s32.totalorder %s101, 1
        %s1441 = scalar_select %p1440, %s101, 1
        %s1442 = smul.addr %s1441, 8
        %s1443 = scalar_lea.vmem %s63, %s1442
        %s1444 = smul.u32 8, %s101
        %p1445 = scmp.lt.s32.totalorder %s102, 1
        %s1446 = scalar_select %p1445, %s102, 1
        %s1447 = smul.addr %s1446, 16
        %s1448 = smul.addr %s1447, 4
        %s1449 = scalar_lea.vmem %s23, %s1448
        %p1450 = scmp.lt.s32.totalorder %s102, 1
        %s1451 = scalar_select %p1450, %s102, 1
        %s1452 = smul.addr %s1451, 4
        %s1453 = scalar_lea.vmem %s33, %s1452
        %p1454 = scmp.lt.s32.totalorder %s101, 1
        %s1455 = scalar_select %p1454, %s101, 1
        %s1456 = smul.addr %s1455, 8
        %s1457 = scalar_lea.vmem %s63, %s1456
        %p1459 = scmp.eq.s32.totalorder %s102, 0
        // Predicated region
        $region213: #{tpu_custom_call.1} parent=143 // pred_check
          %p1460 = pneg %p1459
        $region214: #{tpu_custom_call.1} parent=143 // pred_check_branch
          %1462 = sbr.rel (%p1460) target = $region216
        $region215: #{tpu_custom_call.1} parent=143 // pred_region
          %v1463 = vld [vmem:[%s1209] sm:$0xff]
          %v1464 = vld [vmem:[%s1209 + $0x8] sm:$0xff]
          %v1465 = vld [vmem:[%s1209 + $0x10] sm:$0xff]
          %v1466 = vld [vmem:[%s1209 + $0x18] sm:$0xff]
          %v1467 = vld [vmem:[%s1209 + $0x20] sm:$0xff]
          %v1468 = vld [vmem:[%s1209 + $0x28] sm:$0xff]
          %v1469 = vld [vmem:[%s1209 + $0x30] sm:$0xff]
          %v1470 = vld [vmem:[%s1209 + $0x38] sm:$0xff]
          %v1471 = vld [vmem:[%s1209 + $0x40] sm:$0xff]
          %v1472 = vld [vmem:[%s1209 + $0x48] sm:$0xff]
          %v1473 = vld [vmem:[%s1209 + $0x50] sm:$0xff]
          %v1474 = vld [vmem:[%s1209 + $0x58] sm:$0xff]
          %v1475 = vld [vmem:[%s1209 + $0x60] sm:$0xff]
          %v1476 = vld [vmem:[%s1209 + $0x68] sm:$0xff]
          %v1477 = vld [vmem:[%s1209 + $0x70] sm:$0xff]
          %v1478 = vld [vmem:[%s1209 + $0x78] sm:$0xff]
          %v1479 = vld [vmem:[%s1209 + $0x80] sm:$0xff]
          %v1480 = vld [vmem:[%s1209 + $0x88] sm:$0xff]
          %v1481 = vld [vmem:[%s1209 + $0x90] sm:$0xff]
          %v1482 = vld [vmem:[%s1209 + $0x98] sm:$0xff]
          %v1483 = vld [vmem:[%s1209 + $0xa0] sm:$0xff]
          %v1484 = vld [vmem:[%s1209 + $0xa8] sm:$0xff]
          %v1485 = vld [vmem:[%s1209 + $0xb0] sm:$0xff]
          %v1486 = vld [vmem:[%s1209 + $0xb8] sm:$0xff]
          %v1487 = vld [vmem:[%s1209 + $0xc0] sm:$0xff]
          %v1488 = vld [vmem:[%s1209 + $0xc8] sm:$0xff]
          %v1489 = vld [vmem:[%s1209 + $0xd0] sm:$0xff]
          %v1490 = vld [vmem:[%s1209 + $0xd8] sm:$0xff]
          %v1491 = vld [vmem:[%s1209 + $0xe0] sm:$0xff]
          %v1492 = vld [vmem:[%s1209 + $0xe8] sm:$0xff]
          %v1493 = vld [vmem:[%s1209 + $0xf0] sm:$0xff]
          %v1494 = vld [vmem:[%s1209 + $0xf8] sm:$0xff]
          %v1495 = vld [vmem:[%s1209 + $0x100] sm:$0xff]
          %v1496 = vld [vmem:[%s1209 + $0x108] sm:$0xff]
          %v1497 = vld [vmem:[%s1209 + $0x110] sm:$0xff]
          %v1498 = vld [vmem:[%s1209 + $0x118] sm:$0xff]
          %v1499 = vld [vmem:[%s1209 + $0x120] sm:$0xff]
          %v1500 = vld [vmem:[%s1209 + $0x128] sm:$0xff]
          %v1501 = vld [vmem:[%s1209 + $0x130] sm:$0xff]
          %v1502 = vld [vmem:[%s1209 + $0x138] sm:$0xff]
          %v1503 = vld [vmem:[%s1209 + $0x140] sm:$0xff]
          %v1504 = vld [vmem:[%s1209 + $0x148] sm:$0xff]
          %v1505 = vld [vmem:[%s1209 + $0x150] sm:$0xff]
          %v1506 = vld [vmem:[%s1209 + $0x158] sm:$0xff]
          %v1507 = vld [vmem:[%s1209 + $0x160] sm:$0xff]
          %v1508 = vld [vmem:[%s1209 + $0x168] sm:$0xff]
          %v1509 = vld [vmem:[%s1209 + $0x170] sm:$0xff]
          %v1510 = vld [vmem:[%s1209 + $0x178] sm:$0xff]
          %v1511 = vld [vmem:[%s1209 + $0x180] sm:$0xff]
          %v1512 = vld [vmem:[%s1209 + $0x188] sm:$0xff]
          %v1513 = vld [vmem:[%s1209 + $0x190] sm:$0xff]
          %v1514 = vld [vmem:[%s1209 + $0x198] sm:$0xff]
          %v1515 = vld [vmem:[%s1209 + $0x1a0] sm:$0xff]
          %v1516 = vld [vmem:[%s1209 + $0x1a8] sm:$0xff]
          %v1517 = vld [vmem:[%s1209 + $0x1b0] sm:$0xff]
          %v1518 = vld [vmem:[%s1209 + $0x1b8] sm:$0xff]
          %v1519 = vld [vmem:[%s1209 + $0x1c0] sm:$0xff]
          %v1520 = vld [vmem:[%s1209 + $0x1c8] sm:$0xff]
          %v1521 = vld [vmem:[%s1209 + $0x1d0] sm:$0xff]
          %v1522 = vld [vmem:[%s1209 + $0x1d8] sm:$0xff]
          %v1523 = vld [vmem:[%s1209 + $0x1e0] sm:$0xff]
          %v1524 = vld [vmem:[%s1209 + $0x1e8] sm:$0xff]
          %v1525 = vld [vmem:[%s1209 + $0x1f0] sm:$0xff]
          %v1526 = vld [vmem:[%s1209 + $0x1f8] sm:$0xff]
          %v1527 = vld [vmem:[#allocation3] sm:$0x1]
          %s1528 = vtos %v1527
          %v1529 = vstv %s1528
          %v1530 = vmul.f32 %v1463, %v1529
          %v1531 = vmul.f32 %v1464, %v1529
          %v1532 = vmul.f32 %v1465, %v1529
          %v1533 = vmul.f32 %v1466, %v1529
          %v1534 = vmul.f32 %v1467, %v1529
          %v1535 = vmul.f32 %v1468, %v1529
          %v1536 = vmul.f32 %v1469, %v1529
          %v1537 = vmul.f32 %v1470, %v1529
          %v1538 = vmul.f32 %v1471, %v1529
          %v1539 = vmul.f32 %v1472, %v1529
          %v1540 = vmul.f32 %v1473, %v1529
          %v1541 = vmul.f32 %v1474, %v1529
          %v1542 = vmul.f32 %v1475, %v1529
          %v1543 = vmul.f32 %v1476, %v1529
          %v1544 = vmul.f32 %v1477, %v1529
          %v1545 = vmul.f32 %v1478, %v1529
          %v1546 = vmul.f32 %v1479, %v1529
          %v1547 = vmul.f32 %v1480, %v1529
          %v1548 = vmul.f32 %v1481, %v1529
          %v1549 = vmul.f32 %v1482, %v1529
          %v1550 = vmul.f32 %v1483, %v1529
          %v1551 = vmul.f32 %v1484, %v1529
          %v1552 = vmul.f32 %v1485, %v1529
          %v1553 = vmul.f32 %v1486, %v1529
          %v1554 = vmul.f32 %v1487, %v1529
          %v1555 = vmul.f32 %v1488, %v1529
          %v1556 = vmul.f32 %v1489, %v1529
          %v1557 = vmul.f32 %v1490, %v1529
          %v1558 = vmul.f32 %v1491, %v1529
          %v1559 = vmul.f32 %v1492, %v1529
          %v1560 = vmul.f32 %v1493, %v1529
          %v1561 = vmul.f32 %v1494, %v1529
          %v1562 = vmul.f32 %v1495, %v1529
          %v1563 = vmul.f32 %v1496, %v1529
          %v1564 = vmul.f32 %v1497, %v1529
          %v1565 = vmul.f32 %v1498, %v1529
          %v1566 = vmul.f32 %v1499, %v1529
          %v1567 = vmul.f32 %v1500, %v1529
          %v1568 = vmul.f32 %v1501, %v1529
          %v1569 = vmul.f32 %v1502, %v1529
          %v1570 = vmul.f32 %v1503, %v1529
          %v1571 = vmul.f32 %v1504, %v1529
          %v1572 = vmul.f32 %v1505, %v1529
          %v1573 = vmul.f32 %v1506, %v1529
          %v1574 = vmul.f32 %v1507, %v1529
          %v1575 = vmul.f32 %v1508, %v1529
          %v1576 = vmul.f32 %v1509, %v1529
          %v1577 = vmul.f32 %v1510, %v1529
          %v1578 = vmul.f32 %v1511, %v1529
          %v1579 = vmul.f32 %v1512, %v1529
          %v1580 = vmul.f32 %v1513, %v1529
          %v1581 = vmul.f32 %v1514, %v1529
          %v1582 = vmul.f32 %v1515, %v1529
          %v1583 = vmul.f32 %v1516, %v1529
          %v1584 = vmul.f32 %v1517, %v1529
          %v1585 = vmul.f32 %v1518, %v1529
          %v1586 = vmul.f32 %v1519, %v1529
          %v1587 = vmul.f32 %v1520, %v1529
          %v1588 = vmul.f32 %v1521, %v1529
          %v1589 = vmul.f32 %v1522, %v1529
          %v1590 = vmul.f32 %v1523, %v1529
          %v1591 = vmul.f32 %v1524, %v1529
          %v1592 = vmul.f32 %v1525, %v1529
          %v1593 = vmul.f32 %v1526, %v1529
          %v1594 = vld [vmem:[%s7] sm:$0xf]
          %v1595 = vld [vmem:[%s7 + $0x4] sm:$0xf]
          %v1596 = vld [vmem:[%s7 + $0x8] sm:$0xf]
          %v1597 = vld [vmem:[%s7 + $0xc] sm:$0xf]
          %v1598 = vld [vmem:[%s7 + $0x10] sm:$0xf]
          %v1599 = vld [vmem:[%s7 + $0x14] sm:$0xf]
          %v1600 = vld [vmem:[%s7 + $0x18] sm:$0xf]
          %v1601 = vld [vmem:[%s7 + $0x1c] sm:$0xf]
          %v1602 = vld [vmem:[%s7 + $0x20] sm:$0xf]
          %v1603 = vld [vmem:[%s7 + $0x24] sm:$0xf]
          %v1604 = vld [vmem:[%s7 + $0x28] sm:$0xf]
          %v1605 = vld [vmem:[%s7 + $0x2c] sm:$0xf]
          %v1606 = vld [vmem:[%s7 + $0x30] sm:$0xf]
          %v1607 = vld [vmem:[%s7 + $0x34] sm:$0xf]
          %v1608 = vld [vmem:[%s7 + $0x38] sm:$0xf]
          %v1609 = vld [vmem:[%s7 + $0x3c] sm:$0xf]
          %v1610 = vld [vmem:[%s7 + $0x40] sm:$0xf]
          %v1611 = vld [vmem:[%s7 + $0x44] sm:$0xf]
          %v1612 = vld [vmem:[%s7 + $0x48] sm:$0xf]
          %v1613 = vld [vmem:[%s7 + $0x4c] sm:$0xf]
          %v1614 = vld [vmem:[%s7 + $0x50] sm:$0xf]
          %v1615 = vld [vmem:[%s7 + $0x54] sm:$0xf]
          %v1616 = vld [vmem:[%s7 + $0x58] sm:$0xf]
          %v1617 = vld [vmem:[%s7 + $0x5c] sm:$0xf]
          %v1618 = vld [vmem:[#allocation8] sm:$0x1]
          %v1619 = vpack.c.bf16 %v1532, %v1530
          %v1620 = vpack.c.bf16 %v1533, %v1531
          %v1621 = vpack.c.bf16 %v1536, %v1534
          %v1622 = vpack.c.bf16 %v1537, %v1535
          %v1623 = vpack.c.bf16 %v1540, %v1538
          %v1624 = vpack.c.bf16 %v1541, %v1539
          %v1625 = vpack.c.bf16 %v1544, %v1542
          %v1626 = vpack.c.bf16 %v1545, %v1543
          %v1627 = vpack.c.bf16 %v1548, %v1546
          %v1628 = vpack.c.bf16 %v1549, %v1547
          %v1629 = vpack.c.bf16 %v1552, %v1550
          %v1630 = vpack.c.bf16 %v1553, %v1551
          %v1631 = vpack.c.bf16 %v1556, %v1554
          %v1632 = vpack.c.bf16 %v1557, %v1555
          %v1633 = vpack.c.bf16 %v1560, %v1558
          %v1634 = vpack.c.bf16 %v1561, %v1559
          %v1635 = vpack.c.bf16 %v1564, %v1562
          %v1636 = vpack.c.bf16 %v1565, %v1563
          %v1637 = vpack.c.bf16 %v1568, %v1566
          %v1638 = vpack.c.bf16 %v1569, %v1567
          %v1639 = vpack.c.bf16 %v1572, %v1570
          %v1640 = vpack.c.bf16 %v1573, %v1571
          %v1641 = vpack.c.bf16 %v1576, %v1574
          %v1642 = vpack.c.bf16 %v1577, %v1575
          %v1643 = vpack.c.bf16 %v1580, %v1578
          %v1644 = vpack.c.bf16 %v1581, %v1579
          %v1645 = vpack.c.bf16 %v1584, %v1582
          %v1646 = vpack.c.bf16 %v1585, %v1583
          %v1647 = vpack.c.bf16 %v1588, %v1586
          %v1648 = vpack.c.bf16 %v1589, %v1587
          %v1649 = vpack.c.bf16 %v1592, %v1590
          %v1650 = vpack.c.bf16 %v1593, %v1591
          %v1652 = vlaneseq
          %v1653 = vshrl.u32 %v1652, 7
          %v1654 = vsub.s32 0, %v1653
          %v1655 = vrot.slane %v1618, %v1654
          %v1681 = vunpack.c.l.b16 %v1594
          %v1682 = vunpack.c.l.b16 %v1595
          %v1683 = vunpack.c.l.b16 %v1596
          %v1684 = vunpack.c.l.b16 %v1597
          %v1685 = vunpack.c.l.b16 %v1598
          %v1686 = vunpack.c.l.b16 %v1599
          %v1687 = vunpack.c.l.b16 %v1600
          %v1688 = vunpack.c.l.b16 %v1601
          %v1689 = vunpack.c.l.b16 %v1602
          %v1690 = vunpack.c.l.b16 %v1603
          %v1691 = vunpack.c.l.b16 %v1604
          %v1692 = vunpack.c.l.b16 %v1605
          %v1693 = vunpack.c.l.b16 %v1606
          %v1694 = vunpack.c.l.b16 %v1607
          %v1695 = vunpack.c.l.b16 %v1608
          %v1696 = vunpack.c.l.b16 %v1609
          %v1697 = vunpack.c.l.b16 %v1610
          %v1698 = vunpack.c.l.b16 %v1611
          %v1699 = vunpack.c.l.b16 %v1612
          %v1700 = vunpack.c.l.b16 %v1613
          %v1701 = vunpack.c.l.b16 %v1614
          %v1702 = vunpack.c.l.b16 %v1615
          %v1703 = vunpack.c.l.b16 %v1616
          %v1704 = vunpack.c.l.b16 %v1617
          %v1705 = vpack.c.b16 %v1682, %v1681
          %v1706 = vpack.c.b16 %v1684, %v1683
          %v1707 = vpack.c.b16 %v1686, %v1685
          %v1708 = vpack.c.b16 %v1688, %v1687
          %v1709 = vpack.c.b16 %v1690, %v1689
          %v1710 = vpack.c.b16 %v1692, %v1691
          %v1711 = vpack.c.b16 %v1694, %v1693
          %v1712 = vpack.c.b16 %v1696, %v1695
          %v1713 = vpack.c.b16 %v1698, %v1697
          %v1714 = vpack.c.b16 %v1700, %v1699
          %v1715 = vpack.c.b16 %v1702, %v1701
          %v1716 = vpack.c.b16 %v1704, %v1703
          %vm1729 = vcmask 523264
          %v1731 = vsel %vm1729, %v1620, 0
          %v1734 = vsel %vm1729, %v1622, 0
          %v1737 = vsel %vm1729, %v1624, 0
          %v1740 = vsel %vm1729, %v1626, 0
          %v1743 = vsel %vm1729, %v1628, 0
          %v1746 = vsel %vm1729, %v1630, 0
          %v1749 = vsel %vm1729, %v1632, 0
          %v1752 = vsel %vm1729, %v1634, 0
          %v1755 = vsel %vm1729, %v1636, 0
          %v1758 = vsel %vm1729, %v1638, 0
          %v1761 = vsel %vm1729, %v1640, 0
          %v1764 = vsel %vm1729, %v1642, 0
          %v1767 = vsel %vm1729, %v1644, 0
          %v1770 = vsel %vm1729, %v1646, 0
          %v1773 = vsel %vm1729, %v1648, 0
          %v1776 = vsel %vm1729, %v1650, 0
          %1778 = vmatprep.subr.bf16.mxu0 0
          %1779 = vmatpush1.bf16.msra.mxu0 %v1705
          %1780 = vmatprep.subr.bf16.mxu0 0
          %1781 = vmatpush1.bf16.msra.mxu0 %v1706
          %1782 = vmatprep.subr.bf16.mxu0 0
          %1783 = vmatpush1.bf16.msra.mxu0 %v1707
          %1784 = vmatprep.subr.bf16.mxu0 0
          %1785 = vmatpush1.bf16.msra.mxu0 %v1708
          %1786 = vmatprep.subr.bf16.mxu0 0
          %1787 = vmatpush1.bf16.msra.mxu0 %v1709
          %1788 = vmatprep.subr.bf16.mxu0 0
          %1789 = vmatpush1.bf16.msra.mxu0 %v1710
          %1790 = vmatprep.subr.bf16.mxu0 0
          %1791 = vmatpush1.bf16.msra.mxu0 %v1711
          %1792 = vmatprep.subr.bf16.mxu0 0
          %1793 = vmatpush1.bf16.msra.mxu0 %v1712
          %1794 = vmatprep.subr.bf16.mxu0 0
          %1795 = vmatpush1.bf16.msra.mxu0 %v1713
          %1796 = vmatprep.subr.bf16.mxu0 0
          %1797 = vmatpush1.bf16.msra.mxu0 %v1714
          %1798 = vmatprep.subr.bf16.mxu0 0
          %1799 = vmatpush1.bf16.msra.mxu0 %v1715
          %1800 = vmatprep.subr.bf16.mxu0 0
          %1801 = vmatpush1.bf16.msra.mxu0 %v1716
          %1802 = vmatprep.subr.bf16.mxu0 0
          %1803 = vmatpush1.bf16.msra.mxu0 0
          %1804 = vmatprep.subr.bf16.mxu0 0
          %1805 = vmatpush1.bf16.msra.mxu0 0
          %1806 = vmatprep.subr.bf16.mxu0 0
          %1807 = vmatpush1.bf16.msra.mxu0 0
          %1808 = vmatprep.subr.bf16.mxu0 0
          %1809 = vmatpush1.bf16.msra.mxu0 0
          %1810 = vmatprep.mubr.bf16.mxu0 %v1731
          %1811 = vmatmul.mubr.bf16.gmra.mrb[0].mxu0 %v1619
          %v1812 = vpop.f32.mrb[0].mxu0
          %v1813 = vadd.f32 %v1655, %v1812
          %v1814 = vpop.f32.mrb[0].mxu0
          %v1815 = vpop.f32.mrb[0].mxu0
          %v1816 = vadd.f32 %v1655, %v1815
          %v1817 = vpop.f32.mrb[0].mxu0
          %1818 = vmatprep.mubr.bf16.mxu0 %v1734
          %1819 = vmatmul.mubr.bf16.gmra.mrb[0].mxu0 %v1621
          %v1820 = vpop.f32.mrb[0].mxu0
          %v1821 = vadd.f32 %v1655, %v1820
          %v1822 = vpop.f32.mrb[0].mxu0
          %v1823 = vpop.f32.mrb[0].mxu0
          %v1824 = vadd.f32 %v1655, %v1823
          %v1825 = vpop.f32.mrb[0].mxu0
          %1826 = vmatprep.mubr.bf16.mxu0 %v1737
          %1827 = vmatmul.mubr.bf16.gmra.mrb[0].mxu0 %v1623
          %v1828 = vpop.f32.mrb[0].mxu0
          %v1829 = vadd.f32 %v1655, %v1828
          %v1830 = vpop.f32.mrb[0].mxu0
          %v1831 = vpop.f32.mrb[0].mxu0
          %v1832 = vadd.f32 %v1655, %v1831
          %v1833 = vpop.f32.mrb[0].mxu0
          %1834 = vmatprep.mubr.bf16.mxu0 %v1740
          %1835 = vmatmul.mubr.bf16.gmra.mrb[0].mxu0 %v1625
          %v1836 = vpop.f32.mrb[0].mxu0
          %v1837 = vadd.f32 %v1655, %v1836
          %v1838 = vpop.f32.mrb[0].mxu0
          %v1839 = vpop.f32.mrb[0].mxu0
          %v1840 = vadd.f32 %v1655, %v1839
          %v1841 = vpop.f32.mrb[0].mxu0
          %1842 = vmatprep.mubr.bf16.mxu0 %v1743
          %1843 = vmatmul.mubr.bf16.gmra.mrb[0].mxu0 %v1627
          %v1844 = vpop.f32.mrb[0].mxu0
          %v1845 = vadd.f32 %v1655, %v1844
          %v1846 = vpop.f32.mrb[0].mxu0
          %v1847 = vpop.f32.mrb[0].mxu0
          %v1848 = vadd.f32 %v1655, %v1847
          %v1849 = vpop.f32.mrb[0].mxu0
          %1850 = vmatprep.mubr.bf16.mxu0 %v1746
          %1851 = vmatmul.mubr.bf16.gmra.mrb[0].mxu0 %v1629
          %v1852 = vpop.f32.mrb[0].mxu0
          %v1853 = vadd.f32 %v1655, %v1852
          %v1854 = vpop.f32.mrb[0].mxu0
          %v1855 = vpop.f32.mrb[0].mxu0
          %v1856 = vadd.f32 %v1655, %v1855
          %v1857 = vpop.f32.mrb[0].mxu0
          %1858 = vmatprep.mubr.bf16.mxu0 %v1749
          %1859 = vmatmul.mubr.bf16.gmra.mrb[0].mxu0 %v1631
          %v1860 = vpop.f32.mrb[0].mxu0
          %v1861 = vadd.f32 %v1655, %v1860
          %v1862 = vpop.f32.mrb[0].mxu0
          %v1863 = vpop.f32.mrb[0].mxu0
          %v1864 = vadd.f32 %v1655, %v1863
          %v1865 = vpop.f32.mrb[0].mxu0
          %1866 = vmatprep.mubr.bf16.mxu0 %v1752
          %1867 = vmatmul.mubr.bf16.gmra.mrb[0].mxu0 %v1633
          %v1868 = vpop.f32.mrb[0].mxu0
          %v1869 = vadd.f32 %v1655, %v1868
          %v1870 = vpop.f32.mrb[0].mxu0
          %v1871 = vpop.f32.mrb[0].mxu0
          %v1872 = vadd.f32 %v1655, %v1871
          %v1873 = vpop.f32.mrb[0].mxu0
          %1874 = vmatprep.mubr.bf16.mxu0 %v1755
          %1875 = vmatmul.mubr.bf16.gmra.mrb[0].mxu0 %v1635
          %v1876 = vpop.f32.mrb[0].mxu0
          %v1877 = vadd.f32 %v1655, %v1876
          %v1878 = vpop.f32.mrb[0].mxu0
          %v1879 = vpop.f32.mrb[0].mxu0
          %v1880 = vadd.f32 %v1655, %v1879
          %v1881 = vpop.f32.mrb[0].mxu0
          %1882 = vmatprep.mubr.bf16.mxu0 %v1758
          %1883 = vmatmul.mubr.bf16.gmra.mrb[0].mxu0 %v1637
          %v1884 = vpop.f32.mrb[0].mxu0
          %v1885 = vadd.f32 %v1655, %v1884
          %v1886 = vpop.f32.mrb[0].mxu0
          %v1887 = vpop.f32.mrb[0].mxu0
          %v1888 = vadd.f32 %v1655, %v1887
          %v1889 = vpop.f32.mrb[0].mxu0
          %1890 = vmatprep.mubr.bf16.mxu0 %v1761
          %1891 = vmatmul.mubr.bf16.gmra.mrb[0].mxu0 %v1639
          %v1892 = vpop.f32.mrb[0].mxu0
          %v1893 = vadd.f32 %v1655, %v1892
          %v1894 = vpop.f32.mrb[0].mxu0
          %v1895 = vpop.f32.mrb[0].mxu0
          %v1896 = vadd.f32 %v1655, %v1895
          %v1897 = vpop.f32.mrb[0].mxu0
          %1898 = vmatprep.mubr.bf16.mxu0 %v1764
          %1899 = vmatmul.mubr.bf16.gmra.mrb[0].mxu0 %v1641
          %v1900 = vpop.f32.mrb[0].mxu0
          %v1901 = vadd.f32 %v1655, %v1900
          %v1902 = vpop.f32.mrb[0].mxu0
          %v1903 = vpop.f32.mrb[0].mxu0
          %v1904 = vadd.f32 %v1655, %v1903
          %v1905 = vpop.f32.mrb[0].mxu0
          %1906 = vmatprep.mubr.bf16.mxu0 %v1767
          %1907 = vmatmul.mubr.bf16.gmra.mrb[0].mxu0 %v1643
          %v1908 = vpop.f32.mrb[0].mxu0
          %v1909 = vadd.f32 %v1655, %v1908
          %v1910 = vpop.f32.mrb[0].mxu0
          %v1911 = vpop.f32.mrb[0].mxu0
          %v1912 = vadd.f32 %v1655, %v1911
          %v1913 = vpop.f32.mrb[0].mxu0
          %1914 = vmatprep.mubr.bf16.mxu0 %v1770
          %1915 = vmatmul.mubr.bf16.gmra.mrb[0].mxu0 %v1645
          %v1916 = vpop.f32.mrb[0].mxu0
          %v1917 = vadd.f32 %v1655, %v1916
          %v1918 = vpop.f32.mrb[0].mxu0
          %v1919 = vpop.f32.mrb[0].mxu0
          %v1920 = vadd.f32 %v1655, %v1919
          %v1921 = vpop.f32.mrb[0].mxu0
          %1922 = vmatprep.mubr.bf16.mxu0 %v1773
          %1923 = vmatmul.mubr.bf16.gmra.mrb[0].mxu0 %v1647
          %v1924 = vpop.f32.mrb[0].mxu0
          %v1925 = vadd.f32 %v1655, %v1924
          %v1926 = vpop.f32.mrb[0].mxu0
          %v1927 = vpop.f32.mrb[0].mxu0
          %v1928 = vadd.f32 %v1655, %v1927
          %v1929 = vpop.f32.mrb[0].mxu0
          %1930 = vmatprep.mubr.bf16.mxu0 %v1776
          %1931 = vmatmul.mubr.bf16.gmra.mrb[0].mxu0 %v1649
          %v1932 = vpop.f32.mrb[0].mxu0
          %v1933 = vadd.f32 %v1655, %v1932
          %v1934 = vpop.f32.mrb[0].mxu0
          %v1935 = vpop.f32.mrb[0].mxu0
          %v1936 = vadd.f32 %v1655, %v1935
          %v1937 = vpop.f32.mrb[0].mxu0
          %1938 = vdwg.mxu0
          %v1939 = vlaneseq
          %v1940 = vshrl.u32 %v1939, 7
          %v1941 = vadd.s32 %v1940, 8
          %v1942 = vadd.s32 %v1940, 16
          %v1943 = vadd.s32 %v1940, 24
          %vm1944 = vcmp.eq.s32.totalorder %v1940, 0
          %vm1945 = vcmp.eq.s32.totalorder %v1941, 0
          %vm1946 = vcmp.eq.s32.totalorder %v1942, 0
          %vm1947 = vcmp.eq.s32.totalorder %v1943, 0
          %v1948 = vld [vmem:[#allocation9] sm:$0x1]
          %v1950 = vlaneseq
          %v1951 = vshrl.u32 %v1950, 7
          %v1952 = vsub.s32 0, %v1951
          %v1953 = vrot.slane %v1948, %v1952
          %v1955 = vsel %vm1944, %v1953, %v1813
          %v1956 = vsel %vm1945, %v1953, %v1816
          %v1957 = vsel %vm1946, %v1953, %v1821
          %v1958 = vsel %vm1947, %v1953, %v1824
          %v1959 = vsel %vm1944, %v1953, %v1829
          %v1960 = vsel %vm1945, %v1953, %v1832
          %v1961 = vsel %vm1946, %v1953, %v1837
          %v1962 = vsel %vm1947, %v1953, %v1840
          %v1963 = vsel %vm1944, %v1953, %v1845
          %v1964 = vsel %vm1945, %v1953, %v1848
          %v1965 = vsel %vm1946, %v1953, %v1853
          %v1966 = vsel %vm1947, %v1953, %v1856
          %v1967 = vsel %vm1944, %v1953, %v1861
          %v1968 = vsel %vm1945, %v1953, %v1864
          %v1969 = vsel %vm1946, %v1953, %v1869
          %v1970 = vsel %vm1947, %v1953, %v1872
          %v1971 = vsel %vm1944, %v1953, %v1877
          %v1972 = vsel %vm1945, %v1953, %v1880
          %v1973 = vsel %vm1946, %v1953, %v1885
          %v1974 = vsel %vm1947, %v1953, %v1888
          %v1975 = vsel %vm1944, %v1953, %v1893
          %v1976 = vsel %vm1945, %v1953, %v1896
          %v1977 = vsel %vm1946, %v1953, %v1901
          %v1978 = vsel %vm1947, %v1953, %v1904
          %v1979 = vsel %vm1944, %v1953, %v1909
          %v1980 = vsel %vm1945, %v1953, %v1912
          %v1981 = vsel %vm1946, %v1953, %v1917
          %v1982 = vsel %vm1947, %v1953, %v1920
          %v1983 = vsel %vm1944, %v1953, %v1925
          %v1984 = vsel %vm1945, %v1953, %v1928
          %v1985 = vsel %vm1946, %v1953, %v1933
          %v1986 = vsel %vm1947, %v1953, %v1936
          %v1987 = vld [vmem:[#allocation11] sm:$0xff]
          %v1988 = vld [vmem:[#allocation11 + $0x8] sm:$0xff]
          %v1989 = vld [vmem:[#allocation11 + $0x10] sm:$0xff]
          %v1990 = vld [vmem:[#allocation11 + $0x18] sm:$0xff]
          %v1991 = vadd.f32 %v1955, %v1987
          %v1992 = vadd.f32 %v1956, %v1988
          %v1993 = vadd.f32 %v1957, %v1989
          %v1994 = vadd.f32 %v1958, %v1990
          %v1995 = vadd.f32 %v1959, %v1987
          %v1996 = vadd.f32 %v1960, %v1988
          %v1997 = vadd.f32 %v1961, %v1989
          %v1998 = vadd.f32 %v1962, %v1990
          %v1999 = vadd.f32 %v1963, %v1987
          %v2000 = vadd.f32 %v1964, %v1988
          %v2001 = vadd.f32 %v1965, %v1989
          %v2002 = vadd.f32 %v1966, %v1990
          %v2003 = vadd.f32 %v1967, %v1987
          %v2004 = vadd.f32 %v1968, %v1988
          %v2005 = vadd.f32 %v1969, %v1989
          %v2006 = vadd.f32 %v1970, %v1990
          %v2007 = vadd.f32 %v1971, %v1987
          %v2008 = vadd.f32 %v1972, %v1988
          %v2009 = vadd.f32 %v1973, %v1989
          %v2010 = vadd.f32 %v1974, %v1990
          %v2011 = vadd.f32 %v1975, %v1987
          %v2012 = vadd.f32 %v1976, %v1988
          %v2013 = vadd.f32 %v1977, %v1989
          %v2014 = vadd.f32 %v1978, %v1990
          %v2015 = vadd.f32 %v1979, %v1987
          %v2016 = vadd.f32 %v1980, %v1988
          %v2017 = vadd.f32 %v1981, %v1989
          %v2018 = vadd.f32 %v1982, %v1990
          %v2019 = vadd.f32 %v1983, %v1987
          %v2020 = vadd.f32 %v1984, %v1988
          %v2021 = vadd.f32 %v1985, %v1989
          %v2022 = vadd.f32 %v1986, %v1990
          %2023 = vst [vmem:[#allocation2] sm:$0xff] %v1991
          %2024 = vst [vmem:[#allocation2 + $0x8] sm:$0xff] %v1992
          %2025 = vst [vmem:[#allocation2 + $0x10] sm:$0xff] %v1993
          %2026 = vst [vmem:[#allocation2 + $0x18] sm:$0xff] %v1994
          %2027 = vst [vmem:[#allocation2 + $0x20] sm:$0xff] %v1995
          %2028 = vst [vmem:[#allocation2 + $0x28] sm:$0xff] %v1996
          %2029 = vst [vmem:[#allocation2 + $0x30] sm:$0xff] %v1997
          %2030 = vst [vmem:[#allocation2 + $0x38] sm:$0xff] %v1998
          %2031 = vst [vmem:[#allocation2 + $0x40] sm:$0xff] %v1999
          %2032 = vst [vmem:[#allocation2 + $0x48] sm:$0xff] %v2000
          %2033 = vst [vmem:[#allocation2 + $0x50] sm:$0xff] %v2001
          %2034 = vst [vmem:[#allocation2 + $0x58] sm:$0xff] %v2002
          %2035 = vst [vmem:[#allocation2 + $0x60] sm:$0xff] %v2003
          %2036 = vst [vmem:[#allocation2 + $0x68] sm:$0xff] %v2004
          %2037 = vst [vmem:[#allocation2 + $0x70] sm:$0xff] %v2005
          %2038 = vst [vmem:[#allocation2 + $0x78] sm:$0xff] %v2006
          %2039 = vst [vmem:[#allocation2 + $0x80] sm:$0xff] %v2007
          %2040 = vst [vmem:[#allocation2 + $0x88] sm:$0xff] %v2008
          %2041 = vst [vmem:[#allocation2 + $0x90] sm:$0xff] %v2009
          %2042 = vst [vmem:[#allocation2 + $0x98] sm:$0xff] %v2010
          %2043 = vst [vmem:[#allocation2 + $0xa0] sm:$0xff] %v2011
          %2044 = vst [vmem:[#allocation2 + $0xa8] sm:$0xff] %v2012
          %2045 = vst [vmem:[#allocation2 + $0xb0] sm:$0xff] %v2013
          %2046 = vst [vmem:[#allocation2 + $0xb8] sm:$0xff] %v2014
          %2047 = vst [vmem:[#allocation2 + $0xc0] sm:$0xff] %v2015
          %2048 = vst [vmem:[#allocation2 + $0xc8] sm:$0xff] %v2016
          %2049 = vst [vmem:[#allocation2 + $0xd0] sm:$0xff] %v2017
          %2050 = vst [vmem:[#allocation2 + $0xd8] sm:$0xff] %v2018
          %2051 = vst [vmem:[#allocation2 + $0xe0] sm:$0xff] %v2019
          %2052 = vst [vmem:[#allocation2 + $0xe8] sm:$0xff] %v2020
          %2053 = vst [vmem:[#allocation2 + $0xf0] sm:$0xff] %v2021
          %2054 = vst [vmem:[#allocation2 + $0xf8] sm:$0xff] %v2022
        $region216: #{tpu_custom_call.1} parent=143 // pred_fallthru
          _
        %v2055 = vld [vmem:[#allocation2] sm:$0xff]
        %v2056 = vld [vmem:[#allocation2 + $0x8] sm:$0xff]
        %v2057 = vld [vmem:[#allocation2 + $0x10] sm:$0xff]
        %v2058 = vld [vmem:[#allocation2 + $0x18] sm:$0xff]
        %v2059 = vld [vmem:[#allocation2 + $0x20] sm:$0xff]
        %v2060 = vld [vmem:[#allocation2 + $0x28] sm:$0xff]
        %v2061 = vld [vmem:[#allocation2 + $0x30] sm:$0xff]
        %v2062 = vld [vmem:[#allocation2 + $0x38] sm:$0xff]
        %v2063 = vld [vmem:[#allocation2 + $0x40] sm:$0xff]
        %v2064 = vld [vmem:[#allocation2 + $0x48] sm:$0xff]
        %v2065 = vld [vmem:[#allocation2 + $0x50] sm:$0xff]
        %v2066 = vld [vmem:[#allocation2 + $0x58] sm:$0xff]
        %v2067 = vld [vmem:[#allocation2 + $0x60] sm:$0xff]
        %v2068 = vld [vmem:[#allocation2 + $0x68] sm:$0xff]
        %v2069 = vld [vmem:[#allocation2 + $0x70] sm:$0xff]
        %v2070 = vld [vmem:[#allocation2 + $0x78] sm:$0xff]
        %v2071 = vld [vmem:[#allocation2 + $0x80] sm:$0xff]
        %v2072 = vld [vmem:[#allocation2 + $0x88] sm:$0xff]
        %v2073 = vld [vmem:[#allocation2 + $0x90] sm:$0xff]
        %v2074 = vld [vmem:[#allocation2 + $0x98] sm:$0xff]
        %v2075 = vld [vmem:[#allocation2 + $0xa0] sm:$0xff]
        %v2076 = vld [vmem:[#allocation2 + $0xa8] sm:$0xff]
        %v2077 = vld [vmem:[#allocation2 + $0xb0] sm:$0xff]
        %v2078 = vld [vmem:[#allocation2 + $0xb8] sm:$0xff]
        %v2079 = vld [vmem:[#allocation2 + $0xc0] sm:$0xff]
        %v2080 = vld [vmem:[#allocation2 + $0xc8] sm:$0xff]
        %v2081 = vld [vmem:[#allocation2 + $0xd0] sm:$0xff]
        %v2082 = vld [vmem:[#allocation2 + $0xd8] sm:$0xff]
        %v2083 = vld [vmem:[#allocation2 + $0xe0] sm:$0xff]
        %v2084 = vld [vmem:[#allocation2 + $0xe8] sm:$0xff]
        %v2085 = vld [vmem:[#allocation2 + $0xf0] sm:$0xff]
        %v2086 = vld [vmem:[#allocation2 + $0xf8] sm:$0xff]
        %v2087 = vld [vmem:[%s1229] sm:$0x1]
        %v2088 = vld [vmem:[%s1237] sm:$0x1]
        %2089 = vadd.xlane.f32.xlu0 %v2055
        %v2090 = vpop.xlane.xlu0 %2089
        %2091 = vadd.xlane.f32.xlu0 %v2056
        %v2092 = vpop.xlane.xlu0 %2091
        %2093 = vadd.xlane.f32.xlu0 %v2057
        %v2094 = vpop.xlane.xlu0 %2093
        %2095 = vadd.xlane.f32.xlu0 %v2058
        %v2096 = vpop.xlane.xlu0 %2095
        %2097 = vadd.xlane.f32.xlu0 %v2059
        %v2098 = vpop.xlane.xlu0 %2097
        %2099 = vadd.xlane.f32.xlu0 %v2060
        %v2100 = vpop.xlane.xlu0 %2099
        %2101 = vadd.xlane.f32.xlu0 %v2061
        %v2102 = vpop.xlane.xlu0 %2101
        %2103 = vadd.xlane.f32.xlu0 %v2062
        %v2104 = vpop.xlane.xlu0 %2103
        %2105 = vadd.xlane.f32.xlu0 %v2063
        %v2106 = vpop.xlane.xlu0 %2105
        %2107 = vadd.xlane.f32.xlu0 %v2064
        %v2108 = vpop.xlane.xlu0 %2107
        %2109 = vadd.xlane.f32.xlu0 %v2065
        %v2110 = vpop.xlane.xlu0 %2109
        %2111 = vadd.xlane.f32.xlu0 %v2066
        %v2112 = vpop.xlane.xlu0 %2111
        %2113 = vadd.xlane.f32.xlu0 %v2067
        %v2114 = vpop.xlane.xlu0 %2113
        %2115 = vadd.xlane.f32.xlu0 %v2068
        %v2116 = vpop.xlane.xlu0 %2115
        %2117 = vadd.xlane.f32.xlu0 %v2069
        %v2118 = vpop.xlane.xlu0 %2117
        %2119 = vadd.xlane.f32.xlu0 %v2070
        %v2120 = vpop.xlane.xlu0 %2119
        %2121 = vadd.xlane.f32.xlu0 %v2071
        %v2122 = vpop.xlane.xlu0 %2121
        %2123 = vadd.xlane.f32.xlu0 %v2072
        %v2124 = vpop.xlane.xlu0 %2123
        %2125 = vadd.xlane.f32.xlu0 %v2073
        %v2126 = vpop.xlane.xlu0 %2125
        %2127 = vadd.xlane.f32.xlu0 %v2074
        %v2128 = vpop.xlane.xlu0 %2127
        %2129 = vadd.xlane.f32.xlu0 %v2075
        %v2130 = vpop.xlane.xlu0 %2129
        %2131 = vadd.xlane.f32.xlu0 %v2076
        %v2132 = vpop.xlane.xlu0 %2131
        %2133 = vadd.xlane.f32.xlu0 %v2077
        %v2134 = vpop.xlane.xlu0 %2133
        %2135 = vadd.xlane.f32.xlu0 %v2078
        %v2136 = vpop.xlane.xlu0 %2135
        %2137 = vadd.xlane.f32.xlu0 %v2079
        %v2138 = vpop.xlane.xlu0 %2137
        %2139 = vadd.xlane.f32.xlu0 %v2080
        %v2140 = vpop.xlane.xlu0 %2139
        %2141 = vadd.xlane.f32.xlu0 %v2081
        %v2142 = vpop.xlane.xlu0 %2141
        %2143 = vadd.xlane.f32.xlu0 %v2082
        %v2144 = vpop.xlane.xlu0 %2143
        %2145 = vadd.xlane.f32.xlu0 %v2083
        %v2146 = vpop.xlane.xlu0 %2145
        %2147 = vadd.xlane.f32.xlu0 %v2084
        %v2148 = vpop.xlane.xlu0 %2147
        %2149 = vadd.xlane.f32.xlu0 %v2085
        %v2150 = vpop.xlane.xlu0 %2149
        %2151 = vadd.xlane.f32.xlu0 %v2086
        %v2152 = vpop.xlane.xlu0 %2151
        %v2153 = vrcp.pop 128.0
        %v2154 = vmul.f32 %v2090, %v2153
        %v2155 = vmul.f32 %v2092, %v2153
        %v2156 = vmul.f32 %v2094, %v2153
        %v2157 = vmul.f32 %v2096, %v2153
        %v2158 = vmul.f32 %v2098, %v2153
        %v2159 = vmul.f32 %v2100, %v2153
        %v2160 = vmul.f32 %v2102, %v2153
        %v2161 = vmul.f32 %v2104, %v2153
        %v2162 = vmul.f32 %v2106, %v2153
        %v2163 = vmul.f32 %v2108, %v2153
        %v2164 = vmul.f32 %v2110, %v2153
        %v2165 = vmul.f32 %v2112, %v2153
        %v2166 = vmul.f32 %v2114, %v2153
        %v2167 = vmul.f32 %v2116, %v2153
        %v2168 = vmul.f32 %v2118, %v2153
        %v2169 = vmul.f32 %v2120, %v2153
        %v2170 = vmul.f32 %v2122, %v2153
        %v2171 = vmul.f32 %v2124, %v2153
        %v2172 = vmul.f32 %v2126, %v2153
        %v2173 = vmul.f32 %v2128, %v2153
        %v2174 = vmul.f32 %v2130, %v2153
        %v2175 = vmul.f32 %v2132, %v2153
        %v2176 = vmul.f32 %v2134, %v2153
        %v2177 = vmul.f32 %v2136, %v2153
        %v2178 = vmul.f32 %v2138, %v2153
        %v2179 = vmul.f32 %v2140, %v2153
        %v2180 = vmul.f32 %v2142, %v2153
        %v2181 = vmul.f32 %v2144, %v2153
        %v2182 = vmul.f32 %v2146, %v2153
        %v2183 = vmul.f32 %v2148, %v2153
        %v2184 = vmul.f32 %v2150, %v2153
        %v2185 = vmul.f32 %v2152, %v2153
        %v2186 = vsub.f32 %v2055, %v2154
        %v2187 = vsub.f32 %v2056, %v2155
        %v2188 = vsub.f32 %v2057, %v2156
        %v2189 = vsub.f32 %v2058, %v2157
        %v2190 = vsub.f32 %v2059, %v2158
        %v2191 = vsub.f32 %v2060, %v2159
        %v2192 = vsub.f32 %v2061, %v2160
        %v2193 = vsub.f32 %v2062, %v2161
        %v2194 = vsub.f32 %v2063, %v2162
        %v2195 = vsub.f32 %v2064, %v2163
        %v2196 = vsub.f32 %v2065, %v2164
        %v2197 = vsub.f32 %v2066, %v2165
        %v2198 = vsub.f32 %v2067, %v2166
        %v2199 = vsub.f32 %v2068, %v2167
        %v2200 = vsub.f32 %v2069, %v2168
        %v2201 = vsub.f32 %v2070, %v2169
        %v2202 = vsub.f32 %v2071, %v2170
        %v2203 = vsub.f32 %v2072, %v2171
        %v2204 = vsub.f32 %v2073, %v2172
        %v2205 = vsub.f32 %v2074, %v2173
        %v2206 = vsub.f32 %v2075, %v2174
        %v2207 = vsub.f32 %v2076, %v2175
        %v2208 = vsub.f32 %v2077, %v2176
        %v2209 = vsub.f32 %v2078, %v2177
        %v2210 = vsub.f32 %v2079, %v2178
        %v2211 = vsub.f32 %v2080, %v2179
        %v2212 = vsub.f32 %v2081, %v2180
        %v2213 = vsub.f32 %v2082, %v2181
        %v2214 = vsub.f32 %v2083, %v2182
        %v2215 = vsub.f32 %v2084, %v2183
        %v2216 = vsub.f32 %v2085, %v2184
        %v2217 = vsub.f32 %v2086, %v2185
        %v2218 = vmul.f32 %v2186, %v2186
        %v2219 = vmul.f32 %v2187, %v2187
        %v2220 = vmul.f32 %v2188, %v2188
        %v2221 = vmul.f32 %v2189, %v2189
        %v2222 = vmul.f32 %v2190, %v2190
        %v2223 = vmul.f32 %v2191, %v2191
        %v2224 = vmul.f32 %v2192, %v2192
        %v2225 = vmul.f32 %v2193, %v2193
        %v2226 = vmul.f32 %v2194, %v2194
        %v2227 = vmul.f32 %v2195, %v2195
        %v2228 = vmul.f32 %v2196, %v2196
        %v2229 = vmul.f32 %v2197, %v2197
        %v2230 = vmul.f32 %v2198, %v2198
        %v2231 = vmul.f32 %v2199, %v2199
        %v2232 = vmul.f32 %v2200, %v2200
        %v2233 = vmul.f32 %v2201, %v2201
        %v2234 = vmul.f32 %v2202, %v2202
        %v2235 = vmul.f32 %v2203, %v2203
        %v2236 = vmul.f32 %v2204, %v2204
        %v2237 = vmul.f32 %v2205, %v2205
        %v2238 = vmul.f32 %v2206, %v2206
        %v2239 = vmul.f32 %v2207, %v2207
        %v2240 = vmul.f32 %v2208, %v2208
        %v2241 = vmul.f32 %v2209, %v2209
        %v2242 = vmul.f32 %v2210, %v2210
        %v2243 = vmul.f32 %v2211, %v2211
        %v2244 = vmul.f32 %v2212, %v2212
        %v2245 = vmul.f32 %v2213, %v2213
        %v2246 = vmul.f32 %v2214, %v2214
        %v2247 = vmul.f32 %v2215, %v2215
        %v2248 = vmul.f32 %v2216, %v2216
        %v2249 = vmul.f32 %v2217, %v2217
        %2250 = vadd.xlane.f32.xlu0 %v2218
        %v2251 = vpop.xlane.xlu0 %2250
        %2252 = vadd.xlane.f32.xlu0 %v2219
        %v2253 = vpop.xlane.xlu0 %2252
        %2254 = vadd.xlane.f32.xlu0 %v2220
        %v2255 = vpop.xlane.xlu0 %2254
        %2256 = vadd.xlane.f32.xlu0 %v2221
        %v2257 = vpop.xlane.xlu0 %2256
        %2258 = vadd.xlane.f32.xlu0 %v2222
        %v2259 = vpop.xlane.xlu0 %2258
        %2260 = vadd.xlane.f32.xlu0 %v2223
        %v2261 = vpop.xlane.xlu0 %2260
        %2262 = vadd.xlane.f32.xlu0 %v2224
        %v2263 = vpop.xlane.xlu0 %2262
        %2264 = vadd.xlane.f32.xlu0 %v2225
        %v2265 = vpop.xlane.xlu0 %2264
        %2266 = vadd.xlane.f32.xlu0 %v2226
        %v2267 = vpop.xlane.xlu0 %2266
        %2268 = vadd.xlane.f32.xlu0 %v2227
        %v2269 = vpop.xlane.xlu0 %2268
        %2270 = vadd.xlane.f32.xlu0 %v2228
        %v2271 = vpop.xlane.xlu0 %2270
        %2272 = vadd.xlane.f32.xlu0 %v2229
        %v2273 = vpop.xlane.xlu0 %2272
        %2274 = vadd.xlane.f32.xlu0 %v2230
        %v2275 = vpop.xlane.xlu0 %2274
        %2276 = vadd.xlane.f32.xlu0 %v2231
        %v2277 = vpop.xlane.xlu0 %2276
        %2278 = vadd.xlane.f32.xlu0 %v2232
        %v2279 = vpop.xlane.xlu0 %2278
        %2280 = vadd.xlane.f32.xlu0 %v2233
        %v2281 = vpop.xlane.xlu0 %2280
        %2282 = vadd.xlane.f32.xlu0 %v2234
        %v2283 = vpop.xlane.xlu0 %2282
        %2284 = vadd.xlane.f32.xlu0 %v2235
        %v2285 = vpop.xlane.xlu0 %2284
        %2286 = vadd.xlane.f32.xlu0 %v2236
        %v2287 = vpop.xlane.xlu0 %2286
        %2288 = vadd.xlane.f32.xlu0 %v2237
        %v2289 = vpop.xlane.xlu0 %2288
        %2290 = vadd.xlane.f32.xlu0 %v2238
        %v2291 = vpop.xlane.xlu0 %2290
        %2292 = vadd.xlane.f32.xlu0 %v2239
        %v2293 = vpop.xlane.xlu0 %2292
        %2294 = vadd.xlane.f32.xlu0 %v2240
        %v2295 = vpop.xlane.xlu0 %2294
        %2296 = vadd.xlane.f32.xlu0 %v2241
        %v2297 = vpop.xlane.xlu0 %2296
        %2298 = vadd.xlane.f32.xlu0 %v2242
        %v2299 = vpop.xlane.xlu0 %2298
        %2300 = vadd.xlane.f32.xlu0 %v2243
        %v2301 = vpop.xlane.xlu0 %2300
        %2302 = vadd.xlane.f32.xlu0 %v2244
        %v2303 = vpop.xlane.xlu0 %2302
        %2304 = vadd.xlane.f32.xlu0 %v2245
        %v2305 = vpop.xlane.xlu0 %2304
        %2306 = vadd.xlane.f32.xlu0 %v2246
        %v2307 = vpop.xlane.xlu0 %2306
        %2308 = vadd.xlane.f32.xlu0 %v2247
        %v2309 = vpop.xlane.xlu0 %2308
        %2310 = vadd.xlane.f32.xlu0 %v2248
        %v2311 = vpop.xlane.xlu0 %2310
        %2312 = vadd.xlane.f32.xlu0 %v2249
        %v2313 = vpop.xlane.xlu0 %2312
        %v2314 = vmul.f32 %v2251, %v2153
        %v2315 = vmul.f32 %v2253, %v2153
        %v2316 = vmul.f32 %v2255, %v2153
        %v2317 = vmul.f32 %v2257, %v2153
        %v2318 = vmul.f32 %v2259, %v2153
        %v2319 = vmul.f32 %v2261, %v2153
        %v2320 = vmul.f32 %v2263, %v2153
        %v2321 = vmul.f32 %v2265, %v2153
        %v2322 = vmul.f32 %v2267, %v2153
        %v2323 = vmul.f32 %v2269, %v2153
        %v2324 = vmul.f32 %v2271, %v2153
        %v2325 = vmul.f32 %v2273, %v2153
        %v2326 = vmul.f32 %v2275, %v2153
        %v2327 = vmul.f32 %v2277, %v2153
        %v2328 = vmul.f32 %v2279, %v2153
        %v2329 = vmul.f32 %v2281, %v2153
        %v2330 = vmul.f32 %v2283, %v2153
        %v2331 = vmul.f32 %v2285, %v2153
        %v2332 = vmul.f32 %v2287, %v2153
        %v2333 = vmul.f32 %v2289, %v2153
        %v2334 = vmul.f32 %v2291, %v2153
        %v2335 = vmul.f32 %v2293, %v2153
        %v2336 = vmul.f32 %v2295, %v2153
        %v2337 = vmul.f32 %v2297, %v2153
        %v2338 = vmul.f32 %v2299, %v2153
        %v2339 = vmul.f32 %v2301, %v2153
        %v2340 = vmul.f32 %v2303, %v2153
        %v2341 = vmul.f32 %v2305, %v2153
        %v2342 = vmul.f32 %v2307, %v2153
        %v2343 = vmul.f32 %v2309, %v2153
        %v2344 = vmul.f32 %v2311, %v2153
        %v2345 = vmul.f32 %v2313, %v2153
        %v2346 = vadd.f32 %v2314, 1e-12
        %v2347 = vadd.f32 %v2315, 1e-12
        %v2348 = vadd.f32 %v2316, 1e-12
        %v2349 = vadd.f32 %v2317, 1e-12
        %v2350 = vadd.f32 %v2318, 1e-12
        %v2351 = vadd.f32 %v2319, 1e-12
        %v2352 = vadd.f32 %v2320, 1e-12
        %v2353 = vadd.f32 %v2321, 1e-12
        %v2354 = vadd.f32 %v2322, 1e-12
        %v2355 = vadd.f32 %v2323, 1e-12
        %v2356 = vadd.f32 %v2324, 1e-12
        %v2357 = vadd.f32 %v2325, 1e-12
        %v2358 = vadd.f32 %v2326, 1e-12
        %v2359 = vadd.f32 %v2327, 1e-12
        %v2360 = vadd.f32 %v2328, 1e-12
        %v2361 = vadd.f32 %v2329, 1e-12
        %v2362 = vadd.f32 %v2330, 1e-12
        %v2363 = vadd.f32 %v2331, 1e-12
        %v2364 = vadd.f32 %v2332, 1e-12
        %v2365 = vadd.f32 %v2333, 1e-12
        %v2366 = vadd.f32 %v2334, 1e-12
        %v2367 = vadd.f32 %v2335, 1e-12
        %v2368 = vadd.f32 %v2336, 1e-12
        %v2369 = vadd.f32 %v2337, 1e-12
        %v2370 = vadd.f32 %v2338, 1e-12
        %v2371 = vadd.f32 %v2339, 1e-12
        %v2372 = vadd.f32 %v2340, 1e-12
        %v2373 = vadd.f32 %v2341, 1e-12
        %v2374 = vadd.f32 %v2342, 1e-12
        %v2375 = vadd.f32 %v2343, 1e-12
        %v2376 = vadd.f32 %v2344, 1e-12
        %v2377 = vadd.f32 %v2345, 1e-12
        %v2378 = vrsqrt.pop %v2346
        %v2379 = vrsqrt.pop %v2347
        %v2380 = vrsqrt.pop %v2348
        %v2381 = vrsqrt.pop %v2349
        %v2382 = vrsqrt.pop %v2350
        %v2383 = vrsqrt.pop %v2351
        %v2384 = vrsqrt.pop %v2352
        %v2385 = vrsqrt.pop %v2353
        %v2386 = vrsqrt.pop %v2354
        %v2387 = vrsqrt.pop %v2355
        %v2388 = vrsqrt.pop %v2356
        %v2389 = vrsqrt.pop %v2357
        %v2390 = vrsqrt.pop %v2358
        %v2391 = vrsqrt.pop %v2359
        %v2392 = vrsqrt.pop %v2360
        %v2393 = vrsqrt.pop %v2361
        %v2394 = vrsqrt.pop %v2362
        %v2395 = vrsqrt.pop %v2363
        %v2396 = vrsqrt.pop %v2364
        %v2397 = vrsqrt.pop %v2365
        %v2398 = vrsqrt.pop %v2366
        %v2399 = vrsqrt.pop %v2367
        %v2400 = vrsqrt.pop %v2368
        %v2401 = vrsqrt.pop %v2369
        %v2402 = vrsqrt.pop %v2370
        %v2403 = vrsqrt.pop %v2371
        %v2404 = vrsqrt.pop %v2372
        %v2405 = vrsqrt.pop %v2373
        %v2406 = vrsqrt.pop %v2374
        %v2407 = vrsqrt.pop %v2375
        %v2408 = vrsqrt.pop %v2376
        %v2409 = vrsqrt.pop %v2377
        %v2410 = vmul.f32 %v2186, %v2378
        %v2411 = vmul.f32 %v2187, %v2379
        %v2412 = vmul.f32 %v2188, %v2380
        %v2413 = vmul.f32 %v2189, %v2381
        %v2414 = vmul.f32 %v2190, %v2382
        %v2415 = vmul.f32 %v2191, %v2383
        %v2416 = vmul.f32 %v2192, %v2384
        %v2417 = vmul.f32 %v2193, %v2385
        %v2418 = vmul.f32 %v2194, %v2386
        %v2419 = vmul.f32 %v2195, %v2387
        %v2420 = vmul.f32 %v2196, %v2388
        %v2421 = vmul.f32 %v2197, %v2389
        %v2422 = vmul.f32 %v2198, %v2390
        %v2423 = vmul.f32 %v2199, %v2391
        %v2424 = vmul.f32 %v2200, %v2392
        %v2425 = vmul.f32 %v2201, %v2393
        %v2426 = vmul.f32 %v2202, %v2394
        %v2427 = vmul.f32 %v2203, %v2395
        %v2428 = vmul.f32 %v2204, %v2396
        %v2429 = vmul.f32 %v2205, %v2397
        %v2430 = vmul.f32 %v2206, %v2398
        %v2431 = vmul.f32 %v2207, %v2399
        %v2432 = vmul.f32 %v2208, %v2400
        %v2433 = vmul.f32 %v2209, %v2401
        %v2434 = vmul.f32 %v2210, %v2402
        %v2435 = vmul.f32 %v2211, %v2403
        %v2436 = vmul.f32 %v2212, %v2404
        %v2437 = vmul.f32 %v2213, %v2405
        %v2438 = vmul.f32 %v2214, %v2406
        %v2439 = vmul.f32 %v2215, %v2407
        %v2440 = vmul.f32 %v2216, %v2408
        %v2441 = vmul.f32 %v2217, %v2409
        %v2443 = vlaneseq
        %v2444 = vshrl.u32 %v2443, 7
        %v2445 = vsub.s32 0, %v2444
        %v2446 = vrot.slane %v2087, %v2445
        %v2448 = vmul.f32 %v2410, %v2446
        %v2449 = vmul.f32 %v2411, %v2446
        %v2450 = vmul.f32 %v2412, %v2446
        %v2451 = vmul.f32 %v2413, %v2446
        %v2452 = vmul.f32 %v2414, %v2446
        %v2453 = vmul.f32 %v2415, %v2446
        %v2454 = vmul.f32 %v2416, %v2446
        %v2455 = vmul.f32 %v2417, %v2446
        %v2456 = vmul.f32 %v2418, %v2446
        %v2457 = vmul.f32 %v2419, %v2446
        %v2458 = vmul.f32 %v2420, %v2446
        %v2459 = vmul.f32 %v2421, %v2446
        %v2460 = vmul.f32 %v2422, %v2446
        %v2461 = vmul.f32 %v2423, %v2446
        %v2462 = vmul.f32 %v2424, %v2446
        %v2463 = vmul.f32 %v2425, %v2446
        %v2464 = vmul.f32 %v2426, %v2446
        %v2465 = vmul.f32 %v2427, %v2446
        %v2466 = vmul.f32 %v2428, %v2446
        %v2467 = vmul.f32 %v2429, %v2446
        %v2468 = vmul.f32 %v2430, %v2446
        %v2469 = vmul.f32 %v2431, %v2446
        %v2470 = vmul.f32 %v2432, %v2446
        %v2471 = vmul.f32 %v2433, %v2446
        %v2472 = vmul.f32 %v2434, %v2446
        %v2473 = vmul.f32 %v2435, %v2446
        %v2474 = vmul.f32 %v2436, %v2446
        %v2475 = vmul.f32 %v2437, %v2446
        %v2476 = vmul.f32 %v2438, %v2446
        %v2477 = vmul.f32 %v2439, %v2446
        %v2478 = vmul.f32 %v2440, %v2446
        %v2479 = vmul.f32 %v2441, %v2446
        %v2481 = vlaneseq
        %v2482 = vshrl.u32 %v2481, 7
        %v2483 = vsub.s32 0, %v2482
        %v2484 = vrot.slane %v2088, %v2483
        %v2486 = vadd.f32 %v2448, %v2484
        %v2487 = vadd.f32 %v2449, %v2484
        %v2488 = vadd.f32 %v2450, %v2484
        %v2489 = vadd.f32 %v2451, %v2484
        %v2490 = vadd.f32 %v2452, %v2484
        %v2491 = vadd.f32 %v2453, %v2484
        %v2492 = vadd.f32 %v2454, %v2484
        %v2493 = vadd.f32 %v2455, %v2484
        %v2494 = vadd.f32 %v2456, %v2484
        %v2495 = vadd.f32 %v2457, %v2484
        %v2496 = vadd.f32 %v2458, %v2484
        %v2497 = vadd.f32 %v2459, %v2484
        %v2498 = vadd.f32 %v2460, %v2484
        %v2499 = vadd.f32 %v2461, %v2484
        %v2500 = vadd.f32 %v2462, %v2484
        %v2501 = vadd.f32 %v2463, %v2484
        %v2502 = vadd.f32 %v2464, %v2484
        %v2503 = vadd.f32 %v2465, %v2484
        %v2504 = vadd.f32 %v2466, %v2484
        %v2505 = vadd.f32 %v2467, %v2484
        %v2506 = vadd.f32 %v2468, %v2484
        %v2507 = vadd.f32 %v2469, %v2484
        %v2508 = vadd.f32 %v2470, %v2484
        %v2509 = vadd.f32 %v2471, %v2484
        %v2510 = vadd.f32 %v2472, %v2484
        %v2511 = vadd.f32 %v2473, %v2484
        %v2512 = vadd.f32 %v2474, %v2484
        %v2513 = vadd.f32 %v2475, %v2484
        %v2514 = vadd.f32 %v2476, %v2484
        %v2515 = vadd.f32 %v2477, %v2484
        %v2516 = vadd.f32 %v2478, %v2484
        %v2517 = vadd.f32 %v2479, %v2484
        %v2518 = vld [vmem:[%s1246] sm:$0xff]
        %v2519 = vld [vmem:[%s1246 + $0x8] sm:$0xf]
        %v2520 = vld [vmem:[%s1246 + $0xc] sm:$0xff]
        %v2521 = vld [vmem:[%s1246 + $0x14] sm:$0xf]
        %v2522 = vld [vmem:[%s1246 + $0x18] sm:$0xff]
        %v2523 = vld [vmem:[%s1246 + $0x20] sm:$0xf]
        %v2524 = vld [vmem:[%s1246 + $0x24] sm:$0xff]
        %v2525 = vld [vmem:[%s1246 + $0x2c] sm:$0xf]
        %v2526 = vld [vmem:[%s1246 + $0x30] sm:$0xff]
        %v2527 = vld [vmem:[%s1246 + $0x38] sm:$0xf]
        %v2528 = vld [vmem:[%s1246 + $0x3c] sm:$0xff]
        %v2529 = vld [vmem:[%s1246 + $0x44] sm:$0xf]
        %v2530 = vld [vmem:[%s1246 + $0x48] sm:$0xff]
        %v2531 = vld [vmem:[%s1246 + $0x50] sm:$0xf]
        %v2532 = vld [vmem:[%s1246 + $0x54] sm:$0xff]
        %v2533 = vld [vmem:[%s1246 + $0x5c] sm:$0xf]
        %v2534 = vld [vmem:[%s1246 + $0x60] sm:$0xff]
        %v2535 = vld [vmem:[%s1246 + $0x68] sm:$0xf]
        %v2536 = vld [vmem:[%s1246 + $0x6c] sm:$0xff]
        %v2537 = vld [vmem:[%s1246 + $0x74] sm:$0xf]
        %v2538 = vld [vmem:[%s1246 + $0x78] sm:$0xff]
        %v2539 = vld [vmem:[%s1246 + $0x80] sm:$0xf]
        %v2540 = vld [vmem:[%s1246 + $0x84] sm:$0xff]
        %v2541 = vld [vmem:[%s1246 + $0x8c] sm:$0xf]
        %v2542 = vld [vmem:[%s1246 + $0x90] sm:$0xff]
        %v2543 = vld [vmem:[%s1246 + $0x98] sm:$0xf]
        %v2544 = vld [vmem:[%s1246 + $0x9c] sm:$0xff]
        %v2545 = vld [vmem:[%s1246 + $0xa4] sm:$0xf]
        %v2546 = vld [vmem:[%s1246 + $0xa8] sm:$0xff]
        %v2547 = vld [vmem:[%s1246 + $0xb0] sm:$0xf]
        %v2548 = vld [vmem:[%s1246 + $0xb4] sm:$0xff]
        %v2549 = vld [vmem:[%s1246 + $0xbc] sm:$0xf]
        %v2550 = vld [vmem:[%s1255] sm:$0x7]
        %v2551 = vpack.c.bf16 %v2487, %v2486
        %v2552 = vpack.c.bf16 %v2489, %v2488
        %v2553 = vpack.c.bf16 %v2491, %v2490
        %v2554 = vpack.c.bf16 %v2493, %v2492
        %v2555 = vpack.c.bf16 %v2495, %v2494
        %v2556 = vpack.c.bf16 %v2497, %v2496
        %v2557 = vpack.c.bf16 %v2499, %v2498
        %v2558 = vpack.c.bf16 %v2501, %v2500
        %v2559 = vpack.c.bf16 %v2503, %v2502
        %v2560 = vpack.c.bf16 %v2505, %v2504
        %v2561 = vpack.c.bf16 %v2507, %v2506
        %v2562 = vpack.c.bf16 %v2509, %v2508
        %v2563 = vpack.c.bf16 %v2511, %v2510
        %v2564 = vpack.c.bf16 %v2513, %v2512
        %v2565 = vpack.c.bf16 %v2515, %v2514
        %v2566 = vpack.c.bf16 %v2517, %v2516
        %v2568 = vlaneseq
        %v2569 = vshrl.u32 %v2568, 7
        %v2570 = vsub.s32 0, %v2569
        %v2571 = vrot.slane %v2550, %v2570
        %v2572 = vlaneseq
        %v2573 = vshrl.u32 %v2572, 7
        %v2574 = vsub.s32 1, %v2573
        %v2575 = vrot.slane %v2550, %v2574
        %v2576 = vlaneseq
        %v2577 = vshrl.u32 %v2576, 7
        %v2578 = vsub.s32 2, %v2577
        %v2579 = vrot.slane %v2550, %v2578
        %v2615 = vunpack.c.l.b16 %v2518
        %v2616 = vunpack.c.h.b16 %v2518
        %v2617 = vunpack.c.l.b16 %v2519
        %v2618 = vunpack.c.l.b16 %v2520
        %v2619 = vunpack.c.h.b16 %v2520
        %v2620 = vunpack.c.l.b16 %v2521
        %v2621 = vunpack.c.l.b16 %v2522
        %v2622 = vunpack.c.h.b16 %v2522
        %v2623 = vunpack.c.l.b16 %v2523
        %v2624 = vunpack.c.l.b16 %v2524
        %v2625 = vunpack.c.h.b16 %v2524
        %v2626 = vunpack.c.l.b16 %v2525
        %v2627 = vunpack.c.l.b16 %v2526
        %v2628 = vunpack.c.h.b16 %v2526
        %v2629 = vunpack.c.l.b16 %v2527
        %v2630 = vunpack.c.l.b16 %v2528
        %v2631 = vunpack.c.h.b16 %v2528
        %v2632 = vunpack.c.l.b16 %v2529
        %v2633 = vunpack.c.l.b16 %v2530
        %v2634 = vunpack.c.h.b16 %v2530
        %v2635 = vunpack.c.l.b16 %v2531
        %v2636 = vunpack.c.l.b16 %v2532
        %v2637 = vunpack.c.h.b16 %v2532
        %v2638 = vunpack.c.l.b16 %v2533
        %v2639 = vunpack.c.l.b16 %v2534
        %v2640 = vunpack.c.h.b16 %v2534
        %v2641 = vunpack.c.l.b16 %v2535
        %v2642 = vunpack.c.l.b16 %v2536
        %v2643 = vunpack.c.h.b16 %v2536
        %v2644 = vunpack.c.l.b16 %v2537
        %v2645 = vunpack.c.l.b16 %v2538
        %v2646 = vunpack.c.h.b16 %v2538
        %v2647 = vunpack.c.l.b16 %v2539
        %v2648 = vunpack.c.l.b16 %v2540
        %v2649 = vunpack.c.h.b16 %v2540
        %v2650 = vunpack.c.l.b16 %v2541
        %v2651 = vunpack.c.l.b16 %v2542
        %v2652 = vunpack.c.h.b16 %v2542
        %v2653 = vunpack.c.l.b16 %v2543
        %v2654 = vunpack.c.l.b16 %v2544
        %v2655 = vunpack.c.h.b16 %v2544
        %v2656 = vunpack.c.l.b16 %v2545
        %v2657 = vunpack.c.l.b16 %v2546
        %v2658 = vunpack.c.h.b16 %v2546
        %v2659 = vunpack.c.l.b16 %v2547
        %v2660 = vunpack.c.l.b16 %v2548
        %v2661 = vunpack.c.h.b16 %v2548
        %v2662 = vunpack.c.l.b16 %v2549
        %v2663 = vpack.c.b16 %v2618, %v2615
        %v2664 = vpack.c.b16 %v2619, %v2616
        %v2665 = vpack.c.b16 %v2620, %v2617
        %v2666 = vpack.c.b16 %v2624, %v2621
        %v2667 = vpack.c.b16 %v2625, %v2622
        %v2668 = vpack.c.b16 %v2626, %v2623
        %v2669 = vpack.c.b16 %v2630, %v2627
        %v2670 = vpack.c.b16 %v2631, %v2628
        %v2671 = vpack.c.b16 %v2632, %v2629
        %v2672 = vpack.c.b16 %v2636, %v2633
        %v2673 = vpack.c.b16 %v2637, %v2634
        %v2674 = vpack.c.b16 %v2638, %v2635
        %v2675 = vpack.c.b16 %v2642, %v2639
        %v2676 = vpack.c.b16 %v2643, %v2640
        %v2677 = vpack.c.b16 %v2644, %v2641
        %v2678 = vpack.c.b16 %v2648, %v2645
        %v2679 = vpack.c.b16 %v2649, %v2646
        %v2680 = vpack.c.b16 %v2650, %v2647
        %v2681 = vpack.c.b16 %v2654, %v2651
        %v2682 = vpack.c.b16 %v2655, %v2652
        %v2683 = vpack.c.b16 %v2656, %v2653
        %v2684 = vpack.c.b16 %v2660, %v2657
        %v2685 = vpack.c.b16 %v2661, %v2658
        %v2686 = vpack.c.b16 %v2662, %v2659
        %2711 = vmatprep.subr.bf16.mxu0 %v2664
        %2712 = vmatpush1.bf16.msra.mxu0 %v2663
        %2713 = vmatprep.subr.bf16.mxu0 %v2667
        %2714 = vmatpush1.bf16.msra.mxu0 %v2666
        %2715 = vmatprep.subr.bf16.mxu0 %v2670
        %2716 = vmatpush1.bf16.msra.mxu0 %v2669
        %2717 = vmatprep.subr.bf16.mxu0 %v2673
        %2718 = vmatpush1.bf16.msra.mxu0 %v2672
        %2719 = vmatprep.subr.bf16.mxu0 %v2676
        %2720 = vmatpush1.bf16.msra.mxu0 %v2675
        %2721 = vmatprep.subr.bf16.mxu0 %v2679
        %2722 = vmatpush1.bf16.msra.mxu0 %v2678
        %2723 = vmatprep.subr.bf16.mxu0 %v2682
        %2724 = vmatpush1.bf16.msra.mxu0 %v2681
        %2725 = vmatprep.subr.bf16.mxu0 %v2685
        %2726 = vmatpush1.bf16.msra.mxu0 %v2684
        %2727 = vmatprep.subr.bf16.mxu0 0
        %2728 = vmatpush1.bf16.msra.mxu0 0
        %2729 = vmatprep.subr.bf16.mxu0 0
        %2730 = vmatpush1.bf16.msra.mxu0 0
        %2731 = vmatprep.subr.bf16.mxu0 0
        %2732 = vmatpush1.bf16.msra.mxu0 0
        %2733 = vmatprep.subr.bf16.mxu0 0
        %2734 = vmatpush1.bf16.msra.mxu0 0
        %2735 = vmatprep.subr.bf16.mxu0 0
        %2736 = vmatpush1.bf16.msra.mxu0 0
        %2737 = vmatprep.subr.bf16.mxu0 0
        %2738 = vmatpush1.bf16.msra.mxu0 0
        %2739 = vmatprep.subr.bf16.mxu0 0
        %2740 = vmatpush1.bf16.msra.mxu0 0
        %2741 = vmatprep.subr.bf16.mxu0 0
        %2742 = vmatpush1.bf16.msra.mxu0 0
        %2743 = vmatprep.mubr.bf16.mxu0 0
        %2744 = vmatmul.mubr.bf16.gmra.mrb[0].mxu0 %v2551
        %v2745 = vpop.f32.mrb[0].mxu0
        %v2746 = vadd.f32 %v2571, %v2745
        %v2747 = vpop.f32.mrb[0].mxu0
        %v2748 = vadd.f32 %v2575, %v2747
        %v2749 = vpop.f32.mrb[0].mxu0
        %v2750 = vadd.f32 %v2571, %v2749
        %v2751 = vpop.f32.mrb[0].mxu0
        %v2752 = vadd.f32 %v2575, %v2751
        %2753 = vmatprep.mubr.bf16.mxu0 0
        %2754 = vmatmul.mubr.bf16.gmra.mrb[0].mxu0 %v2552
        %v2755 = vpop.f32.mrb[0].mxu0
        %v2756 = vadd.f32 %v2571, %v2755
        %v2757 = vpop.f32.mrb[0].mxu0
        %v2758 = vadd.f32 %v2575, %v2757
        %v2759 = vpop.f32.mrb[0].mxu0
        %v2760 = vadd.f32 %v2571, %v2759
        %v2761 = vpop.f32.mrb[0].mxu0
        %v2762 = vadd.f32 %v2575, %v2761
        %2763 = vmatprep.mubr.bf16.mxu0 0
        %2764 = vmatmul.mubr.bf16.gmra.mrb[0].mxu0 %v2553
        %v2765 = vpop.f32.mrb[0].mxu0
        %v2766 = vadd.f32 %v2571, %v2765
        %v2767 = vpop.f32.mrb[0].mxu0
        %v2768 = vadd.f32 %v2575, %v2767
        %v2769 = vpop.f32.mrb[0].mxu0
        %v2770 = vadd.f32 %v2571, %v2769
        %v2771 = vpop.f32.mrb[0].mxu0
        %v2772 = vadd.f32 %v2575, %v2771
        %2773 = vmatprep.mubr.bf16.mxu0 0
        %2774 = vmatmul.mubr.bf16.gmra.mrb[0].mxu0 %v2554
        %v2775 = vpop.f32.mrb[0].mxu0
        %v2776 = vadd.f32 %v2571, %v2775
        %v2777 = vpop.f32.mrb[0].mxu0
        %v2778 = vadd.f32 %v2575, %v2777
        %v2779 = vpop.f32.mrb[0].mxu0
        %v2780 = vadd.f32 %v2571, %v2779
        %v2781 = vpop.f32.mrb[0].mxu0
        %v2782 = vadd.f32 %v2575, %v2781
        %2783 = vmatprep.mubr.bf16.mxu0 0
        %2784 = vmatmul.mubr.bf16.gmra.mrb[0].mxu0 %v2555
        %v2785 = vpop.f32.mrb[0].mxu0
        %v2786 = vadd.f32 %v2571, %v2785
        %v2787 = vpop.f32.mrb[0].mxu0
        %v2788 = vadd.f32 %v2575, %v2787
        %v2789 = vpop.f32.mrb[0].mxu0
        %v2790 = vadd.f32 %v2571, %v2789
        %v2791 = vpop.f32.mrb[0].mxu0
        %v2792 = vadd.f32 %v2575, %v2791
        %2793 = vmatprep.mubr.bf16.mxu0 0
        %2794 = vmatmul.mubr.bf16.gmra.mrb[0].mxu0 %v2556
        %v2795 = vpop.f32.mrb[0].mxu0
        %v2796 = vadd.f32 %v2571, %v2795
        %v2797 = vpop.f32.mrb[0].mxu0
        %v2798 = vadd.f32 %v2575, %v2797
        %v2799 = vpop.f32.mrb[0].mxu0
        %v2800 = vadd.f32 %v2571, %v2799
        %v2801 = vpop.f32.mrb[0].mxu0
        %v2802 = vadd.f32 %v2575, %v2801
        %2803 = vmatprep.mubr.bf16.mxu0 0
        %2804 = vmatmul.mubr.bf16.gmra.mrb[0].mxu0 %v2557
        %v2805 = vpop.f32.mrb[0].mxu0
        %v2806 = vadd.f32 %v2571, %v2805
        %v2807 = vpop.f32.mrb[0].mxu0
        %v2808 = vadd.f32 %v2575, %v2807
        %v2809 = vpop.f32.mrb[0].mxu0
        %v2810 = vadd.f32 %v2571, %v2809
        %v2811 = vpop.f32.mrb[0].mxu0
        %v2812 = vadd.f32 %v2575, %v2811
        %2813 = vmatprep.mubr.bf16.mxu0 0
        %2814 = vmatmul.mubr.bf16.gmra.mrb[0].mxu0 %v2558
        %v2815 = vpop.f32.mrb[0].mxu0
        %v2816 = vadd.f32 %v2571, %v2815
        %v2817 = vpop.f32.mrb[0].mxu0
        %v2818 = vadd.f32 %v2575, %v2817
        %v2819 = vpop.f32.mrb[0].mxu0
        %v2820 = vadd.f32 %v2571, %v2819
        %v2821 = vpop.f32.mrb[0].mxu0
        %v2822 = vadd.f32 %v2575, %v2821
        %2823 = vmatprep.mubr.bf16.mxu0 0
        %2824 = vmatmul.mubr.bf16.gmra.mrb[0].mxu0 %v2559
        %v2825 = vpop.f32.mrb[0].mxu0
        %v2826 = vadd.f32 %v2571, %v2825
        %v2827 = vpop.f32.mrb[0].mxu0
        %v2828 = vadd.f32 %v2575, %v2827
        %v2829 = vpop.f32.mrb[0].mxu0
        %v2830 = vadd.f32 %v2571, %v2829
        %v2831 = vpop.f32.mrb[0].mxu0
        %v2832 = vadd.f32 %v2575, %v2831
        %2833 = vmatprep.mubr.bf16.mxu0 0
        %2834 = vmatmul.mubr.bf16.gmra.mrb[0].mxu0 %v2560
        %v2835 = vpop.f32.mrb[0].mxu0
        %v2836 = vadd.f32 %v2571, %v2835
        %v2837 = vpop.f32.mrb[0].mxu0
        %v2838 = vadd.f32 %v2575, %v2837
        %v2839 = vpop.f32.mrb[0].mxu0
        %v2840 = vadd.f32 %v2571, %v2839
        %v2841 = vpop.f32.mrb[0].mxu0
        %v2842 = vadd.f32 %v2575, %v2841
        %2843 = vmatprep.mubr.bf16.mxu0 0
        %2844 = vmatmul.mubr.bf16.gmra.mrb[0].mxu0 %v2561
        %v2845 = vpop.f32.mrb[0].mxu0
        %v2846 = vadd.f32 %v2571, %v2845
        %v2847 = vpop.f32.mrb[0].mxu0
        %v2848 = vadd.f32 %v2575, %v2847
        %v2849 = vpop.f32.mrb[0].mxu0
        %v2850 = vadd.f32 %v2571, %v2849
        %v2851 = vpop.f32.mrb[0].mxu0
        %v2852 = vadd.f32 %v2575, %v2851
        %2853 = vmatprep.mubr.bf16.mxu0 0
        %2854 = vmatmul.mubr.bf16.gmra.mrb[0].mxu0 %v2562
        %v2855 = vpop.f32.mrb[0].mxu0
        %v2856 = vadd.f32 %v2571, %v2855
        %v2857 = vpop.f32.mrb[0].mxu0
        %v2858 = vadd.f32 %v2575, %v2857
        %v2859 = vpop.f32.mrb[0].mxu0
        %v2860 = vadd.f32 %v2571, %v2859
        %v2861 = vpop.f32.mrb[0].mxu0
        %v2862 = vadd.f32 %v2575, %v2861
        %2863 = vmatprep.mubr.bf16.mxu0 0
        %2864 = vmatmul.mubr.bf16.gmra.mrb[0].mxu0 %v2563
        %v2865 = vpop.f32.mrb[0].mxu0
        %v2866 = vadd.f32 %v2571, %v2865
        %v2867 = vpop.f32.mrb[0].mxu0
        %v2868 = vadd.f32 %v2575, %v2867
        %v2869 = vpop.f32.mrb[0].mxu0
        %v2870 = vadd.f32 %v2571, %v2869
        %v2871 = vpop.f32.mrb[0].mxu0
        %v2872 = vadd.f32 %v2575, %v2871
        %2873 = vmatprep.mubr.bf16.mxu0 0
        %2874 = vmatmul.mubr.bf16.gmra.mrb[0].mxu0 %v2564
        %v2875 = vpop.f32.mrb[0].mxu0
        %v2876 = vadd.f32 %v2571, %v2875
        %v2877 = vpop.f32.mrb[0].mxu0
        %v2878 = vadd.f32 %v2575, %v2877
        %v2879 = vpop.f32.mrb[0].mxu0
        %v2880 = vadd.f32 %v2571, %v2879
        %v2881 = vpop.f32.mrb[0].mxu0
        %v2882 = vadd.f32 %v2575, %v2881
        %2883 = vmatprep.mubr.bf16.mxu0 0
        %2884 = vmatmul.mubr.bf16.gmra.mrb[0].mxu0 %v2565
        %v2885 = vpop.f32.mrb[0].mxu0
        %v2886 = vadd.f32 %v2571, %v2885
        %v2887 = vpop.f32.mrb[0].mxu0
        %v2888 = vadd.f32 %v2575, %v2887
        %v2889 = vpop.f32.mrb[0].mxu0
        %v2890 = vadd.f32 %v2571, %v2889
        %v2891 = vpop.f32.mrb[0].mxu0
        %v2892 = vadd.f32 %v2575, %v2891
        %2893 = vmatprep.mubr.bf16.mxu0 0
        %2894 = vmatmul.mubr.bf16.gmra.mrb[0].mxu0 %v2566
        %v2895 = vpop.f32.mrb[0].mxu0
        %v2896 = vadd.f32 %v2571, %v2895
        %v2897 = vpop.f32.mrb[0].mxu0
        %v2898 = vadd.f32 %v2575, %v2897
        %v2899 = vpop.f32.mrb[0].mxu0
        %v2900 = vadd.f32 %v2571, %v2899
        %v2901 = vpop.f32.mrb[0].mxu0
        %v2902 = vadd.f32 %v2575, %v2901
        %2903 = vdwg.mxu0
        %2904 = vmatprep.subr.bf16.mxu0 0
        %2905 = vmatpush1.bf16.msra.mxu0 %v2665
        %2906 = vmatprep.subr.bf16.mxu0 0
        %2907 = vmatpush1.bf16.msra.mxu0 %v2668
        %2908 = vmatprep.subr.bf16.mxu0 0
        %2909 = vmatpush1.bf16.msra.mxu0 %v2671
        %2910 = vmatprep.subr.bf16.mxu0 0
        %2911 = vmatpush1.bf16.msra.mxu0 %v2674
        %2912 = vmatprep.subr.bf16.mxu0 0
        %2913 = vmatpush1.bf16.msra.mxu0 %v2677
        %2914 = vmatprep.subr.bf16.mxu0 0
        %2915 = vmatpush1.bf16.msra.mxu0 %v2680
        %2916 = vmatprep.subr.bf16.mxu0 0
        %2917 = vmatpush1.bf16.msra.mxu0 %v2683
        %2918 = vmatprep.subr.bf16.mxu0 0
        %2919 = vmatpush1.bf16.msra.mxu0 %v2686
        %2920 = vmatprep.subr.bf16.mxu0 0
        %2921 = vmatpush1.bf16.msra.mxu0 0
        %2922 = vmatprep.subr.bf16.mxu0 0
        %2923 = vmatpush1.bf16.msra.mxu0 0
        %2924 = vmatprep.subr.bf16.mxu0 0
        %2925 = vmatpush1.bf16.msra.mxu0 0
        %2926 = vmatprep.subr.bf16.mxu0 0
        %2927 = vmatpush1.bf16.msra.mxu0 0
        %2928 = vmatprep.subr.bf16.mxu0 0
        %2929 = vmatpush1.bf16.msra.mxu0 0
        %2930 = vmatprep.subr.bf16.mxu0 0
        %2931 = vmatpush1.bf16.msra.mxu0 0
        %2932 = vmatprep.subr.bf16.mxu0 0
        %2933 = vmatpush1.bf16.msra.mxu0 0
        %2934 = vmatprep.subr.bf16.mxu0 0
        %2935 = vmatpush1.bf16.msra.mxu0 0
        %2936 = vmatprep.mubr.bf16.mxu0 0
        %2937 = vmatmul.mubr.bf16.gmra.mrb[0].mxu0 %v2551
        %v2938 = vpop.f32.mrb[0].mxu0
        %v2939 = vadd.f32 %v2579, %v2938
        %v2940 = vpop.f32.mrb[0].mxu0
        %v2941 = vpop.f32.mrb[0].mxu0
        %v2942 = vadd.f32 %v2579, %v2941
        %v2943 = vpop.f32.mrb[0].mxu0
        %2944 = vmatprep.mubr.bf16.mxu0 0
        %2945 = vmatmul.mubr.bf16.gmra.mrb[0].mxu0 %v2552
        %v2946 = vpop.f32.mrb[0].mxu0
        %v2947 = vadd.f32 %v2579, %v2946
        %v2948 = vpop.f32.mrb[0].mxu0
        %v2949 = vpop.f32.mrb[0].mxu0
        %v2950 = vadd.f32 %v2579, %v2949
        %v2951 = vpop.f32.mrb[0].mxu0
        %2952 = vmatprep.mubr.bf16.mxu0 0
        %2953 = vmatmul.mubr.bf16.gmra.mrb[0].mxu0 %v2553
        %v2954 = vpop.f32.mrb[0].mxu0
        %v2955 = vadd.f32 %v2579, %v2954
        %v2956 = vpop.f32.mrb[0].mxu0
        %v2957 = vpop.f32.mrb[0].mxu0
        %v2958 = vadd.f32 %v2579, %v2957
        %v2959 = vpop.f32.mrb[0].mxu0
        %2960 = vmatprep.mubr.bf16.mxu0 0
        %2961 = vmatmul.mubr.bf16.gmra.mrb[0].mxu0 %v2554
        %v2962 = vpop.f32.mrb[0].mxu0
        %v2963 = vadd.f32 %v2579, %v2962
        %v2964 = vpop.f32.mrb[0].mxu0
        %v2965 = vpop.f32.mrb[0].mxu0
        %v2966 = vadd.f32 %v2579, %v2965
        %v2967 = vpop.f32.mrb[0].mxu0
        %2968 = vmatprep.mubr.bf16.mxu0 0
        %2969 = vmatmul.mubr.bf16.gmra.mrb[0].mxu0 %v2555
        %v2970 = vpop.f32.mrb[0].mxu0
        %v2971 = vadd.f32 %v2579, %v2970
        %v2972 = vpop.f32.mrb[0].mxu0
        %v2973 = vpop.f32.mrb[0].mxu0
        %v2974 = vadd.f32 %v2579, %v2973
        %v2975 = vpop.f32.mrb[0].mxu0
        %2976 = vmatprep.mubr.bf16.mxu0 0
        %2977 = vmatmul.mubr.bf16.gmra.mrb[0].mxu0 %v2556
        %v2978 = vpop.f32.mrb[0].mxu0
        %v2979 = vadd.f32 %v2579, %v2978
        %v2980 = vpop.f32.mrb[0].mxu0
        %v2981 = vpop.f32.mrb[0].mxu0
        %v2982 = vadd.f32 %v2579, %v2981
        %v2983 = vpop.f32.mrb[0].mxu0
        %2984 = vmatprep.mubr.bf16.mxu0 0
        %2985 = vmatmul.mubr.bf16.gmra.mrb[0].mxu0 %v2557
        %v2986 = vpop.f32.mrb[0].mxu0
        %v2987 = vadd.f32 %v2579, %v2986
        %v2988 = vpop.f32.mrb[0].mxu0
        %v2989 = vpop.f32.mrb[0].mxu0
        %v2990 = vadd.f32 %v2579, %v2989
        %v2991 = vpop.f32.mrb[0].mxu0
        %2992 = vmatprep.mubr.bf16.mxu0 0
        %2993 = vmatmul.mubr.bf16.gmra.mrb[0].mxu0 %v2558
        %v2994 = vpop.f32.mrb[0].mxu0
        %v2995 = vadd.f32 %v2579, %v2994
        %v2996 = vpop.f32.mrb[0].mxu0
        %v2997 = vpop.f32.mrb[0].mxu0
        %v2998 = vadd.f32 %v2579, %v2997
        %v2999 = vpop.f32.mrb[0].mxu0
        %3000 = vmatprep.mubr.bf16.mxu0 0
        %3001 = vmatmul.mubr.bf16.gmra.mrb[0].mxu0 %v2559
        %v3002 = vpop.f32.mrb[0].mxu0
        %v3003 = vadd.f32 %v2579, %v3002
        %v3004 = vpop.f32.mrb[0].mxu0
        %v3005 = vpop.f32.mrb[0].mxu0
        %v3006 = vadd.f32 %v2579, %v3005
        %v3007 = vpop.f32.mrb[0].mxu0
        %3008 = vmatprep.mubr.bf16.mxu0 0
        %3009 = vmatmul.mubr.bf16.gmra.mrb[0].mxu0 %v2560
        %v3010 = vpop.f32.mrb[0].mxu0
        %v3011 = vadd.f32 %v2579, %v3010
        %v3012 = vpop.f32.mrb[0].mxu0
        %v3013 = vpop.f32.mrb[0].mxu0
        %v3014 = vadd.f32 %v2579, %v3013
        %v3015 = vpop.f32.mrb[0].mxu0
        %3016 = vmatprep.mubr.bf16.mxu0 0
        %3017 = vmatmul.mubr.bf16.gmra.mrb[0].mxu0 %v2561
        %v3018 = vpop.f32.mrb[0].mxu0
        %v3019 = vadd.f32 %v2579, %v3018
        %v3020 = vpop.f32.mrb[0].mxu0
        %v3021 = vpop.f32.mrb[0].mxu0
        %v3022 = vadd.f32 %v2579, %v3021
        %v3023 = vpop.f32.mrb[0].mxu0
        %3024 = vmatprep.mubr.bf16.mxu0 0
        %3025 = vmatmul.mubr.bf16.gmra.mrb[0].mxu0 %v2562
        %v3026 = vpop.f32.mrb[0].mxu0
        %v3027 = vadd.f32 %v2579, %v3026
        %v3028 = vpop.f32.mrb[0].mxu0
        %v3029 = vpop.f32.mrb[0].mxu0
        %v3030 = vadd.f32 %v2579, %v3029
        %v3031 = vpop.f32.mrb[0].mxu0
        %3032 = vmatprep.mubr.bf16.mxu0 0
        %3033 = vmatmul.mubr.bf16.gmra.mrb[0].mxu0 %v2563
        %v3034 = vpop.f32.mrb[0].mxu0
        %v3035 = vadd.f32 %v2579, %v3034
        %v3036 = vpop.f32.mrb[0].mxu0
        %v3037 = vpop.f32.mrb[0].mxu0
        %v3038 = vadd.f32 %v2579, %v3037
        %v3039 = vpop.f32.mrb[0].mxu0
        %3040 = vmatprep.mubr.bf16.mxu0 0
        %3041 = vmatmul.mubr.bf16.gmra.mrb[0].mxu0 %v2564
        %v3042 = vpop.f32.mrb[0].mxu0
        %v3043 = vadd.f32 %v2579, %v3042
        %v3044 = vpop.f32.mrb[0].mxu0
        %v3045 = vpop.f32.mrb[0].mxu0
        %v3046 = vadd.f32 %v2579, %v3045
        %v3047 = vpop.f32.mrb[0].mxu0
        %3048 = vmatprep.mubr.bf16.mxu0 0
        %3049 = vmatmul.mubr.bf16.gmra.mrb[0].mxu0 %v2565
        %v3050 = vpop.f32.mrb[0].mxu0
        %v3051 = vadd.f32 %v2579, %v3050
        %v3052 = vpop.f32.mrb[0].mxu0
        %v3053 = vpop.f32.mrb[0].mxu0
        %v3054 = vadd.f32 %v2579, %v3053
        %v3055 = vpop.f32.mrb[0].mxu0
        %3056 = vmatprep.mubr.bf16.mxu0 0
        %3057 = vmatmul.mubr.bf16.gmra.mrb[0].mxu0 %v2566
        %v3058 = vpop.f32.mrb[0].mxu0
        %v3059 = vadd.f32 %v2579, %v3058
        %v3060 = vpop.f32.mrb[0].mxu0
        %v3061 = vpop.f32.mrb[0].mxu0
        %v3062 = vadd.f32 %v2579, %v3061
        %v3063 = vpop.f32.mrb[0].mxu0
        %3064 = vdwg.mxu0
        %v3065 = vpack.c.bf16 %v2750, %v2746
        %v3066 = vpack.c.bf16 %v2760, %v2756
        %v3067 = vpack.c.bf16 %v2770, %v2766
        %v3068 = vpack.c.bf16 %v2780, %v2776
        %v3069 = vpack.c.bf16 %v2790, %v2786
        %v3070 = vpack.c.bf16 %v2800, %v2796
        %v3071 = vpack.c.bf16 %v2810, %v2806
        %v3072 = vpack.c.bf16 %v2820, %v2816
        %v3073 = vpack.c.bf16 %v2830, %v2826
        %v3074 = vpack.c.bf16 %v2840, %v2836
        %v3075 = vpack.c.bf16 %v2850, %v2846
        %v3076 = vpack.c.bf16 %v2860, %v2856
        %v3077 = vpack.c.bf16 %v2870, %v2866
        %v3078 = vpack.c.bf16 %v2880, %v2876
        %v3079 = vpack.c.bf16 %v2890, %v2886
        %v3080 = vpack.c.bf16 %v2900, %v2896
        %v3081 = vpack.c.bf16 %v2752, %v2748
        %v3082 = vpack.c.bf16 %v2762, %v2758
        %v3083 = vpack.c.bf16 %v2772, %v2768
        %v3084 = vpack.c.bf16 %v2782, %v2778
        %v3085 = vpack.c.bf16 %v2792, %v2788
        %v3086 = vpack.c.bf16 %v2802, %v2798
        %v3087 = vpack.c.bf16 %v2812, %v2808
        %v3088 = vpack.c.bf16 %v2822, %v2818
        %v3089 = vpack.c.bf16 %v2832, %v2828
        %v3090 = vpack.c.bf16 %v2842, %v2838
        %v3091 = vpack.c.bf16 %v2852, %v2848
        %v3092 = vpack.c.bf16 %v2862, %v2858
        %v3093 = vpack.c.bf16 %v2872, %v2868
        %v3094 = vpack.c.bf16 %v2882, %v2878
        %v3095 = vpack.c.bf16 %v2892, %v2888
        %v3096 = vpack.c.bf16 %v2902, %v2898
        %3097 = vmatprep.subr.bf16.mxu0 0
        %3098 = vmatpush1.bf16.xpose.msra.mxu0 %v3081
        %3099 = vmatprep.subr.bf16.mxu0 0
        %3100 = vmatpush1.bf16.xpose.msra.mxu0 %v3082
        %3101 = vmatprep.subr.bf16.mxu0 0
        %3102 = vmatpush1.bf16.xpose.msra.mxu0 0
        %3103 = vmatprep.subr.bf16.mxu0 0
        %3104 = vmatpush1.bf16.xpose.msra.mxu0 0
        %3105 = vmatprep.subr.bf16.mxu0 0
        %3106 = vmatpush1.bf16.xpose.msra.mxu0 0
        %3107 = vmatprep.subr.bf16.mxu0 0
        %3108 = vmatpush1.bf16.xpose.msra.mxu0 0
        %3109 = vmatprep.subr.bf16.mxu0 0
        %3110 = vmatpush1.bf16.xpose.msra.mxu0 0
        %3111 = vmatprep.subr.bf16.mxu0 0
        %3112 = vmatpush1.bf16.xpose.msra.mxu0 0
        %3113 = vmatprep.subr.bf16.mxu0 0
        %3114 = vmatpush1.bf16.xpose.msra.mxu0 0
        %3115 = vmatprep.subr.bf16.mxu0 0
        %3116 = vmatpush1.bf16.xpose.msra.mxu0 0
        %3117 = vmatprep.subr.bf16.mxu0 0
        %3118 = vmatpush1.bf16.xpose.msra.mxu0 0
        %3119 = vmatprep.subr.bf16.mxu0 0
        %3120 = vmatpush1.bf16.xpose.msra.mxu0 0
        %3121 = vmatprep.subr.bf16.mxu0 0
        %3122 = vmatpush1.bf16.xpose.msra.mxu0 0
        %3123 = vmatprep.subr.bf16.mxu0 0
        %3124 = vmatpush1.bf16.xpose.msra.mxu0 0
        %3125 = vmatprep.subr.bf16.mxu0 0
        %3126 = vmatpush1.bf16.xpose.msra.mxu0 0
        %3127 = vmatprep.subr.bf16.mxu0 0
        %3128 = vmatpush1.bf16.xpose.msra.mxu0 0
        %3129 = vmatprep.mubr.bf16.mxu0 0
        %3130 = vmatmul.mubr.bf16.gmra.mrb[0].mxu0 %v3065
        %v3131 = vpop.f32.mrb[0].mxu0
        %v3132 = vadd.f32 0.0, %v3131
        %v3133 = vpop.f32.mrb[0].mxu0
        %v3134 = vpop.f32.mrb[0].mxu0
        %v3135 = vadd.f32 0.0, %v3134
        %v3136 = vpop.f32.mrb[0].mxu0
        %3137 = vmatprep.mubr.bf16.mxu0 0
        %3138 = vmatmul.mubr.bf16.gmra.mrb[0].mxu0 %v3066
        %v3139 = vpop.f32.mrb[0].mxu0
        %v3140 = vadd.f32 0.0, %v3139
        %v3141 = vpop.f32.mrb[0].mxu0
        %v3142 = vpop.f32.mrb[0].mxu0
        %v3143 = vadd.f32 0.0, %v3142
        %v3144 = vpop.f32.mrb[0].mxu0
        %3145 = vdwg.mxu0
        %3146 = vmatprep.subr.bf16.mxu0 0
        %3147 = vmatpush1.bf16.xpose.msra.mxu0 %v3083
        %3148 = vmatprep.subr.bf16.mxu0 0
        %3149 = vmatpush1.bf16.xpose.msra.mxu0 %v3084
        %3150 = vmatprep.subr.bf16.mxu0 0
        %3151 = vmatpush1.bf16.xpose.msra.mxu0 0
        %3152 = vmatprep.subr.bf16.mxu0 0
        %3153 = vmatpush1.bf16.xpose.msra.mxu0 0
        %3154 = vmatprep.subr.bf16.mxu0 0
        %3155 = vmatpush1.bf16.xpose.msra.mxu0 0
        %3156 = vmatprep.subr.bf16.mxu0 0
        %3157 = vmatpush1.bf16.xpose.msra.mxu0 0
        %3158 = vmatprep.subr.bf16.mxu0 0
        %3159 = vmatpush1.bf16.xpose.msra.mxu0 0
        %3160 = vmatprep.subr.bf16.mxu0 0
        %3161 = vmatpush1.bf16.xpose.msra.mxu0 0
        %3162 = vmatprep.subr.bf16.mxu0 0
        %3163 = vmatpush1.bf16.xpose.msra.mxu0 0
        %3164 = vmatprep.subr.bf16.mxu0 0
        %3165 = vmatpush1.bf16.xpose.msra.mxu0 0
        %3166 = vmatprep.subr.bf16.mxu0 0
        %3167 = vmatpush1.bf16.xpose.msra.mxu0 0
        %3168 = vmatprep.subr.bf16.mxu0 0
        %3169 = vmatpush1.bf16.xpose.msra.mxu0 0
        %3170 = vmatprep.subr.bf16.mxu0 0
        %3171 = vmatpush1.bf16.xpose.msra.mxu0 0
        %3172 = vmatprep.subr.bf16.mxu0 0
        %3173 = vmatpush1.bf16.xpose.msra.mxu0 0
        %3174 = vmatprep.subr.bf16.mxu0 0
        %3175 = vmatpush1.bf16.xpose.msra.mxu0 0
        %3176 = vmatprep.subr.bf16.mxu0 0
        %3177 = vmatpush1.bf16.xpose.msra.mxu0 0
        %3178 = vmatprep.mubr.bf16.mxu0 0
        %3179 = vmatmul.mubr.bf16.gmra.mrb[0].mxu0 %v3067
        %v3180 = vpop.f32.mrb[0].mxu0
        %v3181 = vadd.f32 0.0, %v3180
        %v3182 = vpop.f32.mrb[0].mxu0
        %v3183 = vpop.f32.mrb[0].mxu0
        %v3184 = vadd.f32 0.0, %v3183
        %v3185 = vpop.f32.mrb[0].mxu0
        %3186 = vmatprep.mubr.bf16.mxu0 0
        %3187 = vmatmul.mubr.bf16.gmra.mrb[0].mxu0 %v3068
        %v3188 = vpop.f32.mrb[0].mxu0
        %v3189 = vadd.f32 0.0, %v3188
        %v3190 = vpop.f32.mrb[0].mxu0
        %v3191 = vpop.f32.mrb[0].mxu0
        %v3192 = vadd.f32 0.0, %v3191
        %v3193 = vpop.f32.mrb[0].mxu0
        %3194 = vdwg.mxu0
        %3195 = vmatprep.subr.bf16.mxu0 0
        %3196 = vmatpush1.bf16.xpose.msra.mxu0 %v3085
        %3197 = vmatprep.subr.bf16.mxu0 0
        %3198 = vmatpush1.bf16.xpose.msra.mxu0 %v3086
        %3199 = vmatprep.subr.bf16.mxu0 0
        %3200 = vmatpush1.bf16.xpose.msra.mxu0 0
        %3201 = vmatprep.subr.bf16.mxu0 0
        %3202 = vmatpush1.bf16.xpose.msra.mxu0 0
        %3203 = vmatprep.subr.bf16.mxu0 0
        %3204 = vmatpush1.bf16.xpose.msra.mxu0 0
        %3205 = vmatprep.subr.bf16.mxu0 0
        %3206 = vmatpush1.bf16.xpose.msra.mxu0 0
        %3207 = vmatprep.subr.bf16.mxu0 0
        %3208 = vmatpush1.bf16.xpose.msra.mxu0 0
        %3209 = vmatprep.subr.bf16.mxu0 0
        %3210 = vmatpush1.bf16.xpose.msra.mxu0 0
        %3211 = vmatprep.subr.bf16.mxu0 0
        %3212 = vmatpush1.bf16.xpose.msra.mxu0 0
        %3213 = vmatprep.subr.bf16.mxu0 0
        %3214 = vmatpush1.bf16.xpose.msra.mxu0 0
        %3215 = vmatprep.subr.bf16.mxu0 0
        %3216 = vmatpush1.bf16.xpose.msra.mxu0 0
        %3217 = vmatprep.subr.bf16.mxu0 0
        %3218 = vmatpush1.bf16.xpose.msra.mxu0 0
        %3219 = vmatprep.subr.bf16.mxu0 0
        %3220 = vmatpush1.bf16.xpose.msra.mxu0 0
        %3221 = vmatprep.subr.bf16.mxu0 0
        %3222 = vmatpush1.bf16.xpose.msra.mxu0 0
        %3223 = vmatprep.subr.bf16.mxu0 0
        %3224 = vmatpush1.bf16.xpose.msra.mxu0 0
        %3225 = vmatprep.subr.bf16.mxu0 0
        %3226 = vmatpush1.bf16.xpose.msra.mxu0 0
        %3227 = vmatprep.mubr.bf16.mxu0 0
        %3228 = vmatmul.mubr.bf16.gmra.mrb[0].mxu0 %v3069
        %v3229 = vpop.f32.mrb[0].mxu0
        %v3230 = vadd.f32 0.0, %v3229
        %v3231 = vpop.f32.mrb[0].mxu0
        %v3232 = vpop.f32.mrb[0].mxu0
        %v3233 = vadd.f32 0.0, %v3232
        %v3234 = vpop.f32.mrb[0].mxu0
        %3235 = vmatprep.mubr.bf16.mxu0 0
        %3236 = vmatmul.mubr.bf16.gmra.mrb[0].mxu0 %v3070
        %v3237 = vpop.f32.mrb[0].mxu0
        %v3238 = vadd.f32 0.0, %v3237
        %v3239 = vpop.f32.mrb[0].mxu0
        %v3240 = vpop.f32.mrb[0].mxu0
        %v3241 = vadd.f32 0.0, %v3240
        %v3242 = vpop.f32.mrb[0].mxu0
        %3243 = vdwg.mxu0
        %3244 = vmatprep.subr.bf16.mxu0 0
        %3245 = vmatpush1.bf16.xpose.msra.mxu0 %v3087
        %3246 = vmatprep.subr.bf16.mxu0 0
        %3247 = vmatpush1.bf16.xpose.msra.mxu0 %v3088
        %3248 = vmatprep.subr.bf16.mxu0 0
        %3249 = vmatpush1.bf16.xpose.msra.mxu0 0
        %3250 = vmatprep.subr.bf16.mxu0 0
        %3251 = vmatpush1.bf16.xpose.msra.mxu0 0
        %3252 = vmatprep.subr.bf16.mxu0 0
        %3253 = vmatpush1.bf16.xpose.msra.mxu0 0
        %3254 = vmatprep.subr.bf16.mxu0 0
        %3255 = vmatpush1.bf16.xpose.msra.mxu0 0
        %3256 = vmatprep.subr.bf16.mxu0 0
        %3257 = vmatpush1.bf16.xpose.msra.mxu0 0
        %3258 = vmatprep.subr.bf16.mxu0 0
        %3259 = vmatpush1.bf16.xpose.msra.mxu0 0
        %3260 = vmatprep.subr.bf16.mxu0 0
        %3261 = vmatpush1.bf16.xpose.msra.mxu0 0
        %3262 = vmatprep.subr.bf16.mxu0 0
        %3263 = vmatpush1.bf16.xpose.msra.mxu0 0
        %3264 = vmatprep.subr.bf16.mxu0 0
        %3265 = vmatpush1.bf16.xpose.msra.mxu0 0
        %3266 = vmatprep.subr.bf16.mxu0 0
        %3267 = vmatpush1.bf16.xpose.msra.mxu0 0
        %3268 = vmatprep.subr.bf16.mxu0 0
        %3269 = vmatpush1.bf16.xpose.msra.mxu0 0
        %3270 = vmatprep.subr.bf16.mxu0 0
        %3271 = vmatpush1.bf16.xpose.msra.mxu0 0
        %3272 = vmatprep.subr.bf16.mxu0 0
        %3273 = vmatpush1.bf16.xpose.msra.mxu0 0
        %3274 = vmatprep.subr.bf16.mxu0 0
        %3275 = vmatpush1.bf16.xpose.msra.mxu0 0
        %3276 = vmatprep.mubr.bf16.mxu0 0
        %3277 = vmatmul.mubr.bf16.gmra.mrb[0].mxu0 %v3071
        %v3278 = vpop.f32.mrb[0].mxu0
        %v3279 = vadd.f32 0.0, %v3278
        %v3280 = vpop.f32.mrb[0].mxu0
        %v3281 = vpop.f32.mrb[0].mxu0
        %v3282 = vadd.f32 0.0, %v3281
        %v3283 = vpop.f32.mrb[0].mxu0
        %3284 = vmatprep.mubr.bf16.mxu0 0
        %3285 = vmatmul.mubr.bf16.gmra.mrb[0].mxu0 %v3072
        %v3286 = vpop.f32.mrb[0].mxu0
        %v3287 = vadd.f32 0.0, %v3286
        %v3288 = vpop.f32.mrb[0].mxu0
        %v3289 = vpop.f32.mrb[0].mxu0
        %v3290 = vadd.f32 0.0, %v3289
        %v3291 = vpop.f32.mrb[0].mxu0
        %3292 = vdwg.mxu0
        %3293 = vmatprep.subr.bf16.mxu0 0
        %3294 = vmatpush1.bf16.xpose.msra.mxu0 %v3089
        %3295 = vmatprep.subr.bf16.mxu0 0
        %3296 = vmatpush1.bf16.xpose.msra.mxu0 %v3090
        %3297 = vmatprep.subr.bf16.mxu0 0
        %3298 = vmatpush1.bf16.xpose.msra.mxu0 0
        %3299 = vmatprep.subr.bf16.mxu0 0
        %3300 = vmatpush1.bf16.xpose.msra.mxu0 0
        %3301 = vmatprep.subr.bf16.mxu0 0
        %3302 = vmatpush1.bf16.xpose.msra.mxu0 0
        %3303 = vmatprep.subr.bf16.mxu0 0
        %3304 = vmatpush1.bf16.xpose.msra.mxu0 0
        %3305 = vmatprep.subr.bf16.mxu0 0
        %3306 = vmatpush1.bf16.xpose.msra.mxu0 0
        %3307 = vmatprep.subr.bf16.mxu0 0
        %3308 = vmatpush1.bf16.xpose.msra.mxu0 0
        %3309 = vmatprep.subr.bf16.mxu0 0
        %3310 = vmatpush1.bf16.xpose.msra.mxu0 0
        %3311 = vmatprep.subr.bf16.mxu0 0
        %3312 = vmatpush1.bf16.xpose.msra.mxu0 0
        %3313 = vmatprep.subr.bf16.mxu0 0
        %3314 = vmatpush1.bf16.xpose.msra.mxu0 0
        %3315 = vmatprep.subr.bf16.mxu0 0
        %3316 = vmatpush1.bf16.xpose.msra.mxu0 0
        %3317 = vmatprep.subr.bf16.mxu0 0
        %3318 = vmatpush1.bf16.xpose.msra.mxu0 0
        %3319 = vmatprep.subr.bf16.mxu0 0
        %3320 = vmatpush1.bf16.xpose.msra.mxu0 0
        %3321 = vmatprep.subr.bf16.mxu0 0
        %3322 = vmatpush1.bf16.xpose.msra.mxu0 0
        %3323 = vmatprep.subr.bf16.mxu0 0
        %3324 = vmatpush1.bf16.xpose.msra.mxu0 0
        %3325 = vmatprep.mubr.bf16.mxu0 0
        %3326 = vmatmul.mubr.bf16.gmra.mrb[0].mxu0 %v3073
        %v3327 = vpop.f32.mrb[0].mxu0
        %v3328 = vadd.f32 0.0, %v3327
        %v3329 = vpop.f32.mrb[0].mxu0
        %v3330 = vpop.f32.mrb[0].mxu0
        %v3331 = vadd.f32 0.0, %v3330
        %v3332 = vpop.f32.mrb[0].mxu0
        %3333 = vmatprep.mubr.bf16.mxu0 0
        %3334 = vmatmul.mubr.bf16.gmra.mrb[0].mxu0 %v3074
        %v3335 = vpop.f32.mrb[0].mxu0
        %v3336 = vadd.f32 0.0, %v3335
        %v3337 = vpop.f32.mrb[0].mxu0
        %v3338 = vpop.f32.mrb[0].mxu0
        %v3339 = vadd.f32 0.0, %v3338
        %v3340 = vpop.f32.mrb[0].mxu0
        %3341 = vdwg.mxu0
        %3342 = vmatprep.subr.bf16.mxu0 0
        %3343 = vmatpush1.bf16.xpose.msra.mxu0 %v3091
        %3344 = vmatprep.subr.bf16.mxu0 0
        %3345 = vmatpush1.bf16.xpose.msra.mxu0 %v3092
        %3346 = vmatprep.subr.bf16.mxu0 0
        %3347 = vmatpush1.bf16.xpose.msra.mxu0 0
        %3348 = vmatprep.subr.bf16.mxu0 0
        %3349 = vmatpush1.bf16.xpose.msra.mxu0 0
        %3350 = vmatprep.subr.bf16.mxu0 0
        %3351 = vmatpush1.bf16.xpose.msra.mxu0 0
        %3352 = vmatprep.subr.bf16.mxu0 0
        %3353 = vmatpush1.bf16.xpose.msra.mxu0 0
        %3354 = vmatprep.subr.bf16.mxu0 0
        %3355 = vmatpush1.bf16.xpose.msra.mxu0 0
        %3356 = vmatprep.subr.bf16.mxu0 0
        %3357 = vmatpush1.bf16.xpose.msra.mxu0 0
        %3358 = vmatprep.subr.bf16.mxu0 0
        %3359 = vmatpush1.bf16.xpose.msra.mxu0 0
        %3360 = vmatprep.subr.bf16.mxu0 0
        %3361 = vmatpush1.bf16.xpose.msra.mxu0 0
        %3362 = vmatprep.subr.bf16.mxu0 0
        %3363 = vmatpush1.bf16.xpose.msra.mxu0 0
        %3364 = vmatprep.subr.bf16.mxu0 0
        %3365 = vmatpush1.bf16.xpose.msra.mxu0 0
        %3366 = vmatprep.subr.bf16.mxu0 0
        %3367 = vmatpush1.bf16.xpose.msra.mxu0 0
        %3368 = vmatprep.subr.bf16.mxu0 0
        %3369 = vmatpush1.bf16.xpose.msra.mxu0 0
        %3370 = vmatprep.subr.bf16.mxu0 0
        %3371 = vmatpush1.bf16.xpose.msra.mxu0 0
        %3372 = vmatprep.subr.bf16.mxu0 0
        %3373 = vmatpush1.bf16.xpose.msra.mxu0 0
        %3374 = vmatprep.mubr.bf16.mxu0 0
        %3375 = vmatmul.mubr.bf16.gmra.mrb[0].mxu0 %v3075
        %v3376 = vpop.f32.mrb[0].mxu0
        %v3377 = vadd.f32 0.0, %v3376
        %v3378 = vpop.f32.mrb[0].mxu0
        %v3379 = vpop.f32.mrb[0].mxu0
        %v3380 = vadd.f32 0.0, %v3379
        %v3381 = vpop.f32.mrb[0].mxu0
        %3382 = vmatprep.mubr.bf16.mxu0 0
        %3383 = vmatmul.mubr.bf16.gmra.mrb[0].mxu0 %v3076
        %v3384 = vpop.f32.mrb[0].mxu0
        %v3385 = vadd.f32 0.0, %v3384
        %v3386 = vpop.f32.mrb[0].mxu0
        %v3387 = vpop.f32.mrb[0].mxu0
        %v3388 = vadd.f32 0.0, %v3387
        %v3389 = vpop.f32.mrb[0].mxu0
        %3390 = vdwg.mxu0
        %3391 = vmatprep.subr.bf16.mxu0 0
        %3392 = vmatpush1.bf16.xpose.msra.mxu0 %v3093
        %3393 = vmatprep.subr.bf16.mxu0 0
        %3394 = vmatpush1.bf16.xpose.msra.mxu0 %v3094
        %3395 = vmatprep.subr.bf16.mxu0 0
        %3396 = vmatpush1.bf16.xpose.msra.mxu0 0
        %3397 = vmatprep.subr.bf16.mxu0 0
        %3398 = vmatpush1.bf16.xpose.msra.mxu0 0
        %3399 = vmatprep.subr.bf16.mxu0 0
        %3400 = vmatpush1.bf16.xpose.msra.mxu0 0
        %3401 = vmatprep.subr.bf16.mxu0 0
        %3402 = vmatpush1.bf16.xpose.msra.mxu0 0
        %3403 = vmatprep.subr.bf16.mxu0 0
        %3404 = vmatpush1.bf16.xpose.msra.mxu0 0
        %3405 = vmatprep.subr.bf16.mxu0 0
        %3406 = vmatpush1.bf16.xpose.msra.mxu0 0
        %3407 = vmatprep.subr.bf16.mxu0 0
        %3408 = vmatpush1.bf16.xpose.msra.mxu0 0
        %3409 = vmatprep.subr.bf16.mxu0 0
        %3410 = vmatpush1.bf16.xpose.msra.mxu0 0
        %3411 = vmatprep.subr.bf16.mxu0 0
        %3412 = vmatpush1.bf16.xpose.msra.mxu0 0
        %3413 = vmatprep.subr.bf16.mxu0 0
        %3414 = vmatpush1.bf16.xpose.msra.mxu0 0
        %3415 = vmatprep.subr.bf16.mxu0 0
        %3416 = vmatpush1.bf16.xpose.msra.mxu0 0
        %3417 = vmatprep.subr.bf16.mxu0 0
        %3418 = vmatpush1.bf16.xpose.msra.mxu0 0
        %3419 = vmatprep.subr.bf16.mxu0 0
        %3420 = vmatpush1.bf16.xpose.msra.mxu0 0
        %3421 = vmatprep.subr.bf16.mxu0 0
        %3422 = vmatpush1.bf16.xpose.msra.mxu0 0
        %3423 = vmatprep.mubr.bf16.mxu0 0
        %3424 = vmatmul.mubr.bf16.gmra.mrb[0].mxu0 %v3077
        %v3425 = vpop.f32.mrb[0].mxu0
        %v3426 = vadd.f32 0.0, %v3425
        %v3427 = vpop.f32.mrb[0].mxu0
        %v3428 = vpop.f32.mrb[0].mxu0
        %v3429 = vadd.f32 0.0, %v3428
        %v3430 = vpop.f32.mrb[0].mxu0
        %3431 = vmatprep.mubr.bf16.mxu0 0
        %3432 = vmatmul.mubr.bf16.gmra.mrb[0].mxu0 %v3078
        %v3433 = vpop.f32.mrb[0].mxu0
        %v3434 = vadd.f32 0.0, %v3433
        %v3435 = vpop.f32.mrb[0].mxu0
        %v3436 = vpop.f32.mrb[0].mxu0
        %v3437 = vadd.f32 0.0, %v3436
        %v3438 = vpop.f32.mrb[0].mxu0
        %3439 = vdwg.mxu0
        %3440 = vmatprep.subr.bf16.mxu0 0
        %3441 = vmatpush1.bf16.xpose.msra.mxu0 %v3095
        %3442 = vmatprep.subr.bf16.mxu0 0
        %3443 = vmatpush1.bf16.xpose.msra.mxu0 %v3096
        %3444 = vmatprep.subr.bf16.mxu0 0
        %3445 = vmatpush1.bf16.xpose.msra.mxu0 0
        %3446 = vmatprep.subr.bf16.mxu0 0
        %3447 = vmatpush1.bf16.xpose.msra.mxu0 0
        %3448 = vmatprep.subr.bf16.mxu0 0
        %3449 = vmatpush1.bf16.xpose.msra.mxu0 0
        %3450 = vmatprep.subr.bf16.mxu0 0
        %3451 = vmatpush1.bf16.xpose.msra.mxu0 0
        %3452 = vmatprep.subr.bf16.mxu0 0
        %3453 = vmatpush1.bf16.xpose.msra.mxu0 0
        %3454 = vmatprep.subr.bf16.mxu0 0
        %3455 = vmatpush1.bf16.xpose.msra.mxu0 0
        %3456 = vmatprep.subr.bf16.mxu0 0
        %3457 = vmatpush1.bf16.xpose.msra.mxu0 0
        %3458 = vmatprep.subr.bf16.mxu0 0
        %3459 = vmatpush1.bf16.xpose.msra.mxu0 0
        %3460 = vmatprep.subr.bf16.mxu0 0
        %3461 = vmatpush1.bf16.xpose.msra.mxu0 0
        %3462 = vmatprep.subr.bf16.mxu0 0
        %3463 = vmatpush1.bf16.xpose.msra.mxu0 0
        %3464 = vmatprep.subr.bf16.mxu0 0
        %3465 = vmatpush1.bf16.xpose.msra.mxu0 0
        %3466 = vmatprep.subr.bf16.mxu0 0
        %3467 = vmatpush1.bf16.xpose.msra.mxu0 0
        %3468 = vmatprep.subr.bf16.mxu0 0
        %3469 = vmatpush1.bf16.xpose.msra.mxu0 0
        %3470 = vmatprep.subr.bf16.mxu0 0
        %3471 = vmatpush1.bf16.xpose.msra.mxu0 0
        %3472 = vmatprep.mubr.bf16.mxu0 0
        %3473 = vmatmul.mubr.bf16.gmra.mrb[0].mxu0 %v3079
        %v3474 = vpop.f32.mrb[0].mxu0
        %v3475 = vadd.f32 0.0, %v3474
        %v3476 = vpop.f32.mrb[0].mxu0
        %v3477 = vpop.f32.mrb[0].mxu0
        %v3478 = vadd.f32 0.0, %v3477
        %v3479 = vpop.f32.mrb[0].mxu0
        %3480 = vmatprep.mubr.bf16.mxu0 0
        %3481 = vmatmul.mubr.bf16.gmra.mrb[0].mxu0 %v3080
        %v3482 = vpop.f32.mrb[0].mxu0
        %v3483 = vadd.f32 0.0, %v3482
        %v3484 = vpop.f32.mrb[0].mxu0
        %v3485 = vpop.f32.mrb[0].mxu0
        %v3486 = vadd.f32 0.0, %v3485
        %v3487 = vpop.f32.mrb[0].mxu0
        %3488 = vdwg.mxu0
        %v3489 = vmul.f32 %v3132, 0.088388346
        %v3490 = vmul.f32 %v3135, 0.088388346
        %v3491 = vmul.f32 %v3140, 0.088388346
        %v3492 = vmul.f32 %v3143, 0.088388346
        %v3493 = vmul.f32 %v3181, 0.088388346
        %v3494 = vmul.f32 %v3184, 0.088388346
        %v3495 = vmul.f32 %v3189, 0.088388346
        %v3496 = vmul.f32 %v3192, 0.088388346
        %v3497 = vmul.f32 %v3230, 0.088388346
        %v3498 = vmul.f32 %v3233, 0.088388346
        %v3499 = vmul.f32 %v3238, 0.088388346
        %v3500 = vmul.f32 %v3241, 0.088388346
        %v3501 = vmul.f32 %v3279, 0.088388346
        %v3502 = vmul.f32 %v3282, 0.088388346
        %v3503 = vmul.f32 %v3287, 0.088388346
        %v3504 = vmul.f32 %v3290, 0.088388346
        %v3505 = vmul.f32 %v3328, 0.088388346
        %v3506 = vmul.f32 %v3331, 0.088388346
        %v3507 = vmul.f32 %v3336, 0.088388346
        %v3508 = vmul.f32 %v3339, 0.088388346
        %v3509 = vmul.f32 %v3377, 0.088388346
        %v3510 = vmul.f32 %v3380, 0.088388346
        %v3511 = vmul.f32 %v3385, 0.088388346
        %v3512 = vmul.f32 %v3388, 0.088388346
        %v3513 = vmul.f32 %v3426, 0.088388346
        %v3514 = vmul.f32 %v3429, 0.088388346
        %v3515 = vmul.f32 %v3434, 0.088388346
        %v3516 = vmul.f32 %v3437, 0.088388346
        %v3517 = vmul.f32 %v3475, 0.088388346
        %v3518 = vmul.f32 %v3478, 0.088388346
        %v3519 = vmul.f32 %v3483, 0.088388346
        %v3520 = vmul.f32 %v3486, 0.088388346
        %v3521 = vld [vmem:[#allocation4] sm:$0x1]
        %v3523 = vlaneseq
        %v3524 = vshrl.u32 %v3523, 7
        %v3525 = vsub.s32 0, %v3524
        %v3526 = vrot.slane %v3521, %v3525
        %v3528 = vadd.f32 %v3489, %v3526
        %v3529 = vadd.f32 %v3490, %v3526
        %v3530 = vadd.f32 %v3491, %v3526
        %v3531 = vadd.f32 %v3492, %v3526
        %v3532 = vadd.f32 %v3493, %v3526
        %v3533 = vadd.f32 %v3494, %v3526
        %v3534 = vadd.f32 %v3495, %v3526
        %v3535 = vadd.f32 %v3496, %v3526
        %v3536 = vadd.f32 %v3497, %v3526
        %v3537 = vadd.f32 %v3498, %v3526
        %v3538 = vadd.f32 %v3499, %v3526
        %v3539 = vadd.f32 %v3500, %v3526
        %v3540 = vadd.f32 %v3501, %v3526
        %v3541 = vadd.f32 %v3502, %v3526
        %v3542 = vadd.f32 %v3503, %v3526
        %v3543 = vadd.f32 %v3504, %v3526
        %v3544 = vadd.f32 %v3505, %v3526
        %v3545 = vadd.f32 %v3506, %v3526
        %v3546 = vadd.f32 %v3507, %v3526
        %v3547 = vadd.f32 %v3508, %v3526
        %v3548 = vadd.f32 %v3509, %v3526
        %v3549 = vadd.f32 %v3510, %v3526
        %v3550 = vadd.f32 %v3511, %v3526
        %v3551 = vadd.f32 %v3512, %v3526
        %v3552 = vadd.f32 %v3513, %v3526
        %v3553 = vadd.f32 %v3514, %v3526
        %v3554 = vadd.f32 %v3515, %v3526
        %v3555 = vadd.f32 %v3516, %v3526
        %v3556 = vadd.f32 %v3517, %v3526
        %v3557 = vadd.f32 %v3518, %v3526
        %v3558 = vadd.f32 %v3519, %v3526
        %v3559 = vadd.f32 %v3520, %v3526
        %vm3560 = vcmask 261120
        %v3561 = vsel %vm3560, %v3528, -inf
        %3562 = vmax.xlane.f32.xlu0 %v3561
        %v3563 = vpop.xlane.xlu0 %3562
        %v3564 = vsel %vm3560, %v3529, -inf
        %3565 = vmax.xlane.f32.xlu0 %v3564
        %v3566 = vpop.xlane.xlu0 %3565
        %v3567 = vsel %vm3560, %v3530, -inf
        %3568 = vmax.xlane.f32.xlu0 %v3567
        %v3569 = vpop.xlane.xlu0 %3568
        %v3570 = vsel %vm3560, %v3531, -inf
        %3571 = vmax.xlane.f32.xlu0 %v3570
        %v3572 = vpop.xlane.xlu0 %3571
        %v3573 = vsel %vm3560, %v3532, -inf
        %3574 = vmax.xlane.f32.xlu0 %v3573
        %v3575 = vpop.xlane.xlu0 %3574
        %v3576 = vsel %vm3560, %v3533, -inf
        %3577 = vmax.xlane.f32.xlu0 %v3576
        %v3578 = vpop.xlane.xlu0 %3577
        %v3579 = vsel %vm3560, %v3534, -inf
        %3580 = vmax.xlane.f32.xlu0 %v3579
        %v3581 = vpop.xlane.xlu0 %3580
        %v3582 = vsel %vm3560, %v3535, -inf
        %3583 = vmax.xlane.f32.xlu0 %v3582
        %v3584 = vpop.xlane.xlu0 %3583
        %v3585 = vsel %vm3560, %v3536, -inf
        %3586 = vmax.xlane.f32.xlu0 %v3585
        %v3587 = vpop.xlane.xlu0 %3586
        %v3588 = vsel %vm3560, %v3537, -inf
        %3589 = vmax.xlane.f32.xlu0 %v3588
        %v3590 = vpop.xlane.xlu0 %3589
        %v3591 = vsel %vm3560, %v3538, -inf
        %3592 = vmax.xlane.f32.xlu0 %v3591
        %v3593 = vpop.xlane.xlu0 %3592
        %v3594 = vsel %vm3560, %v3539, -inf
        %3595 = vmax.xlane.f32.xlu0 %v3594
        %v3596 = vpop.xlane.xlu0 %3595
        %v3597 = vsel %vm3560, %v3540, -inf
        %3598 = vmax.xlane.f32.xlu0 %v3597
        %v3599 = vpop.xlane.xlu0 %3598
        %v3600 = vsel %vm3560, %v3541, -inf
        %3601 = vmax.xlane.f32.xlu0 %v3600
        %v3602 = vpop.xlane.xlu0 %3601
        %v3603 = vsel %vm3560, %v3542, -inf
        %3604 = vmax.xlane.f32.xlu0 %v3603
        %v3605 = vpop.xlane.xlu0 %3604
        %v3606 = vsel %vm3560, %v3543, -inf
        %3607 = vmax.xlane.f32.xlu0 %v3606
        %v3608 = vpop.xlane.xlu0 %3607
        %v3609 = vsel %vm3560, %v3544, -inf
        %3610 = vmax.xlane.f32.xlu0 %v3609
        %v3611 = vpop.xlane.xlu0 %3610
        %v3612 = vsel %vm3560, %v3545, -inf
        %3613 = vmax.xlane.f32.xlu0 %v3612
        %v3614 = vpop.xlane.xlu0 %3613
        %v3615 = vsel %vm3560, %v3546, -inf
        %3616 = vmax.xlane.f32.xlu0 %v3615
        %v3617 = vpop.xlane.xlu0 %3616
        %v3618 = vsel %vm3560, %v3547, -inf
        %3619 = vmax.xlane.f32.xlu0 %v3618
        %v3620 = vpop.xlane.xlu0 %3619
        %v3621 = vsel %vm3560, %v3548, -inf
        %3622 = vmax.xlane.f32.xlu0 %v3621
        %v3623 = vpop.xlane.xlu0 %3622
        %v3624 = vsel %vm3560, %v3549, -inf
        %3625 = vmax.xlane.f32.xlu0 %v3624
        %v3626 = vpop.xlane.xlu0 %3625
        %v3627 = vsel %vm3560, %v3550, -inf
        %3628 = vmax.xlane.f32.xlu0 %v3627
        %v3629 = vpop.xlane.xlu0 %3628
        %v3630 = vsel %vm3560, %v3551, -inf
        %3631 = vmax.xlane.f32.xlu0 %v3630
        %v3632 = vpop.xlane.xlu0 %3631
        %v3633 = vsel %vm3560, %v3552, -inf
        %3634 = vmax.xlane.f32.xlu0 %v3633
        %v3635 = vpop.xlane.xlu0 %3634
        %v3636 = vsel %vm3560, %v3553, -inf
        %3637 = vmax.xlane.f32.xlu0 %v3636
        %v3638 = vpop.xlane.xlu0 %3637
        %v3639 = vsel %vm3560, %v3554, -inf
        %3640 = vmax.xlane.f32.xlu0 %v3639
        %v3641 = vpop.xlane.xlu0 %3640
        %v3642 = vsel %vm3560, %v3555, -inf
        %3643 = vmax.xlane.f32.xlu0 %v3642
        %v3644 = vpop.xlane.xlu0 %3643
        %v3645 = vsel %vm3560, %v3556, -inf
        %3646 = vmax.xlane.f32.xlu0 %v3645
        %v3647 = vpop.xlane.xlu0 %3646
        %v3648 = vsel %vm3560, %v3557, -inf
        %3649 = vmax.xlane.f32.xlu0 %v3648
        %v3650 = vpop.xlane.xlu0 %3649
        %v3651 = vsel %vm3560, %v3558, -inf
        %3652 = vmax.xlane.f32.xlu0 %v3651
        %v3653 = vpop.xlane.xlu0 %3652
        %v3654 = vsel %vm3560, %v3559, -inf
        %3655 = vmax.xlane.f32.xlu0 %v3654
        %v3656 = vpop.xlane.xlu0 %3655
        %v3657 = vsub.f32 %v3528, %v3563
        %v3658 = vsub.f32 %v3529, %v3566
        %v3659 = vsub.f32 %v3530, %v3569
        %v3660 = vsub.f32 %v3531, %v3572
        %v3661 = vsub.f32 %v3532, %v3575
        %v3662 = vsub.f32 %v3533, %v3578
        %v3663 = vsub.f32 %v3534, %v3581
        %v3664 = vsub.f32 %v3535, %v3584
        %v3665 = vsub.f32 %v3536, %v3587
        %v3666 = vsub.f32 %v3537, %v3590
        %v3667 = vsub.f32 %v3538, %v3593
        %v3668 = vsub.f32 %v3539, %v3596
        %v3669 = vsub.f32 %v3540, %v3599
        %v3670 = vsub.f32 %v3541, %v3602
        %v3671 = vsub.f32 %v3542, %v3605
        %v3672 = vsub.f32 %v3543, %v3608
        %v3673 = vsub.f32 %v3544, %v3611
        %v3674 = vsub.f32 %v3545, %v3614
        %v3675 = vsub.f32 %v3546, %v3617
        %v3676 = vsub.f32 %v3547, %v3620
        %v3677 = vsub.f32 %v3548, %v3623
        %v3678 = vsub.f32 %v3549, %v3626
        %v3679 = vsub.f32 %v3550, %v3629
        %v3680 = vsub.f32 %v3551, %v3632
        %v3681 = vsub.f32 %v3552, %v3635
        %v3682 = vsub.f32 %v3553, %v3638
        %v3683 = vsub.f32 %v3554, %v3641
        %v3684 = vsub.f32 %v3555, %v3644
        %v3685 = vsub.f32 %v3556, %v3647
        %v3686 = vsub.f32 %v3557, %v3650
        %v3687 = vsub.f32 %v3558, %v3653
        %v3688 = vsub.f32 %v3559, %v3656
        %v3689 = vmul.f32 %v3657, 1.442695
        %v3690 = vpow.pop %v3689
        %v3691 = vmul.f32 %v3658, 1.442695
        %v3692 = vpow.pop %v3691
        %v3693 = vmul.f32 %v3659, 1.442695
        %v3694 = vpow.pop %v3693
        %v3695 = vmul.f32 %v3660, 1.442695
        %v3696 = vpow.pop %v3695
        %v3697 = vmul.f32 %v3661, 1.442695
        %v3698 = vpow.pop %v3697
        %v3699 = vmul.f32 %v3662, 1.442695
        %v3700 = vpow.pop %v3699
        %v3701 = vmul.f32 %v3663, 1.442695
        %v3702 = vpow.pop %v3701
        %v3703 = vmul.f32 %v3664, 1.442695
        %v3704 = vpow.pop %v3703
        %v3705 = vmul.f32 %v3665, 1.442695
        %v3706 = vpow.pop %v3705
        %v3707 = vmul.f32 %v3666, 1.442695
        %v3708 = vpow.pop %v3707
        %v3709 = vmul.f32 %v3667, 1.442695
        %v3710 = vpow.pop %v3709
        %v3711 = vmul.f32 %v3668, 1.442695
        %v3712 = vpow.pop %v3711
        %v3713 = vmul.f32 %v3669, 1.442695
        %v3714 = vpow.pop %v3713
        %v3715 = vmul.f32 %v3670, 1.442695
        %v3716 = vpow.pop %v3715
        %v3717 = vmul.f32 %v3671, 1.442695
        %v3718 = vpow.pop %v3717
        %v3719 = vmul.f32 %v3672, 1.442695
        %v3720 = vpow.pop %v3719
        %v3721 = vmul.f32 %v3673, 1.442695
        %v3722 = vpow.pop %v3721
        %v3723 = vmul.f32 %v3674, 1.442695
        %v3724 = vpow.pop %v3723
        %v3725 = vmul.f32 %v3675, 1.442695
        %v3726 = vpow.pop %v3725
        %v3727 = vmul.f32 %v3676, 1.442695
        %v3728 = vpow.pop %v3727
        %v3729 = vmul.f32 %v3677, 1.442695
        %v3730 = vpow.pop %v3729
        %v3731 = vmul.f32 %v3678, 1.442695
        %v3732 = vpow.pop %v3731
        %v3733 = vmul.f32 %v3679, 1.442695
        %v3734 = vpow.pop %v3733
        %v3735 = vmul.f32 %v3680, 1.442695
        %v3736 = vpow.pop %v3735
        %v3737 = vmul.f32 %v3681, 1.442695
        %v3738 = vpow.pop %v3737
        %v3739 = vmul.f32 %v3682, 1.442695
        %v3740 = vpow.pop %v3739
        %v3741 = vmul.f32 %v3683, 1.442695
        %v3742 = vpow.pop %v3741
        %v3743 = vmul.f32 %v3684, 1.442695
        %v3744 = vpow.pop %v3743
        %v3745 = vmul.f32 %v3685, 1.442695
        %v3746 = vpow.pop %v3745
        %v3747 = vmul.f32 %v3686, 1.442695
        %v3748 = vpow.pop %v3747
        %v3749 = vmul.f32 %v3687, 1.442695
        %v3750 = vpow.pop %v3749
        %v3751 = vmul.f32 %v3688, 1.442695
        %v3752 = vpow.pop %v3751
        %v3753 = vsel %vm3560, %v3690, 0.0
        %3754 = vadd.xlane.f32.xlu0 %v3753
        %v3755 = vpop.xlane.xlu0 %3754
        %v3756 = vsel %vm3560, %v3692, 0.0
        %3757 = vadd.xlane.f32.xlu0 %v3756
        %v3758 = vpop.xlane.xlu0 %3757
        %v3759 = vsel %vm3560, %v3694, 0.0
        %3760 = vadd.xlane.f32.xlu0 %v3759
        %v3761 = vpop.xlane.xlu0 %3760
        %v3762 = vsel %vm3560, %v3696, 0.0
        %3763 = vadd.xlane.f32.xlu0 %v3762
        %v3764 = vpop.xlane.xlu0 %3763
        %v3765 = vsel %vm3560, %v3698, 0.0
        %3766 = vadd.xlane.f32.xlu0 %v3765
        %v3767 = vpop.xlane.xlu0 %3766
        %v3768 = vsel %vm3560, %v3700, 0.0
        %3769 = vadd.xlane.f32.xlu0 %v3768
        %v3770 = vpop.xlane.xlu0 %3769
        %v3771 = vsel %vm3560, %v3702, 0.0
        %3772 = vadd.xlane.f32.xlu0 %v3771
        %v3773 = vpop.xlane.xlu0 %3772
        %v3774 = vsel %vm3560, %v3704, 0.0
        %3775 = vadd.xlane.f32.xlu0 %v3774
        %v3776 = vpop.xlane.xlu0 %3775
        %v3777 = vsel %vm3560, %v3706, 0.0
        %3778 = vadd.xlane.f32.xlu0 %v3777
        %v3779 = vpop.xlane.xlu0 %3778
        %v3780 = vsel %vm3560, %v3708, 0.0
        %3781 = vadd.xlane.f32.xlu0 %v3780
        %v3782 = vpop.xlane.xlu0 %3781
        %v3783 = vsel %vm3560, %v3710, 0.0
        %3784 = vadd.xlane.f32.xlu0 %v3783
        %v3785 = vpop.xlane.xlu0 %3784
        %v3786 = vsel %vm3560, %v3712, 0.0
        %3787 = vadd.xlane.f32.xlu0 %v3786
        %v3788 = vpop.xlane.xlu0 %3787
        %v3789 = vsel %vm3560, %v3714, 0.0
        %3790 = vadd.xlane.f32.xlu0 %v3789
        %v3791 = vpop.xlane.xlu0 %3790
        %v3792 = vsel %vm3560, %v3716, 0.0
        %3793 = vadd.xlane.f32.xlu0 %v3792
        %v3794 = vpop.xlane.xlu0 %3793
        %v3795 = vsel %vm3560, %v3718, 0.0
        %3796 = vadd.xlane.f32.xlu0 %v3795
        %v3797 = vpop.xlane.xlu0 %3796
        %v3798 = vsel %vm3560, %v3720, 0.0
        %3799 = vadd.xlane.f32.xlu0 %v3798
        %v3800 = vpop.xlane.xlu0 %3799
        %v3801 = vsel %vm3560, %v3722, 0.0
        %3802 = vadd.xlane.f32.xlu0 %v3801
        %v3803 = vpop.xlane.xlu0 %3802
        %v3804 = vsel %vm3560, %v3724, 0.0
        %3805 = vadd.xlane.f32.xlu0 %v3804
        %v3806 = vpop.xlane.xlu0 %3805
        %v3807 = vsel %vm3560, %v3726, 0.0
        %3808 = vadd.xlane.f32.xlu0 %v3807
        %v3809 = vpop.xlane.xlu0 %3808
        %v3810 = vsel %vm3560, %v3728, 0.0
        %3811 = vadd.xlane.f32.xlu0 %v3810
        %v3812 = vpop.xlane.xlu0 %3811
        %v3813 = vsel %vm3560, %v3730, 0.0
        %3814 = vadd.xlane.f32.xlu0 %v3813
        %v3815 = vpop.xlane.xlu0 %3814
        %v3816 = vsel %vm3560, %v3732, 0.0
        %3817 = vadd.xlane.f32.xlu0 %v3816
        %v3818 = vpop.xlane.xlu0 %3817
        %v3819 = vsel %vm3560, %v3734, 0.0
        %3820 = vadd.xlane.f32.xlu0 %v3819
        %v3821 = vpop.xlane.xlu0 %3820
        %v3822 = vsel %vm3560, %v3736, 0.0
        %3823 = vadd.xlane.f32.xlu0 %v3822
        %v3824 = vpop.xlane.xlu0 %3823
        %v3825 = vsel %vm3560, %v3738, 0.0
        %3826 = vadd.xlane.f32.xlu0 %v3825
        %v3827 = vpop.xlane.xlu0 %3826
        %v3828 = vsel %vm3560, %v3740, 0.0
        %3829 = vadd.xlane.f32.xlu0 %v3828
        %v3830 = vpop.xlane.xlu0 %3829
        %v3831 = vsel %vm3560, %v3742, 0.0
        %3832 = vadd.xlane.f32.xlu0 %v3831
        %v3833 = vpop.xlane.xlu0 %3832
        %v3834 = vsel %vm3560, %v3744, 0.0
        %3835 = vadd.xlane.f32.xlu0 %v3834
        %v3836 = vpop.xlane.xlu0 %3835
        %v3837 = vsel %vm3560, %v3746, 0.0
        %3838 = vadd.xlane.f32.xlu0 %v3837
        %v3839 = vpop.xlane.xlu0 %3838
        %v3840 = vsel %vm3560, %v3748, 0.0
        %3841 = vadd.xlane.f32.xlu0 %v3840
        %v3842 = vpop.xlane.xlu0 %3841
        %v3843 = vsel %vm3560, %v3750, 0.0
        %3844 = vadd.xlane.f32.xlu0 %v3843
        %v3845 = vpop.xlane.xlu0 %3844
        %v3846 = vsel %vm3560, %v3752, 0.0
        %3847 = vadd.xlane.f32.xlu0 %v3846
        %v3848 = vpop.xlane.xlu0 %3847
        %v3849 = vrcp.pop %v3755
        %v3850 = vrcp.pop %v3758
        %v3851 = vrcp.pop %v3761
        %v3852 = vrcp.pop %v3764
        %v3853 = vrcp.pop %v3767
        %v3854 = vrcp.pop %v3770
        %v3855 = vrcp.pop %v3773
        %v3856 = vrcp.pop %v3776
        %v3857 = vrcp.pop %v3779
        %v3858 = vrcp.pop %v3782
        %v3859 = vrcp.pop %v3785
        %v3860 = vrcp.pop %v3788
        %v3861 = vrcp.pop %v3791
        %v3862 = vrcp.pop %v3794
        %v3863 = vrcp.pop %v3797
        %v3864 = vrcp.pop %v3800
        %v3865 = vrcp.pop %v3803
        %v3866 = vrcp.pop %v3806
        %v3867 = vrcp.pop %v3809
        %v3868 = vrcp.pop %v3812
        %v3869 = vrcp.pop %v3815
        %v3870 = vrcp.pop %v3818
        %v3871 = vrcp.pop %v3821
        %v3872 = vrcp.pop %v3824
        %v3873 = vrcp.pop %v3827
        %v3874 = vrcp.pop %v3830
        %v3875 = vrcp.pop %v3833
        %v3876 = vrcp.pop %v3836
        %v3877 = vrcp.pop %v3839
        %v3878 = vrcp.pop %v3842
        %v3879 = vrcp.pop %v3845
        %v3880 = vrcp.pop %v3848
        %v3881 = vmul.f32 %v3690, %v3849
        %v3882 = vmul.f32 %v3692, %v3850
        %v3883 = vmul.f32 %v3694, %v3851
        %v3884 = vmul.f32 %v3696, %v3852
        %v3885 = vmul.f32 %v3698, %v3853
        %v3886 = vmul.f32 %v3700, %v3854
        %v3887 = vmul.f32 %v3702, %v3855
        %v3888 = vmul.f32 %v3704, %v3856
        %v3889 = vmul.f32 %v3706, %v3857
        %v3890 = vmul.f32 %v3708, %v3858
        %v3891 = vmul.f32 %v3710, %v3859
        %v3892 = vmul.f32 %v3712, %v3860
        %v3893 = vmul.f32 %v3714, %v3861
        %v3894 = vmul.f32 %v3716, %v3862
        %v3895 = vmul.f32 %v3718, %v3863
        %v3896 = vmul.f32 %v3720, %v3864
        %v3897 = vmul.f32 %v3722, %v3865
        %v3898 = vmul.f32 %v3724, %v3866
        %v3899 = vmul.f32 %v3726, %v3867
        %v3900 = vmul.f32 %v3728, %v3868
        %v3901 = vmul.f32 %v3730, %v3869
        %v3902 = vmul.f32 %v3732, %v3870
        %v3903 = vmul.f32 %v3734, %v3871
        %v3904 = vmul.f32 %v3736, %v3872
        %v3905 = vmul.f32 %v3738, %v3873
        %v3906 = vmul.f32 %v3740, %v3874
        %v3907 = vmul.f32 %v3742, %v3875
        %v3908 = vmul.f32 %v3744, %v3876
        %v3909 = vmul.f32 %v3746, %v3877
        %v3910 = vmul.f32 %v3748, %v3878
        %v3911 = vmul.f32 %v3750, %v3879
        %v3912 = vmul.f32 %v3752, %v3880
        %v3913 = vpack.c.bf16 %v3882, %v3881
        %v3914 = vpack.c.bf16 %v3884, %v3883
        %v3915 = vpack.c.bf16 %v3886, %v3885
        %v3916 = vpack.c.bf16 %v3888, %v3887
        %v3917 = vpack.c.bf16 %v3890, %v3889
        %v3918 = vpack.c.bf16 %v3892, %v3891
        %v3919 = vpack.c.bf16 %v3894, %v3893
        %v3920 = vpack.c.bf16 %v3896, %v3895
        %v3921 = vpack.c.bf16 %v3898, %v3897
        %v3922 = vpack.c.bf16 %v3900, %v3899
        %v3923 = vpack.c.bf16 %v3902, %v3901
        %v3924 = vpack.c.bf16 %v3904, %v3903
        %v3925 = vpack.c.bf16 %v3906, %v3905
        %v3926 = vpack.c.bf16 %v3908, %v3907
        %v3927 = vpack.c.bf16 %v3910, %v3909
        %v3928 = vpack.c.bf16 %v3912, %v3911
        %v3929 = vpack.c.bf16 %v2942, %v2939
        %v3930 = vpack.c.bf16 %v2950, %v2947
        %v3931 = vpack.c.bf16 %v2958, %v2955
        %v3932 = vpack.c.bf16 %v2966, %v2963
        %v3933 = vpack.c.bf16 %v2974, %v2971
        %v3934 = vpack.c.bf16 %v2982, %v2979
        %v3935 = vpack.c.bf16 %v2990, %v2987
        %v3936 = vpack.c.bf16 %v2998, %v2995
        %v3937 = vpack.c.bf16 %v3006, %v3003
        %v3938 = vpack.c.bf16 %v3014, %v3011
        %v3939 = vpack.c.bf16 %v3022, %v3019
        %v3940 = vpack.c.bf16 %v3030, %v3027
        %v3941 = vpack.c.bf16 %v3038, %v3035
        %v3942 = vpack.c.bf16 %v3046, %v3043
        %v3943 = vpack.c.bf16 %v3054, %v3051
        %v3944 = vpack.c.bf16 %v3062, %v3059
        %v3946 = vsel %vm3560, %v3913, 0
        %v3949 = vsel %vm3560, %v3914, 0
        %3951 = vmatprep.subr.bf16.mxu0 0
        %3952 = vmatpush1.bf16.msra.mxu0 %v3929
        %3953 = vmatprep.subr.bf16.mxu0 0
        %3954 = vmatpush1.bf16.msra.mxu0 %v3930
        %3955 = vmatprep.subr.bf16.mxu0 0
        %3956 = vmatpush1.bf16.msra.mxu0 0
        %3957 = vmatprep.subr.bf16.mxu0 0
        %3958 = vmatpush1.bf16.msra.mxu0 0
        %3959 = vmatprep.subr.bf16.mxu0 0
        %3960 = vmatpush1.bf16.msra.mxu0 0
        %3961 = vmatprep.subr.bf16.mxu0 0
        %3962 = vmatpush1.bf16.msra.mxu0 0
        %3963 = vmatprep.subr.bf16.mxu0 0
        %3964 = vmatpush1.bf16.msra.mxu0 0
        %3965 = vmatprep.subr.bf16.mxu0 0
        %3966 = vmatpush1.bf16.msra.mxu0 0
        %3967 = vmatprep.subr.bf16.mxu0 0
        %3968 = vmatpush1.bf16.msra.mxu0 0
        %3969 = vmatprep.subr.bf16.mxu0 0
        %3970 = vmatpush1.bf16.msra.mxu0 0
        %3971 = vmatprep.subr.bf16.mxu0 0
        %3972 = vmatpush1.bf16.msra.mxu0 0
        %3973 = vmatprep.subr.bf16.mxu0 0
        %3974 = vmatpush1.bf16.msra.mxu0 0
        %3975 = vmatprep.subr.bf16.mxu0 0
        %3976 = vmatpush1.bf16.msra.mxu0 0
        %3977 = vmatprep.subr.bf16.mxu0 0
        %3978 = vmatpush1.bf16.msra.mxu0 0
        %3979 = vmatprep.subr.bf16.mxu0 0
        %3980 = vmatpush1.bf16.msra.mxu0 0
        %3981 = vmatprep.subr.bf16.mxu0 0
        %3982 = vmatpush1.bf16.msra.mxu0 0
        %3983 = vmatprep.mubr.bf16.mxu0 0
        %3984 = vmatmul.mubr.bf16.gmra.mrb[0].mxu0 %v3946
        %v3985 = vpop.f32.mrb[0].mxu0
        %v3986 = vadd.f32 0.0, %v3985
        %v3987 = vpop.f32.mrb[0].mxu0
        %v3988 = vpop.f32.mrb[0].mxu0
        %v3989 = vadd.f32 0.0, %v3988
        %v3990 = vpop.f32.mrb[0].mxu0
        %3991 = vmatprep.mubr.bf16.mxu0 0
        %3992 = vmatmul.mubr.bf16.gmra.mrb[0].mxu0 %v3949
        %v3993 = vpop.f32.mrb[0].mxu0
        %v3994 = vadd.f32 0.0, %v3993
        %v3995 = vpop.f32.mrb[0].mxu0
        %v3996 = vpop.f32.mrb[0].mxu0
        %v3997 = vadd.f32 0.0, %v3996
        %v3998 = vpop.f32.mrb[0].mxu0
        %3999 = vdwg.mxu0
        %v4001 = vsel %vm3560, %v3915, 0
        %v4004 = vsel %vm3560, %v3916, 0
        %4006 = vmatprep.subr.bf16.mxu0 0
        %4007 = vmatpush1.bf16.msra.mxu0 %v3931
        %4008 = vmatprep.subr.bf16.mxu0 0
        %4009 = vmatpush1.bf16.msra.mxu0 %v3932
        %4010 = vmatprep.subr.bf16.mxu0 0
        %4011 = vmatpush1.bf16.msra.mxu0 0
        %4012 = vmatprep.subr.bf16.mxu0 0
        %4013 = vmatpush1.bf16.msra.mxu0 0
        %4014 = vmatprep.subr.bf16.mxu0 0
        %4015 = vmatpush1.bf16.msra.mxu0 0
        %4016 = vmatprep.subr.bf16.mxu0 0
        %4017 = vmatpush1.bf16.msra.mxu0 0
        %4018 = vmatprep.subr.bf16.mxu0 0
        %4019 = vmatpush1.bf16.msra.mxu0 0
        %4020 = vmatprep.subr.bf16.mxu0 0
        %4021 = vmatpush1.bf16.msra.mxu0 0
        %4022 = vmatprep.subr.bf16.mxu0 0
        %4023 = vmatpush1.bf16.msra.mxu0 0
        %4024 = vmatprep.subr.bf16.mxu0 0
        %4025 = vmatpush1.bf16.msra.mxu0 0
        %4026 = vmatprep.subr.bf16.mxu0 0
        %4027 = vmatpush1.bf16.msra.mxu0 0
        %4028 = vmatprep.subr.bf16.mxu0 0
        %4029 = vmatpush1.bf16.msra.mxu0 0
        %4030 = vmatprep.subr.bf16.mxu0 0
        %4031 = vmatpush1.bf16.msra.mxu0 0
        %4032 = vmatprep.subr.bf16.mxu0 0
        %4033 = vmatpush1.bf16.msra.mxu0 0
        %4034 = vmatprep.subr.bf16.mxu0 0
        %4035 = vmatpush1.bf16.msra.mxu0 0
        %4036 = vmatprep.subr.bf16.mxu0 0
        %4037 = vmatpush1.bf16.msra.mxu0 0
        %4038 = vmatprep.mubr.bf16.mxu0 0
        %4039 = vmatmul.mubr.bf16.gmra.mrb[0].mxu0 %v4001
        %v4040 = vpop.f32.mrb[0].mxu0
        %v4041 = vadd.f32 0.0, %v4040
        %v4042 = vpop.f32.mrb[0].mxu0
        %v4043 = vpop.f32.mrb[0].mxu0
        %v4044 = vadd.f32 0.0, %v4043
        %v4045 = vpop.f32.mrb[0].mxu0
        %4046 = vmatprep.mubr.bf16.mxu0 0
        %4047 = vmatmul.mubr.bf16.gmra.mrb[0].mxu0 %v4004
        %v4048 = vpop.f32.mrb[0].mxu0
        %v4049 = vadd.f32 0.0, %v4048
        %v4050 = vpop.f32.mrb[0].mxu0
        %v4051 = vpop.f32.mrb[0].mxu0
        %v4052 = vadd.f32 0.0, %v4051
        %v4053 = vpop.f32.mrb[0].mxu0
        %4054 = vdwg.mxu0
        %v4056 = vsel %vm3560, %v3917, 0
        %v4059 = vsel %vm3560, %v3918, 0
        %4061 = vmatprep.subr.bf16.mxu0 0
        %4062 = vmatpush1.bf16.msra.mxu0 %v3933
        %4063 = vmatprep.subr.bf16.mxu0 0
        %4064 = vmatpush1.bf16.msra.mxu0 %v3934
        %4065 = vmatprep.subr.bf16.mxu0 0
        %4066 = vmatpush1.bf16.msra.mxu0 0
        %4067 = vmatprep.subr.bf16.mxu0 0
        %4068 = vmatpush1.bf16.msra.mxu0 0
        %4069 = vmatprep.subr.bf16.mxu0 0
        %4070 = vmatpush1.bf16.msra.mxu0 0
        %4071 = vmatprep.subr.bf16.mxu0 0
        %4072 = vmatpush1.bf16.msra.mxu0 0
        %4073 = vmatprep.subr.bf16.mxu0 0
        %4074 = vmatpush1.bf16.msra.mxu0 0
        %4075 = vmatprep.subr.bf16.mxu0 0
        %4076 = vmatpush1.bf16.msra.mxu0 0
        %4077 = vmatprep.subr.bf16.mxu0 0
        %4078 = vmatpush1.bf16.msra.mxu0 0
        %4079 = vmatprep.subr.bf16.mxu0 0
        %4080 = vmatpush1.bf16.msra.mxu0 0
        %4081 = vmatprep.subr.bf16.mxu0 0
        %4082 = vmatpush1.bf16.msra.mxu0 0
        %4083 = vmatprep.subr.bf16.mxu0 0
        %4084 = vmatpush1.bf16.msra.mxu0 0
        %4085 = vmatprep.subr.bf16.mxu0 0
        %4086 = vmatpush1.bf16.msra.mxu0 0
        %4087 = vmatprep.subr.bf16.mxu0 0
        %4088 = vmatpush1.bf16.msra.mxu0 0
        %4089 = vmatprep.subr.bf16.mxu0 0
        %4090 = vmatpush1.bf16.msra.mxu0 0
        %4091 = vmatprep.subr.bf16.mxu0 0
        %4092 = vmatpush1.bf16.msra.mxu0 0
        %4093 = vmatprep.mubr.bf16.mxu0 0
        %4094 = vmatmul.mubr.bf16.gmra.mrb[0].mxu0 %v4056
        %v4095 = vpop.f32.mrb[0].mxu0
        %v4096 = vadd.f32 0.0, %v4095
        %v4097 = vpop.f32.mrb[0].mxu0
        %v4098 = vpop.f32.mrb[0].mxu0
        %v4099 = vadd.f32 0.0, %v4098
        %v4100 = vpop.f32.mrb[0].mxu0
        %4101 = vmatprep.mubr.bf16.mxu0 0
        %4102 = vmatmul.mubr.bf16.gmra.mrb[0].mxu0 %v4059
        %v4103 = vpop.f32.mrb[0].mxu0
        %v4104 = vadd.f32 0.0, %v4103
        %v4105 = vpop.f32.mrb[0].mxu0
        %v4106 = vpop.f32.mrb[0].mxu0
        %v4107 = vadd.f32 0.0, %v4106
        %v4108 = vpop.f32.mrb[0].mxu0
        %4109 = vdwg.mxu0
        %v4111 = vsel %vm3560, %v3919, 0
        %v4114 = vsel %vm3560, %v3920, 0
        %4116 = vmatprep.subr.bf16.mxu0 0
        %4117 = vmatpush1.bf16.msra.mxu0 %v3935
        %4118 = vmatprep.subr.bf16.mxu0 0
        %4119 = vmatpush1.bf16.msra.mxu0 %v3936
        %4120 = vmatprep.subr.bf16.mxu0 0
        %4121 = vmatpush1.bf16.msra.mxu0 0
        %4122 = vmatprep.subr.bf16.mxu0 0
        %4123 = vmatpush1.bf16.msra.mxu0 0
        %4124 = vmatprep.subr.bf16.mxu0 0
        %4125 = vmatpush1.bf16.msra.mxu0 0
        %4126 = vmatprep.subr.bf16.mxu0 0
        %4127 = vmatpush1.bf16.msra.mxu0 0
        %4128 = vmatprep.subr.bf16.mxu0 0
        %4129 = vmatpush1.bf16.msra.mxu0 0
        %4130 = vmatprep.subr.bf16.mxu0 0
        %4131 = vmatpush1.bf16.msra.mxu0 0
        %4132 = vmatprep.subr.bf16.mxu0 0
        %4133 = vmatpush1.bf16.msra.mxu0 0
        %4134 = vmatprep.subr.bf16.mxu0 0
        %4135 = vmatpush1.bf16.msra.mxu0 0
        %4136 = vmatprep.subr.bf16.mxu0 0
        %4137 = vmatpush1.bf16.msra.mxu0 0
        %4138 = vmatprep.subr.bf16.mxu0 0
        %4139 = vmatpush1.bf16.msra.mxu0 0
        %4140 = vmatprep.subr.bf16.mxu0 0
        %4141 = vmatpush1.bf16.msra.mxu0 0
        %4142 = vmatprep.subr.bf16.mxu0 0
        %4143 = vmatpush1.bf16.msra.mxu0 0
        %4144 = vmatprep.subr.bf16.mxu0 0
        %4145 = vmatpush1.bf16.msra.mxu0 0
        %4146 = vmatprep.subr.bf16.mxu0 0
        %4147 = vmatpush1.bf16.msra.mxu0 0
        %4148 = vmatprep.mubr.bf16.mxu0 0
        %4149 = vmatmul.mubr.bf16.gmra.mrb[0].mxu0 %v4111
        %v4150 = vpop.f32.mrb[0].mxu0
        %v4151 = vadd.f32 0.0, %v4150
        %v4152 = vpop.f32.mrb[0].mxu0
        %v4153 = vpop.f32.mrb[0].mxu0
        %v4154 = vadd.f32 0.0, %v4153
        %v4155 = vpop.f32.mrb[0].mxu0
        %4156 = vmatprep.mubr.bf16.mxu0 0
        %4157 = vmatmul.mubr.bf16.gmra.mrb[0].mxu0 %v4114
        %v4158 = vpop.f32.mrb[0].mxu0
        %v4159 = vadd.f32 0.0, %v4158
        %v4160 = vpop.f32.mrb[0].mxu0
        %v4161 = vpop.f32.mrb[0].mxu0
        %v4162 = vadd.f32 0.0, %v4161
        %v4163 = vpop.f32.mrb[0].mxu0
        %4164 = vdwg.mxu0
        %v4166 = vsel %vm3560, %v3921, 0
        %v4169 = vsel %vm3560, %v3922, 0
        %4171 = vmatprep.subr.bf16.mxu0 0
        %4172 = vmatpush1.bf16.msra.mxu0 %v3937
        %4173 = vmatprep.subr.bf16.mxu0 0
        %4174 = vmatpush1.bf16.msra.mxu0 %v3938
        %4175 = vmatprep.subr.bf16.mxu0 0
        %4176 = vmatpush1.bf16.msra.mxu0 0
        %4177 = vmatprep.subr.bf16.mxu0 0
        %4178 = vmatpush1.bf16.msra.mxu0 0
        %4179 = vmatprep.subr.bf16.mxu0 0
        %4180 = vmatpush1.bf16.msra.mxu0 0
        %4181 = vmatprep.subr.bf16.mxu0 0
        %4182 = vmatpush1.bf16.msra.mxu0 0
        %4183 = vmatprep.subr.bf16.mxu0 0
        %4184 = vmatpush1.bf16.msra.mxu0 0
        %4185 = vmatprep.subr.bf16.mxu0 0
        %4186 = vmatpush1.bf16.msra.mxu0 0
        %4187 = vmatprep.subr.bf16.mxu0 0
        %4188 = vmatpush1.bf16.msra.mxu0 0
        %4189 = vmatprep.subr.bf16.mxu0 0
        %4190 = vmatpush1.bf16.msra.mxu0 0
        %4191 = vmatprep.subr.bf16.mxu0 0
        %4192 = vmatpush1.bf16.msra.mxu0 0
        %4193 = vmatprep.subr.bf16.mxu0 0
        %4194 = vmatpush1.bf16.msra.mxu0 0
        %4195 = vmatprep.subr.bf16.mxu0 0
        %4196 = vmatpush1.bf16.msra.mxu0 0
        %4197 = vmatprep.subr.bf16.mxu0 0
        %4198 = vmatpush1.bf16.msra.mxu0 0
        %4199 = vmatprep.subr.bf16.mxu0 0
        %4200 = vmatpush1.bf16.msra.mxu0 0
        %4201 = vmatprep.subr.bf16.mxu0 0
        %4202 = vmatpush1.bf16.msra.mxu0 0
        %4203 = vmatprep.mubr.bf16.mxu0 0
        %4204 = vmatmul.mubr.bf16.gmra.mrb[0].mxu0 %v4166
        %v4205 = vpop.f32.mrb[0].mxu0
        %v4206 = vadd.f32 0.0, %v4205
        %v4207 = vpop.f32.mrb[0].mxu0
        %v4208 = vpop.f32.mrb[0].mxu0
        %v4209 = vadd.f32 0.0, %v4208
        %v4210 = vpop.f32.mrb[0].mxu0
        %4211 = vmatprep.mubr.bf16.mxu0 0
        %4212 = vmatmul.mubr.bf16.gmra.mrb[0].mxu0 %v4169
        %v4213 = vpop.f32.mrb[0].mxu0
        %v4214 = vadd.f32 0.0, %v4213
        %v4215 = vpop.f32.mrb[0].mxu0
        %v4216 = vpop.f32.mrb[0].mxu0
        %v4217 = vadd.f32 0.0, %v4216
        %v4218 = vpop.f32.mrb[0].mxu0
        %4219 = vdwg.mxu0
        %v4221 = vsel %vm3560, %v3923, 0
        %v4224 = vsel %vm3560, %v3924, 0
        %4226 = vmatprep.subr.bf16.mxu0 0
        %4227 = vmatpush1.bf16.msra.mxu0 %v3939
        %4228 = vmatprep.subr.bf16.mxu0 0
        %4229 = vmatpush1.bf16.msra.mxu0 %v3940
        %4230 = vmatprep.subr.bf16.mxu0 0
        %4231 = vmatpush1.bf16.msra.mxu0 0
        %4232 = vmatprep.subr.bf16.mxu0 0
        %4233 = vmatpush1.bf16.msra.mxu0 0
        %4234 = vmatprep.subr.bf16.mxu0 0
        %4235 = vmatpush1.bf16.msra.mxu0 0
        %4236 = vmatprep.subr.bf16.mxu0 0
        %4237 = vmatpush1.bf16.msra.mxu0 0
        %4238 = vmatprep.subr.bf16.mxu0 0
        %4239 = vmatpush1.bf16.msra.mxu0 0
        %4240 = vmatprep.subr.bf16.mxu0 0
        %4241 = vmatpush1.bf16.msra.mxu0 0
        %4242 = vmatprep.subr.bf16.mxu0 0
        %4243 = vmatpush1.bf16.msra.mxu0 0
        %4244 = vmatprep.subr.bf16.mxu0 0
        %4245 = vmatpush1.bf16.msra.mxu0 0
        %4246 = vmatprep.subr.bf16.mxu0 0
        %4247 = vmatpush1.bf16.msra.mxu0 0
        %4248 = vmatprep.subr.bf16.mxu0 0
        %4249 = vmatpush1.bf16.msra.mxu0 0
        %4250 = vmatprep.subr.bf16.mxu0 0
        %4251 = vmatpush1.bf16.msra.mxu0 0
        %4252 = vmatprep.subr.bf16.mxu0 0
        %4253 = vmatpush1.bf16.msra.mxu0 0
        %4254 = vmatprep.subr.bf16.mxu0 0
        %4255 = vmatpush1.bf16.msra.mxu0 0
        %4256 = vmatprep.subr.bf16.mxu0 0
        %4257 = vmatpush1.bf16.msra.mxu0 0
        %4258 = vmatprep.mubr.bf16.mxu0 0
        %4259 = vmatmul.mubr.bf16.gmra.mrb[0].mxu0 %v4221
        %v4260 = vpop.f32.mrb[0].mxu0
        %v4261 = vadd.f32 0.0, %v4260
        %v4262 = vpop.f32.mrb[0].mxu0
        %v4263 = vpop.f32.mrb[0].mxu0
        %v4264 = vadd.f32 0.0, %v4263
        %v4265 = vpop.f32.mrb[0].mxu0
        %4266 = vmatprep.mubr.bf16.mxu0 0
        %4267 = vmatmul.mubr.bf16.gmra.mrb[0].mxu0 %v4224
        %v4268 = vpop.f32.mrb[0].mxu0
        %v4269 = vadd.f32 0.0, %v4268
        %v4270 = vpop.f32.mrb[0].mxu0
        %v4271 = vpop.f32.mrb[0].mxu0
        %v4272 = vadd.f32 0.0, %v4271
        %v4273 = vpop.f32.mrb[0].mxu0
        %4274 = vdwg.mxu0
        %v4276 = vsel %vm3560, %v3925, 0
        %v4279 = vsel %vm3560, %v3926, 0
        %4281 = vmatprep.subr.bf16.mxu0 0
        %4282 = vmatpush1.bf16.msra.mxu0 %v3941
        %4283 = vmatprep.subr.bf16.mxu0 0
        %4284 = vmatpush1.bf16.msra.mxu0 %v3942
        %4285 = vmatprep.subr.bf16.mxu0 0
        %4286 = vmatpush1.bf16.msra.mxu0 0
        %4287 = vmatprep.subr.bf16.mxu0 0
        %4288 = vmatpush1.bf16.msra.mxu0 0
        %4289 = vmatprep.subr.bf16.mxu0 0
        %4290 = vmatpush1.bf16.msra.mxu0 0
        %4291 = vmatprep.subr.bf16.mxu0 0
        %4292 = vmatpush1.bf16.msra.mxu0 0
        %4293 = vmatprep.subr.bf16.mxu0 0
        %4294 = vmatpush1.bf16.msra.mxu0 0
        %4295 = vmatprep.subr.bf16.mxu0 0
        %4296 = vmatpush1.bf16.msra.mxu0 0
        %4297 = vmatprep.subr.bf16.mxu0 0
        %4298 = vmatpush1.bf16.msra.mxu0 0
        %4299 = vmatprep.subr.bf16.mxu0 0
        %4300 = vmatpush1.bf16.msra.mxu0 0
        %4301 = vmatprep.subr.bf16.mxu0 0
        %4302 = vmatpush1.bf16.msra.mxu0 0
        %4303 = vmatprep.subr.bf16.mxu0 0
        %4304 = vmatpush1.bf16.msra.mxu0 0
        %4305 = vmatprep.subr.bf16.mxu0 0
        %4306 = vmatpush1.bf16.msra.mxu0 0
        %4307 = vmatprep.subr.bf16.mxu0 0
        %4308 = vmatpush1.bf16.msra.mxu0 0
        %4309 = vmatprep.subr.bf16.mxu0 0
        %4310 = vmatpush1.bf16.msra.mxu0 0
        %4311 = vmatprep.subr.bf16.mxu0 0
        %4312 = vmatpush1.bf16.msra.mxu0 0
        %4313 = vmatprep.mubr.bf16.mxu0 0
        %4314 = vmatmul.mubr.bf16.gmra.mrb[0].mxu0 %v4276
        %v4315 = vpop.f32.mrb[0].mxu0
        %v4316 = vadd.f32 0.0, %v4315
        %v4317 = vpop.f32.mrb[0].mxu0
        %v4318 = vpop.f32.mrb[0].mxu0
        %v4319 = vadd.f32 0.0, %v4318
        %v4320 = vpop.f32.mrb[0].mxu0
        %4321 = vmatprep.mubr.bf16.mxu0 0
        %4322 = vmatmul.mubr.bf16.gmra.mrb[0].mxu0 %v4279
        %v4323 = vpop.f32.mrb[0].mxu0
        %v4324 = vadd.f32 0.0, %v4323
        %v4325 = vpop.f32.mrb[0].mxu0
        %v4326 = vpop.f32.mrb[0].mxu0
        %v4327 = vadd.f32 0.0, %v4326
        %v4328 = vpop.f32.mrb[0].mxu0
        %4329 = vdwg.mxu0
        %v4331 = vsel %vm3560, %v3927, 0
        %v4334 = vsel %vm3560, %v3928, 0
        %4336 = vmatprep.subr.bf16.mxu0 0
        %4337 = vmatpush1.bf16.msra.mxu0 %v3943
        %4338 = vmatprep.subr.bf16.mxu0 0
        %4339 = vmatpush1.bf16.msra.mxu0 %v3944
        %4340 = vmatprep.subr.bf16.mxu0 0
        %4341 = vmatpush1.bf16.msra.mxu0 0
        %4342 = vmatprep.subr.bf16.mxu0 0
        %4343 = vmatpush1.bf16.msra.mxu0 0
        %4344 = vmatprep.subr.bf16.mxu0 0
        %4345 = vmatpush1.bf16.msra.mxu0 0
        %4346 = vmatprep.subr.bf16.mxu0 0
        %4347 = vmatpush1.bf16.msra.mxu0 0
        %4348 = vmatprep.subr.bf16.mxu0 0
        %4349 = vmatpush1.bf16.msra.mxu0 0
        %4350 = vmatprep.subr.bf16.mxu0 0
        %4351 = vmatpush1.bf16.msra.mxu0 0
        %4352 = vmatprep.subr.bf16.mxu0 0
        %4353 = vmatpush1.bf16.msra.mxu0 0
        %4354 = vmatprep.subr.bf16.mxu0 0
        %4355 = vmatpush1.bf16.msra.mxu0 0
        %4356 = vmatprep.subr.bf16.mxu0 0
        %4357 = vmatpush1.bf16.msra.mxu0 0
        %4358 = vmatprep.subr.bf16.mxu0 0
        %4359 = vmatpush1.bf16.msra.mxu0 0
        %4360 = vmatprep.subr.bf16.mxu0 0
        %4361 = vmatpush1.bf16.msra.mxu0 0
        %4362 = vmatprep.subr.bf16.mxu0 0
        %4363 = vmatpush1.bf16.msra.mxu0 0
        %4364 = vmatprep.subr.bf16.mxu0 0
        %4365 = vmatpush1.bf16.msra.mxu0 0
        %4366 = vmatprep.subr.bf16.mxu0 0
        %4367 = vmatpush1.bf16.msra.mxu0 0
        %4368 = vmatprep.mubr.bf16.mxu0 0
        %4369 = vmatmul.mubr.bf16.gmra.mrb[0].mxu0 %v4331
        %v4370 = vpop.f32.mrb[0].mxu0
        %v4371 = vadd.f32 0.0, %v4370
        %v4372 = vpop.f32.mrb[0].mxu0
        %v4373 = vpop.f32.mrb[0].mxu0
        %v4374 = vadd.f32 0.0, %v4373
        %v4375 = vpop.f32.mrb[0].mxu0
        %4376 = vmatprep.mubr.bf16.mxu0 0
        %4377 = vmatmul.mubr.bf16.gmra.mrb[0].mxu0 %v4334
        %v4378 = vpop.f32.mrb[0].mxu0
        %v4379 = vadd.f32 0.0, %v4378
        %v4380 = vpop.f32.mrb[0].mxu0
        %v4381 = vpop.f32.mrb[0].mxu0
        %v4382 = vadd.f32 0.0, %v4381
        %v4383 = vpop.f32.mrb[0].mxu0
        %4384 = vdwg.mxu0
        %v4385 = vld [vmem:[%s1449] sm:$0xf]
        %v4386 = vld [vmem:[%s1449 + $0x4] sm:$0xf]
        %v4387 = vld [vmem:[%s1449 + $0x8] sm:$0xf]
        %v4388 = vld [vmem:[%s1449 + $0xc] sm:$0xf]
        %v4389 = vld [vmem:[%s1449 + $0x10] sm:$0xf]
        %v4390 = vld [vmem:[%s1449 + $0x14] sm:$0xf]
        %v4391 = vld [vmem:[%s1449 + $0x18] sm:$0xf]
        %v4392 = vld [vmem:[%s1449 + $0x1c] sm:$0xf]
        %v4393 = vld [vmem:[%s1449 + $0x20] sm:$0xf]
        %v4394 = vld [vmem:[%s1449 + $0x24] sm:$0xf]
        %v4395 = vld [vmem:[%s1449 + $0x28] sm:$0xf]
        %v4396 = vld [vmem:[%s1449 + $0x2c] sm:$0xf]
        %v4397 = vld [vmem:[%s1449 + $0x30] sm:$0xf]
        %v4398 = vld [vmem:[%s1449 + $0x34] sm:$0xf]
        %v4399 = vld [vmem:[%s1449 + $0x38] sm:$0xf]
        %v4400 = vld [vmem:[%s1449 + $0x3c] sm:$0xf]
        %v4401 = vld [vmem:[%s1263] sm:$0x1]
        %v4402 = vpack.c.bf16 %v3989, %v3986
        %v4403 = vpack.c.bf16 %v3997, %v3994
        %v4404 = vpack.c.bf16 %v4044, %v4041
        %v4405 = vpack.c.bf16 %v4052, %v4049
        %v4406 = vpack.c.bf16 %v4099, %v4096
        %v4407 = vpack.c.bf16 %v4107, %v4104
        %v4408 = vpack.c.bf16 %v4154, %v4151
        %v4409 = vpack.c.bf16 %v4162, %v4159
        %v4410 = vpack.c.bf16 %v4209, %v4206
        %v4411 = vpack.c.bf16 %v4217, %v4214
        %v4412 = vpack.c.bf16 %v4264, %v4261
        %v4413 = vpack.c.bf16 %v4272, %v4269
        %v4414 = vpack.c.bf16 %v4319, %v4316
        %v4415 = vpack.c.bf16 %v4327, %v4324
        %v4416 = vpack.c.bf16 %v4374, %v4371
        %v4417 = vpack.c.bf16 %v4382, %v4379
        %v4419 = vlaneseq
        %v4420 = vshrl.u32 %v4419, 7
        %v4421 = vsub.s32 0, %v4420
        %v4422 = vrot.slane %v4401, %v4421
        %v4440 = vunpack.c.l.b16 %v4385
        %v4441 = vunpack.c.l.b16 %v4386
        %v4442 = vunpack.c.l.b16 %v4387
        %v4443 = vunpack.c.l.b16 %v4388
        %v4444 = vunpack.c.l.b16 %v4389
        %v4445 = vunpack.c.l.b16 %v4390
        %v4446 = vunpack.c.l.b16 %v4391
        %v4447 = vunpack.c.l.b16 %v4392
        %v4448 = vunpack.c.l.b16 %v4393
        %v4449 = vunpack.c.l.b16 %v4394
        %v4450 = vunpack.c.l.b16 %v4395
        %v4451 = vunpack.c.l.b16 %v4396
        %v4452 = vunpack.c.l.b16 %v4397
        %v4453 = vunpack.c.l.b16 %v4398
        %v4454 = vunpack.c.l.b16 %v4399
        %v4455 = vunpack.c.l.b16 %v4400
        %v4456 = vpack.c.b16 %v4441, %v4440
        %v4457 = vpack.c.b16 %v4443, %v4442
        %v4458 = vpack.c.b16 %v4445, %v4444
        %v4459 = vpack.c.b16 %v4447, %v4446
        %v4460 = vpack.c.b16 %v4449, %v4448
        %v4461 = vpack.c.b16 %v4451, %v4450
        %v4462 = vpack.c.b16 %v4453, %v4452
        %v4463 = vpack.c.b16 %v4455, %v4454
        %4472 = vmatprep.subr.bf16.mxu0 0
        %4473 = vmatpush1.bf16.msra.mxu0 %v4456
        %4474 = vmatprep.subr.bf16.mxu0 0
        %4475 = vmatpush1.bf16.msra.mxu0 %v4457
        %4476 = vmatprep.subr.bf16.mxu0 0
        %4477 = vmatpush1.bf16.msra.mxu0 %v4458
        %4478 = vmatprep.subr.bf16.mxu0 0
        %4479 = vmatpush1.bf16.msra.mxu0 %v4459
        %4480 = vmatprep.subr.bf16.mxu0 0
        %4481 = vmatpush1.bf16.msra.mxu0 %v4460
        %4482 = vmatprep.subr.bf16.mxu0 0
        %4483 = vmatpush1.bf16.msra.mxu0 %v4461
        %4484 = vmatprep.subr.bf16.mxu0 0
        %4485 = vmatpush1.bf16.msra.mxu0 %v4462
        %4486 = vmatprep.subr.bf16.mxu0 0
        %4487 = vmatpush1.bf16.msra.mxu0 %v4463
        %4488 = vmatprep.subr.bf16.mxu0 0
        %4489 = vmatpush1.bf16.msra.mxu0 0
        %4490 = vmatprep.subr.bf16.mxu0 0
        %4491 = vmatpush1.bf16.msra.mxu0 0
        %4492 = vmatprep.subr.bf16.mxu0 0
        %4493 = vmatpush1.bf16.msra.mxu0 0
        %4494 = vmatprep.subr.bf16.mxu0 0
        %4495 = vmatpush1.bf16.msra.mxu0 0
        %4496 = vmatprep.subr.bf16.mxu0 0
        %4497 = vmatpush1.bf16.msra.mxu0 0
        %4498 = vmatprep.subr.bf16.mxu0 0
        %4499 = vmatpush1.bf16.msra.mxu0 0
        %4500 = vmatprep.subr.bf16.mxu0 0
        %4501 = vmatpush1.bf16.msra.mxu0 0
        %4502 = vmatprep.subr.bf16.mxu0 0
        %4503 = vmatpush1.bf16.msra.mxu0 0
        %4504 = vmatprep.mubr.bf16.mxu0 0
        %4505 = vmatmul.mubr.bf16.gmra.mrb[0].mxu0 %v4402
        %v4506 = vpop.f32.mrb[0].mxu0
        %v4507 = vadd.f32 %v4422, %v4506
        %v4508 = vpop.f32.mrb[0].mxu0
        %v4509 = vpop.f32.mrb[0].mxu0
        %v4510 = vadd.f32 %v4422, %v4509
        %v4511 = vpop.f32.mrb[0].mxu0
        %4512 = vmatprep.mubr.bf16.mxu0 0
        %4513 = vmatmul.mubr.bf16.gmra.mrb[0].mxu0 %v4403
        %v4514 = vpop.f32.mrb[0].mxu0
        %v4515 = vadd.f32 %v4422, %v4514
        %v4516 = vpop.f32.mrb[0].mxu0
        %v4517 = vpop.f32.mrb[0].mxu0
        %v4518 = vadd.f32 %v4422, %v4517
        %v4519 = vpop.f32.mrb[0].mxu0
        %4520 = vmatprep.mubr.bf16.mxu0 0
        %4521 = vmatmul.mubr.bf16.gmra.mrb[0].mxu0 %v4404
        %v4522 = vpop.f32.mrb[0].mxu0
        %v4523 = vadd.f32 %v4422, %v4522
        %v4524 = vpop.f32.mrb[0].mxu0
        %v4525 = vpop.f32.mrb[0].mxu0
        %v4526 = vadd.f32 %v4422, %v4525
        %v4527 = vpop.f32.mrb[0].mxu0
        %4528 = vmatprep.mubr.bf16.mxu0 0
        %4529 = vmatmul.mubr.bf16.gmra.mrb[0].mxu0 %v4405
        %v4530 = vpop.f32.mrb[0].mxu0
        %v4531 = vadd.f32 %v4422, %v4530
        %v4532 = vpop.f32.mrb[0].mxu0
        %v4533 = vpop.f32.mrb[0].mxu0
        %v4534 = vadd.f32 %v4422, %v4533
        %v4535 = vpop.f32.mrb[0].mxu0
        %4536 = vmatprep.mubr.bf16.mxu0 0
        %4537 = vmatmul.mubr.bf16.gmra.mrb[0].mxu0 %v4406
        %v4538 = vpop.f32.mrb[0].mxu0
        %v4539 = vadd.f32 %v4422, %v4538
        %v4540 = vpop.f32.mrb[0].mxu0
        %v4541 = vpop.f32.mrb[0].mxu0
        %v4542 = vadd.f32 %v4422, %v4541
        %v4543 = vpop.f32.mrb[0].mxu0
        %4544 = vmatprep.mubr.bf16.mxu0 0
        %4545 = vmatmul.mubr.bf16.gmra.mrb[0].mxu0 %v4407
        %v4546 = vpop.f32.mrb[0].mxu0
        %v4547 = vadd.f32 %v4422, %v4546
        %v4548 = vpop.f32.mrb[0].mxu0
        %v4549 = vpop.f32.mrb[0].mxu0
        %v4550 = vadd.f32 %v4422, %v4549
        %v4551 = vpop.f32.mrb[0].mxu0
        %4552 = vmatprep.mubr.bf16.mxu0 0
        %4553 = vmatmul.mubr.bf16.gmra.mrb[0].mxu0 %v4408
        %v4554 = vpop.f32.mrb[0].mxu0
        %v4555 = vadd.f32 %v4422, %v4554
        %v4556 = vpop.f32.mrb[0].mxu0
        %v4557 = vpop.f32.mrb[0].mxu0
        %v4558 = vadd.f32 %v4422, %v4557
        %v4559 = vpop.f32.mrb[0].mxu0
        %4560 = vmatprep.mubr.bf16.mxu0 0
        %4561 = vmatmul.mubr.bf16.gmra.mrb[0].mxu0 %v4409
        %v4562 = vpop.f32.mrb[0].mxu0
        %v4563 = vadd.f32 %v4422, %v4562
        %v4564 = vpop.f32.mrb[0].mxu0
        %v4565 = vpop.f32.mrb[0].mxu0
        %v4566 = vadd.f32 %v4422, %v4565
        %v4567 = vpop.f32.mrb[0].mxu0
        %4568 = vmatprep.mubr.bf16.mxu0 0
        %4569 = vmatmul.mubr.bf16.gmra.mrb[0].mxu0 %v4410
        %v4570 = vpop.f32.mrb[0].mxu0
        %v4571 = vadd.f32 %v4422, %v4570
        %v4572 = vpop.f32.mrb[0].mxu0
        %v4573 = vpop.f32.mrb[0].mxu0
        %v4574 = vadd.f32 %v4422, %v4573
        %v4575 = vpop.f32.mrb[0].mxu0
        %4576 = vmatprep.mubr.bf16.mxu0 0
        %4577 = vmatmul.mubr.bf16.gmra.mrb[0].mxu0 %v4411
        %v4578 = vpop.f32.mrb[0].mxu0
        %v4579 = vadd.f32 %v4422, %v4578
        %v4580 = vpop.f32.mrb[0].mxu0
        %v4581 = vpop.f32.mrb[0].mxu0
        %v4582 = vadd.f32 %v4422, %v4581
        %v4583 = vpop.f32.mrb[0].mxu0
        %4584 = vmatprep.mubr.bf16.mxu0 0
        %4585 = vmatmul.mubr.bf16.gmra.mrb[0].mxu0 %v4412
        %v4586 = vpop.f32.mrb[0].mxu0
        %v4587 = vadd.f32 %v4422, %v4586
        %v4588 = vpop.f32.mrb[0].mxu0
        %v4589 = vpop.f32.mrb[0].mxu0
        %v4590 = vadd.f32 %v4422, %v4589
        %v4591 = vpop.f32.mrb[0].mxu0
        %4592 = vmatprep.mubr.bf16.mxu0 0
        %4593 = vmatmul.mubr.bf16.gmra.mrb[0].mxu0 %v4413
        %v4594 = vpop.f32.mrb[0].mxu0
        %v4595 = vadd.f32 %v4422, %v4594
        %v4596 = vpop.f32.mrb[0].mxu0
        %v4597 = vpop.f32.mrb[0].mxu0
        %v4598 = vadd.f32 %v4422, %v4597
        %v4599 = vpop.f32.mrb[0].mxu0
        %4600 = vmatprep.mubr.bf16.mxu0 0
        %4601 = vmatmul.mubr.bf16.gmra.mrb[0].mxu0 %v4414
        %v4602 = vpop.f32.mrb[0].mxu0
        %v4603 = vadd.f32 %v4422, %v4602
        %v4604 = vpop.f32.mrb[0].mxu0
        %v4605 = vpop.f32.mrb[0].mxu0
        %v4606 = vadd.f32 %v4422, %v4605
        %v4607 = vpop.f32.mrb[0].mxu0
        %4608 = vmatprep.mubr.bf16.mxu0 0
        %4609 = vmatmul.mubr.bf16.gmra.mrb[0].mxu0 %v4415
        %v4610 = vpop.f32.mrb[0].mxu0
        %v4611 = vadd.f32 %v4422, %v4610
        %v4612 = vpop.f32.mrb[0].mxu0
        %v4613 = vpop.f32.mrb[0].mxu0
        %v4614 = vadd.f32 %v4422, %v4613
        %v4615 = vpop.f32.mrb[0].mxu0
        %4616 = vmatprep.mubr.bf16.mxu0 0
        %4617 = vmatmul.mubr.bf16.gmra.mrb[0].mxu0 %v4416
        %v4618 = vpop.f32.mrb[0].mxu0
        %v4619 = vadd.f32 %v4422, %v4618
        %v4620 = vpop.f32.mrb[0].mxu0
        %v4621 = vpop.f32.mrb[0].mxu0
        %v4622 = vadd.f32 %v4422, %v4621
        %v4623 = vpop.f32.mrb[0].mxu0
        %4624 = vmatprep.mubr.bf16.mxu0 0
        %4625 = vmatmul.mubr.bf16.gmra.mrb[0].mxu0 %v4417
        %v4626 = vpop.f32.mrb[0].mxu0
        %v4627 = vadd.f32 %v4422, %v4626
        %v4628 = vpop.f32.mrb[0].mxu0
        %v4629 = vpop.f32.mrb[0].mxu0
        %v4630 = vadd.f32 %v4422, %v4629
        %v4631 = vpop.f32.mrb[0].mxu0
        %4632 = vdwg.mxu0
        %v4633 = vadd.f32 %v2055, %v4507
        %v4634 = vadd.f32 %v2056, %v4510
        %v4635 = vadd.f32 %v2057, %v4515
        %v4636 = vadd.f32 %v2058, %v4518
        %v4637 = vadd.f32 %v2059, %v4523
        %v4638 = vadd.f32 %v2060, %v4526
        %v4639 = vadd.f32 %v2061, %v4531
        %v4640 = vadd.f32 %v2062, %v4534
        %v4641 = vadd.f32 %v2063, %v4539
        %v4642 = vadd.f32 %v2064, %v4542
        %v4643 = vadd.f32 %v2065, %v4547
        %v4644 = vadd.f32 %v2066, %v4550
        %v4645 = vadd.f32 %v2067, %v4555
        %v4646 = vadd.f32 %v2068, %v4558
        %v4647 = vadd.f32 %v2069, %v4563
        %v4648 = vadd.f32 %v2070, %v4566
        %v4649 = vadd.f32 %v2071, %v4571
        %v4650 = vadd.f32 %v2072, %v4574
        %v4651 = vadd.f32 %v2073, %v4579
        %v4652 = vadd.f32 %v2074, %v4582
        %v4653 = vadd.f32 %v2075, %v4587
        %v4654 = vadd.f32 %v2076, %v4590
        %v4655 = vadd.f32 %v2077, %v4595
        %v4656 = vadd.f32 %v2078, %v4598
        %v4657 = vadd.f32 %v2079, %v4603
        %v4658 = vadd.f32 %v2080, %v4606
        %v4659 = vadd.f32 %v2081, %v4611
        %v4660 = vadd.f32 %v2082, %v4614
        %v4661 = vadd.f32 %v2083, %v4619
        %v4662 = vadd.f32 %v2084, %v4622
        %v4663 = vadd.f32 %v2085, %v4627
        %v4664 = vadd.f32 %v2086, %v4630
        %v4665 = vld [vmem:[%s1271] sm:$0x1]
        %v4666 = vld [vmem:[%s1279] sm:$0x1]
        %4667 = vadd.xlane.f32.xlu0 %v4633
        %v4668 = vpop.xlane.xlu0 %4667
        %4669 = vadd.xlane.f32.xlu0 %v4634
        %v4670 = vpop.xlane.xlu0 %4669
        %4671 = vadd.xlane.f32.xlu0 %v4635
        %v4672 = vpop.xlane.xlu0 %4671
        %4673 = vadd.xlane.f32.xlu0 %v4636
        %v4674 = vpop.xlane.xlu0 %4673
        %4675 = vadd.xlane.f32.xlu0 %v4637
        %v4676 = vpop.xlane.xlu0 %4675
        %4677 = vadd.xlane.f32.xlu0 %v4638
        %v4678 = vpop.xlane.xlu0 %4677
        %4679 = vadd.xlane.f32.xlu0 %v4639
        %v4680 = vpop.xlane.xlu0 %4679
        %4681 = vadd.xlane.f32.xlu0 %v4640
        %v4682 = vpop.xlane.xlu0 %4681
        %4683 = vadd.xlane.f32.xlu0 %v4641
        %v4684 = vpop.xlane.xlu0 %4683
        %4685 = vadd.xlane.f32.xlu0 %v4642
        %v4686 = vpop.xlane.xlu0 %4685
        %4687 = vadd.xlane.f32.xlu0 %v4643
        %v4688 = vpop.xlane.xlu0 %4687
        %4689 = vadd.xlane.f32.xlu0 %v4644
        %v4690 = vpop.xlane.xlu0 %4689
        %4691 = vadd.xlane.f32.xlu0 %v4645
        %v4692 = vpop.xlane.xlu0 %4691
        %4693 = vadd.xlane.f32.xlu0 %v4646
        %v4694 = vpop.xlane.xlu0 %4693
        %4695 = vadd.xlane.f32.xlu0 %v4647
        %v4696 = vpop.xlane.xlu0 %4695
        %4697 = vadd.xlane.f32.xlu0 %v4648
        %v4698 = vpop.xlane.xlu0 %4697
        %4699 = vadd.xlane.f32.xlu0 %v4649
        %v4700 = vpop.xlane.xlu0 %4699
        %4701 = vadd.xlane.f32.xlu0 %v4650
        %v4702 = vpop.xlane.xlu0 %4701
        %4703 = vadd.xlane.f32.xlu0 %v4651
        %v4704 = vpop.xlane.xlu0 %4703
        %4705 = vadd.xlane.f32.xlu0 %v4652
        %v4706 = vpop.xlane.xlu0 %4705
        %4707 = vadd.xlane.f32.xlu0 %v4653
        %v4708 = vpop.xlane.xlu0 %4707
        %4709 = vadd.xlane.f32.xlu0 %v4654
        %v4710 = vpop.xlane.xlu0 %4709
        %4711 = vadd.xlane.f32.xlu0 %v4655
        %v4712 = vpop.xlane.xlu0 %4711
        %4713 = vadd.xlane.f32.xlu0 %v4656
        %v4714 = vpop.xlane.xlu0 %4713
        %4715 = vadd.xlane.f32.xlu0 %v4657
        %v4716 = vpop.xlane.xlu0 %4715
        %4717 = vadd.xlane.f32.xlu0 %v4658
        %v4718 = vpop.xlane.xlu0 %4717
        %4719 = vadd.xlane.f32.xlu0 %v4659
        %v4720 = vpop.xlane.xlu0 %4719
        %4721 = vadd.xlane.f32.xlu0 %v4660
        %v4722 = vpop.xlane.xlu0 %4721
        %4723 = vadd.xlane.f32.xlu0 %v4661
        %v4724 = vpop.xlane.xlu0 %4723
        %4725 = vadd.xlane.f32.xlu0 %v4662
        %v4726 = vpop.xlane.xlu0 %4725
        %4727 = vadd.xlane.f32.xlu0 %v4663
        %v4728 = vpop.xlane.xlu0 %4727
        %4729 = vadd.xlane.f32.xlu0 %v4664
        %v4730 = vpop.xlane.xlu0 %4729
        %v4731 = vmul.f32 %v4668, %v2153
        %v4732 = vmul.f32 %v4670, %v2153
        %v4733 = vmul.f32 %v4672, %v2153
        %v4734 = vmul.f32 %v4674, %v2153
        %v4735 = vmul.f32 %v4676, %v2153
        %v4736 = vmul.f32 %v4678, %v2153
        %v4737 = vmul.f32 %v4680, %v2153
        %v4738 = vmul.f32 %v4682, %v2153
        %v4739 = vmul.f32 %v4684, %v2153
        %v4740 = vmul.f32 %v4686, %v2153
        %v4741 = vmul.f32 %v4688, %v2153
        %v4742 = vmul.f32 %v4690, %v2153
        %v4743 = vmul.f32 %v4692, %v2153
        %v4744 = vmul.f32 %v4694, %v2153
        %v4745 = vmul.f32 %v4696, %v2153
        %v4746 = vmul.f32 %v4698, %v2153
        %v4747 = vmul.f32 %v4700, %v2153
        %v4748 = vmul.f32 %v4702, %v2153
        %v4749 = vmul.f32 %v4704, %v2153
        %v4750 = vmul.f32 %v4706, %v2153
        %v4751 = vmul.f32 %v4708, %v2153
        %v4752 = vmul.f32 %v4710, %v2153
        %v4753 = vmul.f32 %v4712, %v2153
        %v4754 = vmul.f32 %v4714, %v2153
        %v4755 = vmul.f32 %v4716, %v2153
        %v4756 = vmul.f32 %v4718, %v2153
        %v4757 = vmul.f32 %v4720, %v2153
        %v4758 = vmul.f32 %v4722, %v2153
        %v4759 = vmul.f32 %v4724, %v2153
        %v4760 = vmul.f32 %v4726, %v2153
        %v4761 = vmul.f32 %v4728, %v2153
        %v4762 = vmul.f32 %v4730, %v2153
        %v4763 = vsub.f32 %v4633, %v4731
        %v4764 = vsub.f32 %v4634, %v4732
        %v4765 = vsub.f32 %v4635, %v4733
        %v4766 = vsub.f32 %v4636, %v4734
        %v4767 = vsub.f32 %v4637, %v4735
        %v4768 = vsub.f32 %v4638, %v4736
        %v4769 = vsub.f32 %v4639, %v4737
        %v4770 = vsub.f32 %v4640, %v4738
        %v4771 = vsub.f32 %v4641, %v4739
        %v4772 = vsub.f32 %v4642, %v4740
        %v4773 = vsub.f32 %v4643, %v4741
        %v4774 = vsub.f32 %v4644, %v4742
        %v4775 = vsub.f32 %v4645, %v4743
        %v4776 = vsub.f32 %v4646, %v4744
        %v4777 = vsub.f32 %v4647, %v4745
        %v4778 = vsub.f32 %v4648, %v4746
        %v4779 = vsub.f32 %v4649, %v4747
        %v4780 = vsub.f32 %v4650, %v4748
        %v4781 = vsub.f32 %v4651, %v4749
        %v4782 = vsub.f32 %v4652, %v4750
        %v4783 = vsub.f32 %v4653, %v4751
        %v4784 = vsub.f32 %v4654, %v4752
        %v4785 = vsub.f32 %v4655, %v4753
        %v4786 = vsub.f32 %v4656, %v4754
        %v4787 = vsub.f32 %v4657, %v4755
        %v4788 = vsub.f32 %v4658, %v4756
        %v4789 = vsub.f32 %v4659, %v4757
        %v4790 = vsub.f32 %v4660, %v4758
        %v4791 = vsub.f32 %v4661, %v4759
        %v4792 = vsub.f32 %v4662, %v4760
        %v4793 = vsub.f32 %v4663, %v4761
        %v4794 = vsub.f32 %v4664, %v4762
        %v4795 = vmul.f32 %v4763, %v4763
        %v4796 = vmul.f32 %v4764, %v4764
        %v4797 = vmul.f32 %v4765, %v4765
        %v4798 = vmul.f32 %v4766, %v4766
        %v4799 = vmul.f32 %v4767, %v4767
        %v4800 = vmul.f32 %v4768, %v4768
        %v4801 = vmul.f32 %v4769, %v4769
        %v4802 = vmul.f32 %v4770, %v4770
        %v4803 = vmul.f32 %v4771, %v4771
        %v4804 = vmul.f32 %v4772, %v4772
        %v4805 = vmul.f32 %v4773, %v4773
        %v4806 = vmul.f32 %v4774, %v4774
        %v4807 = vmul.f32 %v4775, %v4775
        %v4808 = vmul.f32 %v4776, %v4776
        %v4809 = vmul.f32 %v4777, %v4777
        %v4810 = vmul.f32 %v4778, %v4778
        %v4811 = vmul.f32 %v4779, %v4779
        %v4812 = vmul.f32 %v4780, %v4780
        %v4813 = vmul.f32 %v4781, %v4781
        %v4814 = vmul.f32 %v4782, %v4782
        %v4815 = vmul.f32 %v4783, %v4783
        %v4816 = vmul.f32 %v4784, %v4784
        %v4817 = vmul.f32 %v4785, %v4785
        %v4818 = vmul.f32 %v4786, %v4786
        %v4819 = vmul.f32 %v4787, %v4787
        %v4820 = vmul.f32 %v4788, %v4788
        %v4821 = vmul.f32 %v4789, %v4789
        %v4822 = vmul.f32 %v4790, %v4790
        %v4823 = vmul.f32 %v4791, %v4791
        %v4824 = vmul.f32 %v4792, %v4792
        %v4825 = vmul.f32 %v4793, %v4793
        %v4826 = vmul.f32 %v4794, %v4794
        %4827 = vadd.xlane.f32.xlu0 %v4795
        %v4828 = vpop.xlane.xlu0 %4827
        %4829 = vadd.xlane.f32.xlu0 %v4796
        %v4830 = vpop.xlane.xlu0 %4829
        %4831 = vadd.xlane.f32.xlu0 %v4797
        %v4832 = vpop.xlane.xlu0 %4831
        %4833 = vadd.xlane.f32.xlu0 %v4798
        %v4834 = vpop.xlane.xlu0 %4833
        %4835 = vadd.xlane.f32.xlu0 %v4799
        %v4836 = vpop.xlane.xlu0 %4835
        %4837 = vadd.xlane.f32.xlu0 %v4800
        %v4838 = vpop.xlane.xlu0 %4837
        %4839 = vadd.xlane.f32.xlu0 %v4801
        %v4840 = vpop.xlane.xlu0 %4839
        %4841 = vadd.xlane.f32.xlu0 %v4802
        %v4842 = vpop.xlane.xlu0 %4841
        %4843 = vadd.xlane.f32.xlu0 %v4803
        %v4844 = vpop.xlane.xlu0 %4843
        %4845 = vadd.xlane.f32.xlu0 %v4804
        %v4846 = vpop.xlane.xlu0 %4845
        %4847 = vadd.xlane.f32.xlu0 %v4805
        %v4848 = vpop.xlane.xlu0 %4847
        %4849 = vadd.xlane.f32.xlu0 %v4806
        %v4850 = vpop.xlane.xlu0 %4849
        %4851 = vadd.xlane.f32.xlu0 %v4807
        %v4852 = vpop.xlane.xlu0 %4851
        %4853 = vadd.xlane.f32.xlu0 %v4808
        %v4854 = vpop.xlane.xlu0 %4853
        %4855 = vadd.xlane.f32.xlu0 %v4809
        %v4856 = vpop.xlane.xlu0 %4855
        %4857 = vadd.xlane.f32.xlu0 %v4810
        %v4858 = vpop.xlane.xlu0 %4857
        %4859 = vadd.xlane.f32.xlu0 %v4811
        %v4860 = vpop.xlane.xlu0 %4859
        %4861 = vadd.xlane.f32.xlu0 %v4812
        %v4862 = vpop.xlane.xlu0 %4861
        %4863 = vadd.xlane.f32.xlu0 %v4813
        %v4864 = vpop.xlane.xlu0 %4863
        %4865 = vadd.xlane.f32.xlu0 %v4814
        %v4866 = vpop.xlane.xlu0 %4865
        %4867 = vadd.xlane.f32.xlu0 %v4815
        %v4868 = vpop.xlane.xlu0 %4867
        %4869 = vadd.xlane.f32.xlu0 %v4816
        %v4870 = vpop.xlane.xlu0 %4869
        %4871 = vadd.xlane.f32.xlu0 %v4817
        %v4872 = vpop.xlane.xlu0 %4871
        %4873 = vadd.xlane.f32.xlu0 %v4818
        %v4874 = vpop.xlane.xlu0 %4873
        %4875 = vadd.xlane.f32.xlu0 %v4819
        %v4876 = vpop.xlane.xlu0 %4875
        %4877 = vadd.xlane.f32.xlu0 %v4820
        %v4878 = vpop.xlane.xlu0 %4877
        %4879 = vadd.xlane.f32.xlu0 %v4821
        %v4880 = vpop.xlane.xlu0 %4879
        %4881 = vadd.xlane.f32.xlu0 %v4822
        %v4882 = vpop.xlane.xlu0 %4881
        %4883 = vadd.xlane.f32.xlu0 %v4823
        %v4884 = vpop.xlane.xlu0 %4883
        %4885 = vadd.xlane.f32.xlu0 %v4824
        %v4886 = vpop.xlane.xlu0 %4885
        %4887 = vadd.xlane.f32.xlu0 %v4825
        %v4888 = vpop.xlane.xlu0 %4887
        %4889 = vadd.xlane.f32.xlu0 %v4826
        %v4890 = vpop.xlane.xlu0 %4889
        %v4891 = vmul.f32 %v4828, %v2153
        %v4892 = vmul.f32 %v4830, %v2153
        %v4893 = vmul.f32 %v4832, %v2153
        %v4894 = vmul.f32 %v4834, %v2153
        %v4895 = vmul.f32 %v4836, %v2153
        %v4896 = vmul.f32 %v4838, %v2153
        %v4897 = vmul.f32 %v4840, %v2153
        %v4898 = vmul.f32 %v4842, %v2153
        %v4899 = vmul.f32 %v4844, %v2153
        %v4900 = vmul.f32 %v4846, %v2153
        %v4901 = vmul.f32 %v4848, %v2153
        %v4902 = vmul.f32 %v4850, %v2153
        %v4903 = vmul.f32 %v4852, %v2153
        %v4904 = vmul.f32 %v4854, %v2153
        %v4905 = vmul.f32 %v4856, %v2153
        %v4906 = vmul.f32 %v4858, %v2153
        %v4907 = vmul.f32 %v4860, %v2153
        %v4908 = vmul.f32 %v4862, %v2153
        %v4909 = vmul.f32 %v4864, %v2153
        %v4910 = vmul.f32 %v4866, %v2153
        %v4911 = vmul.f32 %v4868, %v2153
        %v4912 = vmul.f32 %v4870, %v2153
        %v4913 = vmul.f32 %v4872, %v2153
        %v4914 = vmul.f32 %v4874, %v2153
        %v4915 = vmul.f32 %v4876, %v2153
        %v4916 = vmul.f32 %v4878, %v2153
        %v4917 = vmul.f32 %v4880, %v2153
        %v4918 = vmul.f32 %v4882, %v2153
        %v4919 = vmul.f32 %v4884, %v2153
        %v4920 = vmul.f32 %v4886, %v2153
        %v4921 = vmul.f32 %v4888, %v2153
        %v4922 = vmul.f32 %v4890, %v2153
        %v4923 = vadd.f32 %v4891, 1e-12
        %v4924 = vadd.f32 %v4892, 1e-12
        %v4925 = vadd.f32 %v4893, 1e-12
        %v4926 = vadd.f32 %v4894, 1e-12
        %v4927 = vadd.f32 %v4895, 1e-12
        %v4928 = vadd.f32 %v4896, 1e-12
        %v4929 = vadd.f32 %v4897, 1e-12
        %v4930 = vadd.f32 %v4898, 1e-12
        %v4931 = vadd.f32 %v4899, 1e-12
        %v4932 = vadd.f32 %v4900, 1e-12
        %v4933 = vadd.f32 %v4901, 1e-12
        %v4934 = vadd.f32 %v4902, 1e-12
        %v4935 = vadd.f32 %v4903, 1e-12
        %v4936 = vadd.f32 %v4904, 1e-12
        %v4937 = vadd.f32 %v4905, 1e-12
        %v4938 = vadd.f32 %v4906, 1e-12
        %v4939 = vadd.f32 %v4907, 1e-12
        %v4940 = vadd.f32 %v4908, 1e-12
        %v4941 = vadd.f32 %v4909, 1e-12
        %v4942 = vadd.f32 %v4910, 1e-12
        %v4943 = vadd.f32 %v4911, 1e-12
        %v4944 = vadd.f32 %v4912, 1e-12
        %v4945 = vadd.f32 %v4913, 1e-12
        %v4946 = vadd.f32 %v4914, 1e-12
        %v4947 = vadd.f32 %v4915, 1e-12
        %v4948 = vadd.f32 %v4916, 1e-12
        %v4949 = vadd.f32 %v4917, 1e-12
        %v4950 = vadd.f32 %v4918, 1e-12
        %v4951 = vadd.f32 %v4919, 1e-12
        %v4952 = vadd.f32 %v4920, 1e-12
        %v4953 = vadd.f32 %v4921, 1e-12
        %v4954 = vadd.f32 %v4922, 1e-12
        %v4955 = vrsqrt.pop %v4923
        %v4956 = vrsqrt.pop %v4924
        %v4957 = vrsqrt.pop %v4925
        %v4958 = vrsqrt.pop %v4926
        %v4959 = vrsqrt.pop %v4927
        %v4960 = vrsqrt.pop %v4928
        %v4961 = vrsqrt.pop %v4929
        %v4962 = vrsqrt.pop %v4930
        %v4963 = vrsqrt.pop %v4931
        %v4964 = vrsqrt.pop %v4932
        %v4965 = vrsqrt.pop %v4933
        %v4966 = vrsqrt.pop %v4934
        %v4967 = vrsqrt.pop %v4935
        %v4968 = vrsqrt.pop %v4936
        %v4969 = vrsqrt.pop %v4937
        %v4970 = vrsqrt.pop %v4938
        %v4971 = vrsqrt.pop %v4939
        %v4972 = vrsqrt.pop %v4940
        %v4973 = vrsqrt.pop %v4941
        %v4974 = vrsqrt.pop %v4942
        %v4975 = vrsqrt.pop %v4943
        %v4976 = vrsqrt.pop %v4944
        %v4977 = vrsqrt.pop %v4945
        %v4978 = vrsqrt.pop %v4946
        %v4979 = vrsqrt.pop %v4947
        %v4980 = vrsqrt.pop %v4948
        %v4981 = vrsqrt.pop %v4949
        %v4982 = vrsqrt.pop %v4950
        %v4983 = vrsqrt.pop %v4951
        %v4984 = vrsqrt.pop %v4952
        %v4985 = vrsqrt.pop %v4953
        %v4986 = vrsqrt.pop %v4954
        %v4987 = vmul.f32 %v4763, %v4955
        %v4988 = vmul.f32 %v4764, %v4956
        %v4989 = vmul.f32 %v4765, %v4957
        %v4990 = vmul.f32 %v4766, %v4958
        %v4991 = vmul.f32 %v4767, %v4959
        %v4992 = vmul.f32 %v4768, %v4960
        %v4993 = vmul.f32 %v4769, %v4961
        %v4994 = vmul.f32 %v4770, %v4962
        %v4995 = vmul.f32 %v4771, %v4963
        %v4996 = vmul.f32 %v4772, %v4964
        %v4997 = vmul.f32 %v4773, %v4965
        %v4998 = vmul.f32 %v4774, %v4966
        %v4999 = vmul.f32 %v4775, %v4967
        %v5000 = vmul.f32 %v4776, %v4968
        %v5001 = vmul.f32 %v4777, %v4969
        %v5002 = vmul.f32 %v4778, %v4970
        %v5003 = vmul.f32 %v4779, %v4971
        %v5004 = vmul.f32 %v4780, %v4972
        %v5005 = vmul.f32 %v4781, %v4973
        %v5006 = vmul.f32 %v4782, %v4974
        %v5007 = vmul.f32 %v4783, %v4975
        %v5008 = vmul.f32 %v4784, %v4976
        %v5009 = vmul.f32 %v4785, %v4977
        %v5010 = vmul.f32 %v4786, %v4978
        %v5011 = vmul.f32 %v4787, %v4979
        %v5012 = vmul.f32 %v4788, %v4980
        %v5013 = vmul.f32 %v4789, %v4981
        %v5014 = vmul.f32 %v4790, %v4982
        %v5015 = vmul.f32 %v4791, %v4983
        %v5016 = vmul.f32 %v4792, %v4984
        %v5017 = vmul.f32 %v4793, %v4985
        %v5018 = vmul.f32 %v4794, %v4986
        %v5020 = vlaneseq
        %v5021 = vshrl.u32 %v5020, 7
        %v5022 = vsub.s32 0, %v5021
        %v5023 = vrot.slane %v4665, %v5022
        %v5025 = vmul.f32 %v4987, %v5023
        %v5026 = vmul.f32 %v4988, %v5023
        %v5027 = vmul.f32 %v4989, %v5023
        %v5028 = vmul.f32 %v4990, %v5023
        %v5029 = vmul.f32 %v4991, %v5023
        %v5030 = vmul.f32 %v4992, %v5023
        %v5031 = vmul.f32 %v4993, %v5023
        %v5032 = vmul.f32 %v4994, %v5023
        %v5033 = vmul.f32 %v4995, %v5023
        %v5034 = vmul.f32 %v4996, %v5023
        %v5035 = vmul.f32 %v4997, %v5023
        %v5036 = vmul.f32 %v4998, %v5023
        %v5037 = vmul.f32 %v4999, %v5023
        %v5038 = vmul.f32 %v5000, %v5023
        %v5039 = vmul.f32 %v5001, %v5023
        %v5040 = vmul.f32 %v5002, %v5023
        %v5041 = vmul.f32 %v5003, %v5023
        %v5042 = vmul.f32 %v5004, %v5023
        %v5043 = vmul.f32 %v5005, %v5023
        %v5044 = vmul.f32 %v5006, %v5023
        %v5045 = vmul.f32 %v5007, %v5023
        %v5046 = vmul.f32 %v5008, %v5023
        %v5047 = vmul.f32 %v5009, %v5023
        %v5048 = vmul.f32 %v5010, %v5023
        %v5049 = vmul.f32 %v5011, %v5023
        %v5050 = vmul.f32 %v5012, %v5023
        %v5051 = vmul.f32 %v5013, %v5023
        %v5052 = vmul.f32 %v5014, %v5023
        %v5053 = vmul.f32 %v5015, %v5023
        %v5054 = vmul.f32 %v5016, %v5023
        %v5055 = vmul.f32 %v5017, %v5023
        %v5056 = vmul.f32 %v5018, %v5023
        %v5058 = vlaneseq
        %v5059 = vshrl.u32 %v5058, 7
        %v5060 = vsub.s32 0, %v5059
        %v5061 = vrot.slane %v4666, %v5060
        %v5063 = vadd.f32 %v5025, %v5061
        %v5064 = vadd.f32 %v5026, %v5061
        %v5065 = vadd.f32 %v5027, %v5061
        %v5066 = vadd.f32 %v5028, %v5061
        %v5067 = vadd.f32 %v5029, %v5061
        %v5068 = vadd.f32 %v5030, %v5061
        %v5069 = vadd.f32 %v5031, %v5061
        %v5070 = vadd.f32 %v5032, %v5061
        %v5071 = vadd.f32 %v5033, %v5061
        %v5072 = vadd.f32 %v5034, %v5061
        %v5073 = vadd.f32 %v5035, %v5061
        %v5074 = vadd.f32 %v5036, %v5061
        %v5075 = vadd.f32 %v5037, %v5061
        %v5076 = vadd.f32 %v5038, %v5061
        %v5077 = vadd.f32 %v5039, %v5061
        %v5078 = vadd.f32 %v5040, %v5061
        %v5079 = vadd.f32 %v5041, %v5061
        %v5080 = vadd.f32 %v5042, %v5061
        %v5081 = vadd.f32 %v5043, %v5061
        %v5082 = vadd.f32 %v5044, %v5061
        %v5083 = vadd.f32 %v5045, %v5061
        %v5084 = vadd.f32 %v5046, %v5061
        %v5085 = vadd.f32 %v5047, %v5061
        %v5086 = vadd.f32 %v5048, %v5061
        %v5087 = vadd.f32 %v5049, %v5061
        %v5088 = vadd.f32 %v5050, %v5061
        %v5089 = vadd.f32 %v5051, %v5061
        %v5090 = vadd.f32 %v5052, %v5061
        %v5091 = vadd.f32 %v5053, %v5061
        %v5092 = vadd.f32 %v5054, %v5061
        %v5093 = vadd.f32 %v5055, %v5061
        %v5094 = vadd.f32 %v5056, %v5061
        %v5095 = vld [vmem:[%s1288] sm:$0xff]
        %v5096 = vld [vmem:[%s1288 + $0x8] sm:$0xff]
        %v5097 = vld [vmem:[%s1288 + $0x10] sm:$0xff]
        %v5098 = vld [vmem:[%s1288 + $0x18] sm:$0xff]
        %v5099 = vld [vmem:[%s1288 + $0x20] sm:$0xff]
        %v5100 = vld [vmem:[%s1288 + $0x28] sm:$0xff]
        %v5101 = vld [vmem:[%s1288 + $0x30] sm:$0xff]
        %v5102 = vld [vmem:[%s1288 + $0x38] sm:$0xff]
        %v5103 = vld [vmem:[%s1288 + $0x40] sm:$0xff]
        %v5104 = vld [vmem:[%s1288 + $0x48] sm:$0xff]
        %v5105 = vld [vmem:[%s1288 + $0x50] sm:$0xff]
        %v5106 = vld [vmem:[%s1288 + $0x58] sm:$0xff]
        %v5107 = vld [vmem:[%s1288 + $0x60] sm:$0xff]
        %v5108 = vld [vmem:[%s1288 + $0x68] sm:$0xff]
        %v5109 = vld [vmem:[%s1288 + $0x70] sm:$0xff]
        %v5110 = vld [vmem:[%s1288 + $0x78] sm:$0xff]
        %v5111 = vld [vmem:[%s1288 + $0x80] sm:$0xff]
        %v5112 = vld [vmem:[%s1288 + $0x88] sm:$0xff]
        %v5113 = vld [vmem:[%s1288 + $0x90] sm:$0xff]
        %v5114 = vld [vmem:[%s1288 + $0x98] sm:$0xff]
        %v5115 = vld [vmem:[%s1288 + $0xa0] sm:$0xff]
        %v5116 = vld [vmem:[%s1288 + $0xa8] sm:$0xff]
        %v5117 = vld [vmem:[%s1288 + $0xb0] sm:$0xff]
        %v5118 = vld [vmem:[%s1288 + $0xb8] sm:$0xff]
        %v5119 = vld [vmem:[%s1288 + $0xc0] sm:$0xff]
        %v5120 = vld [vmem:[%s1288 + $0xc8] sm:$0xff]
        %v5121 = vld [vmem:[%s1288 + $0xd0] sm:$0xff]
        %v5122 = vld [vmem:[%s1288 + $0xd8] sm:$0xff]
        %v5123 = vld [vmem:[%s1288 + $0xe0] sm:$0xff]
        %v5124 = vld [vmem:[%s1288 + $0xe8] sm:$0xff]
        %v5125 = vld [vmem:[%s1288 + $0xf0] sm:$0xff]
        %v5126 = vld [vmem:[%s1288 + $0xf8] sm:$0xff]
        %v5127 = vld [vmem:[%s1453] sm:$0xf]
        %v5128 = vpack.c.bf16 %v5064, %v5063
        %v5129 = vpack.c.bf16 %v5066, %v5065
        %v5130 = vpack.c.bf16 %v5068, %v5067
        %v5131 = vpack.c.bf16 %v5070, %v5069
        %v5132 = vpack.c.bf16 %v5072, %v5071
        %v5133 = vpack.c.bf16 %v5074, %v5073
        %v5134 = vpack.c.bf16 %v5076, %v5075
        %v5135 = vpack.c.bf16 %v5078, %v5077
        %v5136 = vpack.c.bf16 %v5080, %v5079
        %v5137 = vpack.c.bf16 %v5082, %v5081
        %v5138 = vpack.c.bf16 %v5084, %v5083
        %v5139 = vpack.c.bf16 %v5086, %v5085
        %v5140 = vpack.c.bf16 %v5088, %v5087
        %v5141 = vpack.c.bf16 %v5090, %v5089
        %v5142 = vpack.c.bf16 %v5092, %v5091
        %v5143 = vpack.c.bf16 %v5094, %v5093
        %v5145 = vlaneseq
        %v5146 = vshrl.u32 %v5145, 7
        %v5147 = vsub.s32 0, %v5146
        %v5148 = vrot.slane %v5127, %v5147
        %v5149 = vlaneseq
        %v5150 = vshrl.u32 %v5149, 7
        %v5151 = vsub.s32 1, %v5150
        %v5152 = vrot.slane %v5127, %v5151
        %v5153 = vlaneseq
        %v5154 = vshrl.u32 %v5153, 7
        %v5155 = vsub.s32 2, %v5154
        %v5156 = vrot.slane %v5127, %v5155
        %v5157 = vlaneseq
        %v5158 = vshrl.u32 %v5157, 7
        %v5159 = vsub.s32 3, %v5158
        %v5160 = vrot.slane %v5127, %v5159
        %v5197 = vunpack.c.l.b16 %v5095
        %v5198 = vunpack.c.h.b16 %v5095
        %v5199 = vunpack.c.l.b16 %v5096
        %v5200 = vunpack.c.h.b16 %v5096
        %v5201 = vunpack.c.l.b16 %v5097
        %v5202 = vunpack.c.h.b16 %v5097
        %v5203 = vunpack.c.l.b16 %v5098
        %v5204 = vunpack.c.h.b16 %v5098
        %v5205 = vunpack.c.l.b16 %v5099
        %v5206 = vunpack.c.h.b16 %v5099
        %v5207 = vunpack.c.l.b16 %v5100
        %v5208 = vunpack.c.h.b16 %v5100
        %v5209 = vunpack.c.l.b16 %v5101
        %v5210 = vunpack.c.h.b16 %v5101
        %v5211 = vunpack.c.l.b16 %v5102
        %v5212 = vunpack.c.h.b16 %v5102
        %v5213 = vunpack.c.l.b16 %v5103
        %v5214 = vunpack.c.h.b16 %v5103
        %v5215 = vunpack.c.l.b16 %v5104
        %v5216 = vunpack.c.h.b16 %v5104
        %v5217 = vunpack.c.l.b16 %v5105
        %v5218 = vunpack.c.h.b16 %v5105
        %v5219 = vunpack.c.l.b16 %v5106
        %v5220 = vunpack.c.h.b16 %v5106
        %v5221 = vunpack.c.l.b16 %v5107
        %v5222 = vunpack.c.h.b16 %v5107
        %v5223 = vunpack.c.l.b16 %v5108
        %v5224 = vunpack.c.h.b16 %v5108
        %v5225 = vunpack.c.l.b16 %v5109
        %v5226 = vunpack.c.h.b16 %v5109
        %v5227 = vunpack.c.l.b16 %v5110
        %v5228 = vunpack.c.h.b16 %v5110
        %v5229 = vunpack.c.l.b16 %v5111
        %v5230 = vunpack.c.h.b16 %v5111
        %v5231 = vunpack.c.l.b16 %v5112
        %v5232 = vunpack.c.h.b16 %v5112
        %v5233 = vunpack.c.l.b16 %v5113
        %v5234 = vunpack.c.h.b16 %v5113
        %v5235 = vunpack.c.l.b16 %v5114
        %v5236 = vunpack.c.h.b16 %v5114
        %v5237 = vunpack.c.l.b16 %v5115
        %v5238 = vunpack.c.h.b16 %v5115
        %v5239 = vunpack.c.l.b16 %v5116
        %v5240 = vunpack.c.h.b16 %v5116
        %v5241 = vunpack.c.l.b16 %v5117
        %v5242 = vunpack.c.h.b16 %v5117
        %v5243 = vunpack.c.l.b16 %v5118
        %v5244 = vunpack.c.h.b16 %v5118
        %v5245 = vunpack.c.l.b16 %v5119
        %v5246 = vunpack.c.h.b16 %v5119
        %v5247 = vunpack.c.l.b16 %v5120
        %v5248 = vunpack.c.h.b16 %v5120
        %v5249 = vunpack.c.l.b16 %v5121
        %v5250 = vunpack.c.h.b16 %v5121
        %v5251 = vunpack.c.l.b16 %v5122
        %v5252 = vunpack.c.h.b16 %v5122
        %v5253 = vunpack.c.l.b16 %v5123
        %v5254 = vunpack.c.h.b16 %v5123
        %v5255 = vunpack.c.l.b16 %v5124
        %v5256 = vunpack.c.h.b16 %v5124
        %v5257 = vunpack.c.l.b16 %v5125
        %v5258 = vunpack.c.h.b16 %v5125
        %v5259 = vunpack.c.l.b16 %v5126
        %v5260 = vunpack.c.h.b16 %v5126
        %v5261 = vpack.c.b16 %v5201, %v5197
        %v5262 = vpack.c.b16 %v5202, %v5198
        %v5263 = vpack.c.b16 %v5203, %v5199
        %v5264 = vpack.c.b16 %v5204, %v5200
        %v5265 = vpack.c.b16 %v5209, %v5205
        %v5266 = vpack.c.b16 %v5210, %v5206
        %v5267 = vpack.c.b16 %v5211, %v5207
        %v5268 = vpack.c.b16 %v5212, %v5208
        %v5269 = vpack.c.b16 %v5217, %v5213
        %v5270 = vpack.c.b16 %v5218, %v5214
        %v5271 = vpack.c.b16 %v5219, %v5215
        %v5272 = vpack.c.b16 %v5220, %v5216
        %v5273 = vpack.c.b16 %v5225, %v5221
        %v5274 = vpack.c.b16 %v5226, %v5222
        %v5275 = vpack.c.b16 %v5227, %v5223
        %v5276 = vpack.c.b16 %v5228, %v5224
        %v5277 = vpack.c.b16 %v5233, %v5229
        %v5278 = vpack.c.b16 %v5234, %v5230
        %v5279 = vpack.c.b16 %v5235, %v5231
        %v5280 = vpack.c.b16 %v5236, %v5232
        %v5281 = vpack.c.b16 %v5241, %v5237
        %v5282 = vpack.c.b16 %v5242, %v5238
        %v5283 = vpack.c.b16 %v5243, %v5239
        %v5284 = vpack.c.b16 %v5244, %v5240
        %v5285 = vpack.c.b16 %v5249, %v5245
        %v5286 = vpack.c.b16 %v5250, %v5246
        %v5287 = vpack.c.b16 %v5251, %v5247
        %v5288 = vpack.c.b16 %v5252, %v5248
        %v5289 = vpack.c.b16 %v5257, %v5253
        %v5290 = vpack.c.b16 %v5258, %v5254
        %v5291 = vpack.c.b16 %v5259, %v5255
        %v5292 = vpack.c.b16 %v5260, %v5256
        %5325 = vmatprep.subr.bf16.mxu0 %v5262
        %5326 = vmatpush1.bf16.msra.mxu0 %v5261
        %5327 = vmatprep.subr.bf16.mxu0 %v5266
        %5328 = vmatpush1.bf16.msra.mxu0 %v5265
        %5329 = vmatprep.subr.bf16.mxu0 %v5270
        %5330 = vmatpush1.bf16.msra.mxu0 %v5269
        %5331 = vmatprep.subr.bf16.mxu0 %v5274
        %5332 = vmatpush1.bf16.msra.mxu0 %v5273
        %5333 = vmatprep.subr.bf16.mxu0 %v5278
        %5334 = vmatpush1.bf16.msra.mxu0 %v5277
        %5335 = vmatprep.subr.bf16.mxu0 %v5282
        %5336 = vmatpush1.bf16.msra.mxu0 %v5281
        %5337 = vmatprep.subr.bf16.mxu0 %v5286
        %5338 = vmatpush1.bf16.msra.mxu0 %v5285
        %5339 = vmatprep.subr.bf16.mxu0 %v5290
        %5340 = vmatpush1.bf16.msra.mxu0 %v5289
        %5341 = vmatprep.subr.bf16.mxu0 0
        %5342 = vmatpush1.bf16.msra.mxu0 0
        %5343 = vmatprep.subr.bf16.mxu0 0
        %5344 = vmatpush1.bf16.msra.mxu0 0
        %5345 = vmatprep.subr.bf16.mxu0 0
        %5346 = vmatpush1.bf16.msra.mxu0 0
        %5347 = vmatprep.subr.bf16.mxu0 0
        %5348 = vmatpush1.bf16.msra.mxu0 0
        %5349 = vmatprep.subr.bf16.mxu0 0
        %5350 = vmatpush1.bf16.msra.mxu0 0
        %5351 = vmatprep.subr.bf16.mxu0 0
        %5352 = vmatpush1.bf16.msra.mxu0 0
        %5353 = vmatprep.subr.bf16.mxu0 0
        %5354 = vmatpush1.bf16.msra.mxu0 0
        %5355 = vmatprep.subr.bf16.mxu0 0
        %5356 = vmatpush1.bf16.msra.mxu0 0
        %5357 = vmatprep.mubr.bf16.mxu0 0
        %5358 = vmatmul.mubr.bf16.gmra.mrb[0].mxu0 %v5128
        %v5359 = vpop.f32.mrb[0].mxu0
        %v5360 = vadd.f32 %v5148, %v5359
        %v5361 = vpop.f32.mrb[0].mxu0
        %v5362 = vadd.f32 %v5152, %v5361
        %v5363 = vpop.f32.mrb[0].mxu0
        %v5364 = vadd.f32 %v5148, %v5363
        %v5365 = vpop.f32.mrb[0].mxu0
        %v5366 = vadd.f32 %v5152, %v5365
        %5367 = vmatprep.mubr.bf16.mxu0 0
        %5368 = vmatmul.mubr.bf16.gmra.mrb[0].mxu0 %v5129
        %v5369 = vpop.f32.mrb[0].mxu0
        %v5370 = vadd.f32 %v5148, %v5369
        %v5371 = vpop.f32.mrb[0].mxu0
        %v5372 = vadd.f32 %v5152, %v5371
        %v5373 = vpop.f32.mrb[0].mxu0
        %v5374 = vadd.f32 %v5148, %v5373
        %v5375 = vpop.f32.mrb[0].mxu0
        %v5376 = vadd.f32 %v5152, %v5375
        %5377 = vmatprep.mubr.bf16.mxu0 0
        %5378 = vmatmul.mubr.bf16.gmra.mrb[0].mxu0 %v5130
        %v5379 = vpop.f32.mrb[0].mxu0
        %v5380 = vadd.f32 %v5148, %v5379
        %v5381 = vpop.f32.mrb[0].mxu0
        %v5382 = vadd.f32 %v5152, %v5381
        %v5383 = vpop.f32.mrb[0].mxu0
        %v5384 = vadd.f32 %v5148, %v5383
        %v5385 = vpop.f32.mrb[0].mxu0
        %v5386 = vadd.f32 %v5152, %v5385
        %5387 = vmatprep.mubr.bf16.mxu0 0
        %5388 = vmatmul.mubr.bf16.gmra.mrb[0].mxu0 %v5131
        %v5389 = vpop.f32.mrb[0].mxu0
        %v5390 = vadd.f32 %v5148, %v5389
        %v5391 = vpop.f32.mrb[0].mxu0
        %v5392 = vadd.f32 %v5152, %v5391
        %v5393 = vpop.f32.mrb[0].mxu0
        %v5394 = vadd.f32 %v5148, %v5393
        %v5395 = vpop.f32.mrb[0].mxu0
        %v5396 = vadd.f32 %v5152, %v5395
        %5397 = vmatprep.mubr.bf16.mxu0 0
        %5398 = vmatmul.mubr.bf16.gmra.mrb[0].mxu0 %v5132
        %v5399 = vpop.f32.mrb[0].mxu0
        %v5400 = vadd.f32 %v5148, %v5399
        %v5401 = vpop.f32.mrb[0].mxu0
        %v5402 = vadd.f32 %v5152, %v5401
        %v5403 = vpop.f32.mrb[0].mxu0
        %v5404 = vadd.f32 %v5148, %v5403
        %v5405 = vpop.f32.mrb[0].mxu0
        %v5406 = vadd.f32 %v5152, %v5405
        %5407 = vmatprep.mubr.bf16.mxu0 0
        %5408 = vmatmul.mubr.bf16.gmra.mrb[0].mxu0 %v5133
        %v5409 = vpop.f32.mrb[0].mxu0
        %v5410 = vadd.f32 %v5148, %v5409
        %v5411 = vpop.f32.mrb[0].mxu0
        %v5412 = vadd.f32 %v5152, %v5411
        %v5413 = vpop.f32.mrb[0].mxu0
        %v5414 = vadd.f32 %v5148, %v5413
        %v5415 = vpop.f32.mrb[0].mxu0
        %v5416 = vadd.f32 %v5152, %v5415
        %5417 = vmatprep.mubr.bf16.mxu0 0
        %5418 = vmatmul.mubr.bf16.gmra.mrb[0].mxu0 %v5134
        %v5419 = vpop.f32.mrb[0].mxu0
        %v5420 = vadd.f32 %v5148, %v5419
        %v5421 = vpop.f32.mrb[0].mxu0
        %v5422 = vadd.f32 %v5152, %v5421
        %v5423 = vpop.f32.mrb[0].mxu0
        %v5424 = vadd.f32 %v5148, %v5423
        %v5425 = vpop.f32.mrb[0].mxu0
        %v5426 = vadd.f32 %v5152, %v5425
        %5427 = vmatprep.mubr.bf16.mxu0 0
        %5428 = vmatmul.mubr.bf16.gmra.mrb[0].mxu0 %v5135
        %v5429 = vpop.f32.mrb[0].mxu0
        %v5430 = vadd.f32 %v5148, %v5429
        %v5431 = vpop.f32.mrb[0].mxu0
        %v5432 = vadd.f32 %v5152, %v5431
        %v5433 = vpop.f32.mrb[0].mxu0
        %v5434 = vadd.f32 %v5148, %v5433
        %v5435 = vpop.f32.mrb[0].mxu0
        %v5436 = vadd.f32 %v5152, %v5435
        %5437 = vmatprep.mubr.bf16.mxu0 0
        %5438 = vmatmul.mubr.bf16.gmra.mrb[0].mxu0 %v5136
        %v5439 = vpop.f32.mrb[0].mxu0
        %v5440 = vadd.f32 %v5148, %v5439
        %v5441 = vpop.f32.mrb[0].mxu0
        %v5442 = vadd.f32 %v5152, %v5441
        %v5443 = vpop.f32.mrb[0].mxu0
        %v5444 = vadd.f32 %v5148, %v5443
        %v5445 = vpop.f32.mrb[0].mxu0
        %v5446 = vadd.f32 %v5152, %v5445
        %5447 = vmatprep.mubr.bf16.mxu0 0
        %5448 = vmatmul.mubr.bf16.gmra.mrb[0].mxu0 %v5137
        %v5449 = vpop.f32.mrb[0].mxu0
        %v5450 = vadd.f32 %v5148, %v5449
        %v5451 = vpop.f32.mrb[0].mxu0
        %v5452 = vadd.f32 %v5152, %v5451
        %v5453 = vpop.f32.mrb[0].mxu0
        %v5454 = vadd.f32 %v5148, %v5453
        %v5455 = vpop.f32.mrb[0].mxu0
        %v5456 = vadd.f32 %v5152, %v5455
        %5457 = vmatprep.mubr.bf16.mxu0 0
        %5458 = vmatmul.mubr.bf16.gmra.mrb[0].mxu0 %v5138
        %v5459 = vpop.f32.mrb[0].mxu0
        %v5460 = vadd.f32 %v5148, %v5459
        %v5461 = vpop.f32.mrb[0].mxu0
        %v5462 = vadd.f32 %v5152, %v5461
        %v5463 = vpop.f32.mrb[0].mxu0
        %v5464 = vadd.f32 %v5148, %v5463
        %v5465 = vpop.f32.mrb[0].mxu0
        %v5466 = vadd.f32 %v5152, %v5465
        %5467 = vmatprep.mubr.bf16.mxu0 0
        %5468 = vmatmul.mubr.bf16.gmra.mrb[0].mxu0 %v5139
        %v5469 = vpop.f32.mrb[0].mxu0
        %v5470 = vadd.f32 %v5148, %v5469
        %v5471 = vpop.f32.mrb[0].mxu0
        %v5472 = vadd.f32 %v5152, %v5471
        %v5473 = vpop.f32.mrb[0].mxu0
        %v5474 = vadd.f32 %v5148, %v5473
        %v5475 = vpop.f32.mrb[0].mxu0
        %v5476 = vadd.f32 %v5152, %v5475
        %5477 = vmatprep.mubr.bf16.mxu0 0
        %5478 = vmatmul.mubr.bf16.gmra.mrb[0].mxu0 %v5140
        %v5479 = vpop.f32.mrb[0].mxu0
        %v5480 = vadd.f32 %v5148, %v5479
        %v5481 = vpop.f32.mrb[0].mxu0
        %v5482 = vadd.f32 %v5152, %v5481
        %v5483 = vpop.f32.mrb[0].mxu0
        %v5484 = vadd.f32 %v5148, %v5483
        %v5485 = vpop.f32.mrb[0].mxu0
        %v5486 = vadd.f32 %v5152, %v5485
        %5487 = vmatprep.mubr.bf16.mxu0 0
        %5488 = vmatmul.mubr.bf16.gmra.mrb[0].mxu0 %v5141
        %v5489 = vpop.f32.mrb[0].mxu0
        %v5490 = vadd.f32 %v5148, %v5489
        %v5491 = vpop.f32.mrb[0].mxu0
        %v5492 = vadd.f32 %v5152, %v5491
        %v5493 = vpop.f32.mrb[0].mxu0
        %v5494 = vadd.f32 %v5148, %v5493
        %v5495 = vpop.f32.mrb[0].mxu0
        %v5496 = vadd.f32 %v5152, %v5495
        %5497 = vmatprep.mubr.bf16.mxu0 0
        %5498 = vmatmul.mubr.bf16.gmra.mrb[0].mxu0 %v5142
        %v5499 = vpop.f32.mrb[0].mxu0
        %v5500 = vadd.f32 %v5148, %v5499
        %v5501 = vpop.f32.mrb[0].mxu0
        %v5502 = vadd.f32 %v5152, %v5501
        %v5503 = vpop.f32.mrb[0].mxu0
        %v5504 = vadd.f32 %v5148, %v5503
        %v5505 = vpop.f32.mrb[0].mxu0
        %v5506 = vadd.f32 %v5152, %v5505
        %5507 = vmatprep.mubr.bf16.mxu0 0
        %5508 = vmatmul.mubr.bf16.gmra.mrb[0].mxu0 %v5143
        %v5509 = vpop.f32.mrb[0].mxu0
        %v5510 = vadd.f32 %v5148, %v5509
        %v5511 = vpop.f32.mrb[0].mxu0
        %v5512 = vadd.f32 %v5152, %v5511
        %v5513 = vpop.f32.mrb[0].mxu0
        %v5514 = vadd.f32 %v5148, %v5513
        %v5515 = vpop.f32.mrb[0].mxu0
        %v5516 = vadd.f32 %v5152, %v5515
        %5517 = vdwg.mxu0
        %5518 = vmatprep.subr.bf16.mxu0 %v5264
        %5519 = vmatpush1.bf16.msra.mxu0 %v5263
        %5520 = vmatprep.subr.bf16.mxu0 %v5268
        %5521 = vmatpush1.bf16.msra.mxu0 %v5267
        %5522 = vmatprep.subr.bf16.mxu0 %v5272
        %5523 = vmatpush1.bf16.msra.mxu0 %v5271
        %5524 = vmatprep.subr.bf16.mxu0 %v5276
        %5525 = vmatpush1.bf16.msra.mxu0 %v5275
        %5526 = vmatprep.subr.bf16.mxu0 %v5280
        %5527 = vmatpush1.bf16.msra.mxu0 %v5279
        %5528 = vmatprep.subr.bf16.mxu0 %v5284
        %5529 = vmatpush1.bf16.msra.mxu0 %v5283
        %5530 = vmatprep.subr.bf16.mxu0 %v5288
        %5531 = vmatpush1.bf16.msra.mxu0 %v5287
        %5532 = vmatprep.subr.bf16.mxu0 %v5292
        %5533 = vmatpush1.bf16.msra.mxu0 %v5291
        %5534 = vmatprep.subr.bf16.mxu0 0
        %5535 = vmatpush1.bf16.msra.mxu0 0
        %5536 = vmatprep.subr.bf16.mxu0 0
        %5537 = vmatpush1.bf16.msra.mxu0 0
        %5538 = vmatprep.subr.bf16.mxu0 0
        %5539 = vmatpush1.bf16.msra.mxu0 0
        %5540 = vmatprep.subr.bf16.mxu0 0
        %5541 = vmatpush1.bf16.msra.mxu0 0
        %5542 = vmatprep.subr.bf16.mxu0 0
        %5543 = vmatpush1.bf16.msra.mxu0 0
        %5544 = vmatprep.subr.bf16.mxu0 0
        %5545 = vmatpush1.bf16.msra.mxu0 0
        %5546 = vmatprep.subr.bf16.mxu0 0
        %5547 = vmatpush1.bf16.msra.mxu0 0
        %5548 = vmatprep.subr.bf16.mxu0 0
        %5549 = vmatpush1.bf16.msra.mxu0 0
        %5550 = vmatprep.mubr.bf16.mxu0 0
        %5551 = vmatmul.mubr.bf16.gmra.mrb[0].mxu0 %v5128
        %v5552 = vpop.f32.mrb[0].mxu0
        %v5553 = vadd.f32 %v5156, %v5552
        %v5554 = vpop.f32.mrb[0].mxu0
        %v5555 = vadd.f32 %v5160, %v5554
        %v5556 = vpop.f32.mrb[0].mxu0
        %v5557 = vadd.f32 %v5156, %v5556
        %v5558 = vpop.f32.mrb[0].mxu0
        %v5559 = vadd.f32 %v5160, %v5558
        %5560 = vmatprep.mubr.bf16.mxu0 0
        %5561 = vmatmul.mubr.bf16.gmra.mrb[0].mxu0 %v5129
        %v5562 = vpop.f32.mrb[0].mxu0
        %v5563 = vadd.f32 %v5156, %v5562
        %v5564 = vpop.f32.mrb[0].mxu0
        %v5565 = vadd.f32 %v5160, %v5564
        %v5566 = vpop.f32.mrb[0].mxu0
        %v5567 = vadd.f32 %v5156, %v5566
        %v5568 = vpop.f32.mrb[0].mxu0
        %v5569 = vadd.f32 %v5160, %v5568
        %5570 = vmatprep.mubr.bf16.mxu0 0
        %5571 = vmatmul.mubr.bf16.gmra.mrb[0].mxu0 %v5130
        %v5572 = vpop.f32.mrb[0].mxu0
        %v5573 = vadd.f32 %v5156, %v5572
        %v5574 = vpop.f32.mrb[0].mxu0
        %v5575 = vadd.f32 %v5160, %v5574
        %v5576 = vpop.f32.mrb[0].mxu0
        %v5577 = vadd.f32 %v5156, %v5576
        %v5578 = vpop.f32.mrb[0].mxu0
        %v5579 = vadd.f32 %v5160, %v5578
        %5580 = vmatprep.mubr.bf16.mxu0 0
        %5581 = vmatmul.mubr.bf16.gmra.mrb[0].mxu0 %v5131
        %v5582 = vpop.f32.mrb[0].mxu0
        %v5583 = vadd.f32 %v5156, %v5582
        %v5584 = vpop.f32.mrb[0].mxu0
        %v5585 = vadd.f32 %v5160, %v5584
        %v5586 = vpop.f32.mrb[0].mxu0
        %v5587 = vadd.f32 %v5156, %v5586
        %v5588 = vpop.f32.mrb[0].mxu0
        %v5589 = vadd.f32 %v5160, %v5588
        %5590 = vmatprep.mubr.bf16.mxu0 0
        %5591 = vmatmul.mubr.bf16.gmra.mrb[0].mxu0 %v5132
        %v5592 = vpop.f32.mrb[0].mxu0
        %v5593 = vadd.f32 %v5156, %v5592
        %v5594 = vpop.f32.mrb[0].mxu0
        %v5595 = vadd.f32 %v5160, %v5594
        %v5596 = vpop.f32.mrb[0].mxu0
        %v5597 = vadd.f32 %v5156, %v5596
        %v5598 = vpop.f32.mrb[0].mxu0
        %v5599 = vadd.f32 %v5160, %v5598
        %5600 = vmatprep.mubr.bf16.mxu0 0
        %5601 = vmatmul.mubr.bf16.gmra.mrb[0].mxu0 %v5133
        %v5602 = vpop.f32.mrb[0].mxu0
        %v5603 = vadd.f32 %v5156, %v5602
        %v5604 = vpop.f32.mrb[0].mxu0
        %v5605 = vadd.f32 %v5160, %v5604
        %v5606 = vpop.f32.mrb[0].mxu0
        %v5607 = vadd.f32 %v5156, %v5606
        %v5608 = vpop.f32.mrb[0].mxu0
        %v5609 = vadd.f32 %v5160, %v5608
        %5610 = vmatprep.mubr.bf16.mxu0 0
        %5611 = vmatmul.mubr.bf16.gmra.mrb[0].mxu0 %v5134
        %v5612 = vpop.f32.mrb[0].mxu0
        %v5613 = vadd.f32 %v5156, %v5612
        %v5614 = vpop.f32.mrb[0].mxu0
        %v5615 = vadd.f32 %v5160, %v5614
        %v5616 = vpop.f32.mrb[0].mxu0
        %v5617 = vadd.f32 %v5156, %v5616
        %v5618 = vpop.f32.mrb[0].mxu0
        %v5619 = vadd.f32 %v5160, %v5618
        %5620 = vmatprep.mubr.bf16.mxu0 0
        %5621 = vmatmul.mubr.bf16.gmra.mrb[0].mxu0 %v5135
        %v5622 = vpop.f32.mrb[0].mxu0
        %v5623 = vadd.f32 %v5156, %v5622
        %v5624 = vpop.f32.mrb[0].mxu0
        %v5625 = vadd.f32 %v5160, %v5624
        %v5626 = vpop.f32.mrb[0].mxu0
        %v5627 = vadd.f32 %v5156, %v5626
        %v5628 = vpop.f32.mrb[0].mxu0
        %v5629 = vadd.f32 %v5160, %v5628
        %5630 = vmatprep.mubr.bf16.mxu0 0
        %5631 = vmatmul.mubr.bf16.gmra.mrb[0].mxu0 %v5136
        %v5632 = vpop.f32.mrb[0].mxu0
        %v5633 = vadd.f32 %v5156, %v5632
        %v5634 = vpop.f32.mrb[0].mxu0
        %v5635 = vadd.f32 %v5160, %v5634
        %v5636 = vpop.f32.mrb[0].mxu0
        %v5637 = vadd.f32 %v5156, %v5636
        %v5638 = vpop.f32.mrb[0].mxu0
        %v5639 = vadd.f32 %v5160, %v5638
        %5640 = vmatprep.mubr.bf16.mxu0 0
        %5641 = vmatmul.mubr.bf16.gmra.mrb[0].mxu0 %v5137
        %v5642 = vpop.f32.mrb[0].mxu0
        %v5643 = vadd.f32 %v5156, %v5642
        %v5644 = vpop.f32.mrb[0].mxu0
        %v5645 = vadd.f32 %v5160, %v5644
        %v5646 = vpop.f32.mrb[0].mxu0
        %v5647 = vadd.f32 %v5156, %v5646
        %v5648 = vpop.f32.mrb[0].mxu0
        %v5649 = vadd.f32 %v5160, %v5648
        %5650 = vmatprep.mubr.bf16.mxu0 0
        %5651 = vmatmul.mubr.bf16.gmra.mrb[0].mxu0 %v5138
        %v5652 = vpop.f32.mrb[0].mxu0
        %v5653 = vadd.f32 %v5156, %v5652
        %v5654 = vpop.f32.mrb[0].mxu0
        %v5655 = vadd.f32 %v5160, %v5654
        %v5656 = vpop.f32.mrb[0].mxu0
        %v5657 = vadd.f32 %v5156, %v5656
        %v5658 = vpop.f32.mrb[0].mxu0
        %v5659 = vadd.f32 %v5160, %v5658
        %5660 = vmatprep.mubr.bf16.mxu0 0
        %5661 = vmatmul.mubr.bf16.gmra.mrb[0].mxu0 %v5139
        %v5662 = vpop.f32.mrb[0].mxu0
        %v5663 = vadd.f32 %v5156, %v5662
        %v5664 = vpop.f32.mrb[0].mxu0
        %v5665 = vadd.f32 %v5160, %v5664
        %v5666 = vpop.f32.mrb[0].mxu0
        %v5667 = vadd.f32 %v5156, %v5666
        %v5668 = vpop.f32.mrb[0].mxu0
        %v5669 = vadd.f32 %v5160, %v5668
        %5670 = vmatprep.mubr.bf16.mxu0 0
        %5671 = vmatmul.mubr.bf16.gmra.mrb[0].mxu0 %v5140
        %v5672 = vpop.f32.mrb[0].mxu0
        %v5673 = vadd.f32 %v5156, %v5672
        %v5674 = vpop.f32.mrb[0].mxu0
        %v5675 = vadd.f32 %v5160, %v5674
        %v5676 = vpop.f32.mrb[0].mxu0
        %v5677 = vadd.f32 %v5156, %v5676
        %v5678 = vpop.f32.mrb[0].mxu0
        %v5679 = vadd.f32 %v5160, %v5678
        %5680 = vmatprep.mubr.bf16.mxu0 0
        %5681 = vmatmul.mubr.bf16.gmra.mrb[0].mxu0 %v5141
        %v5682 = vpop.f32.mrb[0].mxu0
        %v5683 = vadd.f32 %v5156, %v5682
        %v5684 = vpop.f32.mrb[0].mxu0
        %v5685 = vadd.f32 %v5160, %v5684
        %v5686 = vpop.f32.mrb[0].mxu0
        %v5687 = vadd.f32 %v5156, %v5686
        %v5688 = vpop.f32.mrb[0].mxu0
        %v5689 = vadd.f32 %v5160, %v5688
        %5690 = vmatprep.mubr.bf16.mxu0 0
        %5691 = vmatmul.mubr.bf16.gmra.mrb[0].mxu0 %v5142
        %v5692 = vpop.f32.mrb[0].mxu0
        %v5693 = vadd.f32 %v5156, %v5692
        %v5694 = vpop.f32.mrb[0].mxu0
        %v5695 = vadd.f32 %v5160, %v5694
        %v5696 = vpop.f32.mrb[0].mxu0
        %v5697 = vadd.f32 %v5156, %v5696
        %v5698 = vpop.f32.mrb[0].mxu0
        %v5699 = vadd.f32 %v5160, %v5698
        %5700 = vmatprep.mubr.bf16.mxu0 0
        %5701 = vmatmul.mubr.bf16.gmra.mrb[0].mxu0 %v5143
        %v5702 = vpop.f32.mrb[0].mxu0
        %v5703 = vadd.f32 %v5156, %v5702
        %v5704 = vpop.f32.mrb[0].mxu0
        %v5705 = vadd.f32 %v5160, %v5704
        %v5706 = vpop.f32.mrb[0].mxu0
        %v5707 = vadd.f32 %v5156, %v5706
        %v5708 = vpop.f32.mrb[0].mxu0
        %v5709 = vadd.f32 %v5160, %v5708
        %5710 = vdwg.mxu0
        %v5711 = vmul.f32 %v5360, 0.5
        %v5712 = vmul.f32 %v5362, 0.5
        %v5713 = vmul.f32 %v5553, 0.5
        %v5714 = vmul.f32 %v5555, 0.5
        %v5715 = vmul.f32 %v5364, 0.5
        %v5716 = vmul.f32 %v5366, 0.5
        %v5717 = vmul.f32 %v5557, 0.5
        %v5718 = vmul.f32 %v5559, 0.5
        %v5719 = vmul.f32 %v5370, 0.5
        %v5720 = vmul.f32 %v5372, 0.5
        %v5721 = vmul.f32 %v5563, 0.5
        %v5722 = vmul.f32 %v5565, 0.5
        %v5723 = vmul.f32 %v5374, 0.5
        %v5724 = vmul.f32 %v5376, 0.5
        %v5725 = vmul.f32 %v5567, 0.5
        %v5726 = vmul.f32 %v5569, 0.5
        %v5727 = vmul.f32 %v5380, 0.5
        %v5728 = vmul.f32 %v5382, 0.5
        %v5729 = vmul.f32 %v5573, 0.5
        %v5730 = vmul.f32 %v5575, 0.5
        %v5731 = vmul.f32 %v5384, 0.5
        %v5732 = vmul.f32 %v5386, 0.5
        %v5733 = vmul.f32 %v5577, 0.5
        %v5734 = vmul.f32 %v5579, 0.5
        %v5735 = vmul.f32 %v5390, 0.5
        %v5736 = vmul.f32 %v5392, 0.5
        %v5737 = vmul.f32 %v5583, 0.5
        %v5738 = vmul.f32 %v5585, 0.5
        %v5739 = vmul.f32 %v5394, 0.5
        %v5740 = vmul.f32 %v5396, 0.5
        %v5741 = vmul.f32 %v5587, 0.5
        %v5742 = vmul.f32 %v5589, 0.5
        %v5743 = vmul.f32 %v5400, 0.5
        %v5744 = vmul.f32 %v5402, 0.5
        %v5745 = vmul.f32 %v5593, 0.5
        %v5746 = vmul.f32 %v5595, 0.5
        %v5747 = vmul.f32 %v5404, 0.5
        %v5748 = vmul.f32 %v5406, 0.5
        %v5749 = vmul.f32 %v5597, 0.5
        %v5750 = vmul.f32 %v5599, 0.5
        %v5751 = vmul.f32 %v5410, 0.5
        %v5752 = vmul.f32 %v5412, 0.5
        %v5753 = vmul.f32 %v5603, 0.5
        %v5754 = vmul.f32 %v5605, 0.5
        %v5755 = vmul.f32 %v5414, 0.5
        %v5756 = vmul.f32 %v5416, 0.5
        %v5757 = vmul.f32 %v5607, 0.5
        %v5758 = vmul.f32 %v5609, 0.5
        %v5759 = vmul.f32 %v5420, 0.5
        %v5760 = vmul.f32 %v5422, 0.5
        %v5761 = vmul.f32 %v5613, 0.5
        %v5762 = vmul.f32 %v5615, 0.5
        %v5763 = vmul.f32 %v5424, 0.5
        %v5764 = vmul.f32 %v5426, 0.5
        %v5765 = vmul.f32 %v5617, 0.5
        %v5766 = vmul.f32 %v5619, 0.5
        %v5767 = vmul.f32 %v5430, 0.5
        %v5768 = vmul.f32 %v5432, 0.5
        %v5769 = vmul.f32 %v5623, 0.5
        %v5770 = vmul.f32 %v5625, 0.5
        %v5771 = vmul.f32 %v5434, 0.5
        %v5772 = vmul.f32 %v5436, 0.5
        %v5773 = vmul.f32 %v5627, 0.5
        %v5774 = vmul.f32 %v5629, 0.5
        %v5775 = vmul.f32 %v5440, 0.5
        %v5776 = vmul.f32 %v5442, 0.5
        %v5777 = vmul.f32 %v5633, 0.5
        %v5778 = vmul.f32 %v5635, 0.5
        %v5779 = vmul.f32 %v5444, 0.5
        %v5780 = vmul.f32 %v5446, 0.5
        %v5781 = vmul.f32 %v5637, 0.5
        %v5782 = vmul.f32 %v5639, 0.5
        %v5783 = vmul.f32 %v5450, 0.5
        %v5784 = vmul.f32 %v5452, 0.5
        %v5785 = vmul.f32 %v5643, 0.5
        %v5786 = vmul.f32 %v5645, 0.5
        %v5787 = vmul.f32 %v5454, 0.5
        %v5788 = vmul.f32 %v5456, 0.5
        %v5789 = vmul.f32 %v5647, 0.5
        %v5790 = vmul.f32 %v5649, 0.5
        %v5791 = vmul.f32 %v5460, 0.5
        %v5792 = vmul.f32 %v5462, 0.5
        %v5793 = vmul.f32 %v5653, 0.5
        %v5794 = vmul.f32 %v5655, 0.5
        %v5795 = vmul.f32 %v5464, 0.5
        %v5796 = vmul.f32 %v5466, 0.5
        %v5797 = vmul.f32 %v5657, 0.5
        %v5798 = vmul.f32 %v5659, 0.5
        %v5799 = vmul.f32 %v5470, 0.5
        %v5800 = vmul.f32 %v5472, 0.5
        %v5801 = vmul.f32 %v5663, 0.5
        %v5802 = vmul.f32 %v5665, 0.5
        %v5803 = vmul.f32 %v5474, 0.5
        %v5804 = vmul.f32 %v5476, 0.5
        %v5805 = vmul.f32 %v5667, 0.5
        %v5806 = vmul.f32 %v5669, 0.5
        %v5807 = vmul.f32 %v5480, 0.5
        %v5808 = vmul.f32 %v5482, 0.5
        %v5809 = vmul.f32 %v5673, 0.5
        %v5810 = vmul.f32 %v5675, 0.5
        %v5811 = vmul.f32 %v5484, 0.5
        %v5812 = vmul.f32 %v5486, 0.5
        %v5813 = vmul.f32 %v5677, 0.5
        %v5814 = vmul.f32 %v5679, 0.5
        %v5815 = vmul.f32 %v5490, 0.5
        %v5816 = vmul.f32 %v5492, 0.5
        %v5817 = vmul.f32 %v5683, 0.5
        %v5818 = vmul.f32 %v5685, 0.5
        %v5819 = vmul.f32 %v5494, 0.5
        %v5820 = vmul.f32 %v5496, 0.5
        %v5821 = vmul.f32 %v5687, 0.5
        %v5822 = vmul.f32 %v5689, 0.5
        %v5823 = vmul.f32 %v5500, 0.5
        %v5824 = vmul.f32 %v5502, 0.5
        %v5825 = vmul.f32 %v5693, 0.5
        %v5826 = vmul.f32 %v5695, 0.5
        %v5827 = vmul.f32 %v5504, 0.5
        %v5828 = vmul.f32 %v5506, 0.5
        %v5829 = vmul.f32 %v5697, 0.5
        %v5830 = vmul.f32 %v5699, 0.5
        %v5831 = vmul.f32 %v5510, 0.5
        %v5832 = vmul.f32 %v5512, 0.5
        %v5833 = vmul.f32 %v5703, 0.5
        %v5834 = vmul.f32 %v5705, 0.5
        %v5835 = vmul.f32 %v5514, 0.5
        %v5836 = vmul.f32 %v5516, 0.5
        %v5837 = vmul.f32 %v5707, 0.5
        %v5838 = vmul.f32 %v5709, 0.5
        %v5839 = vmul.f32 %v5360, 0.044715
        %v5840 = vmul.f32 %v5362, 0.044715
        %v5841 = vmul.f32 %v5553, 0.044715
        %v5842 = vmul.f32 %v5555, 0.044715
        %v5843 = vmul.f32 %v5364, 0.044715
        %v5844 = vmul.f32 %v5366, 0.044715
        %v5845 = vmul.f32 %v5557, 0.044715
        %v5846 = vmul.f32 %v5559, 0.044715
        %v5847 = vmul.f32 %v5370, 0.044715
        %v5848 = vmul.f32 %v5372, 0.044715
        %v5849 = vmul.f32 %v5563, 0.044715
        %v5850 = vmul.f32 %v5565, 0.044715
        %v5851 = vmul.f32 %v5374, 0.044715
        %v5852 = vmul.f32 %v5376, 0.044715
        %v5853 = vmul.f32 %v5567, 0.044715
        %v5854 = vmul.f32 %v5569, 0.044715
        %v5855 = vmul.f32 %v5380, 0.044715
        %v5856 = vmul.f32 %v5382, 0.044715
        %v5857 = vmul.f32 %v5573, 0.044715
        %v5858 = vmul.f32 %v5575, 0.044715
        %v5859 = vmul.f32 %v5384, 0.044715
        %v5860 = vmul.f32 %v5386, 0.044715
        %v5861 = vmul.f32 %v5577, 0.044715
        %v5862 = vmul.f32 %v5579, 0.044715
        %v5863 = vmul.f32 %v5390, 0.044715
        %v5864 = vmul.f32 %v5392, 0.044715
        %v5865 = vmul.f32 %v5583, 0.044715
        %v5866 = vmul.f32 %v5585, 0.044715
        %v5867 = vmul.f32 %v5394, 0.044715
        %v5868 = vmul.f32 %v5396, 0.044715
        %v5869 = vmul.f32 %v5587, 0.044715
        %v5870 = vmul.f32 %v5589, 0.044715
        %v5871 = vmul.f32 %v5400, 0.044715
        %v5872 = vmul.f32 %v5402, 0.044715
        %v5873 = vmul.f32 %v5593, 0.044715
        %v5874 = vmul.f32 %v5595, 0.044715
        %v5875 = vmul.f32 %v5404, 0.044715
        %v5876 = vmul.f32 %v5406, 0.044715
        %v5877 = vmul.f32 %v5597, 0.044715
        %v5878 = vmul.f32 %v5599, 0.044715
        %v5879 = vmul.f32 %v5410, 0.044715
        %v5880 = vmul.f32 %v5412, 0.044715
        %v5881 = vmul.f32 %v5603, 0.044715
        %v5882 = vmul.f32 %v5605, 0.044715
        %v5883 = vmul.f32 %v5414, 0.044715
        %v5884 = vmul.f32 %v5416, 0.044715
        %v5885 = vmul.f32 %v5607, 0.044715
        %v5886 = vmul.f32 %v5609, 0.044715
        %v5887 = vmul.f32 %v5420, 0.044715
        %v5888 = vmul.f32 %v5422, 0.044715
        %v5889 = vmul.f32 %v5613, 0.044715
        %v5890 = vmul.f32 %v5615, 0.044715
        %v5891 = vmul.f32 %v5424, 0.044715
        %v5892 = vmul.f32 %v5426, 0.044715
        %v5893 = vmul.f32 %v5617, 0.044715
        %v5894 = vmul.f32 %v5619, 0.044715
        %v5895 = vmul.f32 %v5430, 0.044715
        %v5896 = vmul.f32 %v5432, 0.044715
        %v5897 = vmul.f32 %v5623, 0.044715
        %v5898 = vmul.f32 %v5625, 0.044715
        %v5899 = vmul.f32 %v5434, 0.044715
        %v5900 = vmul.f32 %v5436, 0.044715
        %v5901 = vmul.f32 %v5627, 0.044715
        %v5902 = vmul.f32 %v5629, 0.044715
        %v5903 = vmul.f32 %v5440, 0.044715
        %v5904 = vmul.f32 %v5442, 0.044715
        %v5905 = vmul.f32 %v5633, 0.044715
        %v5906 = vmul.f32 %v5635, 0.044715
        %v5907 = vmul.f32 %v5444, 0.044715
        %v5908 = vmul.f32 %v5446, 0.044715
        %v5909 = vmul.f32 %v5637, 0.044715
        %v5910 = vmul.f32 %v5639, 0.044715
        %v5911 = vmul.f32 %v5450, 0.044715
        %v5912 = vmul.f32 %v5452, 0.044715
        %v5913 = vmul.f32 %v5643, 0.044715
        %v5914 = vmul.f32 %v5645, 0.044715
        %v5915 = vmul.f32 %v5454, 0.044715
        %v5916 = vmul.f32 %v5456, 0.044715
        %v5917 = vmul.f32 %v5647, 0.044715
        %v5918 = vmul.f32 %v5649, 0.044715
        %v5919 = vmul.f32 %v5460, 0.044715
        %v5920 = vmul.f32 %v5462, 0.044715
        %v5921 = vmul.f32 %v5653, 0.044715
        %v5922 = vmul.f32 %v5655, 0.044715
        %v5923 = vmul.f32 %v5464, 0.044715
        %v5924 = vmul.f32 %v5466, 0.044715
        %v5925 = vmul.f32 %v5657, 0.044715
        %v5926 = vmul.f32 %v5659, 0.044715
        %v5927 = vmul.f32 %v5470, 0.044715
        %v5928 = vmul.f32 %v5472, 0.044715
        %v5929 = vmul.f32 %v5663, 0.044715
        %v5930 = vmul.f32 %v5665, 0.044715
        %v5931 = vmul.f32 %v5474, 0.044715
        %v5932 = vmul.f32 %v5476, 0.044715
        %v5933 = vmul.f32 %v5667, 0.044715
        %v5934 = vmul.f32 %v5669, 0.044715
        %v5935 = vmul.f32 %v5480, 0.044715
        %v5936 = vmul.f32 %v5482, 0.044715
        %v5937 = vmul.f32 %v5673, 0.044715
        %v5938 = vmul.f32 %v5675, 0.044715
        %v5939 = vmul.f32 %v5484, 0.044715
        %v5940 = vmul.f32 %v5486, 0.044715
        %v5941 = vmul.f32 %v5677, 0.044715
        %v5942 = vmul.f32 %v5679, 0.044715
        %v5943 = vmul.f32 %v5490, 0.044715
        %v5944 = vmul.f32 %v5492, 0.044715
        %v5945 = vmul.f32 %v5683, 0.044715
        %v5946 = vmul.f32 %v5685, 0.044715
        %v5947 = vmul.f32 %v5494, 0.044715
        %v5948 = vmul.f32 %v5496, 0.044715
        %v5949 = vmul.f32 %v5687, 0.044715
        %v5950 = vmul.f32 %v5689, 0.044715
        %v5951 = vmul.f32 %v5500, 0.044715
        %v5952 = vmul.f32 %v5502, 0.044715
        %v5953 = vmul.f32 %v5693, 0.044715
        %v5954 = vmul.f32 %v5695, 0.044715
        %v5955 = vmul.f32 %v5504, 0.044715
        %v5956 = vmul.f32 %v5506, 0.044715
        %v5957 = vmul.f32 %v5697, 0.044715
        %v5958 = vmul.f32 %v5699, 0.044715
        %v5959 = vmul.f32 %v5510, 0.044715
        %v5960 = vmul.f32 %v5512, 0.044715
        %v5961 = vmul.f32 %v5703, 0.044715
        %v5962 = vmul.f32 %v5705, 0.044715
        %v5963 = vmul.f32 %v5514, 0.044715
        %v5964 = vmul.f32 %v5516, 0.044715
        %v5965 = vmul.f32 %v5707, 0.044715
        %v5966 = vmul.f32 %v5709, 0.044715
        %v5967 = vmul.f32 %v5839, %v5360
        %v5968 = vmul.f32 %v5840, %v5362
        %v5969 = vmul.f32 %v5841, %v5553
        %v5970 = vmul.f32 %v5842, %v5555
        %v5971 = vmul.f32 %v5843, %v5364
        %v5972 = vmul.f32 %v5844, %v5366
        %v5973 = vmul.f32 %v5845, %v5557
        %v5974 = vmul.f32 %v5846, %v5559
        %v5975 = vmul.f32 %v5847, %v5370
        %v5976 = vmul.f32 %v5848, %v5372
        %v5977 = vmul.f32 %v5849, %v5563
        %v5978 = vmul.f32 %v5850, %v5565
        %v5979 = vmul.f32 %v5851, %v5374
        %v5980 = vmul.f32 %v5852, %v5376
        %v5981 = vmul.f32 %v5853, %v5567
        %v5982 = vmul.f32 %v5854, %v5569
        %v5983 = vmul.f32 %v5855, %v5380
        %v5984 = vmul.f32 %v5856, %v5382
        %v5985 = vmul.f32 %v5857, %v5573
        %v5986 = vmul.f32 %v5858, %v5575
        %v5987 = vmul.f32 %v5859, %v5384
        %v5988 = vmul.f32 %v5860, %v5386
        %v5989 = vmul.f32 %v5861, %v5577
        %v5990 = vmul.f32 %v5862, %v5579
        %v5991 = vmul.f32 %v5863, %v5390
        %v5992 = vmul.f32 %v5864, %v5392
        %v5993 = vmul.f32 %v5865, %v5583
        %v5994 = vmul.f32 %v5866, %v5585
        %v5995 = vmul.f32 %v5867, %v5394
        %v5996 = vmul.f32 %v5868, %v5396
        %v5997 = vmul.f32 %v5869, %v5587
        %v5998 = vmul.f32 %v5870, %v5589
        %v5999 = vmul.f32 %v5871, %v5400
        %v6000 = vmul.f32 %v5872, %v5402
        %v6001 = vmul.f32 %v5873, %v5593
        %v6002 = vmul.f32 %v5874, %v5595
        %v6003 = vmul.f32 %v5875, %v5404
        %v6004 = vmul.f32 %v5876, %v5406
        %v6005 = vmul.f32 %v5877, %v5597
        %v6006 = vmul.f32 %v5878, %v5599
        %v6007 = vmul.f32 %v5879, %v5410
        %v6008 = vmul.f32 %v5880, %v5412
        %v6009 = vmul.f32 %v5881, %v5603
        %v6010 = vmul.f32 %v5882, %v5605
        %v6011 = vmul.f32 %v5883, %v5414
        %v6012 = vmul.f32 %v5884, %v5416
        %v6013 = vmul.f32 %v5885, %v5607
        %v6014 = vmul.f32 %v5886, %v5609
        %v6015 = vmul.f32 %v5887, %v5420
        %v6016 = vmul.f32 %v5888, %v5422
        %v6017 = vmul.f32 %v5889, %v5613
        %v6018 = vmul.f32 %v5890, %v5615
        %v6019 = vmul.f32 %v5891, %v5424
        %v6020 = vmul.f32 %v5892, %v5426
        %v6021 = vmul.f32 %v5893, %v5617
        %v6022 = vmul.f32 %v5894, %v5619
        %v6023 = vmul.f32 %v5895, %v5430
        %v6024 = vmul.f32 %v5896, %v5432
        %v6025 = vmul.f32 %v5897, %v5623
        %v6026 = vmul.f32 %v5898, %v5625
        %v6027 = vmul.f32 %v5899, %v5434
        %v6028 = vmul.f32 %v5900, %v5436
        %v6029 = vmul.f32 %v5901, %v5627
        %v6030 = vmul.f32 %v5902, %v5629
        %v6031 = vmul.f32 %v5903, %v5440
        %v6032 = vmul.f32 %v5904, %v5442
        %v6033 = vmul.f32 %v5905, %v5633
        %v6034 = vmul.f32 %v5906, %v5635
        %v6035 = vmul.f32 %v5907, %v5444
        %v6036 = vmul.f32 %v5908, %v5446
        %v6037 = vmul.f32 %v5909, %v5637
        %v6038 = vmul.f32 %v5910, %v5639
        %v6039 = vmul.f32 %v5911, %v5450
        %v6040 = vmul.f32 %v5912, %v5452
        %v6041 = vmul.f32 %v5913, %v5643
        %v6042 = vmul.f32 %v5914, %v5645
        %v6043 = vmul.f32 %v5915, %v5454
        %v6044 = vmul.f32 %v5916, %v5456
        %v6045 = vmul.f32 %v5917, %v5647
        %v6046 = vmul.f32 %v5918, %v5649
        %v6047 = vmul.f32 %v5919, %v5460
        %v6048 = vmul.f32 %v5920, %v5462
        %v6049 = vmul.f32 %v5921, %v5653
        %v6050 = vmul.f32 %v5922, %v5655
        %v6051 = vmul.f32 %v5923, %v5464
        %v6052 = vmul.f32 %v5924, %v5466
        %v6053 = vmul.f32 %v5925, %v5657
        %v6054 = vmul.f32 %v5926, %v5659
        %v6055 = vmul.f32 %v5927, %v5470
        %v6056 = vmul.f32 %v5928, %v5472
        %v6057 = vmul.f32 %v5929, %v5663
        %v6058 = vmul.f32 %v5930, %v5665
        %v6059 = vmul.f32 %v5931, %v5474
        %v6060 = vmul.f32 %v5932, %v5476
        %v6061 = vmul.f32 %v5933, %v5667
        %v6062 = vmul.f32 %v5934, %v5669
        %v6063 = vmul.f32 %v5935, %v5480
        %v6064 = vmul.f32 %v5936, %v5482
        %v6065 = vmul.f32 %v5937, %v5673
        %v6066 = vmul.f32 %v5938, %v5675
        %v6067 = vmul.f32 %v5939, %v5484
        %v6068 = vmul.f32 %v5940, %v5486
        %v6069 = vmul.f32 %v5941, %v5677
        %v6070 = vmul.f32 %v5942, %v5679
        %v6071 = vmul.f32 %v5943, %v5490
        %v6072 = vmul.f32 %v5944, %v5492
        %v6073 = vmul.f32 %v5945, %v5683
        %v6074 = vmul.f32 %v5946, %v5685
        %v6075 = vmul.f32 %v5947, %v5494
        %v6076 = vmul.f32 %v5948, %v5496
        %v6077 = vmul.f32 %v5949, %v5687
        %v6078 = vmul.f32 %v5950, %v5689
        %v6079 = vmul.f32 %v5951, %v5500
        %v6080 = vmul.f32 %v5952, %v5502
        %v6081 = vmul.f32 %v5953, %v5693
        %v6082 = vmul.f32 %v5954, %v5695
        %v6083 = vmul.f32 %v5955, %v5504
        %v6084 = vmul.f32 %v5956, %v5506
        %v6085 = vmul.f32 %v5957, %v5697
        %v6086 = vmul.f32 %v5958, %v5699
        %v6087 = vmul.f32 %v5959, %v5510
        %v6088 = vmul.f32 %v5960, %v5512
        %v6089 = vmul.f32 %v5961, %v5703
        %v6090 = vmul.f32 %v5962, %v5705
        %v6091 = vmul.f32 %v5963, %v5514
        %v6092 = vmul.f32 %v5964, %v5516
        %v6093 = vmul.f32 %v5965, %v5707
        %v6094 = vmul.f32 %v5966, %v5709
        %v6095 = vmul.f32 %v5967, %v5360
        %v6096 = vmul.f32 %v5968, %v5362
        %v6097 = vmul.f32 %v5969, %v5553
        %v6098 = vmul.f32 %v5970, %v5555
        %v6099 = vmul.f32 %v5971, %v5364
        %v6100 = vmul.f32 %v5972, %v5366
        %v6101 = vmul.f32 %v5973, %v5557
        %v6102 = vmul.f32 %v5974, %v5559
        %v6103 = vmul.f32 %v5975, %v5370
        %v6104 = vmul.f32 %v5976, %v5372
        %v6105 = vmul.f32 %v5977, %v5563
        %v6106 = vmul.f32 %v5978, %v5565
        %v6107 = vmul.f32 %v5979, %v5374
        %v6108 = vmul.f32 %v5980, %v5376
        %v6109 = vmul.f32 %v5981, %v5567
        %v6110 = vmul.f32 %v5982, %v5569
        %v6111 = vmul.f32 %v5983, %v5380
        %v6112 = vmul.f32 %v5984, %v5382
        %v6113 = vmul.f32 %v5985, %v5573
        %v6114 = vmul.f32 %v5986, %v5575
        %v6115 = vmul.f32 %v5987, %v5384
        %v6116 = vmul.f32 %v5988, %v5386
        %v6117 = vmul.f32 %v5989, %v5577
        %v6118 = vmul.f32 %v5990, %v5579
        %v6119 = vmul.f32 %v5991, %v5390
        %v6120 = vmul.f32 %v5992, %v5392
        %v6121 = vmul.f32 %v5993, %v5583
        %v6122 = vmul.f32 %v5994, %v5585
        %v6123 = vmul.f32 %v5995, %v5394
        %v6124 = vmul.f32 %v5996, %v5396
        %v6125 = vmul.f32 %v5997, %v5587
        %v6126 = vmul.f32 %v5998, %v5589
        %v6127 = vmul.f32 %v5999, %v5400
        %v6128 = vmul.f32 %v6000, %v5402
        %v6129 = vmul.f32 %v6001, %v5593
        %v6130 = vmul.f32 %v6002, %v5595
        %v6131 = vmul.f32 %v6003, %v5404
        %v6132 = vmul.f32 %v6004, %v5406
        %v6133 = vmul.f32 %v6005, %v5597
        %v6134 = vmul.f32 %v6006, %v5599
        %v6135 = vmul.f32 %v6007, %v5410
        %v6136 = vmul.f32 %v6008, %v5412
        %v6137 = vmul.f32 %v6009, %v5603
        %v6138 = vmul.f32 %v6010, %v5605
        %v6139 = vmul.f32 %v6011, %v5414
        %v6140 = vmul.f32 %v6012, %v5416
        %v6141 = vmul.f32 %v6013, %v5607
        %v6142 = vmul.f32 %v6014, %v5609
        %v6143 = vmul.f32 %v6015, %v5420
        %v6144 = vmul.f32 %v6016, %v5422
        %v6145 = vmul.f32 %v6017, %v5613
        %v6146 = vmul.f32 %v6018, %v5615
        %v6147 = vmul.f32 %v6019, %v5424
        %v6148 = vmul.f32 %v6020, %v5426
        %v6149 = vmul.f32 %v6021, %v5617
        %v6150 = vmul.f32 %v6022, %v5619
        %v6151 = vmul.f32 %v6023, %v5430
        %v6152 = vmul.f32 %v6024, %v5432
        %v6153 = vmul.f32 %v6025, %v5623
        %v6154 = vmul.f32 %v6026, %v5625
        %v6155 = vmul.f32 %v6027, %v5434
        %v6156 = vmul.f32 %v6028, %v5436
        %v6157 = vmul.f32 %v6029, %v5627
        %v6158 = vmul.f32 %v6030, %v5629
        %v6159 = vmul.f32 %v6031, %v5440
        %v6160 = vmul.f32 %v6032, %v5442
        %v6161 = vmul.f32 %v6033, %v5633
        %v6162 = vmul.f32 %v6034, %v5635
        %v6163 = vmul.f32 %v6035, %v5444
        %v6164 = vmul.f32 %v6036, %v5446
        %v6165 = vmul.f32 %v6037, %v5637
        %v6166 = vmul.f32 %v6038, %v5639
        %v6167 = vmul.f32 %v6039, %v5450
        %v6168 = vmul.f32 %v6040, %v5452
        %v6169 = vmul.f32 %v6041, %v5643
        %v6170 = vmul.f32 %v6042, %v5645
        %v6171 = vmul.f32 %v6043, %v5454
        %v6172 = vmul.f32 %v6044, %v5456
        %v6173 = vmul.f32 %v6045, %v5647
        %v6174 = vmul.f32 %v6046, %v5649
        %v6175 = vmul.f32 %v6047, %v5460
        %v6176 = vmul.f32 %v6048, %v5462
        %v6177 = vmul.f32 %v6049, %v5653
        %v6178 = vmul.f32 %v6050, %v5655
        %v6179 = vmul.f32 %v6051, %v5464
        %v6180 = vmul.f32 %v6052, %v5466
        %v6181 = vmul.f32 %v6053, %v5657
        %v6182 = vmul.f32 %v6054, %v5659
        %v6183 = vmul.f32 %v6055, %v5470
        %v6184 = vmul.f32 %v6056, %v5472
        %v6185 = vmul.f32 %v6057, %v5663
        %v6186 = vmul.f32 %v6058, %v5665
        %v6187 = vmul.f32 %v6059, %v5474
        %v6188 = vmul.f32 %v6060, %v5476
        %v6189 = vmul.f32 %v6061, %v5667
        %v6190 = vmul.f32 %v6062, %v5669
        %v6191 = vmul.f32 %v6063, %v5480
        %v6192 = vmul.f32 %v6064, %v5482
        %v6193 = vmul.f32 %v6065, %v5673
        %v6194 = vmul.f32 %v6066, %v5675
        %v6195 = vmul.f32 %v6067, %v5484
        %v6196 = vmul.f32 %v6068, %v5486
        %v6197 = vmul.f32 %v6069, %v5677
        %v6198 = vmul.f32 %v6070, %v5679
        %v6199 = vmul.f32 %v6071, %v5490
        %v6200 = vmul.f32 %v6072, %v5492
        %v6201 = vmul.f32 %v6073, %v5683
        %v6202 = vmul.f32 %v6074, %v5685
        %v6203 = vmul.f32 %v6075, %v5494
        %v6204 = vmul.f32 %v6076, %v5496
        %v6205 = vmul.f32 %v6077, %v5687
        %v6206 = vmul.f32 %v6078, %v5689
        %v6207 = vmul.f32 %v6079, %v5500
        %v6208 = vmul.f32 %v6080, %v5502
        %v6209 = vmul.f32 %v6081, %v5693
        %v6210 = vmul.f32 %v6082, %v5695
        %v6211 = vmul.f32 %v6083, %v5504
        %v6212 = vmul.f32 %v6084, %v5506
        %v6213 = vmul.f32 %v6085, %v5697
        %v6214 = vmul.f32 %v6086, %v5699
        %v6215 = vmul.f32 %v6087, %v5510
        %v6216 = vmul.f32 %v6088, %v5512
        %v6217 = vmul.f32 %v6089, %v5703
        %v6218 = vmul.f32 %v6090, %v5705
        %v6219 = vmul.f32 %v6091, %v5514
        %v6220 = vmul.f32 %v6092, %v5516
        %v6221 = vmul.f32 %v6093, %v5707
        %v6222 = vmul.f32 %v6094, %v5709
        %v6223 = vadd.f32 %v5360, %v6095
        %v6224 = vadd.f32 %v5362, %v6096
        %v6225 = vadd.f32 %v5553, %v6097
        %v6226 = vadd.f32 %v5555, %v6098
        %v6227 = vadd.f32 %v5364, %v6099
        %v6228 = vadd.f32 %v5366, %v6100
        %v6229 = vadd.f32 %v5557, %v6101
        %v6230 = vadd.f32 %v5559, %v6102
        %v6231 = vadd.f32 %v5370, %v6103
        %v6232 = vadd.f32 %v5372, %v6104
        %v6233 = vadd.f32 %v5563, %v6105
        %v6234 = vadd.f32 %v5565, %v6106
        %v6235 = vadd.f32 %v5374, %v6107
        %v6236 = vadd.f32 %v5376, %v6108
        %v6237 = vadd.f32 %v5567, %v6109
        %v6238 = vadd.f32 %v5569, %v6110
        %v6239 = vadd.f32 %v5380, %v6111
        %v6240 = vadd.f32 %v5382, %v6112
        %v6241 = vadd.f32 %v5573, %v6113
        %v6242 = vadd.f32 %v5575, %v6114
        %v6243 = vadd.f32 %v5384, %v6115
        %v6244 = vadd.f32 %v5386, %v6116
        %v6245 = vadd.f32 %v5577, %v6117
        %v6246 = vadd.f32 %v5579, %v6118
        %v6247 = vadd.f32 %v5390, %v6119
        %v6248 = vadd.f32 %v5392, %v6120
        %v6249 = vadd.f32 %v5583, %v6121
        %v6250 = vadd.f32 %v5585, %v6122
        %v6251 = vadd.f32 %v5394, %v6123
        %v6252 = vadd.f32 %v5396, %v6124
        %v6253 = vadd.f32 %v5587, %v6125
        %v6254 = vadd.f32 %v5589, %v6126
        %v6255 = vadd.f32 %v5400, %v6127
        %v6256 = vadd.f32 %v5402, %v6128
        %v6257 = vadd.f32 %v5593, %v6129
        %v6258 = vadd.f32 %v5595, %v6130
        %v6259 = vadd.f32 %v5404, %v6131
        %v6260 = vadd.f32 %v5406, %v6132
        %v6261 = vadd.f32 %v5597, %v6133
        %v6262 = vadd.f32 %v5599, %v6134
        %v6263 = vadd.f32 %v5410, %v6135
        %v6264 = vadd.f32 %v5412, %v6136
        %v6265 = vadd.f32 %v5603, %v6137
        %v6266 = vadd.f32 %v5605, %v6138
        %v6267 = vadd.f32 %v5414, %v6139
        %v6268 = vadd.f32 %v5416, %v6140
        %v6269 = vadd.f32 %v5607, %v6141
        %v6270 = vadd.f32 %v5609, %v6142
        %v6271 = vadd.f32 %v5420, %v6143
        %v6272 = vadd.f32 %v5422, %v6144
        %v6273 = vadd.f32 %v5613, %v6145
        %v6274 = vadd.f32 %v5615, %v6146
        %v6275 = vadd.f32 %v5424, %v6147
        %v6276 = vadd.f32 %v5426, %v6148
        %v6277 = vadd.f32 %v5617, %v6149
        %v6278 = vadd.f32 %v5619, %v6150
        %v6279 = vadd.f32 %v5430, %v6151
        %v6280 = vadd.f32 %v5432, %v6152
        %v6281 = vadd.f32 %v5623, %v6153
        %v6282 = vadd.f32 %v5625, %v6154
        %v6283 = vadd.f32 %v5434, %v6155
        %v6284 = vadd.f32 %v5436, %v6156
        %v6285 = vadd.f32 %v5627, %v6157
        %v6286 = vadd.f32 %v5629, %v6158
        %v6287 = vadd.f32 %v5440, %v6159
        %v6288 = vadd.f32 %v5442, %v6160
        %v6289 = vadd.f32 %v5633, %v6161
        %v6290 = vadd.f32 %v5635, %v6162
        %v6291 = vadd.f32 %v5444, %v6163
        %v6292 = vadd.f32 %v5446, %v6164
        %v6293 = vadd.f32 %v5637, %v6165
        %v6294 = vadd.f32 %v5639, %v6166
        %v6295 = vadd.f32 %v5450, %v6167
        %v6296 = vadd.f32 %v5452, %v6168
        %v6297 = vadd.f32 %v5643, %v6169
        %v6298 = vadd.f32 %v5645, %v6170
        %v6299 = vadd.f32 %v5454, %v6171
        %v6300 = vadd.f32 %v5456, %v6172
        %v6301 = vadd.f32 %v5647, %v6173
        %v6302 = vadd.f32 %v5649, %v6174
        %v6303 = vadd.f32 %v5460, %v6175
        %v6304 = vadd.f32 %v5462, %v6176
        %v6305 = vadd.f32 %v5653, %v6177
        %v6306 = vadd.f32 %v5655, %v6178
        %v6307 = vadd.f32 %v5464, %v6179
        %v6308 = vadd.f32 %v5466, %v6180
        %v6309 = vadd.f32 %v5657, %v6181
        %v6310 = vadd.f32 %v5659, %v6182
        %v6311 = vadd.f32 %v5470, %v6183
        %v6312 = vadd.f32 %v5472, %v6184
        %v6313 = vadd.f32 %v5663, %v6185
        %v6314 = vadd.f32 %v5665, %v6186
        %v6315 = vadd.f32 %v5474, %v6187
        %v6316 = vadd.f32 %v5476, %v6188
        %v6317 = vadd.f32 %v5667, %v6189
        %v6318 = vadd.f32 %v5669, %v6190
        %v6319 = vadd.f32 %v5480, %v6191
        %v6320 = vadd.f32 %v5482, %v6192
        %v6321 = vadd.f32 %v5673, %v6193
        %v6322 = vadd.f32 %v5675, %v6194
        %v6323 = vadd.f32 %v5484, %v6195
        %v6324 = vadd.f32 %v5486, %v6196
        %v6325 = vadd.f32 %v5677, %v6197
        %v6326 = vadd.f32 %v5679, %v6198
        %v6327 = vadd.f32 %v5490, %v6199
        %v6328 = vadd.f32 %v5492, %v6200
        %v6329 = vadd.f32 %v5683, %v6201
        %v6330 = vadd.f32 %v5685, %v6202
        %v6331 = vadd.f32 %v5494, %v6203
        %v6332 = vadd.f32 %v5496, %v6204
        %v6333 = vadd.f32 %v5687, %v6205
        %v6334 = vadd.f32 %v5689, %v6206
        %v6335 = vadd.f32 %v5500, %v6207
        %v6336 = vadd.f32 %v5502, %v6208
        %v6337 = vadd.f32 %v5693, %v6209
        %v6338 = vadd.f32 %v5695, %v6210
        %v6339 = vadd.f32 %v5504, %v6211
        %v6340 = vadd.f32 %v5506, %v6212
        %v6341 = vadd.f32 %v5697, %v6213
        %v6342 = vadd.f32 %v5699, %v6214
        %v6343 = vadd.f32 %v5510, %v6215
        %v6344 = vadd.f32 %v5512, %v6216
        %v6345 = vadd.f32 %v5703, %v6217
        %v6346 = vadd.f32 %v5705, %v6218
        %v6347 = vadd.f32 %v5514, %v6219
        %v6348 = vadd.f32 %v5516, %v6220
        %v6349 = vadd.f32 %v5707, %v6221
        %v6350 = vadd.f32 %v5709, %v6222
        %v6351 = vmul.f32 %v6223, 0.7978846
        %v6352 = vmul.f32 %v6224, 0.7978846
        %v6353 = vmul.f32 %v6225, 0.7978846
        %v6354 = vmul.f32 %v6226, 0.7978846
        %v6355 = vmul.f32 %v6227, 0.7978846
        %v6356 = vmul.f32 %v6228, 0.7978846
        %v6357 = vmul.f32 %v6229, 0.7978846
        %v6358 = vmul.f32 %v6230, 0.7978846
        %v6359 = vmul.f32 %v6231, 0.7978846
        %v6360 = vmul.f32 %v6232, 0.7978846
        %v6361 = vmul.f32 %v6233, 0.7978846
        %v6362 = vmul.f32 %v6234, 0.7978846
        %v6363 = vmul.f32 %v6235, 0.7978846
        %v6364 = vmul.f32 %v6236, 0.7978846
        %v6365 = vmul.f32 %v6237, 0.7978846
        %v6366 = vmul.f32 %v6238, 0.7978846
        %v6367 = vmul.f32 %v6239, 0.7978846
        %v6368 = vmul.f32 %v6240, 0.7978846
        %v6369 = vmul.f32 %v6241, 0.7978846
        %v6370 = vmul.f32 %v6242, 0.7978846
        %v6371 = vmul.f32 %v6243, 0.7978846
        %v6372 = vmul.f32 %v6244, 0.7978846
        %v6373 = vmul.f32 %v6245, 0.7978846
        %v6374 = vmul.f32 %v6246, 0.7978846
        %v6375 = vmul.f32 %v6247, 0.7978846
        %v6376 = vmul.f32 %v6248, 0.7978846
        %v6377 = vmul.f32 %v6249, 0.7978846
        %v6378 = vmul.f32 %v6250, 0.7978846
        %v6379 = vmul.f32 %v6251, 0.7978846
        %v6380 = vmul.f32 %v6252, 0.7978846
        %v6381 = vmul.f32 %v6253, 0.7978846
        %v6382 = vmul.f32 %v6254, 0.7978846
        %v6383 = vmul.f32 %v6255, 0.7978846
        %v6384 = vmul.f32 %v6256, 0.7978846
        %v6385 = vmul.f32 %v6257, 0.7978846
        %v6386 = vmul.f32 %v6258, 0.7978846
        %v6387 = vmul.f32 %v6259, 0.7978846
        %v6388 = vmul.f32 %v6260, 0.7978846
        %v6389 = vmul.f32 %v6261, 0.7978846
        %v6390 = vmul.f32 %v6262, 0.7978846
        %v6391 = vmul.f32 %v6263, 0.7978846
        %v6392 = vmul.f32 %v6264, 0.7978846
        %v6393 = vmul.f32 %v6265, 0.7978846
        %v6394 = vmul.f32 %v6266, 0.7978846
        %v6395 = vmul.f32 %v6267, 0.7978846
        %v6396 = vmul.f32 %v6268, 0.7978846
        %v6397 = vmul.f32 %v6269, 0.7978846
        %v6398 = vmul.f32 %v6270, 0.7978846
        %v6399 = vmul.f32 %v6271, 0.7978846
        %v6400 = vmul.f32 %v6272, 0.7978846
        %v6401 = vmul.f32 %v6273, 0.7978846
        %v6402 = vmul.f32 %v6274, 0.7978846
        %v6403 = vmul.f32 %v6275, 0.7978846
        %v6404 = vmul.f32 %v6276, 0.7978846
        %v6405 = vmul.f32 %v6277, 0.7978846
        %v6406 = vmul.f32 %v6278, 0.7978846
        %v6407 = vmul.f32 %v6279, 0.7978846
        %v6408 = vmul.f32 %v6280, 0.7978846
        %v6409 = vmul.f32 %v6281, 0.7978846
        %v6410 = vmul.f32 %v6282, 0.7978846
        %v6411 = vmul.f32 %v6283, 0.7978846
        %v6412 = vmul.f32 %v6284, 0.7978846
        %v6413 = vmul.f32 %v6285, 0.7978846
        %v6414 = vmul.f32 %v6286, 0.7978846
        %v6415 = vmul.f32 %v6287, 0.7978846
        %v6416 = vmul.f32 %v6288, 0.7978846
        %v6417 = vmul.f32 %v6289, 0.7978846
        %v6418 = vmul.f32 %v6290, 0.7978846
        %v6419 = vmul.f32 %v6291, 0.7978846
        %v6420 = vmul.f32 %v6292, 0.7978846
        %v6421 = vmul.f32 %v6293, 0.7978846
        %v6422 = vmul.f32 %v6294, 0.7978846
        %v6423 = vmul.f32 %v6295, 0.7978846
        %v6424 = vmul.f32 %v6296, 0.7978846
        %v6425 = vmul.f32 %v6297, 0.7978846
        %v6426 = vmul.f32 %v6298, 0.7978846
        %v6427 = vmul.f32 %v6299, 0.7978846
        %v6428 = vmul.f32 %v6300, 0.7978846
        %v6429 = vmul.f32 %v6301, 0.7978846
        %v6430 = vmul.f32 %v6302, 0.7978846
        %v6431 = vmul.f32 %v6303, 0.7978846
        %v6432 = vmul.f32 %v6304, 0.7978846
        %v6433 = vmul.f32 %v6305, 0.7978846
        %v6434 = vmul.f32 %v6306, 0.7978846
        %v6435 = vmul.f32 %v6307, 0.7978846
        %v6436 = vmul.f32 %v6308, 0.7978846
        %v6437 = vmul.f32 %v6309, 0.7978846
        %v6438 = vmul.f32 %v6310, 0.7978846
        %v6439 = vmul.f32 %v6311, 0.7978846
        %v6440 = vmul.f32 %v6312, 0.7978846
        %v6441 = vmul.f32 %v6313, 0.7978846
        %v6442 = vmul.f32 %v6314, 0.7978846
        %v6443 = vmul.f32 %v6315, 0.7978846
        %v6444 = vmul.f32 %v6316, 0.7978846
        %v6445 = vmul.f32 %v6317, 0.7978846
        %v6446 = vmul.f32 %v6318, 0.7978846
        %v6447 = vmul.f32 %v6319, 0.7978846
        %v6448 = vmul.f32 %v6320, 0.7978846
        %v6449 = vmul.f32 %v6321, 0.7978846
        %v6450 = vmul.f32 %v6322, 0.7978846
        %v6451 = vmul.f32 %v6323, 0.7978846
        %v6452 = vmul.f32 %v6324, 0.7978846
        %v6453 = vmul.f32 %v6325, 0.7978846
        %v6454 = vmul.f32 %v6326, 0.7978846
        %v6455 = vmul.f32 %v6327, 0.7978846
        %v6456 = vmul.f32 %v6328, 0.7978846
        %v6457 = vmul.f32 %v6329, 0.7978846
        %v6458 = vmul.f32 %v6330, 0.7978846
        %v6459 = vmul.f32 %v6331, 0.7978846
        %v6460 = vmul.f32 %v6332, 0.7978846
        %v6461 = vmul.f32 %v6333, 0.7978846
        %v6462 = vmul.f32 %v6334, 0.7978846
        %v6463 = vmul.f32 %v6335, 0.7978846
        %v6464 = vmul.f32 %v6336, 0.7978846
        %v6465 = vmul.f32 %v6337, 0.7978846
        %v6466 = vmul.f32 %v6338, 0.7978846
        %v6467 = vmul.f32 %v6339, 0.7978846
        %v6468 = vmul.f32 %v6340, 0.7978846
        %v6469 = vmul.f32 %v6341, 0.7978846
        %v6470 = vmul.f32 %v6342, 0.7978846
        %v6471 = vmul.f32 %v6343, 0.7978846
        %v6472 = vmul.f32 %v6344, 0.7978846
        %v6473 = vmul.f32 %v6345, 0.7978846
        %v6474 = vmul.f32 %v6346, 0.7978846
        %v6475 = vmul.f32 %v6347, 0.7978846
        %v6476 = vmul.f32 %v6348, 0.7978846
        %v6477 = vmul.f32 %v6349, 0.7978846
        %v6478 = vmul.f32 %v6350, 0.7978846
        %v6479 = vtanh.pop %v6351
        %v6480 = vtanh.pop %v6352
        %v6481 = vtanh.pop %v6353
        %v6482 = vtanh.pop %v6354
        %v6483 = vtanh.pop %v6355
        %v6484 = vtanh.pop %v6356
        %v6485 = vtanh.pop %v6357
        %v6486 = vtanh.pop %v6358
        %v6487 = vtanh.pop %v6359
        %v6488 = vtanh.pop %v6360
        %v6489 = vtanh.pop %v6361
        %v6490 = vtanh.pop %v6362
        %v6491 = vtanh.pop %v6363
        %v6492 = vtanh.pop %v6364
        %v6493 = vtanh.pop %v6365
        %v6494 = vtanh.pop %v6366
        %v6495 = vtanh.pop %v6367
        %v6496 = vtanh.pop %v6368
        %v6497 = vtanh.pop %v6369
        %v6498 = vtanh.pop %v6370
        %v6499 = vtanh.pop %v6371
        %v6500 = vtanh.pop %v6372
        %v6501 = vtanh.pop %v6373
        %v6502 = vtanh.pop %v6374
        %v6503 = vtanh.pop %v6375
        %v6504 = vtanh.pop %v6376
        %v6505 = vtanh.pop %v6377
        %v6506 = vtanh.pop %v6378
        %v6507 = vtanh.pop %v6379
        %v6508 = vtanh.pop %v6380
        %v6509 = vtanh.pop %v6381
        %v6510 = vtanh.pop %v6382
        %v6511 = vtanh.pop %v6383
        %v6512 = vtanh.pop %v6384
        %v6513 = vtanh.pop %v6385
        %v6514 = vtanh.pop %v6386
        %v6515 = vtanh.pop %v6387
        %v6516 = vtanh.pop %v6388
        %v6517 = vtanh.pop %v6389
        %v6518 = vtanh.pop %v6390
        %v6519 = vtanh.pop %v6391
        %v6520 = vtanh.pop %v6392
        %v6521 = vtanh.pop %v6393
        %v6522 = vtanh.pop %v6394
        %v6523 = vtanh.pop %v6395
        %v6524 = vtanh.pop %v6396
        %v6525 = vtanh.pop %v6397
        %v6526 = vtanh.pop %v6398
        %v6527 = vtanh.pop %v6399
        %v6528 = vtanh.pop %v6400
        %v6529 = vtanh.pop %v6401
        %v6530 = vtanh.pop %v6402
        %v6531 = vtanh.pop %v6403
        %v6532 = vtanh.pop %v6404
        %v6533 = vtanh.pop %v6405
        %v6534 = vtanh.pop %v6406
        %v6535 = vtanh.pop %v6407
        %v6536 = vtanh.pop %v6408
        %v6537 = vtanh.pop %v6409
        %v6538 = vtanh.pop %v6410
        %v6539 = vtanh.pop %v6411
        %v6540 = vtanh.pop %v6412
        %v6541 = vtanh.pop %v6413
        %v6542 = vtanh.pop %v6414
        %v6543 = vtanh.pop %v6415
        %v6544 = vtanh.pop %v6416
        %v6545 = vtanh.pop %v6417
        %v6546 = vtanh.pop %v6418
        %v6547 = vtanh.pop %v6419
        %v6548 = vtanh.pop %v6420
        %v6549 = vtanh.pop %v6421
        %v6550 = vtanh.pop %v6422
        %v6551 = vtanh.pop %v6423
        %v6552 = vtanh.pop %v6424
        %v6553 = vtanh.pop %v6425
        %v6554 = vtanh.pop %v6426
        %v6555 = vtanh.pop %v6427
        %v6556 = vtanh.pop %v6428
        %v6557 = vtanh.pop %v6429
        %v6558 = vtanh.pop %v6430
        %v6559 = vtanh.pop %v6431
        %v6560 = vtanh.pop %v6432
        %v6561 = vtanh.pop %v6433
        %v6562 = vtanh.pop %v6434
        %v6563 = vtanh.pop %v6435
        %v6564 = vtanh.pop %v6436
        %v6565 = vtanh.pop %v6437
        %v6566 = vtanh.pop %v6438
        %v6567 = vtanh.pop %v6439
        %v6568 = vtanh.pop %v6440
        %v6569 = vtanh.pop %v6441
        %v6570 = vtanh.pop %v6442
        %v6571 = vtanh.pop %v6443
        %v6572 = vtanh.pop %v6444
        %v6573 = vtanh.pop %v6445
        %v6574 = vtanh.pop %v6446
        %v6575 = vtanh.pop %v6447
        %v6576 = vtanh.pop %v6448
        %v6577 = vtanh.pop %v6449
        %v6578 = vtanh.pop %v6450
        %v6579 = vtanh.pop %v6451
        %v6580 = vtanh.pop %v6452
        %v6581 = vtanh.pop %v6453
        %v6582 = vtanh.pop %v6454
        %v6583 = vtanh.pop %v6455
        %v6584 = vtanh.pop %v6456
        %v6585 = vtanh.pop %v6457
        %v6586 = vtanh.pop %v6458
        %v6587 = vtanh.pop %v6459
        %v6588 = vtanh.pop %v6460
        %v6589 = vtanh.pop %v6461
        %v6590 = vtanh.pop %v6462
        %v6591 = vtanh.pop %v6463
        %v6592 = vtanh.pop %v6464
        %v6593 = vtanh.pop %v6465
        %v6594 = vtanh.pop %v6466
        %v6595 = vtanh.pop %v6467
        %v6596 = vtanh.pop %v6468
        %v6597 = vtanh.pop %v6469
        %v6598 = vtanh.pop %v6470
        %v6599 = vtanh.pop %v6471
        %v6600 = vtanh.pop %v6472
        %v6601 = vtanh.pop %v6473
        %v6602 = vtanh.pop %v6474
        %v6603 = vtanh.pop %v6475
        %v6604 = vtanh.pop %v6476
        %v6605 = vtanh.pop %v6477
        %v6606 = vtanh.pop %v6478
        %v6607 = vadd.f32 %v6479, 1.0
        %v6608 = vadd.f32 %v6480, 1.0
        %v6609 = vadd.f32 %v6481, 1.0
        %v6610 = vadd.f32 %v6482, 1.0
        %v6611 = vadd.f32 %v6483, 1.0
        %v6612 = vadd.f32 %v6484, 1.0
        %v6613 = vadd.f32 %v6485, 1.0
        %v6614 = vadd.f32 %v6486, 1.0
        %v6615 = vadd.f32 %v6487, 1.0
        %v6616 = vadd.f32 %v6488, 1.0
        %v6617 = vadd.f32 %v6489, 1.0
        %v6618 = vadd.f32 %v6490, 1.0
        %v6619 = vadd.f32 %v6491, 1.0
        %v6620 = vadd.f32 %v6492, 1.0
        %v6621 = vadd.f32 %v6493, 1.0
        %v6622 = vadd.f32 %v6494, 1.0
        %v6623 = vadd.f32 %v6495, 1.0
        %v6624 = vadd.f32 %v6496, 1.0
        %v6625 = vadd.f32 %v6497, 1.0
        %v6626 = vadd.f32 %v6498, 1.0
        %v6627 = vadd.f32 %v6499, 1.0
        %v6628 = vadd.f32 %v6500, 1.0
        %v6629 = vadd.f32 %v6501, 1.0
        %v6630 = vadd.f32 %v6502, 1.0
        %v6631 = vadd.f32 %v6503, 1.0
        %v6632 = vadd.f32 %v6504, 1.0
        %v6633 = vadd.f32 %v6505, 1.0
        %v6634 = vadd.f32 %v6506, 1.0
        %v6635 = vadd.f32 %v6507, 1.0
        %v6636 = vadd.f32 %v6508, 1.0
        %v6637 = vadd.f32 %v6509, 1.0
        %v6638 = vadd.f32 %v6510, 1.0
        %v6639 = vadd.f32 %v6511, 1.0
        %v6640 = vadd.f32 %v6512, 1.0
        %v6641 = vadd.f32 %v6513, 1.0
        %v6642 = vadd.f32 %v6514, 1.0
        %v6643 = vadd.f32 %v6515, 1.0
        %v6644 = vadd.f32 %v6516, 1.0
        %v6645 = vadd.f32 %v6517, 1.0
        %v6646 = vadd.f32 %v6518, 1.0
        %v6647 = vadd.f32 %v6519, 1.0
        %v6648 = vadd.f32 %v6520, 1.0
        %v6649 = vadd.f32 %v6521, 1.0
        %v6650 = vadd.f32 %v6522, 1.0
        %v6651 = vadd.f32 %v6523, 1.0
        %v6652 = vadd.f32 %v6524, 1.0
        %v6653 = vadd.f32 %v6525, 1.0
        %v6654 = vadd.f32 %v6526, 1.0
        %v6655 = vadd.f32 %v6527, 1.0
        %v6656 = vadd.f32 %v6528, 1.0
        %v6657 = vadd.f32 %v6529, 1.0
        %v6658 = vadd.f32 %v6530, 1.0
        %v6659 = vadd.f32 %v6531, 1.0
        %v6660 = vadd.f32 %v6532, 1.0
        %v6661 = vadd.f32 %v6533, 1.0
        %v6662 = vadd.f32 %v6534, 1.0
        %v6663 = vadd.f32 %v6535, 1.0
        %v6664 = vadd.f32 %v6536, 1.0
        %v6665 = vadd.f32 %v6537, 1.0
        %v6666 = vadd.f32 %v6538, 1.0
        %v6667 = vadd.f32 %v6539, 1.0
        %v6668 = vadd.f32 %v6540, 1.0
        %v6669 = vadd.f32 %v6541, 1.0
        %v6670 = vadd.f32 %v6542, 1.0
        %v6671 = vadd.f32 %v6543, 1.0
        %v6672 = vadd.f32 %v6544, 1.0
        %v6673 = vadd.f32 %v6545, 1.0
        %v6674 = vadd.f32 %v6546, 1.0
        %v6675 = vadd.f32 %v6547, 1.0
        %v6676 = vadd.f32 %v6548, 1.0
        %v6677 = vadd.f32 %v6549, 1.0
        %v6678 = vadd.f32 %v6550, 1.0
        %v6679 = vadd.f32 %v6551, 1.0
        %v6680 = vadd.f32 %v6552, 1.0
        %v6681 = vadd.f32 %v6553, 1.0
        %v6682 = vadd.f32 %v6554, 1.0
        %v6683 = vadd.f32 %v6555, 1.0
        %v6684 = vadd.f32 %v6556, 1.0
        %v6685 = vadd.f32 %v6557, 1.0
        %v6686 = vadd.f32 %v6558, 1.0
        %v6687 = vadd.f32 %v6559, 1.0
        %v6688 = vadd.f32 %v6560, 1.0
        %v6689 = vadd.f32 %v6561, 1.0
        %v6690 = vadd.f32 %v6562, 1.0
        %v6691 = vadd.f32 %v6563, 1.0
        %v6692 = vadd.f32 %v6564, 1.0
        %v6693 = vadd.f32 %v6565, 1.0
        %v6694 = vadd.f32 %v6566, 1.0
        %v6695 = vadd.f32 %v6567, 1.0
        %v6696 = vadd.f32 %v6568, 1.0
        %v6697 = vadd.f32 %v6569, 1.0
        %v6698 = vadd.f32 %v6570, 1.0
        %v6699 = vadd.f32 %v6571, 1.0
        %v6700 = vadd.f32 %v6572, 1.0
        %v6701 = vadd.f32 %v6573, 1.0
        %v6702 = vadd.f32 %v6574, 1.0
        %v6703 = vadd.f32 %v6575, 1.0
        %v6704 = vadd.f32 %v6576, 1.0
        %v6705 = vadd.f32 %v6577, 1.0
        %v6706 = vadd.f32 %v6578, 1.0
        %v6707 = vadd.f32 %v6579, 1.0
        %v6708 = vadd.f32 %v6580, 1.0
        %v6709 = vadd.f32 %v6581, 1.0
        %v6710 = vadd.f32 %v6582, 1.0
        %v6711 = vadd.f32 %v6583, 1.0
        %v6712 = vadd.f32 %v6584, 1.0
        %v6713 = vadd.f32 %v6585, 1.0
        %v6714 = vadd.f32 %v6586, 1.0
        %v6715 = vadd.f32 %v6587, 1.0
        %v6716 = vadd.f32 %v6588, 1.0
        %v6717 = vadd.f32 %v6589, 1.0
        %v6718 = vadd.f32 %v6590, 1.0
        %v6719 = vadd.f32 %v6591, 1.0
        %v6720 = vadd.f32 %v6592, 1.0
        %v6721 = vadd.f32 %v6593, 1.0
        %v6722 = vadd.f32 %v6594, 1.0
        %v6723 = vadd.f32 %v6595, 1.0
        %v6724 = vadd.f32 %v6596, 1.0
        %v6725 = vadd.f32 %v6597, 1.0
        %v6726 = vadd.f32 %v6598, 1.0
        %v6727 = vadd.f32 %v6599, 1.0
        %v6728 = vadd.f32 %v6600, 1.0
        %v6729 = vadd.f32 %v6601, 1.0
        %v6730 = vadd.f32 %v6602, 1.0
        %v6731 = vadd.f32 %v6603, 1.0
        %v6732 = vadd.f32 %v6604, 1.0
        %v6733 = vadd.f32 %v6605, 1.0
        %v6734 = vadd.f32 %v6606, 1.0
        %v6735 = vmul.f32 %v5711, %v6607
        %v6736 = vmul.f32 %v5712, %v6608
        %v6737 = vmul.f32 %v5713, %v6609
        %v6738 = vmul.f32 %v5714, %v6610
        %v6739 = vmul.f32 %v5715, %v6611
        %v6740 = vmul.f32 %v5716, %v6612
        %v6741 = vmul.f32 %v5717, %v6613
        %v6742 = vmul.f32 %v5718, %v6614
        %v6743 = vmul.f32 %v5719, %v6615
        %v6744 = vmul.f32 %v5720, %v6616
        %v6745 = vmul.f32 %v5721, %v6617
        %v6746 = vmul.f32 %v5722, %v6618
        %v6747 = vmul.f32 %v5723, %v6619
        %v6748 = vmul.f32 %v5724, %v6620
        %v6749 = vmul.f32 %v5725, %v6621
        %v6750 = vmul.f32 %v5726, %v6622
        %v6751 = vmul.f32 %v5727, %v6623
        %v6752 = vmul.f32 %v5728, %v6624
        %v6753 = vmul.f32 %v5729, %v6625
        %v6754 = vmul.f32 %v5730, %v6626
        %v6755 = vmul.f32 %v5731, %v6627
        %v6756 = vmul.f32 %v5732, %v6628
        %v6757 = vmul.f32 %v5733, %v6629
        %v6758 = vmul.f32 %v5734, %v6630
        %v6759 = vmul.f32 %v5735, %v6631
        %v6760 = vmul.f32 %v5736, %v6632
        %v6761 = vmul.f32 %v5737, %v6633
        %v6762 = vmul.f32 %v5738, %v6634
        %v6763 = vmul.f32 %v5739, %v6635
        %v6764 = vmul.f32 %v5740, %v6636
        %v6765 = vmul.f32 %v5741, %v6637
        %v6766 = vmul.f32 %v5742, %v6638
        %v6767 = vmul.f32 %v5743, %v6639
        %v6768 = vmul.f32 %v5744, %v6640
        %v6769 = vmul.f32 %v5745, %v6641
        %v6770 = vmul.f32 %v5746, %v6642
        %v6771 = vmul.f32 %v5747, %v6643
        %v6772 = vmul.f32 %v5748, %v6644
        %v6773 = vmul.f32 %v5749, %v6645
        %v6774 = vmul.f32 %v5750, %v6646
        %v6775 = vmul.f32 %v5751, %v6647
        %v6776 = vmul.f32 %v5752, %v6648
        %v6777 = vmul.f32 %v5753, %v6649
        %v6778 = vmul.f32 %v5754, %v6650
        %v6779 = vmul.f32 %v5755, %v6651
        %v6780 = vmul.f32 %v5756, %v6652
        %v6781 = vmul.f32 %v5757, %v6653
        %v6782 = vmul.f32 %v5758, %v6654
        %v6783 = vmul.f32 %v5759, %v6655
        %v6784 = vmul.f32 %v5760, %v6656
        %v6785 = vmul.f32 %v5761, %v6657
        %v6786 = vmul.f32 %v5762, %v6658
        %v6787 = vmul.f32 %v5763, %v6659
        %v6788 = vmul.f32 %v5764, %v6660
        %v6789 = vmul.f32 %v5765, %v6661
        %v6790 = vmul.f32 %v5766, %v6662
        %v6791 = vmul.f32 %v5767, %v6663
        %v6792 = vmul.f32 %v5768, %v6664
        %v6793 = vmul.f32 %v5769, %v6665
        %v6794 = vmul.f32 %v5770, %v6666
        %v6795 = vmul.f32 %v5771, %v6667
        %v6796 = vmul.f32 %v5772, %v6668
        %v6797 = vmul.f32 %v5773, %v6669
        %v6798 = vmul.f32 %v5774, %v6670
        %v6799 = vmul.f32 %v5775, %v6671
        %v6800 = vmul.f32 %v5776, %v6672
        %v6801 = vmul.f32 %v5777, %v6673
        %v6802 = vmul.f32 %v5778, %v6674
        %v6803 = vmul.f32 %v5779, %v6675
        %v6804 = vmul.f32 %v5780, %v6676
        %v6805 = vmul.f32 %v5781, %v6677
        %v6806 = vmul.f32 %v5782, %v6678
        %v6807 = vmul.f32 %v5783, %v6679
        %v6808 = vmul.f32 %v5784, %v6680
        %v6809 = vmul.f32 %v5785, %v6681
        %v6810 = vmul.f32 %v5786, %v6682
        %v6811 = vmul.f32 %v5787, %v6683
        %v6812 = vmul.f32 %v5788, %v6684
        %v6813 = vmul.f32 %v5789, %v6685
        %v6814 = vmul.f32 %v5790, %v6686
        %v6815 = vmul.f32 %v5791, %v6687
        %v6816 = vmul.f32 %v5792, %v6688
        %v6817 = vmul.f32 %v5793, %v6689
        %v6818 = vmul.f32 %v5794, %v6690
        %v6819 = vmul.f32 %v5795, %v6691
        %v6820 = vmul.f32 %v5796, %v6692
        %v6821 = vmul.f32 %v5797, %v6693
        %v6822 = vmul.f32 %v5798, %v6694
        %v6823 = vmul.f32 %v5799, %v6695
        %v6824 = vmul.f32 %v5800, %v6696
        %v6825 = vmul.f32 %v5801, %v6697
        %v6826 = vmul.f32 %v5802, %v6698
        %v6827 = vmul.f32 %v5803, %v6699
        %v6828 = vmul.f32 %v5804, %v6700
        %v6829 = vmul.f32 %v5805, %v6701
        %v6830 = vmul.f32 %v5806, %v6702
        %v6831 = vmul.f32 %v5807, %v6703
        %v6832 = vmul.f32 %v5808, %v6704
        %v6833 = vmul.f32 %v5809, %v6705
        %v6834 = vmul.f32 %v5810, %v6706
        %v6835 = vmul.f32 %v5811, %v6707
        %v6836 = vmul.f32 %v5812, %v6708
        %v6837 = vmul.f32 %v5813, %v6709
        %v6838 = vmul.f32 %v5814, %v6710
        %v6839 = vmul.f32 %v5815, %v6711
        %v6840 = vmul.f32 %v5816, %v6712
        %v6841 = vmul.f32 %v5817, %v6713
        %v6842 = vmul.f32 %v5818, %v6714
        %v6843 = vmul.f32 %v5819, %v6715
        %v6844 = vmul.f32 %v5820, %v6716
        %v6845 = vmul.f32 %v5821, %v6717
        %v6846 = vmul.f32 %v5822, %v6718
        %v6847 = vmul.f32 %v5823, %v6719
        %v6848 = vmul.f32 %v5824, %v6720
        %v6849 = vmul.f32 %v5825, %v6721
        %v6850 = vmul.f32 %v5826, %v6722
        %v6851 = vmul.f32 %v5827, %v6723
        %v6852 = vmul.f32 %v5828, %v6724
        %v6853 = vmul.f32 %v5829, %v6725
        %v6854 = vmul.f32 %v5830, %v6726
        %v6855 = vmul.f32 %v5831, %v6727
        %v6856 = vmul.f32 %v5832, %v6728
        %v6857 = vmul.f32 %v5833, %v6729
        %v6858 = vmul.f32 %v5834, %v6730
        %v6859 = vmul.f32 %v5835, %v6731
        %v6860 = vmul.f32 %v5836, %v6732
        %v6861 = vmul.f32 %v5837, %v6733
        %v6862 = vmul.f32 %v5838, %v6734
        %v6863 = vld [vmem:[%s1297] sm:$0xf]
        %v6864 = vld [vmem:[%s1297 + $0x4] sm:$0xf]
        %v6865 = vld [vmem:[%s1297 + $0x8] sm:$0xf]
        %v6866 = vld [vmem:[%s1297 + $0xc] sm:$0xf]
        %v6867 = vld [vmem:[%s1297 + $0x10] sm:$0xf]
        %v6868 = vld [vmem:[%s1297 + $0x14] sm:$0xf]
        %v6869 = vld [vmem:[%s1297 + $0x18] sm:$0xf]
        %v6870 = vld [vmem:[%s1297 + $0x1c] sm:$0xf]
        %v6871 = vld [vmem:[%s1297 + $0x20] sm:$0xf]
        %v6872 = vld [vmem:[%s1297 + $0x24] sm:$0xf]
        %v6873 = vld [vmem:[%s1297 + $0x28] sm:$0xf]
        %v6874 = vld [vmem:[%s1297 + $0x2c] sm:$0xf]
        %v6875 = vld [vmem:[%s1297 + $0x30] sm:$0xf]
        %v6876 = vld [vmem:[%s1297 + $0x34] sm:$0xf]
        %v6877 = vld [vmem:[%s1297 + $0x38] sm:$0xf]
        %v6878 = vld [vmem:[%s1297 + $0x3c] sm:$0xf]
        %v6879 = vld [vmem:[%s1297 + $0x40] sm:$0xf]
        %v6880 = vld [vmem:[%s1297 + $0x44] sm:$0xf]
        %v6881 = vld [vmem:[%s1297 + $0x48] sm:$0xf]
        %v6882 = vld [vmem:[%s1297 + $0x4c] sm:$0xf]
        %v6883 = vld [vmem:[%s1297 + $0x50] sm:$0xf]
        %v6884 = vld [vmem:[%s1297 + $0x54] sm:$0xf]
        %v6885 = vld [vmem:[%s1297 + $0x58] sm:$0xf]
        %v6886 = vld [vmem:[%s1297 + $0x5c] sm:$0xf]
        %v6887 = vld [vmem:[%s1297 + $0x60] sm:$0xf]
        %v6888 = vld [vmem:[%s1297 + $0x64] sm:$0xf]
        %v6889 = vld [vmem:[%s1297 + $0x68] sm:$0xf]
        %v6890 = vld [vmem:[%s1297 + $0x6c] sm:$0xf]
        %v6891 = vld [vmem:[%s1297 + $0x70] sm:$0xf]
        %v6892 = vld [vmem:[%s1297 + $0x74] sm:$0xf]
        %v6893 = vld [vmem:[%s1297 + $0x78] sm:$0xf]
        %v6894 = vld [vmem:[%s1297 + $0x7c] sm:$0xf]
        %v6895 = vld [vmem:[%s1297 + $0x80] sm:$0xf]
        %v6896 = vld [vmem:[%s1297 + $0x84] sm:$0xf]
        %v6897 = vld [vmem:[%s1297 + $0x88] sm:$0xf]
        %v6898 = vld [vmem:[%s1297 + $0x8c] sm:$0xf]
        %v6899 = vld [vmem:[%s1297 + $0x90] sm:$0xf]
        %v6900 = vld [vmem:[%s1297 + $0x94] sm:$0xf]
        %v6901 = vld [vmem:[%s1297 + $0x98] sm:$0xf]
        %v6902 = vld [vmem:[%s1297 + $0x9c] sm:$0xf]
        %v6903 = vld [vmem:[%s1297 + $0xa0] sm:$0xf]
        %v6904 = vld [vmem:[%s1297 + $0xa4] sm:$0xf]
        %v6905 = vld [vmem:[%s1297 + $0xa8] sm:$0xf]
        %v6906 = vld [vmem:[%s1297 + $0xac] sm:$0xf]
        %v6907 = vld [vmem:[%s1297 + $0xb0] sm:$0xf]
        %v6908 = vld [vmem:[%s1297 + $0xb4] sm:$0xf]
        %v6909 = vld [vmem:[%s1297 + $0xb8] sm:$0xf]
        %v6910 = vld [vmem:[%s1297 + $0xbc] sm:$0xf]
        %v6911 = vld [vmem:[%s1297 + $0xc0] sm:$0xf]
        %v6912 = vld [vmem:[%s1297 + $0xc4] sm:$0xf]
        %v6913 = vld [vmem:[%s1297 + $0xc8] sm:$0xf]
        %v6914 = vld [vmem:[%s1297 + $0xcc] sm:$0xf]
        %v6915 = vld [vmem:[%s1297 + $0xd0] sm:$0xf]
        %v6916 = vld [vmem:[%s1297 + $0xd4] sm:$0xf]
        %v6917 = vld [vmem:[%s1297 + $0xd8] sm:$0xf]
        %v6918 = vld [vmem:[%s1297 + $0xdc] sm:$0xf]
        %v6919 = vld [vmem:[%s1297 + $0xe0] sm:$0xf]
        %v6920 = vld [vmem:[%s1297 + $0xe4] sm:$0xf]
        %v6921 = vld [vmem:[%s1297 + $0xe8] sm:$0xf]
        %v6922 = vld [vmem:[%s1297 + $0xec] sm:$0xf]
        %v6923 = vld [vmem:[%s1297 + $0xf0] sm:$0xf]
        %v6924 = vld [vmem:[%s1297 + $0xf4] sm:$0xf]
        %v6925 = vld [vmem:[%s1297 + $0xf8] sm:$0xf]
        %v6926 = vld [vmem:[%s1297 + $0xfc] sm:$0xf]
        %v6927 = vld [vmem:[%s1305] sm:$0x1]
        %v6928 = vpack.c.bf16 %v6739, %v6735
        %v6929 = vpack.c.bf16 %v6740, %v6736
        %v6930 = vpack.c.bf16 %v6741, %v6737
        %v6931 = vpack.c.bf16 %v6742, %v6738
        %v6932 = vpack.c.bf16 %v6747, %v6743
        %v6933 = vpack.c.bf16 %v6748, %v6744
        %v6934 = vpack.c.bf16 %v6749, %v6745
        %v6935 = vpack.c.bf16 %v6750, %v6746
        %v6936 = vpack.c.bf16 %v6755, %v6751
        %v6937 = vpack.c.bf16 %v6756, %v6752
        %v6938 = vpack.c.bf16 %v6757, %v6753
        %v6939 = vpack.c.bf16 %v6758, %v6754
        %v6940 = vpack.c.bf16 %v6763, %v6759
        %v6941 = vpack.c.bf16 %v6764, %v6760
        %v6942 = vpack.c.bf16 %v6765, %v6761
        %v6943 = vpack.c.bf16 %v6766, %v6762
        %v6944 = vpack.c.bf16 %v6771, %v6767
        %v6945 = vpack.c.bf16 %v6772, %v6768
        %v6946 = vpack.c.bf16 %v6773, %v6769
        %v6947 = vpack.c.bf16 %v6774, %v6770
        %v6948 = vpack.c.bf16 %v6779, %v6775
        %v6949 = vpack.c.bf16 %v6780, %v6776
        %v6950 = vpack.c.bf16 %v6781, %v6777
        %v6951 = vpack.c.bf16 %v6782, %v6778
        %v6952 = vpack.c.bf16 %v6787, %v6783
        %v6953 = vpack.c.bf16 %v6788, %v6784
        %v6954 = vpack.c.bf16 %v6789, %v6785
        %v6955 = vpack.c.bf16 %v6790, %v6786
        %v6956 = vpack.c.bf16 %v6795, %v6791
        %v6957 = vpack.c.bf16 %v6796, %v6792
        %v6958 = vpack.c.bf16 %v6797, %v6793
        %v6959 = vpack.c.bf16 %v6798, %v6794
        %v6960 = vpack.c.bf16 %v6803, %v6799
        %v6961 = vpack.c.bf16 %v6804, %v6800
        %v6962 = vpack.c.bf16 %v6805, %v6801
        %v6963 = vpack.c.bf16 %v6806, %v6802
        %v6964 = vpack.c.bf16 %v6811, %v6807
        %v6965 = vpack.c.bf16 %v6812, %v6808
        %v6966 = vpack.c.bf16 %v6813, %v6809
        %v6967 = vpack.c.bf16 %v6814, %v6810
        %v6968 = vpack.c.bf16 %v6819, %v6815
        %v6969 = vpack.c.bf16 %v6820, %v6816
        %v6970 = vpack.c.bf16 %v6821, %v6817
        %v6971 = vpack.c.bf16 %v6822, %v6818
        %v6972 = vpack.c.bf16 %v6827, %v6823
        %v6973 = vpack.c.bf16 %v6828, %v6824
        %v6974 = vpack.c.bf16 %v6829, %v6825
        %v6975 = vpack.c.bf16 %v6830, %v6826
        %v6976 = vpack.c.bf16 %v6835, %v6831
        %v6977 = vpack.c.bf16 %v6836, %v6832
        %v6978 = vpack.c.bf16 %v6837, %v6833
        %v6979 = vpack.c.bf16 %v6838, %v6834
        %v6980 = vpack.c.bf16 %v6843, %v6839
        %v6981 = vpack.c.bf16 %v6844, %v6840
        %v6982 = vpack.c.bf16 %v6845, %v6841
        %v6983 = vpack.c.bf16 %v6846, %v6842
        %v6984 = vpack.c.bf16 %v6851, %v6847
        %v6985 = vpack.c.bf16 %v6852, %v6848
        %v6986 = vpack.c.bf16 %v6853, %v6849
        %v6987 = vpack.c.bf16 %v6854, %v6850
        %v6988 = vpack.c.bf16 %v6859, %v6855
        %v6989 = vpack.c.bf16 %v6860, %v6856
        %v6990 = vpack.c.bf16 %v6861, %v6857
        %v6991 = vpack.c.bf16 %v6862, %v6858
        %v6993 = vlaneseq
        %v6994 = vshrl.u32 %v6993, 7
        %v6995 = vsub.s32 0, %v6994
        %v6996 = vrot.slane %v6927, %v6995
        %v7062 = vunpack.c.l.b16 %v6863
        %v7063 = vunpack.c.l.b16 %v6864
        %v7064 = vunpack.c.l.b16 %v6865
        %v7065 = vunpack.c.l.b16 %v6866
        %v7066 = vunpack.c.l.b16 %v6867
        %v7067 = vunpack.c.l.b16 %v6868
        %v7068 = vunpack.c.l.b16 %v6869
        %v7069 = vunpack.c.l.b16 %v6870
        %v7070 = vunpack.c.l.b16 %v6871
        %v7071 = vunpack.c.l.b16 %v6872
        %v7072 = vunpack.c.l.b16 %v6873
        %v7073 = vunpack.c.l.b16 %v6874
        %v7074 = vunpack.c.l.b16 %v6875
        %v7075 = vunpack.c.l.b16 %v6876
        %v7076 = vunpack.c.l.b16 %v6877
        %v7077 = vunpack.c.l.b16 %v6878
        %v7078 = vunpack.c.l.b16 %v6879
        %v7079 = vunpack.c.l.b16 %v6880
        %v7080 = vunpack.c.l.b16 %v6881
        %v7081 = vunpack.c.l.b16 %v6882
        %v7082 = vunpack.c.l.b16 %v6883
        %v7083 = vunpack.c.l.b16 %v6884
        %v7084 = vunpack.c.l.b16 %v6885
        %v7085 = vunpack.c.l.b16 %v6886
        %v7086 = vunpack.c.l.b16 %v6887
        %v7087 = vunpack.c.l.b16 %v6888
        %v7088 = vunpack.c.l.b16 %v6889
        %v7089 = vunpack.c.l.b16 %v6890
        %v7090 = vunpack.c.l.b16 %v6891
        %v7091 = vunpack.c.l.b16 %v6892
        %v7092 = vunpack.c.l.b16 %v6893
        %v7093 = vunpack.c.l.b16 %v6894
        %v7094 = vunpack.c.l.b16 %v6895
        %v7095 = vunpack.c.l.b16 %v6896
        %v7096 = vunpack.c.l.b16 %v6897
        %v7097 = vunpack.c.l.b16 %v6898
        %v7098 = vunpack.c.l.b16 %v6899
        %v7099 = vunpack.c.l.b16 %v6900
        %v7100 = vunpack.c.l.b16 %v6901
        %v7101 = vunpack.c.l.b16 %v6902
        %v7102 = vunpack.c.l.b16 %v6903
        %v7103 = vunpack.c.l.b16 %v6904
        %v7104 = vunpack.c.l.b16 %v6905
        %v7105 = vunpack.c.l.b16 %v6906
        %v7106 = vunpack.c.l.b16 %v6907
        %v7107 = vunpack.c.l.b16 %v6908
        %v7108 = vunpack.c.l.b16 %v6909
        %v7109 = vunpack.c.l.b16 %v6910
        %v7110 = vunpack.c.l.b16 %v6911
        %v7111 = vunpack.c.l.b16 %v6912
        %v7112 = vunpack.c.l.b16 %v6913
        %v7113 = vunpack.c.l.b16 %v6914
        %v7114 = vunpack.c.l.b16 %v6915
        %v7115 = vunpack.c.l.b16 %v6916
        %v7116 = vunpack.c.l.b16 %v6917
        %v7117 = vunpack.c.l.b16 %v6918
        %v7118 = vunpack.c.l.b16 %v6919
        %v7119 = vunpack.c.l.b16 %v6920
        %v7120 = vunpack.c.l.b16 %v6921
        %v7121 = vunpack.c.l.b16 %v6922
        %v7122 = vunpack.c.l.b16 %v6923
        %v7123 = vunpack.c.l.b16 %v6924
        %v7124 = vunpack.c.l.b16 %v6925
        %v7125 = vunpack.c.l.b16 %v6926
        %v7126 = vpack.c.b16 %v7063, %v7062
        %v7127 = vpack.c.b16 %v7065, %v7064
        %v7128 = vpack.c.b16 %v7067, %v7066
        %v7129 = vpack.c.b16 %v7069, %v7068
        %v7130 = vpack.c.b16 %v7071, %v7070
        %v7131 = vpack.c.b16 %v7073, %v7072
        %v7132 = vpack.c.b16 %v7075, %v7074
        %v7133 = vpack.c.b16 %v7077, %v7076
        %v7134 = vpack.c.b16 %v7079, %v7078
        %v7135 = vpack.c.b16 %v7081, %v7080
        %v7136 = vpack.c.b16 %v7083, %v7082
        %v7137 = vpack.c.b16 %v7085, %v7084
        %v7138 = vpack.c.b16 %v7087, %v7086
        %v7139 = vpack.c.b16 %v7089, %v7088
        %v7140 = vpack.c.b16 %v7091, %v7090
        %v7141 = vpack.c.b16 %v7093, %v7092
        %v7142 = vpack.c.b16 %v7095, %v7094
        %v7143 = vpack.c.b16 %v7097, %v7096
        %v7144 = vpack.c.b16 %v7099, %v7098
        %v7145 = vpack.c.b16 %v7101, %v7100
        %v7146 = vpack.c.b16 %v7103, %v7102
        %v7147 = vpack.c.b16 %v7105, %v7104
        %v7148 = vpack.c.b16 %v7107, %v7106
        %v7149 = vpack.c.b16 %v7109, %v7108
        %v7150 = vpack.c.b16 %v7111, %v7110
        %v7151 = vpack.c.b16 %v7113, %v7112
        %v7152 = vpack.c.b16 %v7115, %v7114
        %v7153 = vpack.c.b16 %v7117, %v7116
        %v7154 = vpack.c.b16 %v7119, %v7118
        %v7155 = vpack.c.b16 %v7121, %v7120
        %v7156 = vpack.c.b16 %v7123, %v7122
        %v7157 = vpack.c.b16 %v7125, %v7124
        %7190 = vmatprep.subr.bf16.mxu0 0
        %7191 = vmatpush1.bf16.msra.mxu0 %v7126
        %7192 = vmatprep.subr.bf16.mxu0 0
        %7193 = vmatpush1.bf16.msra.mxu0 %v7127
        %7194 = vmatprep.subr.bf16.mxu0 0
        %7195 = vmatpush1.bf16.msra.mxu0 %v7128
        %7196 = vmatprep.subr.bf16.mxu0 0
        %7197 = vmatpush1.bf16.msra.mxu0 %v7129
        %7198 = vmatprep.subr.bf16.mxu0 0
        %7199 = vmatpush1.bf16.msra.mxu0 %v7130
        %7200 = vmatprep.subr.bf16.mxu0 0
        %7201 = vmatpush1.bf16.msra.mxu0 %v7131
        %7202 = vmatprep.subr.bf16.mxu0 0
        %7203 = vmatpush1.bf16.msra.mxu0 %v7132
        %7204 = vmatprep.subr.bf16.mxu0 0
        %7205 = vmatpush1.bf16.msra.mxu0 %v7133
        %7206 = vmatprep.subr.bf16.mxu0 0
        %7207 = vmatpush1.bf16.msra.mxu0 %v7134
        %7208 = vmatprep.subr.bf16.mxu0 0
        %7209 = vmatpush1.bf16.msra.mxu0 %v7135
        %7210 = vmatprep.subr.bf16.mxu0 0
        %7211 = vmatpush1.bf16.msra.mxu0 %v7136
        %7212 = vmatprep.subr.bf16.mxu0 0
        %7213 = vmatpush1.bf16.msra.mxu0 %v7137
        %7214 = vmatprep.subr.bf16.mxu0 0
        %7215 = vmatpush1.bf16.msra.mxu0 %v7138
        %7216 = vmatprep.subr.bf16.mxu0 0
        %7217 = vmatpush1.bf16.msra.mxu0 %v7139
        %7218 = vmatprep.subr.bf16.mxu0 0
        %7219 = vmatpush1.bf16.msra.mxu0 %v7140
        %7220 = vmatprep.subr.bf16.mxu0 0
        %7221 = vmatpush1.bf16.msra.mxu0 %v7141
        %7222 = vmatprep.mubr.bf16.mxu0 %v6929
        %7223 = vmatmul.mubr.bf16.gmra.mrb[0].mxu0 %v6928
        %v7224 = vpop.f32.mrb[0].mxu0
        %v7225 = vadd.f32 %v6996, %v7224
        %v7226 = vpop.f32.mrb[0].mxu0
        %v7227 = vpop.f32.mrb[0].mxu0
        %v7228 = vadd.f32 %v6996, %v7227
        %v7229 = vpop.f32.mrb[0].mxu0
        %7230 = vmatprep.mubr.bf16.mxu0 %v6933
        %7231 = vmatmul.mubr.bf16.gmra.mrb[0].mxu0 %v6932
        %v7232 = vpop.f32.mrb[0].mxu0
        %v7233 = vadd.f32 %v6996, %v7232
        %v7234 = vpop.f32.mrb[0].mxu0
        %v7235 = vpop.f32.mrb[0].mxu0
        %v7236 = vadd.f32 %v6996, %v7235
        %v7237 = vpop.f32.mrb[0].mxu0
        %7238 = vmatprep.mubr.bf16.mxu0 %v6937
        %7239 = vmatmul.mubr.bf16.gmra.mrb[0].mxu0 %v6936
        %v7240 = vpop.f32.mrb[0].mxu0
        %v7241 = vadd.f32 %v6996, %v7240
        %v7242 = vpop.f32.mrb[0].mxu0
        %v7243 = vpop.f32.mrb[0].mxu0
        %v7244 = vadd.f32 %v6996, %v7243
        %v7245 = vpop.f32.mrb[0].mxu0
        %7246 = vmatprep.mubr.bf16.mxu0 %v6941
        %7247 = vmatmul.mubr.bf16.gmra.mrb[0].mxu0 %v6940
        %v7248 = vpop.f32.mrb[0].mxu0
        %v7249 = vadd.f32 %v6996, %v7248
        %v7250 = vpop.f32.mrb[0].mxu0
        %v7251 = vpop.f32.mrb[0].mxu0
        %v7252 = vadd.f32 %v6996, %v7251
        %v7253 = vpop.f32.mrb[0].mxu0
        %7254 = vmatprep.mubr.bf16.mxu0 %v6945
        %7255 = vmatmul.mubr.bf16.gmra.mrb[0].mxu0 %v6944
        %v7256 = vpop.f32.mrb[0].mxu0
        %v7257 = vadd.f32 %v6996, %v7256
        %v7258 = vpop.f32.mrb[0].mxu0
        %v7259 = vpop.f32.mrb[0].mxu0
        %v7260 = vadd.f32 %v6996, %v7259
        %v7261 = vpop.f32.mrb[0].mxu0
        %7262 = vmatprep.mubr.bf16.mxu0 %v6949
        %7263 = vmatmul.mubr.bf16.gmra.mrb[0].mxu0 %v6948
        %v7264 = vpop.f32.mrb[0].mxu0
        %v7265 = vadd.f32 %v6996, %v7264
        %v7266 = vpop.f32.mrb[0].mxu0
        %v7267 = vpop.f32.mrb[0].mxu0
        %v7268 = vadd.f32 %v6996, %v7267
        %v7269 = vpop.f32.mrb[0].mxu0
        %7270 = vmatprep.mubr.bf16.mxu0 %v6953
        %7271 = vmatmul.mubr.bf16.gmra.mrb[0].mxu0 %v6952
        %v7272 = vpop.f32.mrb[0].mxu0
        %v7273 = vadd.f32 %v6996, %v7272
        %v7274 = vpop.f32.mrb[0].mxu0
        %v7275 = vpop.f32.mrb[0].mxu0
        %v7276 = vadd.f32 %v6996, %v7275
        %v7277 = vpop.f32.mrb[0].mxu0
        %7278 = vmatprep.mubr.bf16.mxu0 %v6957
        %7279 = vmatmul.mubr.bf16.gmra.mrb[0].mxu0 %v6956
        %v7280 = vpop.f32.mrb[0].mxu0
        %v7281 = vadd.f32 %v6996, %v7280
        %v7282 = vpop.f32.mrb[0].mxu0
        %v7283 = vpop.f32.mrb[0].mxu0
        %v7284 = vadd.f32 %v6996, %v7283
        %v7285 = vpop.f32.mrb[0].mxu0
        %7286 = vmatprep.mubr.bf16.mxu0 %v6961
        %7287 = vmatmul.mubr.bf16.gmra.mrb[0].mxu0 %v6960
        %v7288 = vpop.f32.mrb[0].mxu0
        %v7289 = vadd.f32 %v6996, %v7288
        %v7290 = vpop.f32.mrb[0].mxu0
        %v7291 = vpop.f32.mrb[0].mxu0
        %v7292 = vadd.f32 %v6996, %v7291
        %v7293 = vpop.f32.mrb[0].mxu0
        %7294 = vmatprep.mubr.bf16.mxu0 %v6965
        %7295 = vmatmul.mubr.bf16.gmra.mrb[0].mxu0 %v6964
        %v7296 = vpop.f32.mrb[0].mxu0
        %v7297 = vadd.f32 %v6996, %v7296
        %v7298 = vpop.f32.mrb[0].mxu0
        %v7299 = vpop.f32.mrb[0].mxu0
        %v7300 = vadd.f32 %v6996, %v7299
        %v7301 = vpop.f32.mrb[0].mxu0
        %7302 = vmatprep.mubr.bf16.mxu0 %v6969
        %7303 = vmatmul.mubr.bf16.gmra.mrb[0].mxu0 %v6968
        %v7304 = vpop.f32.mrb[0].mxu0
        %v7305 = vadd.f32 %v6996, %v7304
        %v7306 = vpop.f32.mrb[0].mxu0
        %v7307 = vpop.f32.mrb[0].mxu0
        %v7308 = vadd.f32 %v6996, %v7307
        %v7309 = vpop.f32.mrb[0].mxu0
        %7310 = vmatprep.mubr.bf16.mxu0 %v6973
        %7311 = vmatmul.mubr.bf16.gmra.mrb[0].mxu0 %v6972
        %v7312 = vpop.f32.mrb[0].mxu0
        %v7313 = vadd.f32 %v6996, %v7312
        %v7314 = vpop.f32.mrb[0].mxu0
        %v7315 = vpop.f32.mrb[0].mxu0
        %v7316 = vadd.f32 %v6996, %v7315
        %v7317 = vpop.f32.mrb[0].mxu0
        %7318 = vmatprep.mubr.bf16.mxu0 %v6977
        %7319 = vmatmul.mubr.bf16.gmra.mrb[0].mxu0 %v6976
        %v7320 = vpop.f32.mrb[0].mxu0
        %v7321 = vadd.f32 %v6996, %v7320
        %v7322 = vpop.f32.mrb[0].mxu0
        %v7323 = vpop.f32.mrb[0].mxu0
        %v7324 = vadd.f32 %v6996, %v7323
        %v7325 = vpop.f32.mrb[0].mxu0
        %7326 = vmatprep.mubr.bf16.mxu0 %v6981
        %7327 = vmatmul.mubr.bf16.gmra.mrb[0].mxu0 %v6980
        %v7328 = vpop.f32.mrb[0].mxu0
        %v7329 = vadd.f32 %v6996, %v7328
        %v7330 = vpop.f32.mrb[0].mxu0
        %v7331 = vpop.f32.mrb[0].mxu0
        %v7332 = vadd.f32 %v6996, %v7331
        %v7333 = vpop.f32.mrb[0].mxu0
        %7334 = vmatprep.mubr.bf16.mxu0 %v6985
        %7335 = vmatmul.mubr.bf16.gmra.mrb[0].mxu0 %v6984
        %v7336 = vpop.f32.mrb[0].mxu0
        %v7337 = vadd.f32 %v6996, %v7336
        %v7338 = vpop.f32.mrb[0].mxu0
        %v7339 = vpop.f32.mrb[0].mxu0
        %v7340 = vadd.f32 %v6996, %v7339
        %v7341 = vpop.f32.mrb[0].mxu0
        %7342 = vmatprep.mubr.bf16.mxu0 %v6989
        %7343 = vmatmul.mubr.bf16.gmra.mrb[0].mxu0 %v6988
        %v7344 = vpop.f32.mrb[0].mxu0
        %v7345 = vadd.f32 %v6996, %v7344
        %v7346 = vpop.f32.mrb[0].mxu0
        %v7347 = vpop.f32.mrb[0].mxu0
        %v7348 = vadd.f32 %v6996, %v7347
        %v7349 = vpop.f32.mrb[0].mxu0
        %7350 = vdwg.mxu0
        %7351 = vmatprep.subr.bf16.mxu0 0
        %7352 = vmatpush1.bf16.msra.mxu0 %v7142
        %7353 = vmatprep.subr.bf16.mxu0 0
        %7354 = vmatpush1.bf16.msra.mxu0 %v7143
        %7355 = vmatprep.subr.bf16.mxu0 0
        %7356 = vmatpush1.bf16.msra.mxu0 %v7144
        %7357 = vmatprep.subr.bf16.mxu0 0
        %7358 = vmatpush1.bf16.msra.mxu0 %v7145
        %7359 = vmatprep.subr.bf16.mxu0 0
        %7360 = vmatpush1.bf16.msra.mxu0 %v7146
        %7361 = vmatprep.subr.bf16.mxu0 0
        %7362 = vmatpush1.bf16.msra.mxu0 %v7147
        %7363 = vmatprep.subr.bf16.mxu0 0
        %7364 = vmatpush1.bf16.msra.mxu0 %v7148
        %7365 = vmatprep.subr.bf16.mxu0 0
        %7366 = vmatpush1.bf16.msra.mxu0 %v7149
        %7367 = vmatprep.subr.bf16.mxu0 0
        %7368 = vmatpush1.bf16.msra.mxu0 %v7150
        %7369 = vmatprep.subr.bf16.mxu0 0
        %7370 = vmatpush1.bf16.msra.mxu0 %v7151
        %7371 = vmatprep.subr.bf16.mxu0 0
        %7372 = vmatpush1.bf16.msra.mxu0 %v7152
        %7373 = vmatprep.subr.bf16.mxu0 0
        %7374 = vmatpush1.bf16.msra.mxu0 %v7153
        %7375 = vmatprep.subr.bf16.mxu0 0
        %7376 = vmatpush1.bf16.msra.mxu0 %v7154
        %7377 = vmatprep.subr.bf16.mxu0 0
        %7378 = vmatpush1.bf16.msra.mxu0 %v7155
        %7379 = vmatprep.subr.bf16.mxu0 0
        %7380 = vmatpush1.bf16.msra.mxu0 %v7156
        %7381 = vmatprep.subr.bf16.mxu0 0
        %7382 = vmatpush1.bf16.msra.mxu0 %v7157
        %7383 = vmatprep.mubr.bf16.mxu0 %v6931
        %7384 = vmatmul.mubr.bf16.gmra.mrb[0].mxu0 %v6930
        %v7385 = vpop.f32.mrb[0].mxu0
        %v7386 = vadd.f32 %v7225, %v7385
        %v7387 = vpop.f32.mrb[0].mxu0
        %v7388 = vpop.f32.mrb[0].mxu0
        %v7389 = vadd.f32 %v7228, %v7388
        %v7390 = vpop.f32.mrb[0].mxu0
        %7391 = vmatprep.mubr.bf16.mxu0 %v6935
        %7392 = vmatmul.mubr.bf16.gmra.mrb[0].mxu0 %v6934
        %v7393 = vpop.f32.mrb[0].mxu0
        %v7394 = vadd.f32 %v7233, %v7393
        %v7395 = vpop.f32.mrb[0].mxu0
        %v7396 = vpop.f32.mrb[0].mxu0
        %v7397 = vadd.f32 %v7236, %v7396
        %v7398 = vpop.f32.mrb[0].mxu0
        %7399 = vmatprep.mubr.bf16.mxu0 %v6939
        %7400 = vmatmul.mubr.bf16.gmra.mrb[0].mxu0 %v6938
        %v7401 = vpop.f32.mrb[0].mxu0
        %v7402 = vadd.f32 %v7241, %v7401
        %v7403 = vpop.f32.mrb[0].mxu0
        %v7404 = vpop.f32.mrb[0].mxu0
        %v7405 = vadd.f32 %v7244, %v7404
        %v7406 = vpop.f32.mrb[0].mxu0
        %7407 = vmatprep.mubr.bf16.mxu0 %v6943
        %7408 = vmatmul.mubr.bf16.gmra.mrb[0].mxu0 %v6942
        %v7409 = vpop.f32.mrb[0].mxu0
        %v7410 = vadd.f32 %v7249, %v7409
        %v7411 = vpop.f32.mrb[0].mxu0
        %v7412 = vpop.f32.mrb[0].mxu0
        %v7413 = vadd.f32 %v7252, %v7412
        %v7414 = vpop.f32.mrb[0].mxu0
        %7415 = vmatprep.mubr.bf16.mxu0 %v6947
        %7416 = vmatmul.mubr.bf16.gmra.mrb[0].mxu0 %v6946
        %v7417 = vpop.f32.mrb[0].mxu0
        %v7418 = vadd.f32 %v7257, %v7417
        %v7419 = vpop.f32.mrb[0].mxu0
        %v7420 = vpop.f32.mrb[0].mxu0
        %v7421 = vadd.f32 %v7260, %v7420
        %v7422 = vpop.f32.mrb[0].mxu0
        %7423 = vmatprep.mubr.bf16.mxu0 %v6951
        %7424 = vmatmul.mubr.bf16.gmra.mrb[0].mxu0 %v6950
        %v7425 = vpop.f32.mrb[0].mxu0
        %v7426 = vadd.f32 %v7265, %v7425
        %v7427 = vpop.f32.mrb[0].mxu0
        %v7428 = vpop.f32.mrb[0].mxu0
        %v7429 = vadd.f32 %v7268, %v7428
        %v7430 = vpop.f32.mrb[0].mxu0
        %7431 = vmatprep.mubr.bf16.mxu0 %v6955
        %7432 = vmatmul.mubr.bf16.gmra.mrb[0].mxu0 %v6954
        %v7433 = vpop.f32.mrb[0].mxu0
        %v7434 = vadd.f32 %v7273, %v7433
        %v7435 = vpop.f32.mrb[0].mxu0
        %v7436 = vpop.f32.mrb[0].mxu0
        %v7437 = vadd.f32 %v7276, %v7436
        %v7438 = vpop.f32.mrb[0].mxu0
        %7439 = vmatprep.mubr.bf16.mxu0 %v6959
        %7440 = vmatmul.mubr.bf16.gmra.mrb[0].mxu0 %v6958
        %v7441 = vpop.f32.mrb[0].mxu0
        %v7442 = vadd.f32 %v7281, %v7441
        %v7443 = vpop.f32.mrb[0].mxu0
        %v7444 = vpop.f32.mrb[0].mxu0
        %v7445 = vadd.f32 %v7284, %v7444
        %v7446 = vpop.f32.mrb[0].mxu0
        %7447 = vmatprep.mubr.bf16.mxu0 %v6963
        %7448 = vmatmul.mubr.bf16.gmra.mrb[0].mxu0 %v6962
        %v7449 = vpop.f32.mrb[0].mxu0
        %v7450 = vadd.f32 %v7289, %v7449
        %v7451 = vpop.f32.mrb[0].mxu0
        %v7452 = vpop.f32.mrb[0].mxu0
        %v7453 = vadd.f32 %v7292, %v7452
        %v7454 = vpop.f32.mrb[0].mxu0
        %7455 = vmatprep.mubr.bf16.mxu0 %v6967
        %7456 = vmatmul.mubr.bf16.gmra.mrb[0].mxu0 %v6966
        %v7457 = vpop.f32.mrb[0].mxu0
        %v7458 = vadd.f32 %v7297, %v7457
        %v7459 = vpop.f32.mrb[0].mxu0
        %v7460 = vpop.f32.mrb[0].mxu0
        %v7461 = vadd.f32 %v7300, %v7460
        %v7462 = vpop.f32.mrb[0].mxu0
        %7463 = vmatprep.mubr.bf16.mxu0 %v6971
        %7464 = vmatmul.mubr.bf16.gmra.mrb[0].mxu0 %v6970
        %v7465 = vpop.f32.mrb[0].mxu0
        %v7466 = vadd.f32 %v7305, %v7465
        %v7467 = vpop.f32.mrb[0].mxu0
        %v7468 = vpop.f32.mrb[0].mxu0
        %v7469 = vadd.f32 %v7308, %v7468
        %v7470 = vpop.f32.mrb[0].mxu0
        %7471 = vmatprep.mubr.bf16.mxu0 %v6975
        %7472 = vmatmul.mubr.bf16.gmra.mrb[0].mxu0 %v6974
        %v7473 = vpop.f32.mrb[0].mxu0
        %v7474 = vadd.f32 %v7313, %v7473
        %v7475 = vpop.f32.mrb[0].mxu0
        %v7476 = vpop.f32.mrb[0].mxu0
        %v7477 = vadd.f32 %v7316, %v7476
        %v7478 = vpop.f32.mrb[0].mxu0
        %7479 = vmatprep.mubr.bf16.mxu0 %v6979
        %7480 = vmatmul.mubr.bf16.gmra.mrb[0].mxu0 %v6978
        %v7481 = vpop.f32.mrb[0].mxu0
        %v7482 = vadd.f32 %v7321, %v7481
        %v7483 = vpop.f32.mrb[0].mxu0
        %v7484 = vpop.f32.mrb[0].mxu0
        %v7485 = vadd.f32 %v7324, %v7484
        %v7486 = vpop.f32.mrb[0].mxu0
        %7487 = vmatprep.mubr.bf16.mxu0 %v6983
        %7488 = vmatmul.mubr.bf16.gmra.mrb[0].mxu0 %v6982
        %v7489 = vpop.f32.mrb[0].mxu0
        %v7490 = vadd.f32 %v7329, %v7489
        %v7491 = vpop.f32.mrb[0].mxu0
        %v7492 = vpop.f32.mrb[0].mxu0
        %v7493 = vadd.f32 %v7332, %v7492
        %v7494 = vpop.f32.mrb[0].mxu0
        %7495 = vmatprep.mubr.bf16.mxu0 %v6987
        %7496 = vmatmul.mubr.bf16.gmra.mrb[0].mxu0 %v6986
        %v7497 = vpop.f32.mrb[0].mxu0
        %v7498 = vadd.f32 %v7337, %v7497
        %v7499 = vpop.f32.mrb[0].mxu0
        %v7500 = vpop.f32.mrb[0].mxu0
        %v7501 = vadd.f32 %v7340, %v7500
        %v7502 = vpop.f32.mrb[0].mxu0
        %7503 = vmatprep.mubr.bf16.mxu0 %v6991
        %7504 = vmatmul.mubr.bf16.gmra.mrb[0].mxu0 %v6990
        %v7505 = vpop.f32.mrb[0].mxu0
        %v7506 = vadd.f32 %v7345, %v7505
        %v7507 = vpop.f32.mrb[0].mxu0
        %v7508 = vpop.f32.mrb[0].mxu0
        %v7509 = vadd.f32 %v7348, %v7508
        %v7510 = vpop.f32.mrb[0].mxu0
        %7511 = vdwg.mxu0
        %v7512 = vadd.f32 %v4633, %v7386
        %v7513 = vadd.f32 %v4634, %v7389
        %v7514 = vadd.f32 %v4635, %v7394
        %v7515 = vadd.f32 %v4636, %v7397
        %v7516 = vadd.f32 %v4637, %v7402
        %v7517 = vadd.f32 %v4638, %v7405
        %v7518 = vadd.f32 %v4639, %v7410
        %v7519 = vadd.f32 %v4640, %v7413
        %v7520 = vadd.f32 %v4641, %v7418
        %v7521 = vadd.f32 %v4642, %v7421
        %v7522 = vadd.f32 %v4643, %v7426
        %v7523 = vadd.f32 %v4644, %v7429
        %v7524 = vadd.f32 %v4645, %v7434
        %v7525 = vadd.f32 %v4646, %v7437
        %v7526 = vadd.f32 %v4647, %v7442
        %v7527 = vadd.f32 %v4648, %v7445
        %v7528 = vadd.f32 %v4649, %v7450
        %v7529 = vadd.f32 %v4650, %v7453
        %v7530 = vadd.f32 %v4651, %v7458
        %v7531 = vadd.f32 %v4652, %v7461
        %v7532 = vadd.f32 %v4653, %v7466
        %v7533 = vadd.f32 %v4654, %v7469
        %v7534 = vadd.f32 %v4655, %v7474
        %v7535 = vadd.f32 %v4656, %v7477
        %v7536 = vadd.f32 %v4657, %v7482
        %v7537 = vadd.f32 %v4658, %v7485
        %v7538 = vadd.f32 %v4659, %v7490
        %v7539 = vadd.f32 %v4660, %v7493
        %v7540 = vadd.f32 %v4661, %v7498
        %v7541 = vadd.f32 %v4662, %v7501
        %v7542 = vadd.f32 %v4663, %v7506
        %v7543 = vadd.f32 %v4664, %v7509
        %7544 = vst [vmem:[#allocation2] sm:$0xff] %v7512
        %7545 = vst [vmem:[#allocation2 + $0x8] sm:$0xff] %v7513
        %7546 = vst [vmem:[#allocation2 + $0x10] sm:$0xff] %v7514
        %7547 = vst [vmem:[#allocation2 + $0x18] sm:$0xff] %v7515
        %7548 = vst [vmem:[#allocation2 + $0x20] sm:$0xff] %v7516
        %7549 = vst [vmem:[#allocation2 + $0x28] sm:$0xff] %v7517
        %7550 = vst [vmem:[#allocation2 + $0x30] sm:$0xff] %v7518
        %7551 = vst [vmem:[#allocation2 + $0x38] sm:$0xff] %v7519
        %7552 = vst [vmem:[#allocation2 + $0x40] sm:$0xff] %v7520
        %7553 = vst [vmem:[#allocation2 + $0x48] sm:$0xff] %v7521
        %7554 = vst [vmem:[#allocation2 + $0x50] sm:$0xff] %v7522
        %7555 = vst [vmem:[#allocation2 + $0x58] sm:$0xff] %v7523
        %7556 = vst [vmem:[#allocation2 + $0x60] sm:$0xff] %v7524
        %7557 = vst [vmem:[#allocation2 + $0x68] sm:$0xff] %v7525
        %7558 = vst [vmem:[#allocation2 + $0x70] sm:$0xff] %v7526
        %7559 = vst [vmem:[#allocation2 + $0x78] sm:$0xff] %v7527
        %7560 = vst [vmem:[#allocation2 + $0x80] sm:$0xff] %v7528
        %7561 = vst [vmem:[#allocation2 + $0x88] sm:$0xff] %v7529
        %7562 = vst [vmem:[#allocation2 + $0x90] sm:$0xff] %v7530
        %7563 = vst [vmem:[#allocation2 + $0x98] sm:$0xff] %v7531
        %7564 = vst [vmem:[#allocation2 + $0xa0] sm:$0xff] %v7532
        %7565 = vst [vmem:[#allocation2 + $0xa8] sm:$0xff] %v7533
        %7566 = vst [vmem:[#allocation2 + $0xb0] sm:$0xff] %v7534
        %7567 = vst [vmem:[#allocation2 + $0xb8] sm:$0xff] %v7535
        %7568 = vst [vmem:[#allocation2 + $0xc0] sm:$0xff] %v7536
        %7569 = vst [vmem:[#allocation2 + $0xc8] sm:$0xff] %v7537
        %7570 = vst [vmem:[#allocation2 + $0xd0] sm:$0xff] %v7538
        %7571 = vst [vmem:[#allocation2 + $0xd8] sm:$0xff] %v7539
        %7572 = vst [vmem:[#allocation2 + $0xe0] sm:$0xff] %v7540
        %7573 = vst [vmem:[#allocation2 + $0xe8] sm:$0xff] %v7541
        %7574 = vst [vmem:[#allocation2 + $0xf0] sm:$0xff] %v7542
        %7575 = vst [vmem:[#allocation2 + $0xf8] sm:$0xff] %v7543
        %p7576 = scmp.eq.s32.totalorder %s102, 1
        // Predicated region
        $region217: #{tpu_custom_call.1} parent=143 // pred_check
          %p7577 = pneg %p7576
        $region218: #{tpu_custom_call.1} parent=143 // pred_check_branch
          %7579 = sbr.rel (%p7577) target = $region220
        $region219: #{tpu_custom_call.1} parent=143 // pred_region
          %v7580 = vld [vmem:[%s39] sm:$0x1]
          %v7581 = vld [vmem:[%s41] sm:$0x1]
          %v7590 = vrot.slane %v7516, 7
          %vm7591 = vcmask 1041409
          %v7592 = vsel %vm7591, %v7590, %v7512
          %v7593 = vrot.slane %v7520, 6
          %vm7594 = vcmask 1042434
          %v7595 = vsel %vm7594, %v7593, %v7592
          %v7596 = vrot.slane %v7524, 5
          %vm7597 = vcmask 1043459
          %v7598 = vsel %vm7597, %v7596, %v7595
          %v7599 = vrot.slane %v7528, 4
          %vm7600 = vcmask 1044484
          %v7601 = vsel %vm7600, %v7599, %v7598
          %v7602 = vrot.slane %v7532, 3
          %vm7603 = vcmask 1045509
          %v7604 = vsel %vm7603, %v7602, %v7601
          %v7605 = vrot.slane %v7536, 2
          %vm7606 = vcmask 1046534
          %v7607 = vsel %vm7606, %v7605, %v7604
          %v7608 = vrot.slane %v7540, 1
          %vm7609 = vcmask 1047559
          %v7610 = vsel %vm7609, %v7608, %v7607
          %7612 = vadd.xlane.f32.xlu0 %v7610
          %v7613 = vpop.xlane.xlu0 %7612
          %v7614 = vmul.f32 %v7613, %v2153
          %v7616 = vrot.slane %v7614, 1
          %v7617 = vrot.slane %v7614, 2
          %v7618 = vrot.slane %v7614, 3
          %v7619 = vrot.slane %v7614, 4
          %v7620 = vrot.slane %v7614, 5
          %v7621 = vrot.slane %v7614, 6
          %v7622 = vrot.slane %v7614, 7
          %v7631 = vsub.f32 %v7512, %v7614
          %v7632 = vsub.f32 %v7516, %v7616
          %v7633 = vsub.f32 %v7520, %v7617
          %v7634 = vsub.f32 %v7524, %v7618
          %v7635 = vsub.f32 %v7528, %v7619
          %v7636 = vsub.f32 %v7532, %v7620
          %v7637 = vsub.f32 %v7536, %v7621
          %v7638 = vsub.f32 %v7540, %v7622
          %v7639 = vmul.f32 %v7631, %v7631
          %v7640 = vmul.f32 %v7632, %v7632
          %v7641 = vmul.f32 %v7633, %v7633
          %v7642 = vmul.f32 %v7634, %v7634
          %v7643 = vmul.f32 %v7635, %v7635
          %v7644 = vmul.f32 %v7636, %v7636
          %v7645 = vmul.f32 %v7637, %v7637
          %v7646 = vmul.f32 %v7638, %v7638
          %v7655 = vrot.slane %v7640, 7
          %v7656 = vsel %vm7591, %v7655, %v7639
          %v7657 = vrot.slane %v7641, 6
          %v7658 = vsel %vm7594, %v7657, %v7656
          %v7659 = vrot.slane %v7642, 5
          %v7660 = vsel %vm7597, %v7659, %v7658
          %v7661 = vrot.slane %v7643, 4
          %v7662 = vsel %vm7600, %v7661, %v7660
          %v7663 = vrot.slane %v7644, 3
          %v7664 = vsel %vm7603, %v7663, %v7662
          %v7665 = vrot.slane %v7645, 2
          %v7666 = vsel %vm7606, %v7665, %v7664
          %v7667 = vrot.slane %v7646, 1
          %v7668 = vsel %vm7609, %v7667, %v7666
          %7670 = vadd.xlane.f32.xlu0 %v7668
          %v7671 = vpop.xlane.xlu0 %7670
          %v7672 = vmul.f32 %v7671, %v2153
          %v7673 = vadd.f32 %v7672, 1e-12
          %v7674 = vrsqrt.pop %v7673
          %v7676 = vrot.slane %v7674, 1
          %v7677 = vrot.slane %v7674, 2
          %v7678 = vrot.slane %v7674, 3
          %v7679 = vrot.slane %v7674, 4
          %v7680 = vrot.slane %v7674, 5
          %v7681 = vrot.slane %v7674, 6
          %v7682 = vrot.slane %v7674, 7
          %v7691 = vmul.f32 %v7631, %v7674
          %v7692 = vmul.f32 %v7632, %v7676
          %v7693 = vmul.f32 %v7633, %v7677
          %v7694 = vmul.f32 %v7634, %v7678
          %v7695 = vmul.f32 %v7635, %v7679
          %v7696 = vmul.f32 %v7636, %v7680
          %v7697 = vmul.f32 %v7637, %v7681
          %v7698 = vmul.f32 %v7638, %v7682
          %v7700 = vlaneseq
          %v7701 = vshrl.u32 %v7700, 7
          %v7702 = vsub.s32 0, %v7701
          %v7703 = vrot.slane %v7580, %v7702
          %v7705 = vmul.f32 %v7691, %v7703
          %v7706 = vmul.f32 %v7692, %v7703
          %v7707 = vmul.f32 %v7693, %v7703
          %v7708 = vmul.f32 %v7694, %v7703
          %v7709 = vmul.f32 %v7695, %v7703
          %v7710 = vmul.f32 %v7696, %v7703
          %v7711 = vmul.f32 %v7697, %v7703
          %v7712 = vmul.f32 %v7698, %v7703
          %v7714 = vlaneseq
          %v7715 = vshrl.u32 %v7714, 7
          %v7716 = vsub.s32 0, %v7715
          %v7717 = vrot.slane %v7581, %v7716
          %v7719 = vadd.f32 %v7705, %v7717
          %v7720 = vadd.f32 %v7706, %v7717
          %v7721 = vadd.f32 %v7707, %v7717
          %v7722 = vadd.f32 %v7708, %v7717
          %v7723 = vadd.f32 %v7709, %v7717
          %v7724 = vadd.f32 %v7710, %v7717
          %v7725 = vadd.f32 %v7711, %v7717
          %v7726 = vadd.f32 %v7712, %v7717
          %v7727 = vld [vmem:[#allocation27] sm:$0xff]
          %v7728 = vld [vmem:[#allocation27 + $0x8] sm:$0xff]
          %v7729 = vld [vmem:[#allocation27 + $0x10] sm:$0xff]
          %v7730 = vld [vmem:[#allocation27 + $0x18] sm:$0xff]
          %v7731 = vld [vmem:[#allocation27 + $0x20] sm:$0xff]
          %v7732 = vld [vmem:[#allocation27 + $0x28] sm:$0xff]
          %v7733 = vld [vmem:[#allocation27 + $0x30] sm:$0xff]
          %v7734 = vld [vmem:[#allocation27 + $0x38] sm:$0xff]
          %v7735 = vld [vmem:[#allocation27 + $0x40] sm:$0xff]
          %v7736 = vld [vmem:[#allocation27 + $0x48] sm:$0xff]
          %v7737 = vld [vmem:[#allocation27 + $0x50] sm:$0xff]
          %v7738 = vld [vmem:[#allocation27 + $0x58] sm:$0xff]
          %v7739 = vld [vmem:[#allocation27 + $0x60] sm:$0xff]
          %v7740 = vld [vmem:[#allocation27 + $0x68] sm:$0xff]
          %v7741 = vld [vmem:[#allocation27 + $0x70] sm:$0xff]
          %v7742 = vld [vmem:[#allocation27 + $0x78] sm:$0xff]
          %v7743 = vld [vmem:[#allocation27 + $0x80] sm:$0xff]
          %v7744 = vld [vmem:[#allocation27 + $0x88] sm:$0xff]
          %v7745 = vld [vmem:[#allocation27 + $0x90] sm:$0xff]
          %v7746 = vld [vmem:[#allocation27 + $0x98] sm:$0xff]
          %v7747 = vld [vmem:[#allocation27 + $0xa0] sm:$0xff]
          %v7748 = vld [vmem:[#allocation27 + $0xa8] sm:$0xff]
          %v7749 = vld [vmem:[#allocation27 + $0xb0] sm:$0xff]
          %v7750 = vld [vmem:[#allocation27 + $0xb8] sm:$0xff]
          %v7751 = vld [vmem:[#allocation27 + $0xc0] sm:$0xff]
          %v7752 = vld [vmem:[#allocation27 + $0xc8] sm:$0xff]
          %v7753 = vld [vmem:[#allocation27 + $0xd0] sm:$0xff]
          %v7754 = vld [vmem:[#allocation27 + $0xd8] sm:$0xff]
          %v7755 = vld [vmem:[#allocation27 + $0xe0] sm:$0xff]
          %v7756 = vld [vmem:[#allocation27 + $0xe8] sm:$0xff]
          %v7757 = vld [vmem:[#allocation27 + $0xf0] sm:$0xff]
          %v7758 = vld [vmem:[#allocation27 + $0xf8] sm:$0xff]
          %v7759 = vld [vmem:[#allocation27 + $0x100] sm:$0xff]
          %v7760 = vld [vmem:[#allocation27 + $0x108] sm:$0xff]
          %v7761 = vld [vmem:[#allocation27 + $0x110] sm:$0xff]
          %v7762 = vld [vmem:[#allocation27 + $0x118] sm:$0xff]
          %v7763 = vld [vmem:[#allocation27 + $0x120] sm:$0xff]
          %v7764 = vld [vmem:[#allocation27 + $0x128] sm:$0xff]
          %v7765 = vld [vmem:[#allocation27 + $0x130] sm:$0xff]
          %v7766 = vld [vmem:[#allocation27 + $0x138] sm:$0xff]
          %v7767 = vld [vmem:[#allocation27 + $0x140] sm:$0xff]
          %v7768 = vld [vmem:[#allocation27 + $0x148] sm:$0xff]
          %v7769 = vld [vmem:[#allocation27 + $0x150] sm:$0xff]
          %v7770 = vld [vmem:[#allocation27 + $0x158] sm:$0xff]
          %v7771 = vld [vmem:[#allocation27 + $0x160] sm:$0xff]
          %v7772 = vld [vmem:[#allocation27 + $0x168] sm:$0xff]
          %v7773 = vld [vmem:[#allocation27 + $0x170] sm:$0xff]
          %v7774 = vld [vmem:[#allocation27 + $0x178] sm:$0xff]
          %v7775 = vld [vmem:[%s45] sm:$0x3f]
          %v7776 = vpack.c.bf16 %v7719, %v7719
          %v7777 = vpack.c.bf16 %v7720, %v7720
          %v7778 = vpack.c.bf16 %v7721, %v7721
          %v7779 = vpack.c.bf16 %v7722, %v7722
          %v7780 = vpack.c.bf16 %v7723, %v7723
          %v7781 = vpack.c.bf16 %v7724, %v7724
          %v7782 = vpack.c.bf16 %v7725, %v7725
          %v7783 = vpack.c.bf16 %v7726, %v7726
          %v7785 = vlaneseq
          %v7786 = vshrl.u32 %v7785, 7
          %v7787 = vsub.s32 0, %v7786
          %v7788 = vrot.slane %v7775, %v7787
          %v7789 = vlaneseq
          %v7790 = vshrl.u32 %v7789, 7
          %v7791 = vsub.s32 1, %v7790
          %v7792 = vrot.slane %v7775, %v7791
          %v7793 = vlaneseq
          %v7794 = vshrl.u32 %v7793, 7
          %v7795 = vsub.s32 2, %v7794
          %v7796 = vrot.slane %v7775, %v7795
          %v7797 = vlaneseq
          %v7798 = vshrl.u32 %v7797, 7
          %v7799 = vsub.s32 3, %v7798
          %v7800 = vrot.slane %v7775, %v7799
          %v7801 = vlaneseq
          %v7802 = vshrl.u32 %v7801, 7
          %v7803 = vsub.s32 4, %v7802
          %v7804 = vrot.slane %v7775, %v7803
          %v7805 = vlaneseq
          %v7806 = vshrl.u32 %v7805, 7
          %v7807 = vsub.s32 5, %v7806
          %v7808 = vrot.slane %v7775, %v7807
          %v7823 = vunpack.c.l.b16 %v7776
          %v7824 = vunpack.c.l.b16 %v7777
          %v7825 = vunpack.c.l.b16 %v7778
          %v7826 = vunpack.c.l.b16 %v7779
          %v7827 = vunpack.c.l.b16 %v7780
          %v7828 = vunpack.c.l.b16 %v7781
          %v7829 = vunpack.c.l.b16 %v7782
          %v7830 = vunpack.c.l.b16 %v7783
          %v7831 = vrot.slane %v7824, 7
          %v7832 = vsel %vm7591, %v7831, %v7823
          %v7833 = vrot.slane %v7825, 6
          %v7834 = vsel %vm7594, %v7833, %v7832
          %v7835 = vrot.slane %v7826, 5
          %v7836 = vsel %vm7597, %v7835, %v7834
          %v7837 = vrot.slane %v7827, 4
          %v7838 = vsel %vm7600, %v7837, %v7836
          %v7839 = vrot.slane %v7828, 3
          %v7840 = vsel %vm7603, %v7839, %v7838
          %v7841 = vrot.slane %v7829, 2
          %v7842 = vsel %vm7606, %v7841, %v7840
          %v7843 = vrot.slane %v7830, 1
          %v7844 = vsel %vm7609, %v7843, %v7842
          %v7845 = vpack.c.b16 %v7844, %v7844
          %v7895 = vunpack.c.l.b16 %v7727
          %v7896 = vunpack.c.h.b16 %v7727
          %v7897 = vunpack.c.l.b16 %v7728
          %v7898 = vunpack.c.h.b16 %v7728
          %v7899 = vunpack.c.l.b16 %v7729
          %v7900 = vunpack.c.h.b16 %v7729
          %v7901 = vunpack.c.l.b16 %v7730
          %v7902 = vunpack.c.h.b16 %v7730
          %v7903 = vunpack.c.l.b16 %v7731
          %v7904 = vunpack.c.h.b16 %v7731
          %v7905 = vunpack.c.l.b16 %v7732
          %v7906 = vunpack.c.h.b16 %v7732
          %v7907 = vunpack.c.l.b16 %v7733
          %v7908 = vunpack.c.h.b16 %v7733
          %v7909 = vunpack.c.l.b16 %v7734
          %v7910 = vunpack.c.h.b16 %v7734
          %v7911 = vunpack.c.l.b16 %v7735
          %v7912 = vunpack.c.h.b16 %v7735
          %v7913 = vunpack.c.l.b16 %v7736
          %v7914 = vunpack.c.h.b16 %v7736
          %v7915 = vunpack.c.l.b16 %v7737
          %v7916 = vunpack.c.h.b16 %v7737
          %v7917 = vunpack.c.l.b16 %v7738
          %v7918 = vunpack.c.h.b16 %v7738
          %v7919 = vunpack.c.l.b16 %v7739
          %v7920 = vunpack.c.h.b16 %v7739
          %v7921 = vunpack.c.l.b16 %v7740
          %v7922 = vunpack.c.h.b16 %v7740
          %v7923 = vunpack.c.l.b16 %v7741
          %v7924 = vunpack.c.h.b16 %v7741
          %v7925 = vunpack.c.l.b16 %v7742
          %v7926 = vunpack.c.h.b16 %v7742
          %v7927 = vunpack.c.l.b16 %v7743
          %v7928 = vunpack.c.h.b16 %v7743
          %v7929 = vunpack.c.l.b16 %v7744
          %v7930 = vunpack.c.h.b16 %v7744
          %v7931 = vunpack.c.l.b16 %v7745
          %v7932 = vunpack.c.h.b16 %v7745
          %v7933 = vunpack.c.l.b16 %v7746
          %v7934 = vunpack.c.h.b16 %v7746
          %v7935 = vunpack.c.l.b16 %v7747
          %v7936 = vunpack.c.h.b16 %v7747
          %v7937 = vunpack.c.l.b16 %v7748
          %v7938 = vunpack.c.h.b16 %v7748
          %v7939 = vunpack.c.l.b16 %v7749
          %v7940 = vunpack.c.h.b16 %v7749
          %v7941 = vunpack.c.l.b16 %v7750
          %v7942 = vunpack.c.h.b16 %v7750
          %v7943 = vunpack.c.l.b16 %v7751
          %v7944 = vunpack.c.h.b16 %v7751
          %v7945 = vunpack.c.l.b16 %v7752
          %v7946 = vunpack.c.h.b16 %v7752
          %v7947 = vunpack.c.l.b16 %v7753
          %v7948 = vunpack.c.h.b16 %v7753
          %v7949 = vunpack.c.l.b16 %v7754
          %v7950 = vunpack.c.h.b16 %v7754
          %v7951 = vunpack.c.l.b16 %v7755
          %v7952 = vunpack.c.h.b16 %v7755
          %v7953 = vunpack.c.l.b16 %v7756
          %v7954 = vunpack.c.h.b16 %v7756
          %v7955 = vunpack.c.l.b16 %v7757
          %v7956 = vunpack.c.h.b16 %v7757
          %v7957 = vunpack.c.l.b16 %v7758
          %v7958 = vunpack.c.h.b16 %v7758
          %v7959 = vunpack.c.l.b16 %v7759
          %v7960 = vunpack.c.h.b16 %v7759
          %v7961 = vunpack.c.l.b16 %v7760
          %v7962 = vunpack.c.h.b16 %v7760
          %v7963 = vunpack.c.l.b16 %v7761
          %v7964 = vunpack.c.h.b16 %v7761
          %v7965 = vunpack.c.l.b16 %v7762
          %v7966 = vunpack.c.h.b16 %v7762
          %v7967 = vunpack.c.l.b16 %v7763
          %v7968 = vunpack.c.h.b16 %v7763
          %v7969 = vunpack.c.l.b16 %v7764
          %v7970 = vunpack.c.h.b16 %v7764
          %v7971 = vunpack.c.l.b16 %v7765
          %v7972 = vunpack.c.h.b16 %v7765
          %v7973 = vunpack.c.l.b16 %v7766
          %v7974 = vunpack.c.h.b16 %v7766
          %v7975 = vunpack.c.l.b16 %v7767
          %v7976 = vunpack.c.h.b16 %v7767
          %v7977 = vunpack.c.l.b16 %v7768
          %v7978 = vunpack.c.h.b16 %v7768
          %v7979 = vunpack.c.l.b16 %v7769
          %v7980 = vunpack.c.h.b16 %v7769
          %v7981 = vunpack.c.l.b16 %v7770
          %v7982 = vunpack.c.h.b16 %v7770
          %v7983 = vunpack.c.l.b16 %v7771
          %v7984 = vunpack.c.h.b16 %v7771
          %v7985 = vunpack.c.l.b16 %v7772
          %v7986 = vunpack.c.h.b16 %v7772
          %v7987 = vunpack.c.l.b16 %v7773
          %v7988 = vunpack.c.h.b16 %v7773
          %v7989 = vunpack.c.l.b16 %v7774
          %v7990 = vunpack.c.h.b16 %v7774
          %v7991 = vpack.c.b16 %v7901, %v7895
          %v7992 = vpack.c.b16 %v7902, %v7896
          %v7993 = vpack.c.b16 %v7903, %v7897
          %v7994 = vpack.c.b16 %v7904, %v7898
          %v7995 = vpack.c.b16 %v7905, %v7899
          %v7996 = vpack.c.b16 %v7906, %v7900
          %v7997 = vpack.c.b16 %v7913, %v7907
          %v7998 = vpack.c.b16 %v7914, %v7908
          %v7999 = vpack.c.b16 %v7915, %v7909
          %v8000 = vpack.c.b16 %v7916, %v7910
          %v8001 = vpack.c.b16 %v7917, %v7911
          %v8002 = vpack.c.b16 %v7918, %v7912
          %v8003 = vpack.c.b16 %v7925, %v7919
          %v8004 = vpack.c.b16 %v7926, %v7920
          %v8005 = vpack.c.b16 %v7927, %v7921
          %v8006 = vpack.c.b16 %v7928, %v7922
          %v8007 = vpack.c.b16 %v7929, %v7923
          %v8008 = vpack.c.b16 %v7930, %v7924
          %v8009 = vpack.c.b16 %v7937, %v7931
          %v8010 = vpack.c.b16 %v7938, %v7932
          %v8011 = vpack.c.b16 %v7939, %v7933
          %v8012 = vpack.c.b16 %v7940, %v7934
          %v8013 = vpack.c.b16 %v7941, %v7935
          %v8014 = vpack.c.b16 %v7942, %v7936
          %v8015 = vpack.c.b16 %v7949, %v7943
          %v8016 = vpack.c.b16 %v7950, %v7944
          %v8017 = vpack.c.b16 %v7951, %v7945
          %v8018 = vpack.c.b16 %v7952, %v7946
          %v8019 = vpack.c.b16 %v7953, %v7947
          %v8020 = vpack.c.b16 %v7954, %v7948
          %v8021 = vpack.c.b16 %v7961, %v7955
          %v8022 = vpack.c.b16 %v7962, %v7956
          %v8023 = vpack.c.b16 %v7963, %v7957
          %v8024 = vpack.c.b16 %v7964, %v7958
          %v8025 = vpack.c.b16 %v7965, %v7959
          %v8026 = vpack.c.b16 %v7966, %v7960
          %v8027 = vpack.c.b16 %v7973, %v7967
          %v8028 = vpack.c.b16 %v7974, %v7968
          %v8029 = vpack.c.b16 %v7975, %v7969
          %v8030 = vpack.c.b16 %v7976, %v7970
          %v8031 = vpack.c.b16 %v7977, %v7971
          %v8032 = vpack.c.b16 %v7978, %v7972
          %v8033 = vpack.c.b16 %v7985, %v7979
          %v8034 = vpack.c.b16 %v7986, %v7980
          %v8035 = vpack.c.b16 %v7987, %v7981
          %v8036 = vpack.c.b16 %v7988, %v7982
          %v8037 = vpack.c.b16 %v7989, %v7983
          %v8038 = vpack.c.b16 %v7990, %v7984
          %8087 = vmatprep.subr.bf16.mxu0 %v7992
          %8088 = vmatpush1.bf16.msra.mxu0 %v7991
          %8089 = vmatprep.subr.bf16.mxu0 %v7998
          %8090 = vmatpush1.bf16.msra.mxu0 %v7997
          %8091 = vmatprep.subr.bf16.mxu0 %v8004
          %8092 = vmatpush1.bf16.msra.mxu0 %v8003
          %8093 = vmatprep.subr.bf16.mxu0 %v8010
          %8094 = vmatpush1.bf16.msra.mxu0 %v8009
          %8095 = vmatprep.subr.bf16.mxu0 %v8016
          %8096 = vmatpush1.bf16.msra.mxu0 %v8015
          %8097 = vmatprep.subr.bf16.mxu0 %v8022
          %8098 = vmatpush1.bf16.msra.mxu0 %v8021
          %8099 = vmatprep.subr.bf16.mxu0 %v8028
          %8100 = vmatpush1.bf16.msra.mxu0 %v8027
          %8101 = vmatprep.subr.bf16.mxu0 %v8034
          %8102 = vmatpush1.bf16.msra.mxu0 %v8033
          %8103 = vmatprep.subr.bf16.mxu0 0
          %8104 = vmatpush1.bf16.msra.mxu0 0
          %8105 = vmatprep.subr.bf16.mxu0 0
          %8106 = vmatpush1.bf16.msra.mxu0 0
          %8107 = vmatprep.subr.bf16.mxu0 0
          %8108 = vmatpush1.bf16.msra.mxu0 0
          %8109 = vmatprep.subr.bf16.mxu0 0
          %8110 = vmatpush1.bf16.msra.mxu0 0
          %8111 = vmatprep.subr.bf16.mxu0 0
          %8112 = vmatpush1.bf16.msra.mxu0 0
          %8113 = vmatprep.subr.bf16.mxu0 0
          %8114 = vmatpush1.bf16.msra.mxu0 0
          %8115 = vmatprep.subr.bf16.mxu0 0
          %8116 = vmatpush1.bf16.msra.mxu0 0
          %8117 = vmatprep.subr.bf16.mxu0 0
          %8118 = vmatpush1.bf16.msra.mxu0 0
          %8119 = vmatprep.mubr.bf16.mxu0 0
          %8120 = vmatmul.mubr.bf16.gmra.mrb[0].mxu0 %v7845
          %v8121 = vpop.f32.mrb[0].mxu0
          %v8122 = vadd.f32 %v7788, %v8121
          %v8123 = vpop.f32.mrb[0].mxu0
          %v8124 = vadd.f32 %v7792, %v8123
          %v8125 = vpop.f32.mrb[0].mxu0
          %v8126 = vpop.f32.mrb[0].mxu0
          %8127 = vdwg.mxu0
          %8128 = vmatprep.subr.bf16.mxu0 %v7994
          %8129 = vmatpush1.bf16.msra.mxu0 %v7993
          %8130 = vmatprep.subr.bf16.mxu0 %v8000
          %8131 = vmatpush1.bf16.msra.mxu0 %v7999
          %8132 = vmatprep.subr.bf16.mxu0 %v8006
          %8133 = vmatpush1.bf16.msra.mxu0 %v8005
          %8134 = vmatprep.subr.bf16.mxu0 %v8012
          %8135 = vmatpush1.bf16.msra.mxu0 %v8011
          %8136 = vmatprep.subr.bf16.mxu0 %v8018
          %8137 = vmatpush1.bf16.msra.mxu0 %v8017
          %8138 = vmatprep.subr.bf16.mxu0 %v8024
          %8139 = vmatpush1.bf16.msra.mxu0 %v8023
          %8140 = vmatprep.subr.bf16.mxu0 %v8030
          %8141 = vmatpush1.bf16.msra.mxu0 %v8029
          %8142 = vmatprep.subr.bf16.mxu0 %v8036
          %8143 = vmatpush1.bf16.msra.mxu0 %v8035
          %8144 = vmatprep.subr.bf16.mxu0 0
          %8145 = vmatpush1.bf16.msra.mxu0 0
          %8146 = vmatprep.subr.bf16.mxu0 0
          %8147 = vmatpush1.bf16.msra.mxu0 0
          %8148 = vmatprep.subr.bf16.mxu0 0
          %8149 = vmatpush1.bf16.msra.mxu0 0
          %8150 = vmatprep.subr.bf16.mxu0 0
          %8151 = vmatpush1.bf16.msra.mxu0 0
          %8152 = vmatprep.subr.bf16.mxu0 0
          %8153 = vmatpush1.bf16.msra.mxu0 0
          %8154 = vmatprep.subr.bf16.mxu0 0
          %8155 = vmatpush1.bf16.msra.mxu0 0
          %8156 = vmatprep.subr.bf16.mxu0 0
          %8157 = vmatpush1.bf16.msra.mxu0 0
          %8158 = vmatprep.subr.bf16.mxu0 0
          %8159 = vmatpush1.bf16.msra.mxu0 0
          %8160 = vmatprep.mubr.bf16.mxu0 0
          %8161 = vmatmul.mubr.bf16.gmra.mrb[0].mxu0 %v7845
          %v8162 = vpop.f32.mrb[0].mxu0
          %v8163 = vadd.f32 %v7796, %v8162
          %v8164 = vpop.f32.mrb[0].mxu0
          %v8165 = vadd.f32 %v7800, %v8164
          %v8166 = vpop.f32.mrb[0].mxu0
          %v8167 = vpop.f32.mrb[0].mxu0
          %8168 = vdwg.mxu0
          %8169 = vmatprep.subr.bf16.mxu0 %v7996
          %8170 = vmatpush1.bf16.msra.mxu0 %v7995
          %8171 = vmatprep.subr.bf16.mxu0 %v8002
          %8172 = vmatpush1.bf16.msra.mxu0 %v8001
          %8173 = vmatprep.subr.bf16.mxu0 %v8008
          %8174 = vmatpush1.bf16.msra.mxu0 %v8007
          %8175 = vmatprep.subr.bf16.mxu0 %v8014
          %8176 = vmatpush1.bf16.msra.mxu0 %v8013
          %8177 = vmatprep.subr.bf16.mxu0 %v8020
          %8178 = vmatpush1.bf16.msra.mxu0 %v8019
          %8179 = vmatprep.subr.bf16.mxu0 %v8026
          %8180 = vmatpush1.bf16.msra.mxu0 %v8025
          %8181 = vmatprep.subr.bf16.mxu0 %v8032
          %8182 = vmatpush1.bf16.msra.mxu0 %v8031
          %8183 = vmatprep.subr.bf16.mxu0 %v8038
          %8184 = vmatpush1.bf16.msra.mxu0 %v8037
          %8185 = vmatprep.subr.bf16.mxu0 0
          %8186 = vmatpush1.bf16.msra.mxu0 0
          %8187 = vmatprep.subr.bf16.mxu0 0
          %8188 = vmatpush1.bf16.msra.mxu0 0
          %8189 = vmatprep.subr.bf16.mxu0 0
          %8190 = vmatpush1.bf16.msra.mxu0 0
          %8191 = vmatprep.subr.bf16.mxu0 0
          %8192 = vmatpush1.bf16.msra.mxu0 0
          %8193 = vmatprep.subr.bf16.mxu0 0
          %8194 = vmatpush1.bf16.msra.mxu0 0
          %8195 = vmatprep.subr.bf16.mxu0 0
          %8196 = vmatpush1.bf16.msra.mxu0 0
          %8197 = vmatprep.subr.bf16.mxu0 0
          %8198 = vmatpush1.bf16.msra.mxu0 0
          %8199 = vmatprep.subr.bf16.mxu0 0
          %8200 = vmatpush1.bf16.msra.mxu0 0
          %8201 = vmatprep.mubr.bf16.mxu0 0
          %8202 = vmatmul.mubr.bf16.gmra.mrb[0].mxu0 %v7845
          %v8203 = vpop.f32.mrb[0].mxu0
          %v8204 = vadd.f32 %v7804, %v8203
          %v8205 = vpop.f32.mrb[0].mxu0
          %v8206 = vadd.f32 %v7808, %v8205
          %v8207 = vpop.f32.mrb[0].mxu0
          %v8208 = vpop.f32.mrb[0].mxu0
          %8209 = vdwg.mxu0
          %v8210 = vmul.f32 %v8122, 0.5
          %v8211 = vmul.f32 %v8124, 0.5
          %v8212 = vmul.f32 %v8163, 0.5
          %v8213 = vmul.f32 %v8165, 0.5
          %v8214 = vmul.f32 %v8204, 0.5
          %v8215 = vmul.f32 %v8206, 0.5
          %v8216 = vmul.f32 %v8122, 0.044715
          %v8217 = vmul.f32 %v8124, 0.044715
          %v8218 = vmul.f32 %v8163, 0.044715
          %v8219 = vmul.f32 %v8165, 0.044715
          %v8220 = vmul.f32 %v8204, 0.044715
          %v8221 = vmul.f32 %v8206, 0.044715
          %v8222 = vmul.f32 %v8216, %v8122
          %v8223 = vmul.f32 %v8217, %v8124
          %v8224 = vmul.f32 %v8218, %v8163
          %v8225 = vmul.f32 %v8219, %v8165
          %v8226 = vmul.f32 %v8220, %v8204
          %v8227 = vmul.f32 %v8221, %v8206
          %v8228 = vmul.f32 %v8222, %v8122
          %v8229 = vmul.f32 %v8223, %v8124
          %v8230 = vmul.f32 %v8224, %v8163
          %v8231 = vmul.f32 %v8225, %v8165
          %v8232 = vmul.f32 %v8226, %v8204
          %v8233 = vmul.f32 %v8227, %v8206
          %v8234 = vadd.f32 %v8122, %v8228
          %v8235 = vadd.f32 %v8124, %v8229
          %v8236 = vadd.f32 %v8163, %v8230
          %v8237 = vadd.f32 %v8165, %v8231
          %v8238 = vadd.f32 %v8204, %v8232
          %v8239 = vadd.f32 %v8206, %v8233
          %v8240 = vmul.f32 %v8234, 0.7978846
          %v8241 = vmul.f32 %v8235, 0.7978846
          %v8242 = vmul.f32 %v8236, 0.7978846
          %v8243 = vmul.f32 %v8237, 0.7978846
          %v8244 = vmul.f32 %v8238, 0.7978846
          %v8245 = vmul.f32 %v8239, 0.7978846
          %v8246 = vtanh.pop %v8240
          %v8247 = vtanh.pop %v8241
          %v8248 = vtanh.pop %v8242
          %v8249 = vtanh.pop %v8243
          %v8250 = vtanh.pop %v8244
          %v8251 = vtanh.pop %v8245
          %v8252 = vadd.f32 %v8246, 1.0
          %v8253 = vadd.f32 %v8247, 1.0
          %v8254 = vadd.f32 %v8248, 1.0
          %v8255 = vadd.f32 %v8249, 1.0
          %v8256 = vadd.f32 %v8250, 1.0
          %v8257 = vadd.f32 %v8251, 1.0
          %v8258 = vmul.f32 %v8210, %v8252
          %v8259 = vmul.f32 %v8211, %v8253
          %v8260 = vmul.f32 %v8212, %v8254
          %v8261 = vmul.f32 %v8213, %v8255
          %v8262 = vmul.f32 %v8214, %v8256
          %v8263 = vmul.f32 %v8215, %v8257
          %v8264 = vld [vmem:[%s47] sm:$0x3f]
          %v8265 = vld [vmem:[%s49] sm:$0x3f]
          %v8266 = vadd.f32 %v8258, %v8259
          %v8267 = vadd.f32 %v8266, %v8260
          %v8268 = vadd.f32 %v8267, %v8261
          %v8269 = vadd.f32 %v8268, %v8262
          %v8270 = vadd.f32 %v8269, %v8263
          %8271 = vadd.xlane.f32.xlu0 %v8270
          %v8272 = vpop.xlane.xlu0 %8271
          %v8273 = vrcp.pop 768.0
          %v8274 = vmul.f32 %v8272, %v8273
          %v8275 = vsub.f32 %v8258, %v8274
          %v8276 = vsub.f32 %v8259, %v8274
          %v8277 = vsub.f32 %v8260, %v8274
          %v8278 = vsub.f32 %v8261, %v8274
          %v8279 = vsub.f32 %v8262, %v8274
          %v8280 = vsub.f32 %v8263, %v8274
          %v8281 = vmul.f32 %v8275, %v8275
          %v8282 = vmul.f32 %v8276, %v8276
          %v8283 = vmul.f32 %v8277, %v8277
          %v8284 = vmul.f32 %v8278, %v8278
          %v8285 = vmul.f32 %v8279, %v8279
          %v8286 = vmul.f32 %v8280, %v8280
          %v8287 = vadd.f32 %v8281, %v8282
          %v8288 = vadd.f32 %v8287, %v8283
          %v8289 = vadd.f32 %v8288, %v8284
          %v8290 = vadd.f32 %v8289, %v8285
          %v8291 = vadd.f32 %v8290, %v8286
          %8292 = vadd.xlane.f32.xlu0 %v8291
          %v8293 = vpop.xlane.xlu0 %8292
          %v8294 = vmul.f32 %v8293, %v8273
          %v8295 = vadd.f32 %v8294, 1e-05
          %v8296 = vrsqrt.pop %v8295
          %v8297 = vmul.f32 %v8275, %v8296
          %v8298 = vmul.f32 %v8276, %v8296
          %v8299 = vmul.f32 %v8277, %v8296
          %v8300 = vmul.f32 %v8278, %v8296
          %v8301 = vmul.f32 %v8279, %v8296
          %v8302 = vmul.f32 %v8280, %v8296
          %v8304 = vlaneseq
          %v8305 = vshrl.u32 %v8304, 7
          %v8306 = vsub.s32 0, %v8305
          %v8307 = vrot.slane %v8264, %v8306
          %v8308 = vlaneseq
          %v8309 = vshrl.u32 %v8308, 7
          %v8310 = vsub.s32 1, %v8309
          %v8311 = vrot.slane %v8264, %v8310
          %v8312 = vlaneseq
          %v8313 = vshrl.u32 %v8312, 7
          %v8314 = vsub.s32 2, %v8313
          %v8315 = vrot.slane %v8264, %v8314
          %v8316 = vlaneseq
          %v8317 = vshrl.u32 %v8316, 7
          %v8318 = vsub.s32 3, %v8317
          %v8319 = vrot.slane %v8264, %v8318
          %v8320 = vlaneseq
          %v8321 = vshrl.u32 %v8320, 7
          %v8322 = vsub.s32 4, %v8321
          %v8323 = vrot.slane %v8264, %v8322
          %v8324 = vlaneseq
          %v8325 = vshrl.u32 %v8324, 7
          %v8326 = vsub.s32 5, %v8325
          %v8327 = vrot.slane %v8264, %v8326
          %v8334 = vmul.f32 %v8297, %v8307
          %v8335 = vmul.f32 %v8298, %v8311
          %v8336 = vmul.f32 %v8299, %v8315
          %v8337 = vmul.f32 %v8300, %v8319
          %v8338 = vmul.f32 %v8301, %v8323
          %v8339 = vmul.f32 %v8302, %v8327
          %v8341 = vlaneseq
          %v8342 = vshrl.u32 %v8341, 7
          %v8343 = vsub.s32 0, %v8342
          %v8344 = vrot.slane %v8265, %v8343
          %v8345 = vlaneseq
          %v8346 = vshrl.u32 %v8345, 7
          %v8347 = vsub.s32 1, %v8346
          %v8348 = vrot.slane %v8265, %v8347
          %v8349 = vlaneseq
          %v8350 = vshrl.u32 %v8349, 7
          %v8351 = vsub.s32 2, %v8350
          %v8352 = vrot.slane %v8265, %v8351
          %v8353 = vlaneseq
          %v8354 = vshrl.u32 %v8353, 7
          %v8355 = vsub.s32 3, %v8354
          %v8356 = vrot.slane %v8265, %v8355
          %v8357 = vlaneseq
          %v8358 = vshrl.u32 %v8357, 7
          %v8359 = vsub.s32 4, %v8358
          %v8360 = vrot.slane %v8265, %v8359
          %v8361 = vlaneseq
          %v8362 = vshrl.u32 %v8361, 7
          %v8363 = vsub.s32 5, %v8362
          %v8364 = vrot.slane %v8265, %v8363
          %v8371 = vadd.f32 %v8334, %v8344
          %v8372 = vadd.f32 %v8335, %v8348
          %v8373 = vadd.f32 %v8336, %v8352
          %v8374 = vadd.f32 %v8337, %v8356
          %v8375 = vadd.f32 %v8338, %v8360
          %v8376 = vadd.f32 %v8339, %v8364
          %v8377 = vld [vmem:[#allocation29] sm:$0xff]
          %v8378 = vld [vmem:[#allocation29 + $0x8] sm:$0xf]
          %v8379 = vld [vmem:[#allocation29 + $0xc] sm:$0xff]
          %v8380 = vld [vmem:[#allocation29 + $0x14] sm:$0xf]
          %v8381 = vld [vmem:[#allocation29 + $0x18] sm:$0xff]
          %v8382 = vld [vmem:[#allocation29 + $0x20] sm:$0xf]
          %v8383 = vld [vmem:[#allocation29 + $0x24] sm:$0xff]
          %v8384 = vld [vmem:[#allocation29 + $0x2c] sm:$0xf]
          %v8385 = vld [vmem:[#allocation29 + $0x30] sm:$0xff]
          %v8386 = vld [vmem:[#allocation29 + $0x38] sm:$0xf]
          %v8387 = vld [vmem:[#allocation29 + $0x3c] sm:$0xff]
          %v8388 = vld [vmem:[#allocation29 + $0x44] sm:$0xf]
          %v8389 = vld [vmem:[#allocation29 + $0x48] sm:$0xff]
          %v8390 = vld [vmem:[#allocation29 + $0x50] sm:$0xf]
          %v8391 = vld [vmem:[#allocation29 + $0x54] sm:$0xff]
          %v8392 = vld [vmem:[#allocation29 + $0x5c] sm:$0xf]
          %v8393 = vld [vmem:[#allocation29 + $0x60] sm:$0xff]
          %v8394 = vld [vmem:[#allocation29 + $0x68] sm:$0xf]
          %v8395 = vld [vmem:[#allocation29 + $0x6c] sm:$0xff]
          %v8396 = vld [vmem:[#allocation29 + $0x74] sm:$0xf]
          %v8397 = vld [vmem:[#allocation29 + $0x78] sm:$0xff]
          %v8398 = vld [vmem:[#allocation29 + $0x80] sm:$0xf]
          %v8399 = vld [vmem:[#allocation29 + $0x84] sm:$0xff]
          %v8400 = vld [vmem:[#allocation29 + $0x8c] sm:$0xf]
          %v8401 = vld [vmem:[#allocation29 + $0x90] sm:$0xff]
          %v8402 = vld [vmem:[#allocation29 + $0x98] sm:$0xf]
          %v8403 = vld [vmem:[#allocation29 + $0x9c] sm:$0xff]
          %v8404 = vld [vmem:[#allocation29 + $0xa4] sm:$0xf]
          %v8405 = vld [vmem:[#allocation29 + $0xa8] sm:$0xff]
          %v8406 = vld [vmem:[#allocation29 + $0xb0] sm:$0xf]
          %v8407 = vld [vmem:[#allocation29 + $0xb4] sm:$0xff]
          %v8408 = vld [vmem:[#allocation29 + $0xbc] sm:$0xf]
          %v8409 = vld [vmem:[#allocation29 + $0xc0] sm:$0xff]
          %v8410 = vld [vmem:[#allocation29 + $0xc8] sm:$0xf]
          %v8411 = vld [vmem:[#allocation29 + $0xcc] sm:$0xff]
          %v8412 = vld [vmem:[#allocation29 + $0xd4] sm:$0xf]
          %v8413 = vld [vmem:[#allocation29 + $0xd8] sm:$0xff]
          %v8414 = vld [vmem:[#allocation29 + $0xe0] sm:$0xf]
          %v8415 = vld [vmem:[#allocation29 + $0xe4] sm:$0xff]
          %v8416 = vld [vmem:[#allocation29 + $0xec] sm:$0xf]
          %v8417 = vld [vmem:[#allocation29 + $0xf0] sm:$0xff]
          %v8418 = vld [vmem:[#allocation29 + $0xf8] sm:$0xf]
          %v8419 = vld [vmem:[#allocation29 + $0xfc] sm:$0xff]
          %v8420 = vld [vmem:[#allocation29 + $0x104] sm:$0xf]
          %v8421 = vld [vmem:[#allocation29 + $0x108] sm:$0xff]
          %v8422 = vld [vmem:[#allocation29 + $0x110] sm:$0xf]
          %v8423 = vld [vmem:[#allocation29 + $0x114] sm:$0xff]
          %v8424 = vld [vmem:[#allocation29 + $0x11c] sm:$0xf]
          %v8425 = vld [vmem:[#allocation29 + $0x120] sm:$0xff]
          %v8426 = vld [vmem:[#allocation29 + $0x128] sm:$0xf]
          %v8427 = vld [vmem:[#allocation29 + $0x12c] sm:$0xff]
          %v8428 = vld [vmem:[#allocation29 + $0x134] sm:$0xf]
          %v8429 = vld [vmem:[#allocation29 + $0x138] sm:$0xff]
          %v8430 = vld [vmem:[#allocation29 + $0x140] sm:$0xf]
          %v8431 = vld [vmem:[#allocation29 + $0x144] sm:$0xff]
          %v8432 = vld [vmem:[#allocation29 + $0x14c] sm:$0xf]
          %v8433 = vld [vmem:[#allocation29 + $0x150] sm:$0xff]
          %v8434 = vld [vmem:[#allocation29 + $0x158] sm:$0xf]
          %v8435 = vld [vmem:[#allocation29 + $0x15c] sm:$0xff]
          %v8436 = vld [vmem:[#allocation29 + $0x164] sm:$0xf]
          %v8437 = vld [vmem:[#allocation29 + $0x168] sm:$0xff]
          %v8438 = vld [vmem:[#allocation29 + $0x170] sm:$0xf]
          %v8439 = vld [vmem:[#allocation29 + $0x174] sm:$0xff]
          %v8440 = vld [vmem:[#allocation29 + $0x17c] sm:$0xf]
          %v8441 = vld [vmem:[#allocation29 + $0x180] sm:$0xff]
          %v8442 = vld [vmem:[#allocation29 + $0x188] sm:$0xf]
          %v8443 = vld [vmem:[#allocation29 + $0x18c] sm:$0xff]
          %v8444 = vld [vmem:[#allocation29 + $0x194] sm:$0xf]
          %v8445 = vld [vmem:[#allocation29 + $0x198] sm:$0xff]
          %v8446 = vld [vmem:[#allocation29 + $0x1a0] sm:$0xf]
          %v8447 = vld [vmem:[#allocation29 + $0x1a4] sm:$0xff]
          %v8448 = vld [vmem:[#allocation29 + $0x1ac] sm:$0xf]
          %v8449 = vld [vmem:[#allocation29 + $0x1b0] sm:$0xff]
          %v8450 = vld [vmem:[#allocation29 + $0x1b8] sm:$0xf]
          %v8451 = vld [vmem:[#allocation29 + $0x1bc] sm:$0xff]
          %v8452 = vld [vmem:[#allocation29 + $0x1c4] sm:$0xf]
          %v8453 = vld [vmem:[#allocation29 + $0x1c8] sm:$0xff]
          %v8454 = vld [vmem:[#allocation29 + $0x1d0] sm:$0xf]
          %v8455 = vld [vmem:[#allocation29 + $0x1d4] sm:$0xff]
          %v8456 = vld [vmem:[#allocation29 + $0x1dc] sm:$0xf]
          %v8457 = vld [vmem:[#allocation29 + $0x1e0] sm:$0xff]
          %v8458 = vld [vmem:[#allocation29 + $0x1e8] sm:$0xf]
          %v8459 = vld [vmem:[#allocation29 + $0x1ec] sm:$0xff]
          %v8460 = vld [vmem:[#allocation29 + $0x1f4] sm:$0xf]
          %v8461 = vld [vmem:[#allocation29 + $0x1f8] sm:$0xff]
          %v8462 = vld [vmem:[#allocation29 + $0x200] sm:$0xf]
          %v8463 = vld [vmem:[#allocation29 + $0x204] sm:$0xff]
          %v8464 = vld [vmem:[#allocation29 + $0x20c] sm:$0xf]
          %v8465 = vld [vmem:[#allocation29 + $0x210] sm:$0xff]
          %v8466 = vld [vmem:[#allocation29 + $0x218] sm:$0xf]
          %v8467 = vld [vmem:[#allocation29 + $0x21c] sm:$0xff]
          %v8468 = vld [vmem:[#allocation29 + $0x224] sm:$0xf]
          %v8469 = vld [vmem:[#allocation29 + $0x228] sm:$0xff]
          %v8470 = vld [vmem:[#allocation29 + $0x230] sm:$0xf]
          %v8471 = vld [vmem:[#allocation29 + $0x234] sm:$0xff]
          %v8472 = vld [vmem:[#allocation29 + $0x23c] sm:$0xf]
          %v8473 = vld [vmem:[#allocation29 + $0x240] sm:$0xff]
          %v8474 = vld [vmem:[#allocation29 + $0x248] sm:$0xf]
          %v8475 = vld [vmem:[#allocation29 + $0x24c] sm:$0xff]
          %v8476 = vld [vmem:[#allocation29 + $0x254] sm:$0xf]
          %v8477 = vld [vmem:[#allocation29 + $0x258] sm:$0xff]
          %v8478 = vld [vmem:[#allocation29 + $0x260] sm:$0xf]
          %v8479 = vld [vmem:[#allocation29 + $0x264] sm:$0xff]
          %v8480 = vld [vmem:[#allocation29 + $0x26c] sm:$0xf]
          %v8481 = vld [vmem:[#allocation29 + $0x270] sm:$0xff]
          %v8482 = vld [vmem:[#allocation29 + $0x278] sm:$0xf]
          %v8483 = vld [vmem:[#allocation29 + $0x27c] sm:$0xff]
          %v8484 = vld [vmem:[#allocation29 + $0x284] sm:$0xf]
          %v8485 = vld [vmem:[#allocation29 + $0x288] sm:$0xff]
          %v8486 = vld [vmem:[#allocation29 + $0x290] sm:$0xf]
          %v8487 = vld [vmem:[#allocation29 + $0x294] sm:$0xff]
          %v8488 = vld [vmem:[#allocation29 + $0x29c] sm:$0xf]
          %v8489 = vld [vmem:[#allocation29 + $0x2a0] sm:$0xff]
          %v8490 = vld [vmem:[#allocation29 + $0x2a8] sm:$0xf]
          %v8491 = vld [vmem:[#allocation29 + $0x2ac] sm:$0xff]
          %v8492 = vld [vmem:[#allocation29 + $0x2b4] sm:$0xf]
          %v8493 = vld [vmem:[#allocation29 + $0x2b8] sm:$0xff]
          %v8494 = vld [vmem:[#allocation29 + $0x2c0] sm:$0xf]
          %v8495 = vld [vmem:[#allocation29 + $0x2c4] sm:$0xff]
          %v8496 = vld [vmem:[#allocation29 + $0x2cc] sm:$0xf]
          %v8497 = vld [vmem:[#allocation29 + $0x2d0] sm:$0xff]
          %v8498 = vld [vmem:[#allocation29 + $0x2d8] sm:$0xf]
          %v8499 = vld [vmem:[#allocation29 + $0x2dc] sm:$0xff]
          %v8500 = vld [vmem:[#allocation29 + $0x2e4] sm:$0xf]
          %v8501 = vld [vmem:[#allocation29 + $0x2e8] sm:$0xff]
          %v8502 = vld [vmem:[#allocation29 + $0x2f0] sm:$0xf]
          %v8503 = vld [vmem:[#allocation29 + $0x2f4] sm:$0xff]
          %v8504 = vld [vmem:[#allocation29 + $0x2fc] sm:$0xf]
          %v8505 = vld [vmem:[#allocation29 + $0x300] sm:$0xff]
          %v8506 = vld [vmem:[#allocation29 + $0x308] sm:$0xf]
          %v8507 = vld [vmem:[#allocation29 + $0x30c] sm:$0xff]
          %v8508 = vld [vmem:[#allocation29 + $0x314] sm:$0xf]
          %v8509 = vld [vmem:[#allocation29 + $0x318] sm:$0xff]
          %v8510 = vld [vmem:[#allocation29 + $0x320] sm:$0xf]
          %v8511 = vld [vmem:[#allocation29 + $0x324] sm:$0xff]
          %v8512 = vld [vmem:[#allocation29 + $0x32c] sm:$0xf]
          %v8513 = vld [vmem:[#allocation29 + $0x330] sm:$0xff]
          %v8514 = vld [vmem:[#allocation29 + $0x338] sm:$0xf]
          %v8515 = vld [vmem:[#allocation29 + $0x33c] sm:$0xff]
          %v8516 = vld [vmem:[#allocation29 + $0x344] sm:$0xf]
          %v8517 = vld [vmem:[#allocation29 + $0x348] sm:$0xff]
          %v8518 = vld [vmem:[#allocation29 + $0x350] sm:$0xf]
          %v8519 = vld [vmem:[#allocation29 + $0x354] sm:$0xff]
          %v8520 = vld [vmem:[#allocation29 + $0x35c] sm:$0xf]
          %v8521 = vld [vmem:[#allocation29 + $0x360] sm:$0xff]
          %v8522 = vld [vmem:[#allocation29 + $0x368] sm:$0xf]
          %v8523 = vld [vmem:[#allocation29 + $0x36c] sm:$0xff]
          %v8524 = vld [vmem:[#allocation29 + $0x374] sm:$0xf]
          %v8525 = vld [vmem:[#allocation29 + $0x378] sm:$0xff]
          %v8526 = vld [vmem:[#allocation29 + $0x380] sm:$0xf]
          %v8527 = vld [vmem:[#allocation29 + $0x384] sm:$0xff]
          %v8528 = vld [vmem:[#allocation29 + $0x38c] sm:$0xf]
          %v8529 = vld [vmem:[#allocation29 + $0x390] sm:$0xff]
          %v8530 = vld [vmem:[#allocation29 + $0x398] sm:$0xf]
          %v8531 = vld [vmem:[#allocation29 + $0x39c] sm:$0xff]
          %v8532 = vld [vmem:[#allocation29 + $0x3a4] sm:$0xf]
          %v8533 = vld [vmem:[#allocation29 + $0x3a8] sm:$0xff]
          %v8534 = vld [vmem:[#allocation29 + $0x3b0] sm:$0xf]
          %v8535 = vld [vmem:[#allocation29 + $0x3b4] sm:$0xff]
          %v8536 = vld [vmem:[#allocation29 + $0x3bc] sm:$0xf]
          %v8537 = vld [vmem:[#allocation29 + $0x3c0] sm:$0xff]
          %v8538 = vld [vmem:[#allocation29 + $0x3c8] sm:$0xf]
          %v8539 = vld [vmem:[#allocation29 + $0x3cc] sm:$0xff]
          %v8540 = vld [vmem:[#allocation29 + $0x3d4] sm:$0xf]
          %v8541 = vld [vmem:[#allocation29 + $0x3d8] sm:$0xff]
          %v8542 = vld [vmem:[#allocation29 + $0x3e0] sm:$0xf]
          %v8543 = vld [vmem:[#allocation29 + $0x3e4] sm:$0xff]
          %v8544 = vld [vmem:[#allocation29 + $0x3ec] sm:$0xf]
          %v8545 = vld [vmem:[#allocation29 + $0x3f0] sm:$0xff]
          %v8546 = vld [vmem:[#allocation29 + $0x3f8] sm:$0xf]
          %v8547 = vld [vmem:[#allocation29 + $0x3fc] sm:$0xff]
          %v8548 = vld [vmem:[#allocation29 + $0x404] sm:$0xf]
          %v8549 = vld [vmem:[#allocation29 + $0x408] sm:$0xff]
          %v8550 = vld [vmem:[#allocation29 + $0x410] sm:$0xf]
          %v8551 = vld [vmem:[#allocation29 + $0x414] sm:$0xff]
          %v8552 = vld [vmem:[#allocation29 + $0x41c] sm:$0xf]
          %v8553 = vld [vmem:[#allocation29 + $0x420] sm:$0xff]
          %v8554 = vld [vmem:[#allocation29 + $0x428] sm:$0xf]
          %v8555 = vld [vmem:[#allocation29 + $0x42c] sm:$0xff]
          %v8556 = vld [vmem:[#allocation29 + $0x434] sm:$0xf]
          %v8557 = vld [vmem:[#allocation29 + $0x438] sm:$0xff]
          %v8558 = vld [vmem:[#allocation29 + $0x440] sm:$0xf]
          %v8559 = vld [vmem:[#allocation29 + $0x444] sm:$0xff]
          %v8560 = vld [vmem:[#allocation29 + $0x44c] sm:$0xf]
          %v8561 = vld [vmem:[#allocation29 + $0x450] sm:$0xff]
          %v8562 = vld [vmem:[#allocation29 + $0x458] sm:$0xf]
          %v8563 = vld [vmem:[#allocation29 + $0x45c] sm:$0xff]
          %v8564 = vld [vmem:[#allocation29 + $0x464] sm:$0xf]
          %v8565 = vld [vmem:[#allocation29 + $0x468] sm:$0xff]
          %v8566 = vld [vmem:[#allocation29 + $0x470] sm:$0xf]
          %v8567 = vld [vmem:[#allocation29 + $0x474] sm:$0xff]
          %v8568 = vld [vmem:[#allocation29 + $0x47c] sm:$0xf]
          %v8569 = vld [vmem:[%s53] sm:$0x7]
          %v8570 = vpack.c.bf16 %v8371, %v8371
          %v8571 = vpack.c.bf16 %v8372, %v8372
          %v8572 = vpack.c.bf16 %v8373, %v8373
          %v8573 = vpack.c.bf16 %v8374, %v8374
          %v8574 = vpack.c.bf16 %v8375, %v8375
          %v8575 = vpack.c.bf16 %v8376, %v8376
          %v8577 = vlaneseq
          %v8578 = vshrl.u32 %v8577, 7
          %v8579 = vsub.s32 0, %v8578
          %v8580 = vrot.slane %v8569, %v8579
          %v8581 = vlaneseq
          %v8582 = vshrl.u32 %v8581, 7
          %v8583 = vsub.s32 1, %v8582
          %v8584 = vrot.slane %v8569, %v8583
          %v8585 = vlaneseq
          %v8586 = vshrl.u32 %v8585, 7
          %v8587 = vsub.s32 2, %v8586
          %v8588 = vrot.slane %v8569, %v8587
          %v8784 = vunpack.c.l.b16 %v8377
          %v8785 = vunpack.c.h.b16 %v8377
          %v8786 = vunpack.c.l.b16 %v8378
          %v8787 = vunpack.c.l.b16 %v8379
          %v8788 = vunpack.c.h.b16 %v8379
          %v8789 = vunpack.c.l.b16 %v8380
          %v8790 = vunpack.c.l.b16 %v8381
          %v8791 = vunpack.c.h.b16 %v8381
          %v8792 = vunpack.c.l.b16 %v8382
          %v8793 = vunpack.c.l.b16 %v8383
          %v8794 = vunpack.c.h.b16 %v8383
          %v8795 = vunpack.c.l.b16 %v8384
          %v8796 = vunpack.c.l.b16 %v8385
          %v8797 = vunpack.c.h.b16 %v8385
          %v8798 = vunpack.c.l.b16 %v8386
          %v8799 = vunpack.c.l.b16 %v8387
          %v8800 = vunpack.c.h.b16 %v8387
          %v8801 = vunpack.c.l.b16 %v8388
          %v8802 = vunpack.c.l.b16 %v8389
          %v8803 = vunpack.c.h.b16 %v8389
          %v8804 = vunpack.c.l.b16 %v8390
          %v8805 = vunpack.c.l.b16 %v8391
          %v8806 = vunpack.c.h.b16 %v8391
          %v8807 = vunpack.c.l.b16 %v8392
          %v8808 = vunpack.c.l.b16 %v8393
          %v8809 = vunpack.c.h.b16 %v8393
          %v8810 = vunpack.c.l.b16 %v8394
          %v8811 = vunpack.c.l.b16 %v8395
          %v8812 = vunpack.c.h.b16 %v8395
          %v8813 = vunpack.c.l.b16 %v8396
          %v8814 = vunpack.c.l.b16 %v8397
          %v8815 = vunpack.c.h.b16 %v8397
          %v8816 = vunpack.c.l.b16 %v8398
          %v8817 = vunpack.c.l.b16 %v8399
          %v8818 = vunpack.c.h.b16 %v8399
          %v8819 = vunpack.c.l.b16 %v8400
          %v8820 = vunpack.c.l.b16 %v8401
          %v8821 = vunpack.c.h.b16 %v8401
          %v8822 = vunpack.c.l.b16 %v8402
          %v8823 = vunpack.c.l.b16 %v8403
          %v8824 = vunpack.c.h.b16 %v8403
          %v8825 = vunpack.c.l.b16 %v8404
          %v8826 = vunpack.c.l.b16 %v8405
          %v8827 = vunpack.c.h.b16 %v8405
          %v8828 = vunpack.c.l.b16 %v8406
          %v8829 = vunpack.c.l.b16 %v8407
          %v8830 = vunpack.c.h.b16 %v8407
          %v8831 = vunpack.c.l.b16 %v8408
          %v8832 = vunpack.c.l.b16 %v8409
          %v8833 = vunpack.c.h.b16 %v8409
          %v8834 = vunpack.c.l.b16 %v8410
          %v8835 = vunpack.c.l.b16 %v8411
          %v8836 = vunpack.c.h.b16 %v8411
          %v8837 = vunpack.c.l.b16 %v8412
          %v8838 = vunpack.c.l.b16 %v8413
          %v8839 = vunpack.c.h.b16 %v8413
          %v8840 = vunpack.c.l.b16 %v8414
          %v8841 = vunpack.c.l.b16 %v8415
          %v8842 = vunpack.c.h.b16 %v8415
          %v8843 = vunpack.c.l.b16 %v8416
          %v8844 = vunpack.c.l.b16 %v8417
          %v8845 = vunpack.c.h.b16 %v8417
          %v8846 = vunpack.c.l.b16 %v8418
          %v8847 = vunpack.c.l.b16 %v8419
          %v8848 = vunpack.c.h.b16 %v8419
          %v8849 = vunpack.c.l.b16 %v8420
          %v8850 = vunpack.c.l.b16 %v8421
          %v8851 = vunpack.c.h.b16 %v8421
          %v8852 = vunpack.c.l.b16 %v8422
          %v8853 = vunpack.c.l.b16 %v8423
          %v8854 = vunpack.c.h.b16 %v8423
          %v8855 = vunpack.c.l.b16 %v8424
          %v8856 = vunpack.c.l.b16 %v8425
          %v8857 = vunpack.c.h.b16 %v8425
          %v8858 = vunpack.c.l.b16 %v8426
          %v8859 = vunpack.c.l.b16 %v8427
          %v8860 = vunpack.c.h.b16 %v8427
          %v8861 = vunpack.c.l.b16 %v8428
          %v8862 = vunpack.c.l.b16 %v8429
          %v8863 = vunpack.c.h.b16 %v8429
          %v8864 = vunpack.c.l.b16 %v8430
          %v8865 = vunpack.c.l.b16 %v8431
          %v8866 = vunpack.c.h.b16 %v8431
          %v8867 = vunpack.c.l.b16 %v8432
          %v8868 = vunpack.c.l.b16 %v8433
          %v8869 = vunpack.c.h.b16 %v8433
          %v8870 = vunpack.c.l.b16 %v8434
          %v8871 = vunpack.c.l.b16 %v8435
          %v8872 = vunpack.c.h.b16 %v8435
          %v8873 = vunpack.c.l.b16 %v8436
          %v8874 = vunpack.c.l.b16 %v8437
          %v8875 = vunpack.c.h.b16 %v8437
          %v8876 = vunpack.c.l.b16 %v8438
          %v8877 = vunpack.c.l.b16 %v8439
          %v8878 = vunpack.c.h.b16 %v8439
          %v8879 = vunpack.c.l.b16 %v8440
          %v8880 = vunpack.c.l.b16 %v8441
          %v8881 = vunpack.c.h.b16 %v8441
          %v8882 = vunpack.c.l.b16 %v8442
          %v8883 = vunpack.c.l.b16 %v8443
          %v8884 = vunpack.c.h.b16 %v8443
          %v8885 = vunpack.c.l.b16 %v8444
          %v8886 = vunpack.c.l.b16 %v8445
          %v8887 = vunpack.c.h.b16 %v8445
          %v8888 = vunpack.c.l.b16 %v8446
          %v8889 = vunpack.c.l.b16 %v8447
          %v8890 = vunpack.c.h.b16 %v8447
          %v8891 = vunpack.c.l.b16 %v8448
          %v8892 = vunpack.c.l.b16 %v8449
          %v8893 = vunpack.c.h.b16 %v8449
          %v8894 = vunpack.c.l.b16 %v8450
          %v8895 = vunpack.c.l.b16 %v8451
          %v8896 = vunpack.c.h.b16 %v8451
          %v8897 = vunpack.c.l.b16 %v8452
          %v8898 = vunpack.c.l.b16 %v8453
          %v8899 = vunpack.c.h.b16 %v8453
          %v8900 = vunpack.c.l.b16 %v8454
          %v8901 = vunpack.c.l.b16 %v8455
          %v8902 = vunpack.c.h.b16 %v8455
          %v8903 = vunpack.c.l.b16 %v8456
          %v8904 = vunpack.c.l.b16 %v8457
          %v8905 = vunpack.c.h.b16 %v8457
          %v8906 = vunpack.c.l.b16 %v8458
          %v8907 = vunpack.c.l.b16 %v8459
          %v8908 = vunpack.c.h.b16 %v8459
          %v8909 = vunpack.c.l.b16 %v8460
          %v8910 = vunpack.c.l.b16 %v8461
          %v8911 = vunpack.c.h.b16 %v8461
          %v8912 = vunpack.c.l.b16 %v8462
          %v8913 = vunpack.c.l.b16 %v8463
          %v8914 = vunpack.c.h.b16 %v8463
          %v8915 = vunpack.c.l.b16 %v8464
          %v8916 = vunpack.c.l.b16 %v8465
          %v8917 = vunpack.c.h.b16 %v8465
          %v8918 = vunpack.c.l.b16 %v8466
          %v8919 = vunpack.c.l.b16 %v8467
          %v8920 = vunpack.c.h.b16 %v8467
          %v8921 = vunpack.c.l.b16 %v8468
          %v8922 = vunpack.c.l.b16 %v8469
          %v8923 = vunpack.c.h.b16 %v8469
          %v8924 = vunpack.c.l.b16 %v8470
          %v8925 = vunpack.c.l.b16 %v8471
          %v8926 = vunpack.c.h.b16 %v8471
          %v8927 = vunpack.c.l.b16 %v8472
          %v8928 = vunpack.c.l.b16 %v8473
          %v8929 = vunpack.c.h.b16 %v8473
          %v8930 = vunpack.c.l.b16 %v8474
          %v8931 = vunpack.c.l.b16 %v8475
          %v8932 = vunpack.c.h.b16 %v8475
          %v8933 = vunpack.c.l.b16 %v8476
          %v8934 = vunpack.c.l.b16 %v8477
          %v8935 = vunpack.c.h.b16 %v8477
          %v8936 = vunpack.c.l.b16 %v8478
          %v8937 = vunpack.c.l.b16 %v8479
          %v8938 = vunpack.c.h.b16 %v8479
          %v8939 = vunpack.c.l.b16 %v8480
          %v8940 = vunpack.c.l.b16 %v8481
          %v8941 = vunpack.c.h.b16 %v8481
          %v8942 = vunpack.c.l.b16 %v8482
          %v8943 = vunpack.c.l.b16 %v8483
          %v8944 = vunpack.c.h.b16 %v8483
          %v8945 = vunpack.c.l.b16 %v8484
          %v8946 = vunpack.c.l.b16 %v8485
          %v8947 = vunpack.c.h.b16 %v8485
          %v8948 = vunpack.c.l.b16 %v8486
          %v8949 = vunpack.c.l.b16 %v8487
          %v8950 = vunpack.c.h.b16 %v8487
          %v8951 = vunpack.c.l.b16 %v8488
          %v8952 = vunpack.c.l.b16 %v8489
          %v8953 = vunpack.c.h.b16 %v8489
          %v8954 = vunpack.c.l.b16 %v8490
          %v8955 = vunpack.c.l.b16 %v8491
          %v8956 = vunpack.c.h.b16 %v8491
          %v8957 = vunpack.c.l.b16 %v8492
          %v8958 = vunpack.c.l.b16 %v8493
          %v8959 = vunpack.c.h.b16 %v8493
          %v8960 = vunpack.c.l.b16 %v8494
          %v8961 = vunpack.c.l.b16 %v8495
          %v8962 = vunpack.c.h.b16 %v8495
          %v8963 = vunpack.c.l.b16 %v8496
          %v8964 = vunpack.c.l.b16 %v8497
          %v8965 = vunpack.c.h.b16 %v8497
          %v8966 = vunpack.c.l.b16 %v8498
          %v8967 = vunpack.c.l.b16 %v8499
          %v8968 = vunpack.c.h.b16 %v8499
          %v8969 = vunpack.c.l.b16 %v8500
          %v8970 = vunpack.c.l.b16 %v8501
          %v8971 = vunpack.c.h.b16 %v8501
          %v8972 = vunpack.c.l.b16 %v8502
          %v8973 = vunpack.c.l.b16 %v8503
          %v8974 = vunpack.c.h.b16 %v8503
          %v8975 = vunpack.c.l.b16 %v8504
          %v8976 = vunpack.c.l.b16 %v8505
          %v8977 = vunpack.c.h.b16 %v8505
          %v8978 = vunpack.c.l.b16 %v8506
          %v8979 = vunpack.c.l.b16 %v8507
          %v8980 = vunpack.c.h.b16 %v8507
          %v8981 = vunpack.c.l.b16 %v8508
          %v8982 = vunpack.c.l.b16 %v8509
          %v8983 = vunpack.c.h.b16 %v8509
          %v8984 = vunpack.c.l.b16 %v8510
          %v8985 = vunpack.c.l.b16 %v8511
          %v8986 = vunpack.c.h.b16 %v8511
          %v8987 = vunpack.c.l.b16 %v8512
          %v8988 = vunpack.c.l.b16 %v8513
          %v8989 = vunpack.c.h.b16 %v8513
          %v8990 = vunpack.c.l.b16 %v8514
          %v8991 = vunpack.c.l.b16 %v8515
          %v8992 = vunpack.c.h.b16 %v8515
          %v8993 = vunpack.c.l.b16 %v8516
          %v8994 = vunpack.c.l.b16 %v8517
          %v8995 = vunpack.c.h.b16 %v8517
          %v8996 = vunpack.c.l.b16 %v8518
          %v8997 = vunpack.c.l.b16 %v8519
          %v8998 = vunpack.c.h.b16 %v8519
          %v8999 = vunpack.c.l.b16 %v8520
          %v9000 = vunpack.c.l.b16 %v8521
          %v9001 = vunpack.c.h.b16 %v8521
          %v9002 = vunpack.c.l.b16 %v8522
          %v9003 = vunpack.c.l.b16 %v8523
          %v9004 = vunpack.c.h.b16 %v8523
          %v9005 = vunpack.c.l.b16 %v8524
          %v9006 = vunpack.c.l.b16 %v8525
          %v9007 = vunpack.c.h.b16 %v8525
          %v9008 = vunpack.c.l.b16 %v8526
          %v9009 = vunpack.c.l.b16 %v8527
          %v9010 = vunpack.c.h.b16 %v8527
          %v9011 = vunpack.c.l.b16 %v8528
          %v9012 = vunpack.c.l.b16 %v8529
          %v9013 = vunpack.c.h.b16 %v8529
          %v9014 = vunpack.c.l.b16 %v8530
          %v9015 = vunpack.c.l.b16 %v8531
          %v9016 = vunpack.c.h.b16 %v8531
          %v9017 = vunpack.c.l.b16 %v8532
          %v9018 = vunpack.c.l.b16 %v8533
          %v9019 = vunpack.c.h.b16 %v8533
          %v9020 = vunpack.c.l.b16 %v8534
          %v9021 = vunpack.c.l.b16 %v8535
          %v9022 = vunpack.c.h.b16 %v8535
          %v9023 = vunpack.c.l.b16 %v8536
          %v9024 = vunpack.c.l.b16 %v8537
          %v9025 = vunpack.c.h.b16 %v8537
          %v9026 = vunpack.c.l.b16 %v8538
          %v9027 = vunpack.c.l.b16 %v8539
          %v9028 = vunpack.c.h.b16 %v8539
          %v9029 = vunpack.c.l.b16 %v8540
          %v9030 = vunpack.c.l.b16 %v8541
          %v9031 = vunpack.c.h.b16 %v8541
          %v9032 = vunpack.c.l.b16 %v8542
          %v9033 = vunpack.c.l.b16 %v8543
          %v9034 = vunpack.c.h.b16 %v8543
          %v9035 = vunpack.c.l.b16 %v8544
          %v9036 = vunpack.c.l.b16 %v8545
          %v9037 = vunpack.c.h.b16 %v8545
          %v9038 = vunpack.c.l.b16 %v8546
          %v9039 = vunpack.c.l.b16 %v8547
          %v9040 = vunpack.c.h.b16 %v8547
          %v9041 = vunpack.c.l.b16 %v8548
          %v9042 = vunpack.c.l.b16 %v8549
          %v9043 = vunpack.c.h.b16 %v8549
          %v9044 = vunpack.c.l.b16 %v8550
          %v9045 = vunpack.c.l.b16 %v8551
          %v9046 = vunpack.c.h.b16 %v8551
          %v9047 = vunpack.c.l.b16 %v8552
          %v9048 = vunpack.c.l.b16 %v8553
          %v9049 = vunpack.c.h.b16 %v8553
          %v9050 = vunpack.c.l.b16 %v8554
          %v9051 = vunpack.c.l.b16 %v8555
          %v9052 = vunpack.c.h.b16 %v8555
          %v9053 = vunpack.c.l.b16 %v8556
          %v9054 = vunpack.c.l.b16 %v8557
          %v9055 = vunpack.c.h.b16 %v8557
          %v9056 = vunpack.c.l.b16 %v8558
          %v9057 = vunpack.c.l.b16 %v8559
          %v9058 = vunpack.c.h.b16 %v8559
          %v9059 = vunpack.c.l.b16 %v8560
          %v9060 = vunpack.c.l.b16 %v8561
          %v9061 = vunpack.c.h.b16 %v8561
          %v9062 = vunpack.c.l.b16 %v8562
          %v9063 = vunpack.c.l.b16 %v8563
          %v9064 = vunpack.c.h.b16 %v8563
          %v9065 = vunpack.c.l.b16 %v8564
          %v9066 = vunpack.c.l.b16 %v8565
          %v9067 = vunpack.c.h.b16 %v8565
          %v9068 = vunpack.c.l.b16 %v8566
          %v9069 = vunpack.c.l.b16 %v8567
          %v9070 = vunpack.c.h.b16 %v8567
          %v9071 = vunpack.c.l.b16 %v8568
          %v9072 = vpack.c.b16 %v8787, %v8784
          %v9073 = vpack.c.b16 %v8788, %v8785
          %v9074 = vpack.c.b16 %v8789, %v8786
          %v9075 = vpack.c.b16 %v8793, %v8790
          %v9076 = vpack.c.b16 %v8794, %v8791
          %v9077 = vpack.c.b16 %v8795, %v8792
          %v9078 = vpack.c.b16 %v8799, %v8796
          %v9079 = vpack.c.b16 %v8800, %v8797
          %v9080 = vpack.c.b16 %v8801, %v8798
          %v9081 = vpack.c.b16 %v8805, %v8802
          %v9082 = vpack.c.b16 %v8806, %v8803
          %v9083 = vpack.c.b16 %v8807, %v8804
          %v9084 = vpack.c.b16 %v8811, %v8808
          %v9085 = vpack.c.b16 %v8812, %v8809
          %v9086 = vpack.c.b16 %v8813, %v8810
          %v9087 = vpack.c.b16 %v8817, %v8814
          %v9088 = vpack.c.b16 %v8818, %v8815
          %v9089 = vpack.c.b16 %v8819, %v8816
          %v9090 = vpack.c.b16 %v8823, %v8820
          %v9091 = vpack.c.b16 %v8824, %v8821
          %v9092 = vpack.c.b16 %v8825, %v8822
          %v9093 = vpack.c.b16 %v8829, %v8826
          %v9094 = vpack.c.b16 %v8830, %v8827
          %v9095 = vpack.c.b16 %v8831, %v8828
          %v9096 = vpack.c.b16 %v8835, %v8832
          %v9097 = vpack.c.b16 %v8836, %v8833
          %v9098 = vpack.c.b16 %v8837, %v8834
          %v9099 = vpack.c.b16 %v8841, %v8838
          %v9100 = vpack.c.b16 %v8842, %v8839
          %v9101 = vpack.c.b16 %v8843, %v8840
          %v9102 = vpack.c.b16 %v8847, %v8844
          %v9103 = vpack.c.b16 %v8848, %v8845
          %v9104 = vpack.c.b16 %v8849, %v8846
          %v9105 = vpack.c.b16 %v8853, %v8850
          %v9106 = vpack.c.b16 %v8854, %v8851
          %v9107 = vpack.c.b16 %v8855, %v8852
          %v9108 = vpack.c.b16 %v8859, %v8856
          %v9109 = vpack.c.b16 %v8860, %v8857
          %v9110 = vpack.c.b16 %v8861, %v8858
          %v9111 = vpack.c.b16 %v8865, %v8862
          %v9112 = vpack.c.b16 %v8866, %v8863
          %v9113 = vpack.c.b16 %v8867, %v8864
          %v9114 = vpack.c.b16 %v8871, %v8868
          %v9115 = vpack.c.b16 %v8872, %v8869
          %v9116 = vpack.c.b16 %v8873, %v8870
          %v9117 = vpack.c.b16 %v8877, %v8874
          %v9118 = vpack.c.b16 %v8878, %v8875
          %v9119 = vpack.c.b16 %v8879, %v8876
          %v9120 = vpack.c.b16 %v8883, %v8880
          %v9121 = vpack.c.b16 %v8884, %v8881
          %v9122 = vpack.c.b16 %v8885, %v8882
          %v9123 = vpack.c.b16 %v8889, %v8886
          %v9124 = vpack.c.b16 %v8890, %v8887
          %v9125 = vpack.c.b16 %v8891, %v8888
          %v9126 = vpack.c.b16 %v8895, %v8892
          %v9127 = vpack.c.b16 %v8896, %v8893
          %v9128 = vpack.c.b16 %v8897, %v8894
          %v9129 = vpack.c.b16 %v8901, %v8898
          %v9130 = vpack.c.b16 %v8902, %v8899
          %v9131 = vpack.c.b16 %v8903, %v8900
          %v9132 = vpack.c.b16 %v8907, %v8904
          %v9133 = vpack.c.b16 %v8908, %v8905
          %v9134 = vpack.c.b16 %v8909, %v8906
          %v9135 = vpack.c.b16 %v8913, %v8910
          %v9136 = vpack.c.b16 %v8914, %v8911
          %v9137 = vpack.c.b16 %v8915, %v8912
          %v9138 = vpack.c.b16 %v8919, %v8916
          %v9139 = vpack.c.b16 %v8920, %v8917
          %v9140 = vpack.c.b16 %v8921, %v8918
          %v9141 = vpack.c.b16 %v8925, %v8922
          %v9142 = vpack.c.b16 %v8926, %v8923
          %v9143 = vpack.c.b16 %v8927, %v8924
          %v9144 = vpack.c.b16 %v8931, %v8928
          %v9145 = vpack.c.b16 %v8932, %v8929
          %v9146 = vpack.c.b16 %v8933, %v8930
          %v9147 = vpack.c.b16 %v8937, %v8934
          %v9148 = vpack.c.b16 %v8938, %v8935
          %v9149 = vpack.c.b16 %v8939, %v8936
          %v9150 = vpack.c.b16 %v8943, %v8940
          %v9151 = vpack.c.b16 %v8944, %v8941
          %v9152 = vpack.c.b16 %v8945, %v8942
          %v9153 = vpack.c.b16 %v8949, %v8946
          %v9154 = vpack.c.b16 %v8950, %v8947
          %v9155 = vpack.c.b16 %v8951, %v8948
          %v9156 = vpack.c.b16 %v8955, %v8952
          %v9157 = vpack.c.b16 %v8956, %v8953
          %v9158 = vpack.c.b16 %v8957, %v8954
          %v9159 = vpack.c.b16 %v8961, %v8958
          %v9160 = vpack.c.b16 %v8962, %v8959
          %v9161 = vpack.c.b16 %v8963, %v8960
          %v9162 = vpack.c.b16 %v8967, %v8964
          %v9163 = vpack.c.b16 %v8968, %v8965
          %v9164 = vpack.c.b16 %v8969, %v8966
          %v9165 = vpack.c.b16 %v8973, %v8970
          %v9166 = vpack.c.b16 %v8974, %v8971
          %v9167 = vpack.c.b16 %v8975, %v8972
          %v9168 = vpack.c.b16 %v8979, %v8976
          %v9169 = vpack.c.b16 %v8980, %v8977
          %v9170 = vpack.c.b16 %v8981, %v8978
          %v9171 = vpack.c.b16 %v8985, %v8982
          %v9172 = vpack.c.b16 %v8986, %v8983
          %v9173 = vpack.c.b16 %v8987, %v8984
          %v9174 = vpack.c.b16 %v8991, %v8988
          %v9175 = vpack.c.b16 %v8992, %v8989
          %v9176 = vpack.c.b16 %v8993, %v8990
          %v9177 = vpack.c.b16 %v8997, %v8994
          %v9178 = vpack.c.b16 %v8998, %v8995
          %v9179 = vpack.c.b16 %v8999, %v8996
          %v9180 = vpack.c.b16 %v9003, %v9000
          %v9181 = vpack.c.b16 %v9004, %v9001
          %v9182 = vpack.c.b16 %v9005, %v9002
          %v9183 = vpack.c.b16 %v9009, %v9006
          %v9184 = vpack.c.b16 %v9010, %v9007
          %v9185 = vpack.c.b16 %v9011, %v9008
          %v9186 = vpack.c.b16 %v9015, %v9012
          %v9187 = vpack.c.b16 %v9016, %v9013
          %v9188 = vpack.c.b16 %v9017, %v9014
          %v9189 = vpack.c.b16 %v9021, %v9018
          %v9190 = vpack.c.b16 %v9022, %v9019
          %v9191 = vpack.c.b16 %v9023, %v9020
          %v9192 = vpack.c.b16 %v9027, %v9024
          %v9193 = vpack.c.b16 %v9028, %v9025
          %v9194 = vpack.c.b16 %v9029, %v9026
          %v9195 = vpack.c.b16 %v9033, %v9030
          %v9196 = vpack.c.b16 %v9034, %v9031
          %v9197 = vpack.c.b16 %v9035, %v9032
          %v9198 = vpack.c.b16 %v9039, %v9036
          %v9199 = vpack.c.b16 %v9040, %v9037
          %v9200 = vpack.c.b16 %v9041, %v9038
          %v9201 = vpack.c.b16 %v9045, %v9042
          %v9202 = vpack.c.b16 %v9046, %v9043
          %v9203 = vpack.c.b16 %v9047, %v9044
          %v9204 = vpack.c.b16 %v9051, %v9048
          %v9205 = vpack.c.b16 %v9052, %v9049
          %v9206 = vpack.c.b16 %v9053, %v9050
          %v9207 = vpack.c.b16 %v9057, %v9054
          %v9208 = vpack.c.b16 %v9058, %v9055
          %v9209 = vpack.c.b16 %v9059, %v9056
          %v9210 = vpack.c.b16 %v9063, %v9060
          %v9211 = vpack.c.b16 %v9064, %v9061
          %v9212 = vpack.c.b16 %v9065, %v9062
          %v9213 = vpack.c.b16 %v9069, %v9066
          %v9214 = vpack.c.b16 %v9070, %v9067
          %v9215 = vpack.c.b16 %v9071, %v9068
          %9360 = vmatprep.subr.bf16.mxu0 %v9073
          %9361 = vmatpush1.bf16.msra.mxu0 %v9072
          %9362 = vmatprep.subr.bf16.mxu0 %v9076
          %9363 = vmatpush1.bf16.msra.mxu0 %v9075
          %9364 = vmatprep.subr.bf16.mxu0 %v9079
          %9365 = vmatpush1.bf16.msra.mxu0 %v9078
          %9366 = vmatprep.subr.bf16.mxu0 %v9082
          %9367 = vmatpush1.bf16.msra.mxu0 %v9081
          %9368 = vmatprep.subr.bf16.mxu0 %v9085
          %9369 = vmatpush1.bf16.msra.mxu0 %v9084
          %9370 = vmatprep.subr.bf16.mxu0 %v9088
          %9371 = vmatpush1.bf16.msra.mxu0 %v9087
          %9372 = vmatprep.subr.bf16.mxu0 %v9091
          %9373 = vmatpush1.bf16.msra.mxu0 %v9090
          %9374 = vmatprep.subr.bf16.mxu0 %v9094
          %9375 = vmatpush1.bf16.msra.mxu0 %v9093
          %9376 = vmatprep.subr.bf16.mxu0 %v9097
          %9377 = vmatpush1.bf16.msra.mxu0 %v9096
          %9378 = vmatprep.subr.bf16.mxu0 %v9100
          %9379 = vmatpush1.bf16.msra.mxu0 %v9099
          %9380 = vmatprep.subr.bf16.mxu0 %v9103
          %9381 = vmatpush1.bf16.msra.mxu0 %v9102
          %9382 = vmatprep.subr.bf16.mxu0 %v9106
          %9383 = vmatpush1.bf16.msra.mxu0 %v9105
          %9384 = vmatprep.subr.bf16.mxu0 %v9109
          %9385 = vmatpush1.bf16.msra.mxu0 %v9108
          %9386 = vmatprep.subr.bf16.mxu0 %v9112
          %9387 = vmatpush1.bf16.msra.mxu0 %v9111
          %9388 = vmatprep.subr.bf16.mxu0 %v9115
          %9389 = vmatpush1.bf16.msra.mxu0 %v9114
          %9390 = vmatprep.subr.bf16.mxu0 %v9118
          %9391 = vmatpush1.bf16.msra.mxu0 %v9117
          %9392 = vmatprep.mubr.bf16.mxu0 %v8571
          %9393 = vmatmul.mubr.bf16.gmra.mrb[0].mxu0 %v8570
          %v9394 = vpop.f32.mrb[0].mxu0
          %v9395 = vadd.f32 %v8580, %v9394
          %v9396 = vpop.f32.mrb[0].mxu0
          %v9397 = vadd.f32 %v8584, %v9396
          %v9398 = vpop.f32.mrb[0].mxu0
          %v9399 = vpop.f32.mrb[0].mxu0
          %9400 = vdwg.mxu0
          %9401 = vmatprep.subr.bf16.mxu0 %v9121
          %9402 = vmatpush1.bf16.msra.mxu0 %v9120
          %9403 = vmatprep.subr.bf16.mxu0 %v9124
          %9404 = vmatpush1.bf16.msra.mxu0 %v9123
          %9405 = vmatprep.subr.bf16.mxu0 %v9127
          %9406 = vmatpush1.bf16.msra.mxu0 %v9126
          %9407 = vmatprep.subr.bf16.mxu0 %v9130
          %9408 = vmatpush1.bf16.msra.mxu0 %v9129
          %9409 = vmatprep.subr.bf16.mxu0 %v9133
          %9410 = vmatpush1.bf16.msra.mxu0 %v9132
          %9411 = vmatprep.subr.bf16.mxu0 %v9136
          %9412 = vmatpush1.bf16.msra.mxu0 %v9135
          %9413 = vmatprep.subr.bf16.mxu0 %v9139
          %9414 = vmatpush1.bf16.msra.mxu0 %v9138
          %9415 = vmatprep.subr.bf16.mxu0 %v9142
          %9416 = vmatpush1.bf16.msra.mxu0 %v9141
          %9417 = vmatprep.subr.bf16.mxu0 %v9145
          %9418 = vmatpush1.bf16.msra.mxu0 %v9144
          %9419 = vmatprep.subr.bf16.mxu0 %v9148
          %9420 = vmatpush1.bf16.msra.mxu0 %v9147
          %9421 = vmatprep.subr.bf16.mxu0 %v9151
          %9422 = vmatpush1.bf16.msra.mxu0 %v9150
          %9423 = vmatprep.subr.bf16.mxu0 %v9154
          %9424 = vmatpush1.bf16.msra.mxu0 %v9153
          %9425 = vmatprep.subr.bf16.mxu0 %v9157
          %9426 = vmatpush1.bf16.msra.mxu0 %v9156
          %9427 = vmatprep.subr.bf16.mxu0 %v9160
          %9428 = vmatpush1.bf16.msra.mxu0 %v9159
          %9429 = vmatprep.subr.bf16.mxu0 %v9163
          %9430 = vmatpush1.bf16.msra.mxu0 %v9162
          %9431 = vmatprep.subr.bf16.mxu0 %v9166
          %9432 = vmatpush1.bf16.msra.mxu0 %v9165
          %9433 = vmatprep.mubr.bf16.mxu0 %v8573
          %9434 = vmatmul.mubr.bf16.gmra.mrb[0].mxu0 %v8572
          %v9435 = vpop.f32.mrb[0].mxu0
          %v9436 = vadd.f32 %v9395, %v9435
          %v9437 = vpop.f32.mrb[0].mxu0
          %v9438 = vadd.f32 %v9397, %v9437
          %v9439 = vpop.f32.mrb[0].mxu0
          %v9440 = vpop.f32.mrb[0].mxu0
          %9441 = vdwg.mxu0
          %9442 = vmatprep.subr.bf16.mxu0 %v9169
          %9443 = vmatpush1.bf16.msra.mxu0 %v9168
          %9444 = vmatprep.subr.bf16.mxu0 %v9172
          %9445 = vmatpush1.bf16.msra.mxu0 %v9171
          %9446 = vmatprep.subr.bf16.mxu0 %v9175
          %9447 = vmatpush1.bf16.msra.mxu0 %v9174
          %9448 = vmatprep.subr.bf16.mxu0 %v9178
          %9449 = vmatpush1.bf16.msra.mxu0 %v9177
          %9450 = vmatprep.subr.bf16.mxu0 %v9181
          %9451 = vmatpush1.bf16.msra.mxu0 %v9180
          %9452 = vmatprep.subr.bf16.mxu0 %v9184
          %9453 = vmatpush1.bf16.msra.mxu0 %v9183
          %9454 = vmatprep.subr.bf16.mxu0 %v9187
          %9455 = vmatpush1.bf16.msra.mxu0 %v9186
          %9456 = vmatprep.subr.bf16.mxu0 %v9190
          %9457 = vmatpush1.bf16.msra.mxu0 %v9189
          %9458 = vmatprep.subr.bf16.mxu0 %v9193
          %9459 = vmatpush1.bf16.msra.mxu0 %v9192
          %9460 = vmatprep.subr.bf16.mxu0 %v9196
          %9461 = vmatpush1.bf16.msra.mxu0 %v9195
          %9462 = vmatprep.subr.bf16.mxu0 %v9199
          %9463 = vmatpush1.bf16.msra.mxu0 %v9198
          %9464 = vmatprep.subr.bf16.mxu0 %v9202
          %9465 = vmatpush1.bf16.msra.mxu0 %v9201
          %9466 = vmatprep.subr.bf16.mxu0 %v9205
          %9467 = vmatpush1.bf16.msra.mxu0 %v9204
          %9468 = vmatprep.subr.bf16.mxu0 %v9208
          %9469 = vmatpush1.bf16.msra.mxu0 %v9207
          %9470 = vmatprep.subr.bf16.mxu0 %v9211
          %9471 = vmatpush1.bf16.msra.mxu0 %v9210
          %9472 = vmatprep.subr.bf16.mxu0 %v9214
          %9473 = vmatpush1.bf16.msra.mxu0 %v9213
          %9474 = vmatprep.mubr.bf16.mxu0 %v8575
          %9475 = vmatmul.mubr.bf16.gmra.mrb[0].mxu0 %v8574
          %v9476 = vpop.f32.mrb[0].mxu0
          %v9477 = vadd.f32 %v9436, %v9476
          %v9478 = vpop.f32.mrb[0].mxu0
          %v9479 = vadd.f32 %v9438, %v9478
          %v9480 = vpop.f32.mrb[0].mxu0
          %v9481 = vpop.f32.mrb[0].mxu0
          %9482 = vdwg.mxu0
          %9483 = vmatprep.subr.bf16.mxu0 0
          %9484 = vmatpush1.bf16.msra.mxu0 %v9074
          %9485 = vmatprep.subr.bf16.mxu0 0
          %9486 = vmatpush1.bf16.msra.mxu0 %v9077
          %9487 = vmatprep.subr.bf16.mxu0 0
          %9488 = vmatpush1.bf16.msra.mxu0 %v9080
          %9489 = vmatprep.subr.bf16.mxu0 0
          %9490 = vmatpush1.bf16.msra.mxu0 %v9083
          %9491 = vmatprep.subr.bf16.mxu0 0
          %9492 = vmatpush1.bf16.msra.mxu0 %v9086
          %9493 = vmatprep.subr.bf16.mxu0 0
          %9494 = vmatpush1.bf16.msra.mxu0 %v9089
          %9495 = vmatprep.subr.bf16.mxu0 0
          %9496 = vmatpush1.bf16.msra.mxu0 %v9092
          %9497 = vmatprep.subr.bf16.mxu0 0
          %9498 = vmatpush1.bf16.msra.mxu0 %v9095
          %9499 = vmatprep.subr.bf16.mxu0 0
          %9500 = vmatpush1.bf16.msra.mxu0 %v9098
          %9501 = vmatprep.subr.bf16.mxu0 0
          %9502 = vmatpush1.bf16.msra.mxu0 %v9101
          %9503 = vmatprep.subr.bf16.mxu0 0
          %9504 = vmatpush1.bf16.msra.mxu0 %v9104
          %9505 = vmatprep.subr.bf16.mxu0 0
          %9506 = vmatpush1.bf16.msra.mxu0 %v9107
          %9507 = vmatprep.subr.bf16.mxu0 0
          %9508 = vmatpush1.bf16.msra.mxu0 %v9110
          %9509 = vmatprep.subr.bf16.mxu0 0
          %9510 = vmatpush1.bf16.msra.mxu0 %v9113
          %9511 = vmatprep.subr.bf16.mxu0 0
          %9512 = vmatpush1.bf16.msra.mxu0 %v9116
          %9513 = vmatprep.subr.bf16.mxu0 0
          %9514 = vmatpush1.bf16.msra.mxu0 %v9119
          %9515 = vmatprep.mubr.bf16.mxu0 %v8571
          %9516 = vmatmul.mubr.bf16.gmra.mrb[0].mxu0 %v8570
          %v9517 = vpop.f32.mrb[0].mxu0
          %v9518 = vadd.f32 %v8588, %v9517
          %v9519 = vpop.f32.mrb[0].mxu0
          %v9520 = vpop.f32.mrb[0].mxu0
          %v9521 = vpop.f32.mrb[0].mxu0
          %9522 = vdwg.mxu0
          %9523 = vmatprep.subr.bf16.mxu0 0
          %9524 = vmatpush1.bf16.msra.mxu0 %v9122
          %9525 = vmatprep.subr.bf16.mxu0 0
          %9526 = vmatpush1.bf16.msra.mxu0 %v9125
          %9527 = vmatprep.subr.bf16.mxu0 0
          %9528 = vmatpush1.bf16.msra.mxu0 %v9128
          %9529 = vmatprep.subr.bf16.mxu0 0
          %9530 = vmatpush1.bf16.msra.mxu0 %v9131
          %9531 = vmatprep.subr.bf16.mxu0 0
          %9532 = vmatpush1.bf16.msra.mxu0 %v9134
          %9533 = vmatprep.subr.bf16.mxu0 0
          %9534 = vmatpush1.bf16.msra.mxu0 %v9137
          %9535 = vmatprep.subr.bf16.mxu0 0
          %9536 = vmatpush1.bf16.msra.mxu0 %v9140
          %9537 = vmatprep.subr.bf16.mxu0 0
          %9538 = vmatpush1.bf16.msra.mxu0 %v9143
          %9539 = vmatprep.subr.bf16.mxu0 0
          %9540 = vmatpush1.bf16.msra.mxu0 %v9146
          %9541 = vmatprep.subr.bf16.mxu0 0
          %9542 = vmatpush1.bf16.msra.mxu0 %v9149
          %9543 = vmatprep.subr.bf16.mxu0 0
          %9544 = vmatpush1.bf16.msra.mxu0 %v9152
          %9545 = vmatprep.subr.bf16.mxu0 0
          %9546 = vmatpush1.bf16.msra.mxu0 %v9155
          %9547 = vmatprep.subr.bf16.mxu0 0
          %9548 = vmatpush1.bf16.msra.mxu0 %v9158
          %9549 = vmatprep.subr.bf16.mxu0 0
          %9550 = vmatpush1.bf16.msra.mxu0 %v9161
          %9551 = vmatprep.subr.bf16.mxu0 0
          %9552 = vmatpush1.bf16.msra.mxu0 %v9164
          %9553 = vmatprep.subr.bf16.mxu0 0
          %9554 = vmatpush1.bf16.msra.mxu0 %v9167
          %9555 = vmatprep.mubr.bf16.mxu0 %v8573
          %9556 = vmatmul.mubr.bf16.gmra.mrb[0].mxu0 %v8572
          %v9557 = vpop.f32.mrb[0].mxu0
          %v9558 = vadd.f32 %v9518, %v9557
          %v9559 = vpop.f32.mrb[0].mxu0
          %v9560 = vpop.f32.mrb[0].mxu0
          %v9561 = vpop.f32.mrb[0].mxu0
          %9562 = vdwg.mxu0
          %9563 = vmatprep.subr.bf16.mxu0 0
          %9564 = vmatpush1.bf16.msra.mxu0 %v9170
          %9565 = vmatprep.subr.bf16.mxu0 0
          %9566 = vmatpush1.bf16.msra.mxu0 %v9173
          %9567 = vmatprep.subr.bf16.mxu0 0
          %9568 = vmatpush1.bf16.msra.mxu0 %v9176
          %9569 = vmatprep.subr.bf16.mxu0 0
          %9570 = vmatpush1.bf16.msra.mxu0 %v9179
          %9571 = vmatprep.subr.bf16.mxu0 0
          %9572 = vmatpush1.bf16.msra.mxu0 %v9182
          %9573 = vmatprep.subr.bf16.mxu0 0
          %9574 = vmatpush1.bf16.msra.mxu0 %v9185
          %9575 = vmatprep.subr.bf16.mxu0 0
          %9576 = vmatpush1.bf16.msra.mxu0 %v9188
          %9577 = vmatprep.subr.bf16.mxu0 0
          %9578 = vmatpush1.bf16.msra.mxu0 %v9191
          %9579 = vmatprep.subr.bf16.mxu0 0
          %9580 = vmatpush1.bf16.msra.mxu0 %v9194
          %9581 = vmatprep.subr.bf16.mxu0 0
          %9582 = vmatpush1.bf16.msra.mxu0 %v9197
          %9583 = vmatprep.subr.bf16.mxu0 0
          %9584 = vmatpush1.bf16.msra.mxu0 %v9200
          %9585 = vmatprep.subr.bf16.mxu0 0
          %9586 = vmatpush1.bf16.msra.mxu0 %v9203
          %9587 = vmatprep.subr.bf16.mxu0 0
          %9588 = vmatpush1.bf16.msra.mxu0 %v9206
          %9589 = vmatprep.subr.bf16.mxu0 0
          %9590 = vmatpush1.bf16.msra.mxu0 %v9209
          %9591 = vmatprep.subr.bf16.mxu0 0
          %9592 = vmatpush1.bf16.msra.mxu0 %v9212
          %9593 = vmatprep.subr.bf16.mxu0 0
          %9594 = vmatpush1.bf16.msra.mxu0 %v9215
          %9595 = vmatprep.mubr.bf16.mxu0 %v8575
          %9596 = vmatmul.mubr.bf16.gmra.mrb[0].mxu0 %v8574
          %v9597 = vpop.f32.mrb[0].mxu0
          %v9598 = vadd.f32 %v9558, %v9597
          %v9599 = vpop.f32.mrb[0].mxu0
          %v9600 = vpop.f32.mrb[0].mxu0
          %v9601 = vpop.f32.mrb[0].mxu0
          %9602 = vdwg.mxu0
          %v9603 = vmul.f32 %v9477, 0.5
          %v9604 = vmul.f32 %v9479, 0.5
          %v9605 = vmul.f32 %v9598, 0.5
          %v9606 = vmul.f32 %v9477, 0.044715
          %v9607 = vmul.f32 %v9479, 0.044715
          %v9608 = vmul.f32 %v9598, 0.044715
          %v9609 = vmul.f32 %v9606, %v9477
          %v9610 = vmul.f32 %v9607, %v9479
          %v9611 = vmul.f32 %v9608, %v9598
          %v9612 = vmul.f32 %v9609, %v9477
          %v9613 = vmul.f32 %v9610, %v9479
          %v9614 = vmul.f32 %v9611, %v9598
          %v9615 = vadd.f32 %v9477, %v9612
          %v9616 = vadd.f32 %v9479, %v9613
          %v9617 = vadd.f32 %v9598, %v9614
          %v9618 = vmul.f32 %v9615, 0.7978846
          %v9619 = vmul.f32 %v9616, 0.7978846
          %v9620 = vmul.f32 %v9617, 0.7978846
          %v9621 = vtanh.pop %v9618
          %v9622 = vtanh.pop %v9619
          %v9623 = vtanh.pop %v9620
          %v9624 = vadd.f32 %v9621, 1.0
          %v9625 = vadd.f32 %v9622, 1.0
          %v9626 = vadd.f32 %v9623, 1.0
          %v9627 = vmul.f32 %v9603, %v9624
          %v9628 = vmul.f32 %v9604, %v9625
          %v9629 = vmul.f32 %v9605, %v9626
          %v9630 = vld [vmem:[%s55] sm:$0x7]
          %v9631 = vld [vmem:[%s57] sm:$0x7]
          %v9632 = vadd.f32 %v9627, %v9628
          %v9633 = vadd.f32 %v9632, %v9629
          %9634 = vadd.xlane.f32.xlu0 %v9633
          %v9635 = vpop.xlane.xlu0 %9634
          %v9636 = vrcp.pop 384.0
          %v9637 = vmul.f32 %v9635, %v9636
          %v9638 = vsub.f32 %v9627, %v9637
          %v9639 = vsub.f32 %v9628, %v9637
          %v9640 = vsub.f32 %v9629, %v9637
          %v9641 = vmul.f32 %v9638, %v9638
          %v9642 = vmul.f32 %v9639, %v9639
          %v9643 = vmul.f32 %v9640, %v9640
          %v9644 = vadd.f32 %v9641, %v9642
          %v9645 = vadd.f32 %v9644, %v9643
          %9646 = vadd.xlane.f32.xlu0 %v9645
          %v9647 = vpop.xlane.xlu0 %9646
          %v9648 = vmul.f32 %v9647, %v9636
          %v9649 = vadd.f32 %v9648, 1e-05
          %v9650 = vrsqrt.pop %v9649
          %v9651 = vmul.f32 %v9638, %v9650
          %v9652 = vmul.f32 %v9639, %v9650
          %v9653 = vmul.f32 %v9640, %v9650
          %v9655 = vlaneseq
          %v9656 = vshrl.u32 %v9655, 7
          %v9657 = vsub.s32 0, %v9656
          %v9658 = vrot.slane %v9630, %v9657
          %v9659 = vlaneseq
          %v9660 = vshrl.u32 %v9659, 7
          %v9661 = vsub.s32 1, %v9660
          %v9662 = vrot.slane %v9630, %v9661
          %v9663 = vlaneseq
          %v9664 = vshrl.u32 %v9663, 7
          %v9665 = vsub.s32 2, %v9664
          %v9666 = vrot.slane %v9630, %v9665
          %v9670 = vmul.f32 %v9651, %v9658
          %v9671 = vmul.f32 %v9652, %v9662
          %v9672 = vmul.f32 %v9653, %v9666
          %v9674 = vlaneseq
          %v9675 = vshrl.u32 %v9674, 7
          %v9676 = vsub.s32 0, %v9675
          %v9677 = vrot.slane %v9631, %v9676
          %v9678 = vlaneseq
          %v9679 = vshrl.u32 %v9678, 7
          %v9680 = vsub.s32 1, %v9679
          %v9681 = vrot.slane %v9631, %v9680
          %v9682 = vlaneseq
          %v9683 = vshrl.u32 %v9682, 7
          %v9684 = vsub.s32 2, %v9683
          %v9685 = vrot.slane %v9631, %v9684
          %v9689 = vadd.f32 %v9670, %v9677
          %v9690 = vadd.f32 %v9671, %v9681
          %v9691 = vadd.f32 %v9672, %v9685
          %v9692 = vld [vmem:[%s59] sm:$0xf]
          %v9693 = vld [vmem:[%s59 + $0x4] sm:$0xf]
          %v9694 = vld [vmem:[%s59 + $0x8] sm:$0xf]
          %v9695 = vld [vmem:[%s59 + $0xc] sm:$0xf]
          %v9696 = vld [vmem:[%s59 + $0x10] sm:$0xf]
          %v9697 = vld [vmem:[%s59 + $0x14] sm:$0xf]
          %v9698 = vld [vmem:[%s59 + $0x18] sm:$0xf]
          %v9699 = vld [vmem:[%s59 + $0x1c] sm:$0xf]
          %v9700 = vld [vmem:[%s59 + $0x20] sm:$0xf]
          %v9701 = vld [vmem:[%s59 + $0x24] sm:$0xf]
          %v9702 = vld [vmem:[%s59 + $0x28] sm:$0xf]
          %v9703 = vld [vmem:[%s59 + $0x2c] sm:$0xf]
          %v9704 = vld [vmem:[%s59 + $0x30] sm:$0xf]
          %v9705 = vld [vmem:[%s59 + $0x34] sm:$0xf]
          %v9706 = vld [vmem:[%s59 + $0x38] sm:$0xf]
          %v9707 = vld [vmem:[%s59 + $0x3c] sm:$0xf]
          %v9708 = vld [vmem:[%s59 + $0x40] sm:$0xf]
          %v9709 = vld [vmem:[%s59 + $0x44] sm:$0xf]
          %v9710 = vld [vmem:[%s59 + $0x48] sm:$0xf]
          %v9711 = vld [vmem:[%s59 + $0x4c] sm:$0xf]
          %v9712 = vld [vmem:[%s59 + $0x50] sm:$0xf]
          %v9713 = vld [vmem:[%s59 + $0x54] sm:$0xf]
          %v9714 = vld [vmem:[%s59 + $0x58] sm:$0xf]
          %v9715 = vld [vmem:[%s59 + $0x5c] sm:$0xf]
          %v9716 = vld [vmem:[%s59 + $0x60] sm:$0xf]
          %v9717 = vld [vmem:[%s59 + $0x64] sm:$0xf]
          %v9718 = vld [vmem:[%s59 + $0x68] sm:$0xf]
          %v9719 = vld [vmem:[%s59 + $0x6c] sm:$0xf]
          %v9720 = vld [vmem:[%s59 + $0x70] sm:$0xf]
          %v9721 = vld [vmem:[%s59 + $0x74] sm:$0xf]
          %v9722 = vld [vmem:[%s59 + $0x78] sm:$0xf]
          %v9723 = vld [vmem:[%s59 + $0x7c] sm:$0xf]
          %v9724 = vld [vmem:[%s59 + $0x80] sm:$0xf]
          %v9725 = vld [vmem:[%s59 + $0x84] sm:$0xf]
          %v9726 = vld [vmem:[%s59 + $0x88] sm:$0xf]
          %v9727 = vld [vmem:[%s59 + $0x8c] sm:$0xf]
          %v9728 = vld [vmem:[%s59 + $0x90] sm:$0xf]
          %v9729 = vld [vmem:[%s59 + $0x94] sm:$0xf]
          %v9730 = vld [vmem:[%s59 + $0x98] sm:$0xf]
          %v9731 = vld [vmem:[%s59 + $0x9c] sm:$0xf]
          %v9732 = vld [vmem:[%s59 + $0xa0] sm:$0xf]
          %v9733 = vld [vmem:[%s59 + $0xa4] sm:$0xf]
          %v9734 = vld [vmem:[%s59 + $0xa8] sm:$0xf]
          %v9735 = vld [vmem:[%s59 + $0xac] sm:$0xf]
          %v9736 = vld [vmem:[%s59 + $0xb0] sm:$0xf]
          %v9737 = vld [vmem:[%s59 + $0xb4] sm:$0xf]
          %v9738 = vld [vmem:[%s59 + $0xb8] sm:$0xf]
          %v9739 = vld [vmem:[%s59 + $0xbc] sm:$0xf]
          %v9740 = vld [vmem:[%s61] sm:$0x1]
          %v9741 = vpack.c.bf16 %v9689, %v9689
          %v9742 = vpack.c.bf16 %v9690, %v9690
          %v9743 = vpack.c.bf16 %v9691, %v9691
          %v9745 = vlaneseq
          %v9746 = vshrl.u32 %v9745, 7
          %v9747 = vsub.s32 0, %v9746
          %v9748 = vrot.slane %v9740, %v9747
          %v9798 = vunpack.c.l.b16 %v9692
          %v9799 = vunpack.c.l.b16 %v9693
          %v9800 = vunpack.c.l.b16 %v9694
          %v9801 = vunpack.c.l.b16 %v9695
          %v9802 = vunpack.c.l.b16 %v9696
          %v9803 = vunpack.c.l.b16 %v9697
          %v9804 = vunpack.c.l.b16 %v9698
          %v9805 = vunpack.c.l.b16 %v9699
          %v9806 = vunpack.c.l.b16 %v9700
          %v9807 = vunpack.c.l.b16 %v9701
          %v9808 = vunpack.c.l.b16 %v9702
          %v9809 = vunpack.c.l.b16 %v9703
          %v9810 = vunpack.c.l.b16 %v9704
          %v9811 = vunpack.c.l.b16 %v9705
          %v9812 = vunpack.c.l.b16 %v9706
          %v9813 = vunpack.c.l.b16 %v9707
          %v9814 = vunpack.c.l.b16 %v9708
          %v9815 = vunpack.c.l.b16 %v9709
          %v9816 = vunpack.c.l.b16 %v9710
          %v9817 = vunpack.c.l.b16 %v9711
          %v9818 = vunpack.c.l.b16 %v9712
          %v9819 = vunpack.c.l.b16 %v9713
          %v9820 = vunpack.c.l.b16 %v9714
          %v9821 = vunpack.c.l.b16 %v9715
          %v9822 = vunpack.c.l.b16 %v9716
          %v9823 = vunpack.c.l.b16 %v9717
          %v9824 = vunpack.c.l.b16 %v9718
          %v9825 = vunpack.c.l.b16 %v9719
          %v9826 = vunpack.c.l.b16 %v9720
          %v9827 = vunpack.c.l.b16 %v9721
          %v9828 = vunpack.c.l.b16 %v9722
          %v9829 = vunpack.c.l.b16 %v9723
          %v9830 = vunpack.c.l.b16 %v9724
          %v9831 = vunpack.c.l.b16 %v9725
          %v9832 = vunpack.c.l.b16 %v9726
          %v9833 = vunpack.c.l.b16 %v9727
          %v9834 = vunpack.c.l.b16 %v9728
          %v9835 = vunpack.c.l.b16 %v9729
          %v9836 = vunpack.c.l.b16 %v9730
          %v9837 = vunpack.c.l.b16 %v9731
          %v9838 = vunpack.c.l.b16 %v9732
          %v9839 = vunpack.c.l.b16 %v9733
          %v9840 = vunpack.c.l.b16 %v9734
          %v9841 = vunpack.c.l.b16 %v9735
          %v9842 = vunpack.c.l.b16 %v9736
          %v9843 = vunpack.c.l.b16 %v9737
          %v9844 = vunpack.c.l.b16 %v9738
          %v9845 = vunpack.c.l.b16 %v9739
          %v9846 = vpack.c.b16 %v9799, %v9798
          %v9847 = vpack.c.b16 %v9801, %v9800
          %v9848 = vpack.c.b16 %v9803, %v9802
          %v9849 = vpack.c.b16 %v9805, %v9804
          %v9850 = vpack.c.b16 %v9807, %v9806
          %v9851 = vpack.c.b16 %v9809, %v9808
          %v9852 = vpack.c.b16 %v9811, %v9810
          %v9853 = vpack.c.b16 %v9813, %v9812
          %v9854 = vpack.c.b16 %v9815, %v9814
          %v9855 = vpack.c.b16 %v9817, %v9816
          %v9856 = vpack.c.b16 %v9819, %v9818
          %v9857 = vpack.c.b16 %v9821, %v9820
          %v9858 = vpack.c.b16 %v9823, %v9822
          %v9859 = vpack.c.b16 %v9825, %v9824
          %v9860 = vpack.c.b16 %v9827, %v9826
          %v9861 = vpack.c.b16 %v9829, %v9828
          %v9862 = vpack.c.b16 %v9831, %v9830
          %v9863 = vpack.c.b16 %v9833, %v9832
          %v9864 = vpack.c.b16 %v9835, %v9834
          %v9865 = vpack.c.b16 %v9837, %v9836
          %v9866 = vpack.c.b16 %v9839, %v9838
          %v9867 = vpack.c.b16 %v9841, %v9840
          %v9868 = vpack.c.b16 %v9843, %v9842
          %v9869 = vpack.c.b16 %v9845, %v9844
          %9894 = vmatprep.subr.bf16.mxu0 0
          %9895 = vmatpush1.bf16.msra.mxu0 %v9846
          %9896 = vmatprep.subr.bf16.mxu0 0
          %9897 = vmatpush1.bf16.msra.mxu0 %v9847
          %9898 = vmatprep.subr.bf16.mxu0 0
          %9899 = vmatpush1.bf16.msra.mxu0 %v9848
          %9900 = vmatprep.subr.bf16.mxu0 0
          %9901 = vmatpush1.bf16.msra.mxu0 %v9849
          %9902 = vmatprep.subr.bf16.mxu0 0
          %9903 = vmatpush1.bf16.msra.mxu0 %v9850
          %9904 = vmatprep.subr.bf16.mxu0 0
          %9905 = vmatpush1.bf16.msra.mxu0 %v9851
          %9906 = vmatprep.subr.bf16.mxu0 0
          %9907 = vmatpush1.bf16.msra.mxu0 %v9852
          %9908 = vmatprep.subr.bf16.mxu0 0
          %9909 = vmatpush1.bf16.msra.mxu0 %v9853
          %9910 = vmatprep.subr.bf16.mxu0 0
          %9911 = vmatpush1.bf16.msra.mxu0 %v9854
          %9912 = vmatprep.subr.bf16.mxu0 0
          %9913 = vmatpush1.bf16.msra.mxu0 %v9855
          %9914 = vmatprep.subr.bf16.mxu0 0
          %9915 = vmatpush1.bf16.msra.mxu0 %v9856
          %9916 = vmatprep.subr.bf16.mxu0 0
          %9917 = vmatpush1.bf16.msra.mxu0 %v9857
          %9918 = vmatprep.subr.bf16.mxu0 0
          %9919 = vmatpush1.bf16.msra.mxu0 %v9858
          %9920 = vmatprep.subr.bf16.mxu0 0
          %9921 = vmatpush1.bf16.msra.mxu0 %v9859
          %9922 = vmatprep.subr.bf16.mxu0 0
          %9923 = vmatpush1.bf16.msra.mxu0 %v9860
          %9924 = vmatprep.subr.bf16.mxu0 0
          %9925 = vmatpush1.bf16.msra.mxu0 %v9861
          %9926 = vmatprep.mubr.bf16.mxu0 %v9742
          %9927 = vmatmul.mubr.bf16.gmra.mrb[0].mxu0 %v9741
          %v9928 = vpop.f32.mrb[0].mxu0
          %v9929 = vadd.f32 %v9748, %v9928
          %v9930 = vpop.f32.mrb[0].mxu0
          %v9931 = vpop.f32.mrb[0].mxu0
          %v9932 = vpop.f32.mrb[0].mxu0
          %9933 = vdwg.mxu0
          %9934 = vmatprep.subr.bf16.mxu0 0
          %9935 = vmatpush1.bf16.msra.mxu0 %v9862
          %9936 = vmatprep.subr.bf16.mxu0 0
          %9937 = vmatpush1.bf16.msra.mxu0 %v9863
          %9938 = vmatprep.subr.bf16.mxu0 0
          %9939 = vmatpush1.bf16.msra.mxu0 %v9864
          %9940 = vmatprep.subr.bf16.mxu0 0
          %9941 = vmatpush1.bf16.msra.mxu0 %v9865
          %9942 = vmatprep.subr.bf16.mxu0 0
          %9943 = vmatpush1.bf16.msra.mxu0 %v9866
          %9944 = vmatprep.subr.bf16.mxu0 0
          %9945 = vmatpush1.bf16.msra.mxu0 %v9867
          %9946 = vmatprep.subr.bf16.mxu0 0
          %9947 = vmatpush1.bf16.msra.mxu0 %v9868
          %9948 = vmatprep.subr.bf16.mxu0 0
          %9949 = vmatpush1.bf16.msra.mxu0 %v9869
          %9950 = vmatprep.subr.bf16.mxu0 0
          %9951 = vmatpush1.bf16.msra.mxu0 0
          %9952 = vmatprep.subr.bf16.mxu0 0
          %9953 = vmatpush1.bf16.msra.mxu0 0
          %9954 = vmatprep.subr.bf16.mxu0 0
          %9955 = vmatpush1.bf16.msra.mxu0 0
          %9956 = vmatprep.subr.bf16.mxu0 0
          %9957 = vmatpush1.bf16.msra.mxu0 0
          %9958 = vmatprep.subr.bf16.mxu0 0
          %9959 = vmatpush1.bf16.msra.mxu0 0
          %9960 = vmatprep.subr.bf16.mxu0 0
          %9961 = vmatpush1.bf16.msra.mxu0 0
          %9962 = vmatprep.subr.bf16.mxu0 0
          %9963 = vmatpush1.bf16.msra.mxu0 0
          %9964 = vmatprep.subr.bf16.mxu0 0
          %9965 = vmatpush1.bf16.msra.mxu0 0
          %9966 = vmatprep.mubr.bf16.mxu0 0
          %9967 = vmatmul.mubr.bf16.gmra.mrb[0].mxu0 %v9743
          %v9968 = vpop.f32.mrb[0].mxu0
          %v9969 = vadd.f32 %v9929, %v9968
          %v9970 = vpop.f32.mrb[0].mxu0
          %v9971 = vpop.f32.mrb[0].mxu0
          %v9972 = vpop.f32.mrb[0].mxu0
          %9973 = vdwg.mxu0
          %v9974 = vsub.f32 0.0, %v9969
          %v9975 = vmul.f32 %v9974, 1.442695
          %v9976 = vpow.pop %v9975
          %v9977 = vadd.f32 %v9976, 1.0
          %v9978 = vrcp.pop %v9977
          %v9979 = vmul.f32 1.0, %v9978
          %9981 = vrot.lane.b32.xlu0 %v9979, 127
          %v9982 = vpop.permute.xlu0 %9981
          %vm9984 = vcmask 7168
          %9985 = vst.msk [vmem:[%s1457] sm:$0xff] %vm9984, %v9982
        $region220: #{tpu_custom_call.1} parent=143 // pred_fallthru
          _
        %p9986 = scmp.lt.s32.totalorder %s101, 1
        %s9987 = scalar_select %p9986, %s101, 1
        %s9988 = smul.addr %s9987, 8
        %s9989 = scalar_lea.vmem %s63, %s9988
        // Predicated region
        $region221: #{tpu_custom_call.1} parent=143 // pred_check
          %p9990 = pneg %p843
        $region222: #{tpu_custom_call.1} parent=143 // pred_check_branch
          %9992 = sbr.rel (%p9990) target = $region224
        $region223: #{tpu_custom_call.1} parent=143 // pred_region
          _
        $region224: #{tpu_custom_call.1} parent=143 // pred_fallthru
          _
      $region144: #{tpu_custom_call.1} parent=5 // pred_fallthru
        _
      %p9993 = scmp.le.s32.totalorder 2, %s92
      // Predicated region
      $region225: #{tpu_custom_call.1} parent=5 // pred_check
        %p9994 = pneg %p9993
      $region226: #{tpu_custom_call.1} parent=5 // pred_check_branch
        %9996 = sbr.rel (%p9994) target = $region228
      $region227: #{tpu_custom_call.1} parent=5 // pred_region
        %s9997 = ssub.s32 %s92, 2
        // Predicated region
        $region229: #{tpu_custom_call.1} parent=227 // pred_check
          %p9998 = pneg %p849
        $region230: #{tpu_custom_call.1} parent=227 // pred_check_branch
          %10000 = sbr.rel (%p9998) target = $region232
        $region231: #{tpu_custom_call.1} parent=227 // pred_region
          %p10001 = scmp.lt.s32.totalorder %s103, 1
          %s10002 = scalar_select %p10001, %s103, 1
          %s10003 = smul.addr %s10002, 8
          %s10004 = scalar_lea.vmem %s63, %s10003
        $region232: #{tpu_custom_call.1} parent=227 // pred_fallthru
          _
      $region228: #{tpu_custom_call.1} parent=5 // pred_fallthru
        _
    $region6: #{tpu_custom_call.1} parent=1 // loop_footer
      %s96 = sadd.s32 1, %s92
    $region7: #{tpu_custom_call.1} parent=1 // loop_footer_branch
      %91 = sbr.rel target = $region3
    $region8: #{tpu_custom_call.1} parent=1 // loop_exit
      _
    %10005 = vsyncpa [#allocation5], 1
    %s10006 = scalar_lea.sflag [#allocation5], 1
    %10007 = vsyncpa %s10006, 1
    %10008 = vsyncpa [#allocation7], 1
    %s10009 = scalar_lea.sflag [#allocation7], 1
    %10010 = vsyncpa %s10009, 1
    %10011 = vsyncpa [#allocation10], 1
    %10012 = vsyncpa [#allocation13], 1
    %s10013 = scalar_lea.sflag [#allocation13], 1
    %10014 = vsyncpa %s10013, 1
    %10015 = vsyncpa [#allocation16], 1
    %s10016 = scalar_lea.sflag [#allocation16], 1
    %10017 = vsyncpa %s10016, 1
    %10018 = vsyncpa [#allocation19], 1
    %s10019 = scalar_lea.sflag [#allocation19], 1
    %10020 = vsyncpa %s10019, 1
    %10021 = vsyncpa [#allocation22], 1
    %s10022 = scalar_lea.sflag [#allocation22], 1
    %10023 = vsyncpa %s10022, 1
    %10024 = vsyncpa [#allocation25], 1
    %s10025 = scalar_lea.sflag [#allocation25], 1
    %10026 = vsyncpa %s10025, 1
    %10027 = vsyncpa [#allocation28], 1

</llo_original>
